<compile_context>
chip_gen: v6e
topology: v6e:2x2x1
jax: 0.10.0
libtpu: 0.0.40
codegen_flags: <defaults>
</compile_context>

<pallas_src>
import functools

import jax
import jax.numpy as jnp
from jax import lax
from jax.experimental import pallas as pl
from jax.experimental.pallas import tpu as pltpu

LANE = 128          # lane width (last dim padding target)
SUBLANE = 8         # sublane width (batch padding target)
NEG = -1e30         # pad value for fc bias so padded vocab never wins argmax
VMEM_LIMIT = 32 * 1024 * 1024


def _round_up(x, m):
    return ((x + m - 1) // m) * m


def _pad_to(a, shape, value=0.0):
    pads = [(0, s - d) for d, s in zip(a.shape, shape)]
    return jnp.pad(a, pads, constant_values=value)


def _gate_pad_w(w, kp, hp):
    """Pad a GRU weight (K, 3H) -> (kp, 3hp) keeping per-gate blocks 128-aligned."""
    k, h3 = w.shape
    h = h3 // 3
    w3 = w.reshape(k, 3, h)
    w3 = jnp.pad(w3, ((0, kp - k), (0, 0), (0, hp - h)))
    return w3.reshape(kp, 3 * hp)


def _gate_pad_b(b, hp):
    h = b.shape[-1] // 3
    b3 = b.reshape(1, 3, h)
    b3 = jnp.pad(b3, ((0, 0), (0, 0), (0, hp - h)))
    return b3.reshape(1, 3 * hp)


def _full_spec(a):
    # whole-array, loop-invariant block (constant index map => fetched once)
    return pl.BlockSpec(a.shape, lambda c, _nd=a.ndim: (0,) * _nd)


# ----------------------------- Pallas kernels ------------------------------ #

def _linear_kernel(x_ref, w_ref, b_ref, out_ref):
    out_ref[...] = jnp.dot(x_ref[...], w_ref[...],
                           preferred_element_type=jnp.float32) + b_ref[...]


def _encoder_kernel(sz_ref, gi_ref, whh_ref, bhh_ref, enc_out_ref, h_out_ref, h_scr):
    """A chunk of GRU timesteps per grid iteration; hidden carried in VMEM scratch.

    gi_ref already contains Embed(src) @ W_ih + b_ih (hoisted batched matmul),
    so the serial critical path is only h @ W_hh plus elementwise gates.
    pack_padded semantics: outputs zeroed and hidden frozen past src_sz.
    """
    c = pl.program_id(0)
    tc = gi_ref.shape[0]
    hp = whh_ref.shape[0]

    @pl.when(c == 0)
    def _():
        h_scr[...] = jnp.zeros_like(h_scr)

    whh = whh_ref[...]
    bhh = bhh_ref[...]
    sz = sz_ref[...]                                 # (B, 1) int32
    t0 = c * tc

    def step(i, h):
        gi = gi_ref[i]                               # (B, 3Hp)  (precomputed)
        gh = jnp.dot(h, whh, preferred_element_type=jnp.float32) + bhh
        r = jax.nn.sigmoid(gi[:, 0:hp] + gh[:, 0:hp])
        z = jax.nn.sigmoid(gi[:, hp:2 * hp] + gh[:, hp:2 * hp])
        n = jnp.tanh(gi[:, 2 * hp:3 * hp] + r * gh[:, 2 * hp:3 * hp])
        h_new = (1.0 - z) * n + z * h
        valid = (t0 + i < sz).astype(jnp.float32)    # (B, 1)
        enc_out_ref[i] = valid * h_new               # outputs zero past src_sz
        return valid * h_new + (1.0 - valid) * h     # hidden frozen past src_sz

    h_last = lax.fori_loop(0, tc, step, h_scr[...], unroll=True)
    h_scr[...] = h_last

    @pl.when(c == pl.num_programs(0) - 1)
    def _():
        h_out_ref[...] = h_last                      # final hidden, stored once


def _decoder_kernel(enc_ref, a1_ref, w2_ref, b2_ref, v_ref, bv_ref, emb_ref,
                    wih_ref, whh_ref, bih_ref, bhh_ref, fcw_ref, fcb_ref,
                    h0_ref, x0_ref, pred_ref, h_scr, xin_scr):
    """A chunk of full decode steps per grid iteration: attention + GRU + fc + greedy feedback."""
    c = pl.program_id(0)
    tc = pred_ref.shape[0]
    hp = whh_ref.shape[0]                            # hidden dim == enc_outstate dim
    mp = x0_ref.shape[1]                             # embedding dim
    ep = hp

    @pl.when(c == 0)
    def _():
        h_scr[...] = h0_ref[...]                     # pass_enc2dec_hid=True
        xin_scr[:, ep:ep + mp] = x0_ref[...]         # Embed(tgt[:, 0])

    enc = enc_ref[...]
    a1 = a1_ref[...]
    w2 = w2_ref[...]
    b2 = b2_ref[...]
    v = v_ref[...]
    bv = bv_ref[...]
    emb = emb_ref[...]
    wih = wih_ref[...]
    whh = whh_ref[...]
    bih = bih_ref[...]
    bhh = bhh_ref[...]
    fcw = fcw_ref[...]
    fcb = fcb_ref[...]
    vp = fcw.shape[1]

    def step(i, h):
        # --- Bahdanau additive attention (a1 = enc @ W1 + b1 is precomputed) ---
        a2 = jnp.dot(h, w2, preferred_element_type=jnp.float32) + b2
        att = jnp.tanh(a1 + a2[:, None, :])                          # (B, S, Hp)
        score = jnp.sum(att * v[None, :, :], axis=-1) + bv           # (B, S)
        score = score - jnp.max(score, axis=1, keepdims=True)
        e = jnp.exp(score)
        wgt = e * pl.reciprocal(jnp.sum(e, axis=1, keepdims=True), approx=True)
        ctx = jnp.sum(wgt[:, :, None] * enc, axis=1)                 # (B, Ep)

        # --- GRU cell on cat(ctx, x_emb): one fused K=(Ep+Mp) matmul ---
        xin_scr[:, 0:ep] = ctx                                       # x_emb already in cols Ep:
        gi = jnp.dot(xin_scr[...], wih, preferred_element_type=jnp.float32) + bih
        gh = jnp.dot(h, whh, preferred_element_type=jnp.float32) + bhh
        r = jax.nn.sigmoid(gi[:, 0:hp] + gh[:, 0:hp])
        z = jax.nn.sigmoid(gi[:, hp:2 * hp] + gh[:, hp:2 * hp])
        n = jnp.tanh(gi[:, 2 * hp:3 * hp] + r * gh[:, 2 * hp:3 * hp])
        h_new = (1.0 - z) * n + z * h

        # --- output projection: lane-dense (B, Vp) logits row per step ---
        logits = jnp.dot(h_new, fcw, preferred_element_type=jnp.float32) + fcb
        pred_ref[i] = logits

        # --- greedy feedback in-kernel: f32 argmax (lowest-index tie-break)
        #     + embedding lookup via one-hot matmul (padded vocab never wins:
        #     its bias is -1e30).  TODO(synk): for large vocabularies replace
        #     with a scalar-index DMA gather of dec_emb kept in HBM.
        iota = lax.broadcasted_iota(jnp.int32, logits.shape, 1)
        mx = jnp.max(logits, axis=1, keepdims=True)
        first = jnp.min(jnp.where(logits == mx, iota, vp), axis=1, keepdims=True)
        onehot = (iota == first).astype(jnp.float32)
        xin_scr[:, ep:ep + mp] = jnp.dot(onehot, emb,
                                         preferred_element_type=jnp.float32)
        return h_new

    h_last = lax.fori_loop(0, tc, step, h_scr[...], unroll=True)
    h_scr[...] = h_last


# ------------------------------ kernel wrappers ---------------------------- #

def linear_rows(x, w, b, tm=512):
    """Row-tiled x @ w + b with lane-dense output and a "parallel" grid axis."""
    r, k = x.shape
    n = w.shape[1]
    rp = _round_up(r, SUBLANE)
    tm = min(tm, rp)
    rp = _round_up(rp, tm)
    if rp != r:
        x = jnp.pad(x, ((0, rp - r), (0, 0)))
    out = pl.pallas_call(
        _linear_kernel,
        out_shape=jax.ShapeDtypeStruct((rp, n), jnp.float32),
        grid=(rp // tm,),
        in_specs=[pl.BlockSpec((tm, k), lambda i: (i, 0)),
                  pl.BlockSpec((k, n), lambda i: (0, 0)),
                  pl.BlockSpec((1, n), lambda i: (0, 0))],
        out_specs=pl.BlockSpec((tm, n), lambda i: (i, 0)),
        compiler_params=pltpu.CompilerParams(
            dimension_semantics=("parallel",),
            vmem_limit_bytes=VMEM_LIMIT),
    )(x, w, b)
    return out[:r]


def encoder_run(gi, sz, whh, bhh, chunk):
    """Fused encoder recurrence: grid=(S_pad//chunk,), hidden in VMEM scratch."""
    s_pad, bp, h3 = gi.shape
    hp = whh.shape[0]
    return pl.pallas_call(
        _encoder_kernel,
        out_shape=(jax.ShapeDtypeStruct((s_pad, bp, hp), jnp.float32),
                   jax.ShapeDtypeStruct((bp, hp), jnp.float32)),
        grid=(s_pad // chunk,),
        in_specs=[pl.BlockSpec((bp, 1), lambda c: (0, 0)),
                  pl.BlockSpec((chunk, bp, h3), lambda c: (c, 0, 0)),
                  pl.BlockSpec((hp, h3), lambda c: (0, 0)),
                  pl.BlockSpec((1, h3), lambda c: (0, 0))],
        out_specs=(pl.BlockSpec((chunk, bp, hp), lambda c: (c, 0, 0)),
                   pl.BlockSpec((bp, hp), lambda c: (0, 0))),
        scratch_shapes=[pltpu.VMEM((bp, hp), jnp.float32)],
        compiler_params=pltpu.CompilerParams(
            dimension_semantics=("arbitrary",),
            vmem_limit_bytes=VMEM_LIMIT),
    )(sz, gi, whh, bhh)


def decoder_run(enc_output, a1, h0, x0_emb, params, t_pad, chunk):
    """Fused greedy decode loop: grid=(t_pad//chunk,), weights VMEM-resident, state in scratch."""
    bp, s, hp = enc_output.shape
    mp = x0_emb.shape[1]
    vp = params["fc_w"].shape[1]
    ins = [enc_output, a1, params["att_w2"], params["att_b2"], params["att_v"],
           params["att_bv"], params["dec_emb"], params["dec_wih"], params["dec_whh"],
           params["dec_bih"], params["dec_bhh"], params["fc_w"], params["fc_b"],
           h0, x0_emb]
    return pl.pallas_call(
        _decoder_kernel,
        out_shape=jax.ShapeDtypeStruct((t_pad, bp, vp), jnp.float32),
        grid=(t_pad // chunk,),
        in_specs=[_full_spec(a) for a in ins],
        out_specs=pl.BlockSpec((chunk, bp, vp), lambda c: (c, 0, 0)),
        scratch_shapes=[pltpu.VMEM((bp, hp), jnp.float32),
                        pltpu.VMEM((bp, hp + mp), jnp.float32)],
        compiler_params=pltpu.CompilerParams(
            dimension_semantics=("arbitrary",),
            vmem_limit_bytes=VMEM_LIMIT),
    )(*ins)


# ------------------------------ parameters --------------------------------- #

def init_params(key, vocab_in, vocab_out, emb_dim, hid_dim):
    """Logical-size init, then zero-pad every feature dim to a multiple of 128.

    Padded weight rows/cols are zero (bias -1e30 only for padded fc columns),
    so padded hidden/embedding columns stay exactly zero through the whole
    recurrence and real outputs equal the unpadded computation.
    """
    mp = _round_up(emb_dim, LANE)
    hp = _round_up(hid_dim, LANE)
    vp = _round_up(vocab_out, LANE)
    ep = hp                       # enc_outstate_dim = enc_directions * enc_hidden_dim

    ks = jax.random.split(key, 18)
    s = 1.0 / jnp.sqrt(jnp.float32(hid_dim))

    def u(k, shape):
        return jax.random.uniform(k, shape, jnp.float32, -s, s)

    dec_wih_log = u(ks[12], (hid_dim + emb_dim, 3 * hid_dim))
    dec_wih = jnp.concatenate(
        [_gate_pad_w(dec_wih_log[:hid_dim], ep, hp),     # ctx rows
         _gate_pad_w(dec_wih_log[hid_dim:], mp, hp)],    # x_emb rows
        axis=0)

    return dict(
        enc_emb=_pad_to(u(ks[0], (vocab_in, emb_dim)), (vocab_in, mp)),
        enc_wih=_gate_pad_w(u(ks[1], (emb_dim, 3 * hid_dim)), mp, hp),
        enc_whh=_gate_pad_w(u(ks[2], (hid_dim, 3 * hid_dim)), hp, hp),
        enc_bih=_gate_pad_b(u(ks[3], (1, 3 * hid_dim)), hp),
        enc_bhh=_gate_pad_b(u(ks[4], (1, 3 * hid_dim)), hp),
        dec_emb=_pad_to(u(ks[5], (vocab_out, emb_dim)), (vp, mp)),
        att_w1=_pad_to(u(ks[6], (hid_dim, hid_dim)), (ep, hp)),
        att_b1=_pad_to(u(ks[7], (1, hid_dim)), (1, hp)),
        att_w2=_pad_to(u(ks[8], (hid_dim, hid_dim)), (hp, hp)),
        att_b2=_pad_to(u(ks[9], (1, hid_dim)), (1, hp)),
        att_v=_pad_to(u(ks[10], (1, hid_dim)), (1, hp)),
        att_bv=u(ks[11], (1, 1)),
        dec_wih=dec_wih,
        dec_whh=_gate_pad_w(u(ks[13], (hid_dim, 3 * hid_dim)), hp, hp),
        dec_bih=_gate_pad_b(u(ks[14], (1, 3 * hid_dim)), hp),
        dec_bhh=_gate_pad_b(u(ks[15], (1, 3 * hid_dim)), hp),
        fc_w=_pad_to(u(ks[16], (hid_dim, vocab_out)), (hp, vp)),
        fc_b=_pad_to(u(ks[17], (1, vocab_out)), (1, vp), value=NEG),
    )


# ------------------------------ forward pass ------------------------------- #

def seq2seq_forward(params, src, tgt, src_sz, *, out_dim,
                    enc_chunk=8, dec_chunk=8):
    """Equivalent of Seq2Seq.forward with teacher_forcing_ratio=0 (greedy)."""
    b, s = src.shape
    t = tgt.shape[1]
    hp = params["enc_whh"].shape[0]
    mp = params["enc_emb"].shape[1]
    vp = params["fc_w"].shape[1]

    # ---- batch / time padding (sublane-dense batch, chunk-aligned time) ----
    bp = _round_up(max(b, SUBLANE), SUBLANE)
    ec = max(1, min(enc_chunk, s))
    s_pad = _round_up(s, ec)
    src_p = jnp.pad(src, ((0, bp - b), (0, s_pad - s)))
    tgt_p = jnp.pad(tgt, ((0, bp - b), (0, 0)))
    sz_p = jnp.pad(src_sz.reshape(-1).astype(jnp.int32), (0, bp - b)).reshape(bp, 1)

    # ---- one-time precompute (hoisted out of the serial recurrences) ----
    src_emb = params["enc_emb"][src_p]                           # (Bp, S_pad, Mp) gather
    src_emb_t = jnp.transpose(src_emb, (1, 0, 2))                # (S_pad, Bp, Mp)
    gi_enc = linear_rows(src_emb_t.reshape(s_pad * bp, mp),
                         params["enc_wih"], params["enc_bih"]).reshape(s_pad, bp, 3 * hp)

    # ---- Encoder (fused recurrence, pack_padded semantics via in-kernel mask) ----
    enc_out_sbh, h_final = encoder_run(gi_enc, sz_p, params["enc_whh"],
                                       params["enc_bhh"], ec)
    enc_output = jnp.transpose(enc_out_sbh[:s], (1, 0, 2))       # (Bp, S, Hp)

    # ---- loop-invariant attention projection, computed once ----
    a1 = linear_rows(enc_output.reshape(bp * s, hp),
                     params["att_w1"], params["att_b1"]).reshape(bp, s, hp)

    # ---- Decoder (fused greedy loop, teacher_forcing_ratio == 0) ----
    # TODO(synk): teacher forcing uses python random.random() per step; with
    # ratio=0 it is a no-op, so only the greedy path is implemented.
    steps = t - 1
    dc = max(1, min(dec_chunk, steps))
    t_pad = _round_up(steps, dc)
    x0_emb = params["dec_emb"][tgt_p[:, 0]]                      # (Bp, Mp)
    pred_full = decoder_run(enc_output, a1, h_final, x0_emb, params, t_pad, dc)
    pred_rest = pred_full[:steps, :b, :out_dim]                  # (T-1, B, V)

    col0 = jnp.zeros((1, b, out_dim), jnp.float32).at[:, :, 1].set(1.0)  # pred_vecs[:,1,0]=1
    pred = jnp.concatenate([col0, pred_rest], axis=0)            # (T, B, V)
    return jnp.transpose(pred, (1, 2, 0))                        # (B, output_dim, T)


# ---------------------------------- main ------------------------------------ #

if __name__ == "__main__":
    B, S, T = 2, 8, 8
    VOCAB_IN, VOCAB_OUT = 16, 16
    EMB, HID = 32, 32

    key = jax.random.PRNGKey(0)
    k_p, k_src, k_tgt = jax.random.split(key, 3)
    params = init_params(k_p, VOCAB_IN, VOCAB_OUT, EMB, HID)

    src = jax.random.randint(k_src, (B, S), 0, VOCAB_IN, dtype=jnp.int32)
    tgt = jax.random.randint(k_tgt, (B, T), 0, VOCAB_OUT, dtype=jnp.int32)
    src_sz = jnp.array([S, S - 3], dtype=jnp.int32)  # unpadded lengths

    fwd = jax.jit(functools.partial(seq2seq_forward, out_dim=VOCAB_OUT))
    pred_vecs = fwd(params, src, tgt, src_sz)
    jax.block_until_ready(pred_vecs)

    assert pred_vecs.shape == (B, VOCAB_OUT, T)
    assert bool(jnp.all(pred_vecs[:, 1, 0] == 1.0))
    assert bool(jnp.all(jnp.isfinite(pred_vecs)))
    print("KERNEL_OK")
</pallas_src>

<mosaic_0001>
module attributes {stable_mosaic.version = 11 : i64} {
  func.func @_linear_kernel(%arg0: i32, %arg1: memref<64x128xf32, #tpu.memory_space<vmem>>, %arg2: memref<128x384xf32, #tpu.memory_space<vmem>>, %arg3: memref<1x384xf32, #tpu.memory_space<vmem>>, %arg4: memref<64x384xf32, #tpu.memory_space<vmem>>) attributes {dimension_semantics = [#tpu.dimension_semantics<parallel>], iteration_bounds = array<i64: 1>, scalar_prefetch = 0 : i64, scratch_operands = 0 : i64, tpu.core_type = #tpu.core_type<tc>, window_params = [{transform_indices = @transform_0, window_bounds = array<i64: 64, 128>}, {pipeline_mode = #tpu.pipeline_mode<synchronous>, transform_indices = @transform_1, window_bounds = array<i64: 128, 384>}, {pipeline_mode = #tpu.pipeline_mode<synchronous>, transform_indices = @transform_2, window_bounds = array<i64: 1, 384>}, {transform_indices = @transform_3, window_bounds = array<i64: 64, 384>}]} {
    %c0 = arith.constant 0 : index
    %c0_0 = arith.constant 0 : index
    %0 = vector.load %arg1[%c0, %c0_0] : memref<64x128xf32, #tpu.memory_space<vmem>>, vector<64x128xf32>
    %c0_1 = arith.constant 0 : index
    %c0_2 = arith.constant 0 : index
    %1 = vector.load %arg2[%c0_1, %c0_2] : memref<128x384xf32, #tpu.memory_space<vmem>>, vector<128x384xf32>
    %cst = arith.constant dense<0.000000e+00> : vector<64x384xf32>
    %2 = tpu.matmul %0, %1, %cst {dimension_numbers = #tpu.dot_dimension_numbers<[1], [0], [0], [1], [0, 0, 1, 1], [], []>} : vector<64x128xf32>, vector<128x384xf32>, vector<64x384xf32> -> vector<64x384xf32>
    %c0_3 = arith.constant 0 : index
    %c0_4 = arith.constant 0 : index
    %3 = vector.load %arg3[%c0_3, %c0_4] : memref<1x384xf32, #tpu.memory_space<vmem>>, vector<1x384xf32>
    %4 = vector.broadcast %3 : vector<1x384xf32> to vector<64x384xf32>
    %5 = arith.addf %2, %4 : vector<64x384xf32>
    %c0_5 = arith.constant 0 : index
    %c0_6 = arith.constant 0 : index
    %6 = vector.load %arg4[%c0_5, %c0_6] : memref<64x384xf32, #tpu.memory_space<vmem>>, vector<64x384xf32>
    tpu.vector_store %arg4[%c0_5, %c0_6], %5 {strides = array<i32>} : memref<64x384xf32, #tpu.memory_space<vmem>>, vector<64x384xf32>,
    return
  }
  func.func @transform_0(%arg0: i32) -> (i32, i32) {
    %c0_i32 = arith.constant 0 : i32
    %c0_i32_0 = arith.constant 0 : i32
    return %arg0, %c0_i32 : i32, i32
  }
  func.func @transform_1(%arg0: i32) -> (i32, i32) {
    %c0_i32 = arith.constant 0 : i32
    %c0_i32_0 = arith.constant 0 : i32
    %c0_i32_1 = arith.constant 0 : i32
    return %c0_i32, %c0_i32_0 : i32, i32
  }
  func.func @transform_2(%arg0: i32) -> (i32, i32) {
    %c0_i32 = arith.constant 0 : i32
    %c0_i32_0 = arith.constant 0 : i32
    %c0_i32_1 = arith.constant 0 : i32
    return %c0_i32, %c0_i32_0 : i32, i32
  }
  func.func @transform_3(%arg0: i32) -> (i32, i32) {
    %c0_i32 = arith.constant 0 : i32
    %c0_i32_0 = arith.constant 0 : i32
    return %arg0, %c0_i32 : i32, i32
  }
}

module attributes {stable_mosaic.version = 11 : i64} {
  func.func @_linear_kernel(%arg0: i32, %arg1: memref<64x128xf32, #tpu.memory_space<vmem>>, %arg2: memref<128x128xf32, #tpu.memory_space<vmem>>, %arg3: memref<1x128xf32, #tpu.memory_space<vmem>>, %arg4: memref<64x128xf32, #tpu.memory_space<vmem>>) attributes {dimension_semantics = [#tpu.dimension_semantics<parallel>], iteration_bounds = array<i64: 1>, scalar_prefetch = 0 : i64, scratch_operands = 0 : i64, tpu.core_type = #tpu.core_type<tc>, window_params = [{transform_indices = @transform_0, window_bounds = array<i64: 64, 128>}, {pipeline_mode = #tpu.pipeline_mode<synchronous>, transform_indices = @transform_1, window_bounds = array<i64: 128, 128>}, {pipeline_mode = #tpu.pipeline_mode<synchronous>, transform_indices = @transform_2, window_bounds = array<i64: 1, 128>}, {transform_indices = @transform_3, window_bounds = array<i64: 64, 128>}]} {
    %c0 = arith.constant 0 : index
    %c0_0 = arith.constant 0 : index
    %0 = vector.load %arg1[%c0, %c0_0] : memref<64x128xf32, #tpu.memory_space<vmem>>, vector<64x128xf32>
    %c0_1 = arith.constant 0 : index
    %c0_2 = arith.constant 0 : index
    %1 = vector.load %arg2[%c0_1, %c0_2] : memref<128x128xf32, #tpu.memory_space<vmem>>, vector<128x128xf32>
    %cst = arith.constant dense<0.000000e+00> : vector<64x128xf32>
    %2 = tpu.matmul %0, %1, %cst {dimension_numbers = #tpu.dot_dimension_numbers<[1], [0], [0], [1], [0, 0, 1, 1], [], []>} : vector<64x128xf32>, vector<128x128xf32>, vector<64x128xf32> -> vector<64x128xf32>
    %c0_3 = arith.constant 0 : index
    %c0_4 = arith.constant 0 : index
    %3 = vector.load %arg3[%c0_3, %c0_4] : memref<1x128xf32, #tpu.memory_space<vmem>>, vector<1x128xf32>
    %4 = vector.broadcast %3 : vector<1x128xf32> to vector<64x128xf32>
    %5 = arith.addf %2, %4 : vector<64x128xf32>
    %c0_5 = arith.constant 0 : index
    %c0_6 = arith.constant 0 : index
    %6 = vector.load %arg4[%c0_5, %c0_6] : memref<64x128xf32, #tpu.memory_space<vmem>>, vector<64x128xf32>
    tpu.vector_store %arg4[%c0_5, %c0_6], %5 {strides = array<i32>} : memref<64x128xf32, #tpu.memory_space<vmem>>, vector<64x128xf32>,
    return
  }
  func.func @transform_0(%arg0: i32) -> (i32, i32) {
    %c0_i32 = arith.constant 0 : i32
    %c0_i32_0 = arith.constant 0 : i32
    return %arg0, %c0_i32 : i32, i32
  }
  func.func @transform_1(%arg0: i32) -> (i32, i32) {
    %c0_i32 = arith.constant 0 : i32
    %c0_i32_0 = arith.constant 0 : i32
    %c0_i32_1 = arith.constant 0 : i32
    return %c0_i32, %c0_i32_0 : i32, i32
  }
  func.func @transform_2(%arg0: i32) -> (i32, i32) {
    %c0_i32 = arith.constant 0 : i32
    %c0_i32_0 = arith.constant 0 : i32
    %c0_i32_1 = arith.constant 0 : i32
    return %c0_i32, %c0_i32_0 : i32, i32
  }
  func.func @transform_3(%arg0: i32) -> (i32, i32) {
    %c0_i32 = arith.constant 0 : i32
    %c0_i32_0 = arith.constant 0 : i32
    return %arg0, %c0_i32 : i32, i32
  }
}

module attributes {stable_mosaic.version = 11 : i64} {
  func.func @_encoder_kernel(%arg0: i32, %arg1: memref<8x1xi32, #tpu.memory_space<vmem>>, %arg2: memref<8x8x384xf32, #tpu.memory_space<vmem>>, %arg3: memref<128x384xf32, #tpu.memory_space<vmem>>, %arg4: memref<1x384xf32, #tpu.memory_space<vmem>>, %arg5: memref<8x8x128xf32, #tpu.memory_space<vmem>>, %arg6: memref<8x128xf32, #tpu.memory_space<vmem>>, %arg7: memref<8x128xf32, #tpu.memory_space<vmem>>) attributes {dimension_semantics = [#tpu.dimension_semantics<arbitrary>], iteration_bounds = array<i64: 1>, scalar_prefetch = 0 : i64, scratch_operands = 1 : i64, tpu.core_type = #tpu.core_type<tc>, window_params = [{pipeline_mode = #tpu.pipeline_mode<synchronous>, transform_indices = @transform_0, window_bounds = array<i64: 8, 1>}, {transform_indices = @transform_1, window_bounds = array<i64: 8, 8, 384>}, {pipeline_mode = #tpu.pipeline_mode<synchronous>, transform_indices = @transform_2, window_bounds = array<i64: 128, 384>}, {pipeline_mode = #tpu.pipeline_mode<synchronous>, transform_indices = @transform_3, window_bounds = array<i64: 1, 384>}, {transform_indices = @transform_4, window_bounds = array<i64: 8, 8, 128>}, {pipeline_mode = #tpu.pipeline_mode<synchronous>, transform_indices = @transform_5, window_bounds = array<i64: 8, 128>}]} {
    %c0_i32 = arith.constant 0 : i32
    %0 = arith.cmpi eq, %arg0, %c0_i32 : i32
    %1 = arith.extui %0 : i1 to i32
    %c0_i32_0 = arith.constant 0 : i32
    %2 = arith.cmpi ne, %1, %c0_i32_0 : i32
    scf.if %2 {
      %cst_85 = arith.constant 0.000000e+00 : f32
      %412 = vector.broadcast %cst_85 : f32 to vector<8x128xf32>
      %c0_86 = arith.constant 0 : index
      %c0_87 = arith.constant 0 : index
      %413 = vector.load %arg7[%c0_86, %c0_87] : memref<8x128xf32, #tpu.memory_space<vmem>>, vector<8x128xf32>
      tpu.vector_store %arg7[%c0_86, %c0_87], %412 {strides = array<i32>} : memref<8x128xf32, #tpu.memory_space<vmem>>, vector<8x128xf32>,
    } else {
    }
    %c0 = arith.constant 0 : index
    %c0_1 = arith.constant 0 : index
    %3 = vector.load %arg3[%c0, %c0_1] : memref<128x384xf32, #tpu.memory_space<vmem>>, vector<128x384xf32>
    %c0_2 = arith.constant 0 : index
    %c0_3 = arith.constant 0 : index
    %4 = vector.load %arg4[%c0_2, %c0_3] : memref<1x384xf32, #tpu.memory_space<vmem>>, vector<1x384xf32>
    %c0_4 = arith.constant 0 : index
    %c0_5 = arith.constant 0 : index
    %5 = vector.load %arg1[%c0_4, %c0_5] : memref<8x1xi32, #tpu.memory_space<vmem>>, vector<8x1xi32>
    %c8_i32 = arith.constant 8 : i32
    %6 = arith.muli %arg0, %c8_i32 : i32
    %c0_6 = arith.constant 0 : index
    %c0_7 = arith.constant 0 : index
    %7 = vector.load %arg7[%c0_6, %c0_7] : memref<8x128xf32, #tpu.memory_space<vmem>>, vector<8x128xf32>
    %c0_i32_8 = arith.constant 0 : i32
    %8 = arith.index_cast %c0_i32_8 : i32 to index
    %c0_9 = arith.constant 0 : index
    %c0_10 = arith.constant 0 : index
    %9 = vector.load %arg2[%8, %c0_9, %c0_10] : memref<8x8x384xf32, #tpu.memory_space<vmem>>, vector<1x8x384xf32>
    %10 = vector.shape_cast %9 : vector<1x8x384xf32> to vector<8x384xf32>
    %cst = arith.constant dense<0.000000e+00> : vector<8x384xf32>
    %11 = tpu.matmul %7, %3, %cst {dimension_numbers = #tpu.dot_dimension_numbers<[1], [0], [0], [1], [0, 0, 1, 1], [], []>} : vector<8x128xf32>, vector<128x384xf32>, vector<8x384xf32> -> vector<8x384xf32>
    %12 = vector.broadcast %4 : vector<1x384xf32> to vector<8x384xf32>
    %13 = arith.addf %11, %12 : vector<8x384xf32>
    %14 = vector.extract_strided_slice %10 {offsets = [0, 0], sizes = [8, 128], strides = [1, 1]} : vector<8x384xf32> to vector<8x128xf32>
    %15 = vector.extract_strided_slice %13 {offsets = [0, 0], sizes = [8, 128], strides = [1, 1]} : vector<8x384xf32> to vector<8x128xf32>
    %16 = arith.addf %14, %15 : vector<8x128xf32>
    %17 = arith.negf %16 : vector<8x128xf32>
    %18 = math.exp %17 : vector<8x128xf32>
    %cst_11 = arith.constant 1.000000e+00 : f32
    %19 = vector.broadcast %cst_11 : f32 to vector<8x128xf32>
    %20 = arith.addf %19, %18 : vector<8x128xf32>
    %21 = arith.divf %19, %20 : vector<8x128xf32>
    %22 = vector.extract_strided_slice %10 {offsets = [0, 128], sizes = [8, 128], strides = [1, 1]} : vector<8x384xf32> to vector<8x128xf32>
    %23 = vector.extract_strided_slice %13 {offsets = [0, 128], sizes = [8, 128], strides = [1, 1]} : vector<8x384xf32> to vector<8x128xf32>
    %24 = arith.addf %22, %23 : vector<8x128xf32>
    %25 = arith.negf %24 : vector<8x128xf32>
    %26 = math.exp %25 : vector<8x128xf32>
    %cst_12 = arith.constant 1.000000e+00 : f32
    %27 = vector.broadcast %cst_12 : f32 to vector<8x128xf32>
    %28 = arith.addf %27, %26 : vector<8x128xf32>
    %29 = arith.divf %27, %28 : vector<8x128xf32>
    %30 = vector.extract_strided_slice %10 {offsets = [0, 256], sizes = [8, 128], strides = [1, 1]} : vector<8x384xf32> to vector<8x128xf32>
    %31 = vector.extract_strided_slice %13 {offsets = [0, 256], sizes = [8, 128], strides = [1, 1]} : vector<8x384xf32> to vector<8x128xf32>
    %32 = arith.mulf %21, %31 : vector<8x128xf32>
    %33 = arith.addf %30, %32 : vector<8x128xf32>
    %34 = math.tanh %33 : vector<8x128xf32>
    %cst_13 = arith.constant 1.000000e+00 : f32
    %35 = vector.broadcast %cst_13 : f32 to vector<8x128xf32>
    %36 = arith.subf %35, %29 : vector<8x128xf32>
    %37 = arith.mulf %36, %34 : vector<8x128xf32>
    %38 = arith.mulf %29, %7 : vector<8x128xf32>
    %39 = arith.addf %37, %38 : vector<8x128xf32>
    %40 = arith.addi %6, %c0_i32_8 : i32
    %41 = vector.broadcast %40 : i32 to vector<8x1xi32>
    %42 = arith.cmpi slt, %41, %5 : vector<8x1xi32>
    %43 = arith.extui %42 : vector<8x1xi1> to vector<8x1xi32>
    %44 = arith.sitofp %43 : vector<8x1xi32> to vector<8x1xf32>
    %45 = vector.broadcast %44 : vector<8x1xf32> to vector<8x128xf32>
    %46 = arith.mulf %45, %39 : vector<8x128xf32>
    %47 = arith.index_cast %c0_i32_8 : i32 to index
    %c0_14 = arith.constant 0 : index
    %c0_15 = arith.constant 0 : index
    %48 = vector.load %arg5[%47, %c0_14, %c0_15] : memref<8x8x128xf32, #tpu.memory_space<vmem>>, vector<1x8x128xf32>
    %49 = vector.shape_cast %48 : vector<1x8x128xf32> to vector<8x128xf32>
    %50 = vector.shape_cast %46 : vector<8x128xf32> to vector<1x8x128xf32>
    tpu.vector_store %arg5[%47, %c0_14, %c0_15], %50 {strides = array<i32>} : memref<8x8x128xf32, #tpu.memory_space<vmem>>, vector<1x8x128xf32>,
    %51 = vector.broadcast %44 : vector<8x1xf32> to vector<8x128xf32>
    %52 = arith.mulf %51, %39 : vector<8x128xf32>
    %cst_16 = arith.constant 1.000000e+00 : f32
    %53 = vector.broadcast %cst_16 : f32 to vector<8x1xf32>
    %54 = arith.subf %53, %44 : vector<8x1xf32>
    %55 = vector.broadcast %54 : vector<8x1xf32> to vector<8x128xf32>
    %56 = arith.mulf %55, %7 : vector<8x128xf32>
    %57 = arith.addf %52, %56 : vector<8x128xf32>
    %c1_i32 = arith.constant 1 : i32
    %58 = arith.index_cast %c1_i32 : i32 to index
    %c0_17 = arith.constant 0 : index
    %c0_18 = arith.constant 0 : index
    %59 = vector.load %arg2[%58, %c0_17, %c0_18] : memref<8x8x384xf32, #tpu.memory_space<vmem>>, vector<1x8x384xf32>
    %60 = vector.shape_cast %59 : vector<1x8x384xf32> to vector<8x384xf32>
    %cst_19 = arith.constant dense<0.000000e+00> : vector<8x384xf32>
    %61 = tpu.matmul %57, %3, %cst_19 {dimension_numbers = #tpu.dot_dimension_numbers<[1], [0], [0], [1], [0, 0, 1, 1], [], []>} : vector<8x128xf32>, vector<128x384xf32>, vector<8x384xf32> -> vector<8x384xf32>
    %62 = vector.broadcast %4 : vector<1x384xf32> to vector<8x384xf32>
    %63 = arith.addf %61, %62 : vector<8x384xf32>
    %64 = vector.extract_strided_slice %60 {offsets = [0, 0], sizes = [8, 128], strides = [1, 1]} : vector<8x384xf32> to vector<8x128xf32>
    %65 = vector.extract_strided_slice %63 {offsets = [0, 0], sizes = [8, 128], strides = [1, 1]} : vector<8x384xf32> to vector<8x128xf32>
    %66 = arith.addf %64, %65 : vector<8x128xf32>
    %67 = arith.negf %66 : vector<8x128xf32>
    %68 = math.exp %67 : vector<8x128xf32>
    %cst_20 = arith.constant 1.000000e+00 : f32
    %69 = vector.broadcast %cst_20 : f32 to vector<8x128xf32>
    %70 = arith.addf %69, %68 : vector<8x128xf32>
    %71 = arith.divf %69, %70 : vector<8x128xf32>
    %72 = vector.extract_strided_slice %60 {offsets = [0, 128], sizes = [8, 128], strides = [1, 1]} : vector<8x384xf32> to vector<8x128xf32>
    %73 = vector.extract_strided_slice %63 {offsets = [0, 128], sizes = [8, 128], strides = [1, 1]} : vector<8x384xf32> to vector<8x128xf32>
    %74 = arith.addf %72, %73 : vector<8x128xf32>
    %75 = arith.negf %74 : vector<8x128xf32>
    %76 = math.exp %75 : vector<8x128xf32>
    %cst_21 = arith.constant 1.000000e+00 : f32
    %77 = vector.broadcast %cst_21 : f32 to vector<8x128xf32>
    %78 = arith.addf %77, %76 : vector<8x128xf32>
    %79 = arith.divf %77, %78 : vector<8x128xf32>
    %80 = vector.extract_strided_slice %60 {offsets = [0, 256], sizes = [8, 128], strides = [1, 1]} : vector<8x384xf32> to vector<8x128xf32>
    %81 = vector.extract_strided_slice %63 {offsets = [0, 256], sizes = [8, 128], strides = [1, 1]} : vector<8x384xf32> to vector<8x128xf32>
    %82 = arith.mulf %71, %81 : vector<8x128xf32>
    %83 = arith.addf %80, %82 : vector<8x128xf32>
    %84 = math.tanh %83 : vector<8x128xf32>
    %cst_22 = arith.constant 1.000000e+00 : f32
    %85 = vector.broadcast %cst_22 : f32 to vector<8x128xf32>
    %86 = arith.subf %85, %79 : vector<8x128xf32>
    %87 = arith.mulf %86, %84 : vector<8x128xf32>
    %88 = arith.mulf %79, %57 : vector<8x128xf32>
    %89 = arith.addf %87, %88 : vector<8x128xf32>
    %90 = arith.addi %6, %c1_i32 : i32
    %91 = vector.broadcast %90 : i32 to vector<8x1xi32>
    %92 = arith.cmpi slt, %91, %5 : vector<8x1xi32>
    %93 = arith.extui %92 : vector<8x1xi1> to vector<8x1xi32>
    %94 = arith.sitofp %93 : vector<8x1xi32> to vector<8x1xf32>
    %95 = vector.broadcast %94 : vector<8x1xf32> to vector<8x128xf32>
    %96 = arith.mulf %95, %89 : vector<8x128xf32>
    %97 = arith.index_cast %c1_i32 : i32 to index
    %c0_23 = arith.constant 0 : index
    %c0_24 = arith.constant 0 : index
    %98 = vector.load %arg5[%97, %c0_23, %c0_24] : memref<8x8x128xf32, #tpu.memory_space<vmem>>, vector<1x8x128xf32>
    %99 = vector.shape_cast %98 : vector<1x8x128xf32> to vector<8x128xf32>
    %100 = vector.shape_cast %96 : vector<8x128xf32> to vector<1x8x128xf32>
    tpu.vector_store %arg5[%97, %c0_23, %c0_24], %100 {strides = array<i32>} : memref<8x8x128xf32, #tpu.memory_space<vmem>>, vector<1x8x128xf32>,
    %101 = vector.broadcast %94 : vector<8x1xf32> to vector<8x128xf32>
    %102 = arith.mulf %101, %89 : vector<8x128xf32>
    %cst_25 = arith.constant 1.000000e+00 : f32
    %103 = vector.broadcast %cst_25 : f32 to vector<8x1xf32>
    %104 = arith.subf %103, %94 : vector<8x1xf32>
    %105 = vector.broadcast %104 : vector<8x1xf32> to vector<8x128xf32>
    %106 = arith.mulf %105, %57 : vector<8x128xf32>
    %107 = arith.addf %102, %106 : vector<8x128xf32>
    %c2_i32 = arith.constant 2 : i32
    %108 = arith.index_cast %c2_i32 : i32 to index
    %c0_26 = arith.constant 0 : index
    %c0_27 = arith.constant 0 : index
    %109 = vector.load %arg2[%108, %c0_26, %c0_27] : memref<8x8x384xf32, #tpu.memory_space<vmem>>, vector<1x8x384xf32>
    %110 = vector.shape_cast %109 : vector<1x8x384xf32> to vector<8x384xf32>
    %cst_28 = arith.constant dense<0.000000e+00> : vector<8x384xf32>
    %111 = tpu.matmul %107, %3, %cst_28 {dimension_numbers = #tpu.dot_dimension_numbers<[1], [0], [0], [1], [0, 0, 1, 1], [], []>} : vector<8x128xf32>, vector<128x384xf32>, vector<8x384xf32> -> vector<8x384xf32>
    %112 = vector.broadcast %4 : vector<1x384xf32> to vector<8x384xf32>
    %113 = arith.addf %111, %112 : vector<8x384xf32>
    %114 = vector.extract_strided_slice %110 {offsets = [0, 0], sizes = [8, 128], strides = [1, 1]} : vector<8x384xf32> to vector<8x128xf32>
    %115 = vector.extract_strided_slice %113 {offsets = [0, 0], sizes = [8, 128], strides = [1, 1]} : vector<8x384xf32> to vector<8x128xf32>
    %116 = arith.addf %114, %115 : vector<8x128xf32>
    %117 = arith.negf %116 : vector<8x128xf32>
    %118 = math.exp %117 : vector<8x128xf32>
    %cst_29 = arith.constant 1.000000e+00 : f32
    %119 = vector.broadcast %cst_29 : f32 to vector<8x128xf32>
    %120 = arith.addf %119, %118 : vector<8x128xf32>
    %121 = arith.divf %119, %120 : vector<8x128xf32>
    %122 = vector.extract_strided_slice %110 {offsets = [0, 128], sizes = [8, 128], strides = [1, 1]} : vector<8x384xf32> to vector<8x128xf32>
    %123 = vector.extract_strided_slice %113 {offsets = [0, 128], sizes = [8, 128], strides = [1, 1]} : vector<8x384xf32> to vector<8x128xf32>
    %124 = arith.addf %122, %123 : vector<8x128xf32>
    %125 = arith.negf %124 : vector<8x128xf32>
    %126 = math.exp %125 : vector<8x128xf32>
    %cst_30 = arith.constant 1.000000e+00 : f32
    %127 = vector.broadcast %cst_30 : f32 to vector<8x128xf32>
    %128 = arith.addf %127, %126 : vector<8x128xf32>
    %129 = arith.divf %127, %128 : vector<8x128xf32>
    %130 = vector.extract_strided_slice %110 {offsets = [0, 256], sizes = [8, 128], strides = [1, 1]} : vector<8x384xf32> to vector<8x128xf32>
    %131 = vector.extract_strided_slice %113 {offsets = [0, 256], sizes = [8, 128], strides = [1, 1]} : vector<8x384xf32> to vector<8x128xf32>
    %132 = arith.mulf %121, %131 : vector<8x128xf32>
    %133 = arith.addf %130, %132 : vector<8x128xf32>
    %134 = math.tanh %133 : vector<8x128xf32>
    %cst_31 = arith.constant 1.000000e+00 : f32
    %135 = vector.broadcast %cst_31 : f32 to vector<8x128xf32>
    %136 = arith.subf %135, %129 : vector<8x128xf32>
    %137 = arith.mulf %136, %134 : vector<8x128xf32>
    %138 = arith.mulf %129, %107 : vector<8x128xf32>
    %139 = arith.addf %137, %138 : vector<8x128xf32>
    %140 = arith.addi %6, %c2_i32 : i32
    %141 = vector.broadcast %140 : i32 to vector<8x1xi32>
    %142 = arith.cmpi slt, %141, %5 : vector<8x1xi32>
    %143 = arith.extui %142 : vector<8x1xi1> to vector<8x1xi32>
    %144 = arith.sitofp %143 : vector<8x1xi32> to vector<8x1xf32>
    %145 = vector.broadcast %144 : vector<8x1xf32> to vector<8x128xf32>
    %146 = arith.mulf %145, %139 : vector<8x128xf32>
    %147 = arith.index_cast %c2_i32 : i32 to index
    %c0_32 = arith.constant 0 : index
    %c0_33 = arith.constant 0 : index
    %148 = vector.load %arg5[%147, %c0_32, %c0_33] : memref<8x8x128xf32, #tpu.memory_space<vmem>>, vector<1x8x128xf32>
    %149 = vector.shape_cast %148 : vector<1x8x128xf32> to vector<8x128xf32>
    %150 = vector.shape_cast %146 : vector<8x128xf32> to vector<1x8x128xf32>
    tpu.vector_store %arg5[%147, %c0_32, %c0_33], %150 {strides = array<i32>} : memref<8x8x128xf32, #tpu.memory_space<vmem>>, vector<1x8x128xf32>,
    %151 = vector.broadcast %144 : vector<8x1xf32> to vector<8x128xf32>
    %152 = arith.mulf %151, %139 : vector<8x128xf32>
    %cst_34 = arith.constant 1.000000e+00 : f32
    %153 = vector.broadcast %cst_34 : f32 to vector<8x1xf32>
    %154 = arith.subf %153, %144 : vector<8x1xf32>
    %155 = vector.broadcast %154 : vector<8x1xf32> to vector<8x128xf32>
    %156 = arith.mulf %155, %107 : vector<8x128xf32>
    %157 = arith.addf %152, %156 : vector<8x128xf32>
    %c3_i32 = arith.constant 3 : i32
    %158 = arith.index_cast %c3_i32 : i32 to index
    %c0_35 = arith.constant 0 : index
    %c0_36 = arith.constant 0 : index
    %159 = vector.load %arg2[%158, %c0_35, %c0_36] : memref<8x8x384xf32, #tpu.memory_space<vmem>>, vector<1x8x384xf32>
    %160 = vector.shape_cast %159 : vector<1x8x384xf32> to vector<8x384xf32>
    %cst_37 = arith.constant dense<0.000000e+00> : vector<8x384xf32>
    %161 = tpu.matmul %157, %3, %cst_37 {dimension_numbers = #tpu.dot_dimension_numbers<[1], [0], [0], [1], [0, 0, 1, 1], [], []>} : vector<8x128xf32>, vector<128x384xf32>, vector<8x384xf32> -> vector<8x384xf32>
    %162 = vector.broadcast %4 : vector<1x384xf32> to vector<8x384xf32>
    %163 = arith.addf %161, %162 : vector<8x384xf32>
    %164 = vector.extract_strided_slice %160 {offsets = [0, 0], sizes = [8, 128], strides = [1, 1]} : vector<8x384xf32> to vector<8x128xf32>
    %165 = vector.extract_strided_slice %163 {offsets = [0, 0], sizes = [8, 128], strides = [1, 1]} : vector<8x384xf32> to vector<8x128xf32>
    %166 = arith.addf %164, %165 : vector<8x128xf32>
    %167 = arith.negf %166 : vector<8x128xf32>
    %168 = math.exp %167 : vector<8x128xf32>
    %cst_38 = arith.constant 1.000000e+00 : f32
    %169 = vector.broadcast %cst_38 : f32 to vector<8x128xf32>
    %170 = arith.addf %169, %168 : vector<8x128xf32>
    %171 = arith.divf %169, %170 : vector<8x128xf32>
    %172 = vector.extract_strided_slice %160 {offsets = [0, 128], sizes = [8, 128], strides = [1, 1]} : vector<8x384xf32> to vector<8x128xf32>
    %173 = vector.extract_strided_slice %163 {offsets = [0, 128], sizes = [8, 128], strides = [1, 1]} : vector<8x384xf32> to vector<8x128xf32>
    %174 = arith.addf %172, %173 : vector<8x128xf32>
    %175 = arith.negf %174 : vector<8x128xf32>
    %176 = math.exp %175 : vector<8x128xf32>
    %cst_39 = arith.constant 1.000000e+00 : f32
    %177 = vector.broadcast %cst_39 : f32 to vector<8x128xf32>
    %178 = arith.addf %177, %176 : vector<8x128xf32>
    %179 = arith.divf %177, %178 : vector<8x128xf32>
    %180 = vector.extract_strided_slice %160 {offsets = [0, 256], sizes = [8, 128], strides = [1, 1]} : vector<8x384xf32> to vector<8x128xf32>
    %181 = vector.extract_strided_slice %163 {offsets = [0, 256], sizes = [8, 128], strides = [1, 1]} : vector<8x384xf32> to vector<8x128xf32>
    %182 = arith.mulf %171, %181 : vector<8x128xf32>
    %183 = arith.addf %180, %182 : vector<8x128xf32>
    %184 = math.tanh %183 : vector<8x128xf32>
    %cst_40 = arith.constant 1.000000e+00 : f32
    %185 = vector.broadcast %cst_40 : f32 to vector<8x128xf32>
    %186 = arith.subf %185, %179 : vector<8x128xf32>
    %187 = arith.mulf %186, %184 : vector<8x128xf32>
    %188 = arith.mulf %179, %157 : vector<8x128xf32>
    %189 = arith.addf %187, %188 : vector<8x128xf32>
    %190 = arith.addi %6, %c3_i32 : i32
    %191 = vector.broadcast %190 : i32 to vector<8x1xi32>
    %192 = arith.cmpi slt, %191, %5 : vector<8x1xi32>
    %193 = arith.extui %192 : vector<8x1xi1> to vector<8x1xi32>
    %194 = arith.sitofp %193 : vector<8x1xi32> to vector<8x1xf32>
    %195 = vector.broadcast %194 : vector<8x1xf32> to vector<8x128xf32>
    %196 = arith.mulf %195, %189 : vector<8x128xf32>
    %197 = arith.index_cast %c3_i32 : i32 to index
    %c0_41 = arith.constant 0 : index
    %c0_42 = arith.constant 0 : index
    %198 = vector.load %arg5[%197, %c0_41, %c0_42] : memref<8x8x128xf32, #tpu.memory_space<vmem>>, vector<1x8x128xf32>
    %199 = vector.shape_cast %198 : vector<1x8x128xf32> to vector<8x128xf32>
    %200 = vector.shape_cast %196 : vector<8x128xf32> to vector<1x8x128xf32>
    tpu.vector_store %arg5[%197, %c0_41, %c0_42], %200 {strides = array<i32>} : memref<8x8x128xf32, #tpu.memory_space<vmem>>, vector<1x8x128xf32>,
    %201 = vector.broadcast %194 : vector<8x1xf32> to vector<8x128xf32>
    %202 = arith.mulf %201, %189 : vector<8x128xf32>
    %cst_43 = arith.constant 1.000000e+00 : f32
    %203 = vector.broadcast %cst_43 : f32 to vector<8x1xf32>
    %204 = arith.subf %203, %194 : vector<8x1xf32>
    %205 = vector.broadcast %204 : vector<8x1xf32> to vector<8x128xf32>
    %206 = arith.mulf %205, %157 : vector<8x128xf32>
    %207 = arith.addf %202, %206 : vector<8x128xf32>
    %c4_i32 = arith.constant 4 : i32
    %208 = arith.index_cast %c4_i32 : i32 to index
    %c0_44 = arith.constant 0 : index
    %c0_45 = arith.constant 0 : index
    %209 = vector.load %arg2[%208, %c0_44, %c0_45] : memref<8x8x384xf32, #tpu.memory_space<vmem>>, vector<1x8x384xf32>
    %210 = vector.shape_cast %209 : vector<1x8x384xf32> to vector<8x384xf32>
    %cst_46 = arith.constant dense<0.000000e+00> : vector<8x384xf32>
    %211 = tpu.matmul %207, %3, %cst_46 {dimension_numbers = #tpu.dot_dimension_numbers<[1], [0], [0], [1], [0, 0, 1, 1], [], []>} : vector<8x128xf32>, vector<128x384xf32>, vector<8x384xf32> -> vector<8x384xf32>
    %212 = vector.broadcast %4 : vector<1x384xf32> to vector<8x384xf32>
    %213 = arith.addf %211, %212 : vector<8x384xf32>
    %214 = vector.extract_strided_slice %210 {offsets = [0, 0], sizes = [8, 128], strides = [1, 1]} : vector<8x384xf32> to vector<8x128xf32>
    %215 = vector.extract_strided_slice %213 {offsets = [0, 0], sizes = [8, 128], strides = [1, 1]} : vector<8x384xf32> to vector<8x128xf32>
    %216 = arith.addf %214, %215 : vector<8x128xf32>
    %217 = arith.negf %216 : vector<8x128xf32>
    %218 = math.exp %217 : vector<8x128xf32>
    %cst_47 = arith.constant 1.000000e+00 : f32
    %219 = vector.broadcast %cst_47 : f32 to vector<8x128xf32>
    %220 = arith.addf %219, %218 : vector<8x128xf32>
    %221 = arith.divf %219, %220 : vector<8x128xf32>
    %222 = vector.extract_strided_slice %210 {offsets = [0, 128], sizes = [8, 128], strides = [1, 1]} : vector<8x384xf32> to vector<8x128xf32>
    %223 = vector.extract_strided_slice %213 {offsets = [0, 128], sizes = [8, 128], strides = [1, 1]} : vector<8x384xf32> to vector<8x128xf32>
    %224 = arith.addf %222, %223 : vector<8x128xf32>
    %225 = arith.negf %224 : vector<8x128xf32>
    %226 = math.exp %225 : vector<8x128xf32>
    %cst_48 = arith.constant 1.000000e+00 : f32
    %227 = vector.broadcast %cst_48 : f32 to vector<8x128xf32>
    %228 = arith.addf %227, %226 : vector<8x128xf32>
    %229 = arith.divf %227, %228 : vector<8x128xf32>
    %230 = vector.extract_strided_slice %210 {offsets = [0, 256], sizes = [8, 128], strides = [1, 1]} : vector<8x384xf32> to vector<8x128xf32>
    %231 = vector.extract_strided_slice %213 {offsets = [0, 256], sizes = [8, 128], strides = [1, 1]} : vector<8x384xf32> to vector<8x128xf32>
    %232 = arith.mulf %221, %231 : vector<8x128xf32>
    %233 = arith.addf %230, %232 : vector<8x128xf32>
    %234 = math.tanh %233 : vector<8x128xf32>
    %cst_49 = arith.constant 1.000000e+00 : f32
    %235 = vector.broadcast %cst_49 : f32 to vector<8x128xf32>
    %236 = arith.subf %235, %229 : vector<8x128xf32>
    %237 = arith.mulf %236, %234 : vector<8x128xf32>
    %238 = arith.mulf %229, %207 : vector<8x128xf32>
    %239 = arith.addf %237, %238 : vector<8x128xf32>
    %240 = arith.addi %6, %c4_i32 : i32
    %241 = vector.broadcast %240 : i32 to vector<8x1xi32>
    %242 = arith.cmpi slt, %241, %5 : vector<8x1xi32>
    %243 = arith.extui %242 : vector<8x1xi1> to vector<8x1xi32>
    %244 = arith.sitofp %243 : vector<8x1xi32> to vector<8x1xf32>
    %245 = vector.broadcast %244 : vector<8x1xf32> to vector<8x128xf32>
    %246 = arith.mulf %245, %239 : vector<8x128xf32>
    %247 = arith.index_cast %c4_i32 : i32 to index
    %c0_50 = arith.constant 0 : index
    %c0_51 = arith.constant 0 : index
    %248 = vector.load %arg5[%247, %c0_50, %c0_51] : memref<8x8x128xf32, #tpu.memory_space<vmem>>, vector<1x8x128xf32>
    %249 = vector.shape_cast %248 : vector<1x8x128xf32> to vector<8x128xf32>
    %250 = vector.shape_cast %246 : vector<8x128xf32> to vector<1x8x128xf32>
    tpu.vector_store %arg5[%247, %c0_50, %c0_51], %250 {strides = array<i32>} : memref<8x8x128xf32, #tpu.memory_space<vmem>>, vector<1x8x128xf32>,
    %251 = vector.broadcast %244 : vector<8x1xf32> to vector<8x128xf32>
    %252 = arith.mulf %251, %239 : vector<8x128xf32>
    %cst_52 = arith.constant 1.000000e+00 : f32
    %253 = vector.broadcast %cst_52 : f32 to vector<8x1xf32>
    %254 = arith.subf %253, %244 : vector<8x1xf32>
    %255 = vector.broadcast %254 : vector<8x1xf32> to vector<8x128xf32>
    %256 = arith.mulf %255, %207 : vector<8x128xf32>
    %257 = arith.addf %252, %256 : vector<8x128xf32>
    %c5_i32 = arith.constant 5 : i32
    %258 = arith.index_cast %c5_i32 : i32 to index
    %c0_53 = arith.constant 0 : index
    %c0_54 = arith.constant 0 : index
    %259 = vector.load %arg2[%258, %c0_53, %c0_54] : memref<8x8x384xf32, #tpu.memory_space<vmem>>, vector<1x8x384xf32>
    %260 = vector.shape_cast %259 : vector<1x8x384xf32> to vector<8x384xf32>
    %cst_55 = arith.constant dense<0.000000e+00> : vector<8x384xf32>
    %261 = tpu.matmul %257, %3, %cst_55 {dimension_numbers = #tpu.dot_dimension_numbers<[1], [0], [0], [1], [0, 0, 1, 1], [], []>} : vector<8x128xf32>, vector<128x384xf32>, vector<8x384xf32> -> vector<8x384xf32>
    %262 = vector.broadcast %4 : vector<1x384xf32> to vector<8x384xf32>
    %263 = arith.addf %261, %262 : vector<8x384xf32>
    %264 = vector.extract_strided_slice %260 {offsets = [0, 0], sizes = [8, 128], strides = [1, 1]} : vector<8x384xf32> to vector<8x128xf32>
    %265 = vector.extract_strided_slice %263 {offsets = [0, 0], sizes = [8, 128], strides = [1, 1]} : vector<8x384xf32> to vector<8x128xf32>
    %266 = arith.addf %264, %265 : vector<8x128xf32>
    %267 = arith.negf %266 : vector<8x128xf32>
    %268 = math.exp %267 : vector<8x128xf32>
    %cst_56 = arith.constant 1.000000e+00 : f32
    %269 = vector.broadcast %cst_56 : f32 to vector<8x128xf32>
    %270 = arith.addf %269, %268 : vector<8x128xf32>
    %271 = arith.divf %269, %270 : vector<8x128xf32>
    %272 = vector.extract_strided_slice %260 {offsets = [0, 128], sizes = [8, 128], strides = [1, 1]} : vector<8x384xf32> to vector<8x128xf32>
    %273 = vector.extract_strided_slice %263 {offsets = [0, 128], sizes = [8, 128], strides = [1, 1]} : vector<8x384xf32> to vector<8x128xf32>
    %274 = arith.addf %272, %273 : vector<8x128xf32>
    %275 = arith.negf %274 : vector<8x128xf32>
    %276 = math.exp %275 : vector<8x128xf32>
    %cst_57 = arith.constant 1.000000e+00 : f32
    %277 = vector.broadcast %cst_57 : f32 to vector<8x128xf32>
    %278 = arith.addf %277, %276 : vector<8x128xf32>
    %279 = arith.divf %277, %278 : vector<8x128xf32>
    %280 = vector.extract_strided_slice %260 {offsets = [0, 256], sizes = [8, 128], strides = [1, 1]} : vector<8x384xf32> to vector<8x128xf32>
    %281 = vector.extract_strided_slice %263 {offsets = [0, 256], sizes = [8, 128], strides = [1, 1]} : vector<8x384xf32> to vector<8x128xf32>
    %282 = arith.mulf %271, %281 : vector<8x128xf32>
    %283 = arith.addf %280, %282 : vector<8x128xf32>
    %284 = math.tanh %283 : vector<8x128xf32>
    %cst_58 = arith.constant 1.000000e+00 : f32
    %285 = vector.broadcast %cst_58 : f32 to vector<8x128xf32>
    %286 = arith.subf %285, %279 : vector<8x128xf32>
    %287 = arith.mulf %286, %284 : vector<8x128xf32>
    %288 = arith.mulf %279, %257 : vector<8x128xf32>
    %289 = arith.addf %287, %288 : vector<8x128xf32>
    %290 = arith.addi %6, %c5_i32 : i32
    %291 = vector.broadcast %290 : i32 to vector<8x1xi32>
    %292 = arith.cmpi slt, %291, %5 : vector<8x1xi32>
    %293 = arith.extui %292 : vector<8x1xi1> to vector<8x1xi32>
    %294 = arith.sitofp %293 : vector<8x1xi32> to vector<8x1xf32>
    %295 = vector.broadcast %294 : vector<8x1xf32> to vector<8x128xf32>
    %296 = arith.mulf %295, %289 : vector<8x128xf32>
    %297 = arith.index_cast %c5_i32 : i32 to index
    %c0_59 = arith.constant 0 : index
    %c0_60 = arith.constant 0 : index
    %298 = vector.load %arg5[%297, %c0_59, %c0_60] : memref<8x8x128xf32, #tpu.memory_space<vmem>>, vector<1x8x128xf32>
    %299 = vector.shape_cast %298 : vector<1x8x128xf32> to vector<8x128xf32>
    %300 = vector.shape_cast %296 : vector<8x128xf32> to vector<1x8x128xf32>
    tpu.vector_store %arg5[%297, %c0_59, %c0_60], %300 {strides = array<i32>} : memref<8x8x128xf32, #tpu.memory_space<vmem>>, vector<1x8x128xf32>,
    %301 = vector.broadcast %294 : vector<8x1xf32> to vector<8x128xf32>
    %302 = arith.mulf %301, %289 : vector<8x128xf32>
    %cst_61 = arith.constant 1.000000e+00 : f32
    %303 = vector.broadcast %cst_61 : f32 to vector<8x1xf32>
    %304 = arith.subf %303, %294 : vector<8x1xf32>
    %305 = vector.broadcast %304 : vector<8x1xf32> to vector<8x128xf32>
    %306 = arith.mulf %305, %257 : vector<8x128xf32>
    %307 = arith.addf %302, %306 : vector<8x128xf32>
    %c6_i32 = arith.constant 6 : i32
    %308 = arith.index_cast %c6_i32 : i32 to index
    %c0_62 = arith.constant 0 : index
    %c0_63 = arith.constant 0 : index
    %309 = vector.load %arg2[%308, %c0_62, %c0_63] : memref<8x8x384xf32, #tpu.memory_space<vmem>>, vector<1x8x384xf32>
    %310 = vector.shape_cast %309 : vector<1x8x384xf32> to vector<8x384xf32>
    %cst_64 = arith.constant dense<0.000000e+00> : vector<8x384xf32>
    %311 = tpu.matmul %307, %3, %cst_64 {dimension_numbers = #tpu.dot_dimension_numbers<[1], [0], [0], [1], [0, 0, 1, 1], [], []>} : vector<8x128xf32>, vector<128x384xf32>, vector<8x384xf32> -> vector<8x384xf32>
    %312 = vector.broadcast %4 : vector<1x384xf32> to vector<8x384xf32>
    %313 = arith.addf %311, %312 : vector<8x384xf32>
    %314 = vector.extract_strided_slice %310 {offsets = [0, 0], sizes = [8, 128], strides = [1, 1]} : vector<8x384xf32> to vector<8x128xf32>
    %315 = vector.extract_strided_slice %313 {offsets = [0, 0], sizes = [8, 128], strides = [1, 1]} : vector<8x384xf32> to vector<8x128xf32>
    %316 = arith.addf %314, %315 : vector<8x128xf32>
    %317 = arith.negf %316 : vector<8x128xf32>
    %318 = math.exp %317 : vector<8x128xf32>
    %cst_65 = arith.constant 1.000000e+00 : f32
    %319 = vector.broadcast %cst_65 : f32 to vector<8x128xf32>
    %320 = arith.addf %319, %318 : vector<8x128xf32>
    %321 = arith.divf %319, %320 : vector<8x128xf32>
    %322 = vector.extract_strided_slice %310 {offsets = [0, 128], sizes = [8, 128], strides = [1, 1]} : vector<8x384xf32> to vector<8x128xf32>
    %323 = vector.extract_strided_slice %313 {offsets = [0, 128], sizes = [8, 128], strides = [1, 1]} : vector<8x384xf32> to vector<8x128xf32>
    %324 = arith.addf %322, %323 : vector<8x128xf32>
    %325 = arith.negf %324 : vector<8x128xf32>
    %326 = math.exp %325 : vector<8x128xf32>
    %cst_66 = arith.constant 1.000000e+00 : f32
    %327 = vector.broadcast %cst_66 : f32 to vector<8x128xf32>
    %328 = arith.addf %327, %326 : vector<8x128xf32>
    %329 = arith.divf %327, %328 : vector<8x128xf32>
    %330 = vector.extract_strided_slice %310 {offsets = [0, 256], sizes = [8, 128], strides = [1, 1]} : vector<8x384xf32> to vector<8x128xf32>
    %331 = vector.extract_strided_slice %313 {offsets = [0, 256], sizes = [8, 128], strides = [1, 1]} : vector<8x384xf32> to vector<8x128xf32>
    %332 = arith.mulf %321, %331 : vector<8x128xf32>
    %333 = arith.addf %330, %332 : vector<8x128xf32>
    %334 = math.tanh %333 : vector<8x128xf32>
    %cst_67 = arith.constant 1.000000e+00 : f32
    %335 = vector.broadcast %cst_67 : f32 to vector<8x128xf32>
    %336 = arith.subf %335, %329 : vector<8x128xf32>
    %337 = arith.mulf %336, %334 : vector<8x128xf32>
    %338 = arith.mulf %329, %307 : vector<8x128xf32>
    %339 = arith.addf %337, %338 : vector<8x128xf32>
    %340 = arith.addi %6, %c6_i32 : i32
    %341 = vector.broadcast %340 : i32 to vector<8x1xi32>
    %342 = arith.cmpi slt, %341, %5 : vector<8x1xi32>
    %343 = arith.extui %342 : vector<8x1xi1> to vector<8x1xi32>
    %344 = arith.sitofp %343 : vector<8x1xi32> to vector<8x1xf32>
    %345 = vector.broadcast %344 : vector<8x1xf32> to vector<8x128xf32>
    %346 = arith.mulf %345, %339 : vector<8x128xf32>
    %347 = arith.index_cast %c6_i32 : i32 to index
    %c0_68 = arith.constant 0 : index
    %c0_69 = arith.constant 0 : index
    %348 = vector.load %arg5[%347, %c0_68, %c0_69] : memref<8x8x128xf32, #tpu.memory_space<vmem>>, vector<1x8x128xf32>
    %349 = vector.shape_cast %348 : vector<1x8x128xf32> to vector<8x128xf32>
    %350 = vector.shape_cast %346 : vector<8x128xf32> to vector<1x8x128xf32>
    tpu.vector_store %arg5[%347, %c0_68, %c0_69], %350 {strides = array<i32>} : memref<8x8x128xf32, #tpu.memory_space<vmem>>, vector<1x8x128xf32>,
    %351 = vector.broadcast %344 : vector<8x1xf32> to vector<8x128xf32>
    %352 = arith.mulf %351, %339 : vector<8x128xf32>
    %cst_70 = arith.constant 1.000000e+00 : f32
    %353 = vector.broadcast %cst_70 : f32 to vector<8x1xf32>
    %354 = arith.subf %353, %344 : vector<8x1xf32>
    %355 = vector.broadcast %354 : vector<8x1xf32> to vector<8x128xf32>
    %356 = arith.mulf %355, %307 : vector<8x128xf32>
    %357 = arith.addf %352, %356 : vector<8x128xf32>
    %c7_i32 = arith.constant 7 : i32
    %358 = arith.index_cast %c7_i32 : i32 to index
    %c0_71 = arith.constant 0 : index
    %c0_72 = arith.constant 0 : index
    %359 = vector.load %arg2[%358, %c0_71, %c0_72] : memref<8x8x384xf32, #tpu.memory_space<vmem>>, vector<1x8x384xf32>
    %360 = vector.shape_cast %359 : vector<1x8x384xf32> to vector<8x384xf32>
    %cst_73 = arith.constant dense<0.000000e+00> : vector<8x384xf32>
    %361 = tpu.matmul %357, %3, %cst_73 {dimension_numbers = #tpu.dot_dimension_numbers<[1], [0], [0], [1], [0, 0, 1, 1], [], []>} : vector<8x128xf32>, vector<128x384xf32>, vector<8x384xf32> -> vector<8x384xf32>
    %362 = vector.broadcast %4 : vector<1x384xf32> to vector<8x384xf32>
    %363 = arith.addf %361, %362 : vector<8x384xf32>
    %364 = vector.extract_strided_slice %360 {offsets = [0, 0], sizes = [8, 128], strides = [1, 1]} : vector<8x384xf32> to vector<8x128xf32>
    %365 = vector.extract_strided_slice %363 {offsets = [0, 0], sizes = [8, 128], strides = [1, 1]} : vector<8x384xf32> to vector<8x128xf32>
    %366 = arith.addf %364, %365 : vector<8x128xf32>
    %367 = arith.negf %366 : vector<8x128xf32>
    %368 = math.exp %367 : vector<8x128xf32>
    %cst_74 = arith.constant 1.000000e+00 : f32
    %369 = vector.broadcast %cst_74 : f32 to vector<8x128xf32>
    %370 = arith.addf %369, %368 : vector<8x128xf32>
    %371 = arith.divf %369, %370 : vector<8x128xf32>
    %372 = vector.extract_strided_slice %360 {offsets = [0, 128], sizes = [8, 128], strides = [1, 1]} : vector<8x384xf32> to vector<8x128xf32>
    %373 = vector.extract_strided_slice %363 {offsets = [0, 128], sizes = [8, 128], strides = [1, 1]} : vector<8x384xf32> to vector<8x128xf32>
    %374 = arith.addf %372, %373 : vector<8x128xf32>
    %375 = arith.negf %374 : vector<8x128xf32>
    %376 = math.exp %375 : vector<8x128xf32>
    %cst_75 = arith.constant 1.000000e+00 : f32
    %377 = vector.broadcast %cst_75 : f32 to vector<8x128xf32>
    %378 = arith.addf %377, %376 : vector<8x128xf32>
    %379 = arith.divf %377, %378 : vector<8x128xf32>
    %380 = vector.extract_strided_slice %360 {offsets = [0, 256], sizes = [8, 128], strides = [1, 1]} : vector<8x384xf32> to vector<8x128xf32>
    %381 = vector.extract_strided_slice %363 {offsets = [0, 256], sizes = [8, 128], strides = [1, 1]} : vector<8x384xf32> to vector<8x128xf32>
    %382 = arith.mulf %371, %381 : vector<8x128xf32>
    %383 = arith.addf %380, %382 : vector<8x128xf32>
    %384 = math.tanh %383 : vector<8x128xf32>
    %cst_76 = arith.constant 1.000000e+00 : f32
    %385 = vector.broadcast %cst_76 : f32 to vector<8x128xf32>
    %386 = arith.subf %385, %379 : vector<8x128xf32>
    %387 = arith.mulf %386, %384 : vector<8x128xf32>
    %388 = arith.mulf %379, %357 : vector<8x128xf32>
    %389 = arith.addf %387, %388 : vector<8x128xf32>
    %390 = arith.addi %6, %c7_i32 : i32
    %391 = vector.broadcast %390 : i32 to vector<8x1xi32>
    %392 = arith.cmpi slt, %391, %5 : vector<8x1xi32>
    %393 = arith.extui %392 : vector<8x1xi1> to vector<8x1xi32>
    %394 = arith.sitofp %393 : vector<8x1xi32> to vector<8x1xf32>
    %395 = vector.broadcast %394 : vector<8x1xf32> to vector<8x128xf32>
    %396 = arith.mulf %395, %389 : vector<8x128xf32>
    %397 = arith.index_cast %c7_i32 : i32 to index
    %c0_77 = arith.constant 0 : index
    %c0_78 = arith.constant 0 : index
    %398 = vector.load %arg5[%397, %c0_77, %c0_78] : memref<8x8x128xf32, #tpu.memory_space<vmem>>, vector<1x8x128xf32>
    %399 = vector.shape_cast %398 : vector<1x8x128xf32> to vector<8x128xf32>
    %400 = vector.shape_cast %396 : vector<8x128xf32> to vector<1x8x128xf32>
    tpu.vector_store %arg5[%397, %c0_77, %c0_78], %400 {strides = array<i32>} : memref<8x8x128xf32, #tpu.memory_space<vmem>>, vector<1x8x128xf32>,
    %401 = vector.broadcast %394 : vector<8x1xf32> to vector<8x128xf32>
    %402 = arith.mulf %401, %389 : vector<8x128xf32>
    %cst_79 = arith.constant 1.000000e+00 : f32
    %403 = vector.broadcast %cst_79 : f32 to vector<8x1xf32>
    %404 = arith.subf %403, %394 : vector<8x1xf32>
    %405 = vector.broadcast %404 : vector<8x1xf32> to vector<8x128xf32>
    %406 = arith.mulf %405, %357 : vector<8x128xf32>
    %407 = arith.addf %402, %406 : vector<8x128xf32>
    %c8_i32_80 = arith.constant 8 : i32
    %c0_81 = arith.constant 0 : index
    %c0_82 = arith.constant 0 : index
    %408 = vector.load %arg7[%c0_81, %c0_82] : memref<8x128xf32, #tpu.memory_space<vmem>>, vector<8x128xf32>
    tpu.vector_store %arg7[%c0_81, %c0_82], %407 {strides = array<i32>} : memref<8x128xf32, #tpu.memory_space<vmem>>, vector<8x128xf32>,
    %c0_i32_83 = arith.constant 0 : i32
    %409 = arith.cmpi eq, %arg0, %c0_i32_83 : i32
    %410 = arith.extui %409 : i1 to i32
    %c0_i32_84 = arith.constant 0 : i32
    %411 = arith.cmpi ne, %410, %c0_i32_84 : i32
    scf.if %411 {
      %c0_85 = arith.constant 0 : index
      %c0_86 = arith.constant 0 : index
      %412 = vector.load %arg6[%c0_85, %c0_86] : memref<8x128xf32, #tpu.memory_space<vmem>>, vector<8x128xf32>
      tpu.vector_store %arg6[%c0_85, %c0_86], %407 {strides = array<i32>} : memref<8x128xf32, #tpu.memory_space<vmem>>, vector<8x128xf32>,
    } else {
    }
    return
  }
  func.func @transform_0(%arg0: i32) -> (i32, i32) {
    %c0_i32 = arith.constant 0 : i32
    %c0_i32_0 = arith.constant 0 : i32
    %c0_i32_1 = arith.constant 0 : i32
    return %c0_i32, %c0_i32_0 : i32, i32
  }
  func.func @transform_1(%arg0: i32) -> (i32, i32, i32) {
    %c0_i32 = arith.constant 0 : i32
    %c0_i32_0 = arith.constant 0 : i32
    %c0_i32_1 = arith.constant 0 : i32
    return %arg0, %c0_i32, %c0_i32_0 : i32, i32, i32
  }
  func.func @transform_2(%arg0: i32) -> (i32, i32) {
    %c0_i32 = arith.constant 0 : i32
    %c0_i32_0 = arith.constant 0 : i32
    %c0_i32_1 = arith.constant 0 : i32
    return %c0_i32, %c0_i32_0 : i32, i32
  }
  func.func @transform_3(%arg0: i32) -> (i32, i32) {
    %c0_i32 = arith.constant 0 : i32
    %c0_i32_0 = arith.constant 0 : i32
    %c0_i32_1 = arith.constant 0 : i32
    return %c0_i32, %c0_i32_0 : i32, i32
  }
  func.func @transform_4(%arg0: i32) -> (i32, i32, i32) {
    %c0_i32 = arith.constant 0 : i32
    %c0_i32_0 = arith.constant 0 : i32
    %c0_i32_1 = arith.constant 0 : i32
    return %arg0, %c0_i32, %c0_i32_0 : i32, i32, i32
  }
  func.func @transform_5(%arg0: i32) -> (i32, i32) {
    %c0_i32 = arith.constant 0 : i32
    %c0_i32_0 = arith.constant 0 : i32
    %c0_i32_1 = arith.constant 0 : i32
    return %c0_i32, %c0_i32_0 : i32, i32
  }
}

module attributes {stable_mosaic.version = 11 : i64} {
  func.func @_decoder_kernel(%arg0: i32, %arg1: memref<8x8x128xf32, #tpu.memory_space<vmem>>, %arg2: memref<8x8x128xf32, #tpu.memory_space<vmem>>, %arg3: memref<128x128xf32, #tpu.memory_space<vmem>>, %arg4: memref<1x128xf32, #tpu.memory_space<vmem>>, %arg5: memref<1x128xf32, #tpu.memory_space<vmem>>, %arg6: memref<1x1xf32, #tpu.memory_space<vmem>>, %arg7: memref<128x128xf32, #tpu.memory_space<vmem>>, %arg8: memref<256x384xf32, #tpu.memory_space<vmem>>, %arg9: memref<128x384xf32, #tpu.memory_space<vmem>>, %arg10: memref<1x384xf32, #tpu.memory_space<vmem>>, %arg11: memref<1x384xf32, #tpu.memory_space<vmem>>, %arg12: memref<128x128xf32, #tpu.memory_space<vmem>>, %arg13: memref<1x128xf32, #tpu.memory_space<vmem>>, %arg14: memref<8x128xf32, #tpu.memory_space<vmem>>, %arg15: memref<8x128xf32, #tpu.memory_space<vmem>>, %arg16: memref<7x8x128xf32, #tpu.memory_space<vmem>>, %arg17: memref<8x128xf32, #tpu.memory_space<vmem>>, %arg18: memref<8x256xf32, #tpu.memory_space<vmem>>) attributes {dimension_semantics = [#tpu.dimension_semantics<arbitrary>], iteration_bounds = array<i64: 1>, scalar_prefetch = 0 : i64, scratch_operands = 2 : i64, tpu.core_type = #tpu.core_type<tc>, window_params = [{pipeline_mode = #tpu.pipeline_mode<synchronous>, transform_indices = @transform_0, window_bounds = array<i64: 8, 8, 128>}, {pipeline_mode = #tpu.pipeline_mode<synchronous>, transform_indices = @transform_1, window_bounds = array<i64: 8, 8, 128>}, {pipeline_mode = #tpu.pipeline_mode<synchronous>, transform_indices = @transform_2, window_bounds = array<i64: 128, 128>}, {pipeline_mode = #tpu.pipeline_mode<synchronous>, transform_indices = @transform_3, window_bounds = array<i64: 1, 128>}, {pipeline_mode = #tpu.pipeline_mode<synchronous>, transform_indices = @transform_4, window_bounds = array<i64: 1, 128>}, {pipeline_mode = #tpu.pipeline_mode<synchronous>, transform_indices = @transform_5, window_bounds = array<i64: 1, 1>}, {pipeline_mode = #tpu.pipeline_mode<synchronous>, transform_indices = @transform_6, window_bounds = array<i64: 128, 128>}, {pipeline_mode = #tpu.pipeline_mode<synchronous>, transform_indices = @transform_7, window_bounds = array<i64: 256, 384>}, {pipeline_mode = #tpu.pipeline_mode<synchronous>, transform_indices = @transform_8, window_bounds = array<i64: 128, 384>}, {pipeline_mode = #tpu.pipeline_mode<synchronous>, transform_indices = @transform_9, window_bounds = array<i64: 1, 384>}, {pipeline_mode = #tpu.pipeline_mode<synchronous>, transform_indices = @transform_10, window_bounds = array<i64: 1, 384>}, {pipeline_mode = #tpu.pipeline_mode<synchronous>, transform_indices = @transform_11, window_bounds = array<i64: 128, 128>}, {pipeline_mode = #tpu.pipeline_mode<synchronous>, transform_indices = @transform_12, window_bounds = array<i64: 1, 128>}, {pipeline_mode = #tpu.pipeline_mode<synchronous>, transform_indices = @transform_13, window_bounds = array<i64: 8, 128>}, {pipeline_mode = #tpu.pipeline_mode<synchronous>, transform_indices = @transform_14, window_bounds = array<i64: 8, 128>}, {transform_indices = @transform_15, window_bounds = array<i64: 7, 8, 128>}]} {
    %c0_i32 = arith.constant 0 : i32
    %0 = arith.cmpi eq, %arg0, %c0_i32 : i32
    %1 = arith.extui %0 : i1 to i32
    %c0_i32_0 = arith.constant 0 : i32
    %2 = arith.cmpi ne, %1, %c0_i32_0 : i32
    scf.if %2 {
      %c0_191 = arith.constant 0 : index
      %c0_192 = arith.constant 0 : index
      %599 = vector.load %arg14[%c0_191, %c0_192] : memref<8x128xf32, #tpu.memory_space<vmem>>, vector<8x128xf32>
      %c0_193 = arith.constant 0 : index
      %c0_194 = arith.constant 0 : index
      %600 = vector.load %arg17[%c0_193, %c0_194] : memref<8x128xf32, #tpu.memory_space<vmem>>, vector<8x128xf32>
      tpu.vector_store %arg17[%c0_193, %c0_194], %599 {strides = array<i32>} : memref<8x128xf32, #tpu.memory_space<vmem>>, vector<8x128xf32>,
      %c0_195 = arith.constant 0 : index
      %c0_196 = arith.constant 0 : index
      %601 = vector.load %arg15[%c0_195, %c0_196] : memref<8x128xf32, #tpu.memory_space<vmem>>, vector<8x128xf32>
      %c0_197 = arith.constant 0 : index
      %c128_198 = arith.constant 128 : index
      %602 = vector.load %arg18[%c0_197, %c128_198] : memref<8x256xf32, #tpu.memory_space<vmem>>, vector<8x128xf32>
      tpu.vector_store %arg18[%c0_197, %c128_198], %601 {strides = array<i32>} : memref<8x256xf32, #tpu.memory_space<vmem>>, vector<8x128xf32>,
    } else {
    }
    %c0 = arith.constant 0 : index
    %c0_1 = arith.constant 0 : index
    %c0_2 = arith.constant 0 : index
    %3 = vector.load %arg1[%c0, %c0_1, %c0_2] : memref<8x8x128xf32, #tpu.memory_space<vmem>>, vector<8x8x128xf32>
    %c0_3 = arith.constant 0 : index
    %c0_4 = arith.constant 0 : index
    %c0_5 = arith.constant 0 : index
    %4 = vector.load %arg2[%c0_3, %c0_4, %c0_5] : memref<8x8x128xf32, #tpu.memory_space<vmem>>, vector<8x8x128xf32>
    %c0_6 = arith.constant 0 : index
    %c0_7 = arith.constant 0 : index
    %5 = vector.load %arg3[%c0_6, %c0_7] : memref<128x128xf32, #tpu.memory_space<vmem>>, vector<128x128xf32>
    %c0_8 = arith.constant 0 : index
    %c0_9 = arith.constant 0 : index
    %6 = vector.load %arg4[%c0_8, %c0_9] : memref<1x128xf32, #tpu.memory_space<vmem>>, vector<1x128xf32>
    %c0_10 = arith.constant 0 : index
    %c0_11 = arith.constant 0 : index
    %7 = vector.load %arg5[%c0_10, %c0_11] : memref<1x128xf32, #tpu.memory_space<vmem>>, vector<1x128xf32>
    %c0_12 = arith.constant 0 : index
    %c0_13 = arith.constant 0 : index
    %8 = vector.load %arg6[%c0_12, %c0_13] : memref<1x1xf32, #tpu.memory_space<vmem>>, vector<1x1xf32>
    %c0_14 = arith.constant 0 : index
    %c0_15 = arith.constant 0 : index
    %9 = vector.load %arg7[%c0_14, %c0_15] : memref<128x128xf32, #tpu.memory_space<vmem>>, vector<128x128xf32>
    %c0_16 = arith.constant 0 : index
    %c0_17 = arith.constant 0 : index
    %10 = vector.load %arg8[%c0_16, %c0_17] : memref<256x384xf32, #tpu.memory_space<vmem>>, vector<256x384xf32>
    %c0_18 = arith.constant 0 : index
    %c0_19 = arith.constant 0 : index
    %11 = vector.load %arg9[%c0_18, %c0_19] : memref<128x384xf32, #tpu.memory_space<vmem>>, vector<128x384xf32>
    %c0_20 = arith.constant 0 : index
    %c0_21 = arith.constant 0 : index
    %12 = vector.load %arg10[%c0_20, %c0_21] : memref<1x384xf32, #tpu.memory_space<vmem>>, vector<1x384xf32>
    %c0_22 = arith.constant 0 : index
    %c0_23 = arith.constant 0 : index
    %13 = vector.load %arg11[%c0_22, %c0_23] : memref<1x384xf32, #tpu.memory_space<vmem>>, vector<1x384xf32>
    %c0_24 = arith.constant 0 : index
    %c0_25 = arith.constant 0 : index
    %14 = vector.load %arg12[%c0_24, %c0_25] : memref<128x128xf32, #tpu.memory_space<vmem>>, vector<128x128xf32>
    %c0_26 = arith.constant 0 : index
    %c0_27 = arith.constant 0 : index
    %15 = vector.load %arg13[%c0_26, %c0_27] : memref<1x128xf32, #tpu.memory_space<vmem>>, vector<1x128xf32>
    %c0_28 = arith.constant 0 : index
    %c0_29 = arith.constant 0 : index
    %16 = vector.load %arg17[%c0_28, %c0_29] : memref<8x128xf32, #tpu.memory_space<vmem>>, vector<8x128xf32>
    %c0_i32_30 = arith.constant 0 : i32
    %cst = arith.constant dense<0.000000e+00> : vector<8x128xf32>
    %17 = tpu.matmul %16, %5, %cst {dimension_numbers = #tpu.dot_dimension_numbers<[1], [0], [0], [1], [0, 0, 1, 1], [], []>} : vector<8x128xf32>, vector<128x128xf32>, vector<8x128xf32> -> vector<8x128xf32>
    %18 = vector.broadcast %6 : vector<1x128xf32> to vector<8x128xf32>
    %19 = arith.addf %17, %18 : vector<8x128xf32>
    %20 = vector.shape_cast %19 : vector<8x128xf32> to vector<8x1x128xf32>
    %21 = vector.broadcast %20 : vector<8x1x128xf32> to vector<8x8x128xf32>
    %22 = arith.addf %4, %21 : vector<8x8x128xf32>
    %23 = math.tanh %22 : vector<8x8x128xf32>
    %24 = vector.shape_cast %7 : vector<1x128xf32> to vector<1x1x128xf32>
    %25 = vector.broadcast %24 : vector<1x1x128xf32> to vector<8x8x128xf32>
    %26 = arith.mulf %23, %25 : vector<8x8x128xf32>
    %cst_31 = arith.constant dense<0.000000e+00> : vector<8x8xf32>
    %27 = vector.multi_reduction <add>, %26, %cst_31 [2] : vector<8x8x128xf32> to vector<8x8xf32>
    %28 = vector.broadcast %8 : vector<1x1xf32> to vector<8x8xf32>
    %29 = arith.addf %27, %28 : vector<8x8xf32>
    %cst_32 = arith.constant dense<0xFF800000> : vector<8xf32>
    %30 = vector.multi_reduction <maximumf>, %29, %cst_32 [1] : vector<8x8xf32> to vector<8xf32>
    %31 = vector.shape_cast %30 : vector<8xf32> to vector<8x1xf32>
    %32 = vector.broadcast %31 : vector<8x1xf32> to vector<8x8xf32>
    %33 = arith.subf %29, %32 : vector<8x8xf32>
    %34 = math.exp %33 : vector<8x8xf32>
    %cst_33 = arith.constant dense<0.000000e+00> : vector<8xf32>
    %35 = vector.multi_reduction <add>, %34, %cst_33 [1] : vector<8x8xf32> to vector<8xf32>
    %36 = vector.shape_cast %35 : vector<8xf32> to vector<8x1xf32>
    %37 = tpu.reciprocal %36 {approx = true} : vector<8x1xf32> -> vector<8x1xf32>
    %38 = vector.broadcast %37 : vector<8x1xf32> to vector<8x8xf32>
    %39 = arith.mulf %34, %38 : vector<8x8xf32>
    %40 = vector.shape_cast %39 : vector<8x8xf32> to vector<8x8x1xf32>
    %41 = vector.broadcast %40 : vector<8x8x1xf32> to vector<8x8x128xf32>
    %42 = arith.mulf %41, %3 : vector<8x8x128xf32>
    %cst_34 = arith.constant dense<0.000000e+00> : vector<8x128xf32>
    %43 = vector.multi_reduction <add>, %42, %cst_34 [1] : vector<8x8x128xf32> to vector<8x128xf32>
    %c0_35 = arith.constant 0 : index
    %c0_36 = arith.constant 0 : index
    %44 = vector.load %arg18[%c0_35, %c0_36] : memref<8x256xf32, #tpu.memory_space<vmem>>, vector<8x128xf32>
    tpu.vector_store %arg18[%c0_35, %c0_36], %43 {strides = array<i32>} : memref<8x256xf32, #tpu.memory_space<vmem>>, vector<8x128xf32>,
    %c0_37 = arith.constant 0 : index
    %c0_38 = arith.constant 0 : index
    %45 = vector.load %arg18[%c0_37, %c0_38] : memref<8x256xf32, #tpu.memory_space<vmem>>, vector<8x256xf32>
    %cst_39 = arith.constant dense<0.000000e+00> : vector<8x384xf32>
    %46 = tpu.matmul %45, %10, %cst_39 {dimension_numbers = #tpu.dot_dimension_numbers<[1], [0], [0], [1], [0, 0, 1, 1], [], []>} : vector<8x256xf32>, vector<256x384xf32>, vector<8x384xf32> -> vector<8x384xf32>
    %47 = vector.broadcast %12 : vector<1x384xf32> to vector<8x384xf32>
    %48 = arith.addf %46, %47 : vector<8x384xf32>
    %cst_40 = arith.constant dense<0.000000e+00> : vector<8x384xf32>
    %49 = tpu.matmul %16, %11, %cst_40 {dimension_numbers = #tpu.dot_dimension_numbers<[1], [0], [0], [1], [0, 0, 1, 1], [], []>} : vector<8x128xf32>, vector<128x384xf32>, vector<8x384xf32> -> vector<8x384xf32>
    %50 = vector.broadcast %13 : vector<1x384xf32> to vector<8x384xf32>
    %51 = arith.addf %49, %50 : vector<8x384xf32>
    %52 = vector.extract_strided_slice %48 {offsets = [0, 0], sizes = [8, 128], strides = [1, 1]} : vector<8x384xf32> to vector<8x128xf32>
    %53 = vector.extract_strided_slice %51 {offsets = [0, 0], sizes = [8, 128], strides = [1, 1]} : vector<8x384xf32> to vector<8x128xf32>
    %54 = arith.addf %52, %53 : vector<8x128xf32>
    %55 = arith.negf %54 : vector<8x128xf32>
    %56 = math.exp %55 : vector<8x128xf32>
    %cst_41 = arith.constant 1.000000e+00 : f32
    %57 = vector.broadcast %cst_41 : f32 to vector<8x128xf32>
    %58 = arith.addf %57, %56 : vector<8x128xf32>
    %59 = arith.divf %57, %58 : vector<8x128xf32>
    %60 = vector.extract_strided_slice %48 {offsets = [0, 128], sizes = [8, 128], strides = [1, 1]} : vector<8x384xf32> to vector<8x128xf32>
    %61 = vector.extract_strided_slice %51 {offsets = [0, 128], sizes = [8, 128], strides = [1, 1]} : vector<8x384xf32> to vector<8x128xf32>
    %62 = arith.addf %60, %61 : vector<8x128xf32>
    %63 = arith.negf %62 : vector<8x128xf32>
    %64 = math.exp %63 : vector<8x128xf32>
    %cst_42 = arith.constant 1.000000e+00 : f32
    %65 = vector.broadcast %cst_42 : f32 to vector<8x128xf32>
    %66 = arith.addf %65, %64 : vector<8x128xf32>
    %67 = arith.divf %65, %66 : vector<8x128xf32>
    %68 = vector.extract_strided_slice %48 {offsets = [0, 256], sizes = [8, 128], strides = [1, 1]} : vector<8x384xf32> to vector<8x128xf32>
    %69 = vector.extract_strided_slice %51 {offsets = [0, 256], sizes = [8, 128], strides = [1, 1]} : vector<8x384xf32> to vector<8x128xf32>
    %70 = arith.mulf %59, %69 : vector<8x128xf32>
    %71 = arith.addf %68, %70 : vector<8x128xf32>
    %72 = math.tanh %71 : vector<8x128xf32>
    %cst_43 = arith.constant 1.000000e+00 : f32
    %73 = vector.broadcast %cst_43 : f32 to vector<8x128xf32>
    %74 = arith.subf %73, %67 : vector<8x128xf32>
    %75 = arith.mulf %74, %72 : vector<8x128xf32>
    %76 = arith.mulf %67, %16 : vector<8x128xf32>
    %77 = arith.addf %75, %76 : vector<8x128xf32>
    %cst_44 = arith.constant dense<0.000000e+00> : vector<8x128xf32>
    %78 = tpu.matmul %77, %14, %cst_44 {dimension_numbers = #tpu.dot_dimension_numbers<[1], [0], [0], [1], [0, 0, 1, 1], [], []>} : vector<8x128xf32>, vector<128x128xf32>, vector<8x128xf32> -> vector<8x128xf32>
    %79 = vector.broadcast %15 : vector<1x128xf32> to vector<8x128xf32>
    %80 = arith.addf %78, %79 : vector<8x128xf32>
    %81 = arith.index_cast %c0_i32_30 : i32 to index
    %c0_45 = arith.constant 0 : index
    %c0_46 = arith.constant 0 : index
    %82 = vector.load %arg16[%81, %c0_45, %c0_46] : memref<7x8x128xf32, #tpu.memory_space<vmem>>, vector<1x8x128xf32>
    %83 = vector.shape_cast %82 : vector<1x8x128xf32> to vector<8x128xf32>
    %84 = vector.shape_cast %80 : vector<8x128xf32> to vector<1x8x128xf32>
    tpu.vector_store %arg16[%81, %c0_45, %c0_46], %84 {strides = array<i32>} : memref<7x8x128xf32, #tpu.memory_space<vmem>>, vector<1x8x128xf32>,
    %85 = tpu.iota {dimensions = array<i32: 1>} : vector<8x128xi32>
    %cst_47 = arith.constant dense<0xFF800000> : vector<8xf32>
    %86 = vector.multi_reduction <maximumf>, %80, %cst_47 [1] : vector<8x128xf32> to vector<8xf32>
    %87 = vector.shape_cast %86 : vector<8xf32> to vector<8x1xf32>
    %88 = vector.broadcast %87 : vector<8x1xf32> to vector<8x128xf32>
    %89 = arith.cmpf oeq, %80, %88 : vector<8x128xf32>
    %c128_i32 = arith.constant 128 : i32
    %90 = vector.broadcast %c128_i32 : i32 to vector<8x128xi32>
    %91 = arith.select %89, %85, %90 : vector<8x128xi1>, vector<8x128xi32>
    %cst_48 = arith.constant dense<2147483647> : vector<8xi32>
    %92 = vector.multi_reduction <minsi>, %91, %cst_48 [1] : vector<8x128xi32> to vector<8xi32>
    %93 = vector.shape_cast %92 : vector<8xi32> to vector<8x1xi32>
    %94 = vector.broadcast %93 : vector<8x1xi32> to vector<8x128xi32>
    %95 = arith.cmpi eq, %85, %94 : vector<8x128xi32>
    %96 = arith.extui %95 : vector<8x128xi1> to vector<8x128xi32>
    %97 = arith.sitofp %96 : vector<8x128xi32> to vector<8x128xf32>
    %cst_49 = arith.constant dense<0.000000e+00> : vector<8x128xf32>
    %98 = tpu.matmul %97, %9, %cst_49 {dimension_numbers = #tpu.dot_dimension_numbers<[1], [0], [0], [1], [0, 0, 1, 1], [], []>} : vector<8x128xf32>, vector<128x128xf32>, vector<8x128xf32> -> vector<8x128xf32>
    %c0_50 = arith.constant 0 : index
    %c128 = arith.constant 128 : index
    %99 = vector.load %arg18[%c0_50, %c128] : memref<8x256xf32, #tpu.memory_space<vmem>>, vector<8x128xf32>
    tpu.vector_store %arg18[%c0_50, %c128], %98 {strides = array<i32>} : memref<8x256xf32, #tpu.memory_space<vmem>>, vector<8x128xf32>,
    %c1_i32 = arith.constant 1 : i32
    %cst_51 = arith.constant dense<0.000000e+00> : vector<8x128xf32>
    %100 = tpu.matmul %77, %5, %cst_51 {dimension_numbers = #tpu.dot_dimension_numbers<[1], [0], [0], [1], [0, 0, 1, 1], [], []>} : vector<8x128xf32>, vector<128x128xf32>, vector<8x128xf32> -> vector<8x128xf32>
    %101 = vector.broadcast %6 : vector<1x128xf32> to vector<8x128xf32>
    %102 = arith.addf %100, %101 : vector<8x128xf32>
    %103 = vector.shape_cast %102 : vector<8x128xf32> to vector<8x1x128xf32>
    %104 = vector.broadcast %103 : vector<8x1x128xf32> to vector<8x8x128xf32>
    %105 = arith.addf %4, %104 : vector<8x8x128xf32>
    %106 = math.tanh %105 : vector<8x8x128xf32>
    %107 = vector.shape_cast %7 : vector<1x128xf32> to vector<1x1x128xf32>
    %108 = vector.broadcast %107 : vector<1x1x128xf32> to vector<8x8x128xf32>
    %109 = arith.mulf %106, %108 : vector<8x8x128xf32>
    %cst_52 = arith.constant dense<0.000000e+00> : vector<8x8xf32>
    %110 = vector.multi_reduction <add>, %109, %cst_52 [2] : vector<8x8x128xf32> to vector<8x8xf32>
    %111 = vector.broadcast %8 : vector<1x1xf32> to vector<8x8xf32>
    %112 = arith.addf %110, %111 : vector<8x8xf32>
    %cst_53 = arith.constant dense<0xFF800000> : vector<8xf32>
    %113 = vector.multi_reduction <maximumf>, %112, %cst_53 [1] : vector<8x8xf32> to vector<8xf32>
    %114 = vector.shape_cast %113 : vector<8xf32> to vector<8x1xf32>
    %115 = vector.broadcast %114 : vector<8x1xf32> to vector<8x8xf32>
    %116 = arith.subf %112, %115 : vector<8x8xf32>
    %117 = math.exp %116 : vector<8x8xf32>
    %cst_54 = arith.constant dense<0.000000e+00> : vector<8xf32>
    %118 = vector.multi_reduction <add>, %117, %cst_54 [1] : vector<8x8xf32> to vector<8xf32>
    %119 = vector.shape_cast %118 : vector<8xf32> to vector<8x1xf32>
    %120 = tpu.reciprocal %119 {approx = true} : vector<8x1xf32> -> vector<8x1xf32>
    %121 = vector.broadcast %120 : vector<8x1xf32> to vector<8x8xf32>
    %122 = arith.mulf %117, %121 : vector<8x8xf32>
    %123 = vector.shape_cast %122 : vector<8x8xf32> to vector<8x8x1xf32>
    %124 = vector.broadcast %123 : vector<8x8x1xf32> to vector<8x8x128xf32>
    %125 = arith.mulf %124, %3 : vector<8x8x128xf32>
    %cst_55 = arith.constant dense<0.000000e+00> : vector<8x128xf32>
    %126 = vector.multi_reduction <add>, %125, %cst_55 [1] : vector<8x8x128xf32> to vector<8x128xf32>
    %c0_56 = arith.constant 0 : index
    %c0_57 = arith.constant 0 : index
    %127 = vector.load %arg18[%c0_56, %c0_57] : memref<8x256xf32, #tpu.memory_space<vmem>>, vector<8x128xf32>
    tpu.vector_store %arg18[%c0_56, %c0_57], %126 {strides = array<i32>} : memref<8x256xf32, #tpu.memory_space<vmem>>, vector<8x128xf32>,
    %c0_58 = arith.constant 0 : index
    %c0_59 = arith.constant 0 : index
    %128 = vector.load %arg18[%c0_58, %c0_59] : memref<8x256xf32, #tpu.memory_space<vmem>>, vector<8x256xf32>
    %cst_60 = arith.constant dense<0.000000e+00> : vector<8x384xf32>
    %129 = tpu.matmul %128, %10, %cst_60 {dimension_numbers = #tpu.dot_dimension_numbers<[1], [0], [0], [1], [0, 0, 1, 1], [], []>} : vector<8x256xf32>, vector<256x384xf32>, vector<8x384xf32> -> vector<8x384xf32>
    %130 = vector.broadcast %12 : vector<1x384xf32> to vector<8x384xf32>
    %131 = arith.addf %129, %130 : vector<8x384xf32>
    %cst_61 = arith.constant dense<0.000000e+00> : vector<8x384xf32>
    %132 = tpu.matmul %77, %11, %cst_61 {dimension_numbers = #tpu.dot_dimension_numbers<[1], [0], [0], [1], [0, 0, 1, 1], [], []>} : vector<8x128xf32>, vector<128x384xf32>, vector<8x384xf32> -> vector<8x384xf32>
    %133 = vector.broadcast %13 : vector<1x384xf32> to vector<8x384xf32>
    %134 = arith.addf %132, %133 : vector<8x384xf32>
    %135 = vector.extract_strided_slice %131 {offsets = [0, 0], sizes = [8, 128], strides = [1, 1]} : vector<8x384xf32> to vector<8x128xf32>
    %136 = vector.extract_strided_slice %134 {offsets = [0, 0], sizes = [8, 128], strides = [1, 1]} : vector<8x384xf32> to vector<8x128xf32>
    %137 = arith.addf %135, %136 : vector<8x128xf32>
    %138 = arith.negf %137 : vector<8x128xf32>
    %139 = math.exp %138 : vector<8x128xf32>
    %cst_62 = arith.constant 1.000000e+00 : f32
    %140 = vector.broadcast %cst_62 : f32 to vector<8x128xf32>
    %141 = arith.addf %140, %139 : vector<8x128xf32>
    %142 = arith.divf %140, %141 : vector<8x128xf32>
    %143 = vector.extract_strided_slice %131 {offsets = [0, 128], sizes = [8, 128], strides = [1, 1]} : vector<8x384xf32> to vector<8x128xf32>
    %144 = vector.extract_strided_slice %134 {offsets = [0, 128], sizes = [8, 128], strides = [1, 1]} : vector<8x384xf32> to vector<8x128xf32>
    %145 = arith.addf %143, %144 : vector<8x128xf32>
    %146 = arith.negf %145 : vector<8x128xf32>
    %147 = math.exp %146 : vector<8x128xf32>
    %cst_63 = arith.constant 1.000000e+00 : f32
    %148 = vector.broadcast %cst_63 : f32 to vector<8x128xf32>
    %149 = arith.addf %148, %147 : vector<8x128xf32>
    %150 = arith.divf %148, %149 : vector<8x128xf32>
    %151 = vector.extract_strided_slice %131 {offsets = [0, 256], sizes = [8, 128], strides = [1, 1]} : vector<8x384xf32> to vector<8x128xf32>
    %152 = vector.extract_strided_slice %134 {offsets = [0, 256], sizes = [8, 128], strides = [1, 1]} : vector<8x384xf32> to vector<8x128xf32>
    %153 = arith.mulf %142, %152 : vector<8x128xf32>
    %154 = arith.addf %151, %153 : vector<8x128xf32>
    %155 = math.tanh %154 : vector<8x128xf32>
    %cst_64 = arith.constant 1.000000e+00 : f32
    %156 = vector.broadcast %cst_64 : f32 to vector<8x128xf32>
    %157 = arith.subf %156, %150 : vector<8x128xf32>
    %158 = arith.mulf %157, %155 : vector<8x128xf32>
    %159 = arith.mulf %150, %77 : vector<8x128xf32>
    %160 = arith.addf %158, %159 : vector<8x128xf32>
    %cst_65 = arith.constant dense<0.000000e+00> : vector<8x128xf32>
    %161 = tpu.matmul %160, %14, %cst_65 {dimension_numbers = #tpu.dot_dimension_numbers<[1], [0], [0], [1], [0, 0, 1, 1], [], []>} : vector<8x128xf32>, vector<128x128xf32>, vector<8x128xf32> -> vector<8x128xf32>
    %162 = vector.broadcast %15 : vector<1x128xf32> to vector<8x128xf32>
    %163 = arith.addf %161, %162 : vector<8x128xf32>
    %164 = arith.index_cast %c1_i32 : i32 to index
    %c0_66 = arith.constant 0 : index
    %c0_67 = arith.constant 0 : index
    %165 = vector.load %arg16[%164, %c0_66, %c0_67] : memref<7x8x128xf32, #tpu.memory_space<vmem>>, vector<1x8x128xf32>
    %166 = vector.shape_cast %165 : vector<1x8x128xf32> to vector<8x128xf32>
    %167 = vector.shape_cast %163 : vector<8x128xf32> to vector<1x8x128xf32>
    tpu.vector_store %arg16[%164, %c0_66, %c0_67], %167 {strides = array<i32>} : memref<7x8x128xf32, #tpu.memory_space<vmem>>, vector<1x8x128xf32>,
    %168 = tpu.iota {dimensions = array<i32: 1>} : vector<8x128xi32>
    %cst_68 = arith.constant dense<0xFF800000> : vector<8xf32>
    %169 = vector.multi_reduction <maximumf>, %163, %cst_68 [1] : vector<8x128xf32> to vector<8xf32>
    %170 = vector.shape_cast %169 : vector<8xf32> to vector<8x1xf32>
    %171 = vector.broadcast %170 : vector<8x1xf32> to vector<8x128xf32>
    %172 = arith.cmpf oeq, %163, %171 : vector<8x128xf32>
    %c128_i32_69 = arith.constant 128 : i32
    %173 = vector.broadcast %c128_i32_69 : i32 to vector<8x128xi32>
    %174 = arith.select %172, %168, %173 : vector<8x128xi1>, vector<8x128xi32>
    %cst_70 = arith.constant dense<2147483647> : vector<8xi32>
    %175 = vector.multi_reduction <minsi>, %174, %cst_70 [1] : vector<8x128xi32> to vector<8xi32>
    %176 = vector.shape_cast %175 : vector<8xi32> to vector<8x1xi32>
    %177 = vector.broadcast %176 : vector<8x1xi32> to vector<8x128xi32>
    %178 = arith.cmpi eq, %168, %177 : vector<8x128xi32>
    %179 = arith.extui %178 : vector<8x128xi1> to vector<8x128xi32>
    %180 = arith.sitofp %179 : vector<8x128xi32> to vector<8x128xf32>
    %cst_71 = arith.constant dense<0.000000e+00> : vector<8x128xf32>
    %181 = tpu.matmul %180, %9, %cst_71 {dimension_numbers = #tpu.dot_dimension_numbers<[1], [0], [0], [1], [0, 0, 1, 1], [], []>} : vector<8x128xf32>, vector<128x128xf32>, vector<8x128xf32> -> vector<8x128xf32>
    %c0_72 = arith.constant 0 : index
    %c128_73 = arith.constant 128 : index
    %182 = vector.load %arg18[%c0_72, %c128_73] : memref<8x256xf32, #tpu.memory_space<vmem>>, vector<8x128xf32>
    tpu.vector_store %arg18[%c0_72, %c128_73], %181 {strides = array<i32>} : memref<8x256xf32, #tpu.memory_space<vmem>>, vector<8x128xf32>,
    %c2_i32 = arith.constant 2 : i32
    %cst_74 = arith.constant dense<0.000000e+00> : vector<8x128xf32>
    %183 = tpu.matmul %160, %5, %cst_74 {dimension_numbers = #tpu.dot_dimension_numbers<[1], [0], [0], [1], [0, 0, 1, 1], [], []>} : vector<8x128xf32>, vector<128x128xf32>, vector<8x128xf32> -> vector<8x128xf32>
    %184 = vector.broadcast %6 : vector<1x128xf32> to vector<8x128xf32>
    %185 = arith.addf %183, %184 : vector<8x128xf32>
    %186 = vector.shape_cast %185 : vector<8x128xf32> to vector<8x1x128xf32>
    %187 = vector.broadcast %186 : vector<8x1x128xf32> to vector<8x8x128xf32>
    %188 = arith.addf %4, %187 : vector<8x8x128xf32>
    %189 = math.tanh %188 : vector<8x8x128xf32>
    %190 = vector.shape_cast %7 : vector<1x128xf32> to vector<1x1x128xf32>
    %191 = vector.broadcast %190 : vector<1x1x128xf32> to vector<8x8x128xf32>
    %192 = arith.mulf %189, %191 : vector<8x8x128xf32>
    %cst_75 = arith.constant dense<0.000000e+00> : vector<8x8xf32>
    %193 = vector.multi_reduction <add>, %192, %cst_75 [2] : vector<8x8x128xf32> to vector<8x8xf32>
    %194 = vector.broadcast %8 : vector<1x1xf32> to vector<8x8xf32>
    %195 = arith.addf %193, %194 : vector<8x8xf32>
    %cst_76 = arith.constant dense<0xFF800000> : vector<8xf32>
    %196 = vector.multi_reduction <maximumf>, %195, %cst_76 [1] : vector<8x8xf32> to vector<8xf32>
    %197 = vector.shape_cast %196 : vector<8xf32> to vector<8x1xf32>
    %198 = vector.broadcast %197 : vector<8x1xf32> to vector<8x8xf32>
    %199 = arith.subf %195, %198 : vector<8x8xf32>
    %200 = math.exp %199 : vector<8x8xf32>
    %cst_77 = arith.constant dense<0.000000e+00> : vector<8xf32>
    %201 = vector.multi_reduction <add>, %200, %cst_77 [1] : vector<8x8xf32> to vector<8xf32>
    %202 = vector.shape_cast %201 : vector<8xf32> to vector<8x1xf32>
    %203 = tpu.reciprocal %202 {approx = true} : vector<8x1xf32> -> vector<8x1xf32>
    %204 = vector.broadcast %203 : vector<8x1xf32> to vector<8x8xf32>
    %205 = arith.mulf %200, %204 : vector<8x8xf32>
    %206 = vector.shape_cast %205 : vector<8x8xf32> to vector<8x8x1xf32>
    %207 = vector.broadcast %206 : vector<8x8x1xf32> to vector<8x8x128xf32>
    %208 = arith.mulf %207, %3 : vector<8x8x128xf32>
    %cst_78 = arith.constant dense<0.000000e+00> : vector<8x128xf32>
    %209 = vector.multi_reduction <add>, %208, %cst_78 [1] : vector<8x8x128xf32> to vector<8x128xf32>
    %c0_79 = arith.constant 0 : index
    %c0_80 = arith.constant 0 : index
    %210 = vector.load %arg18[%c0_79, %c0_80] : memref<8x256xf32, #tpu.memory_space<vmem>>, vector<8x128xf32>
    tpu.vector_store %arg18[%c0_79, %c0_80], %209 {strides = array<i32>} : memref<8x256xf32, #tpu.memory_space<vmem>>, vector<8x128xf32>,
    %c0_81 = arith.constant 0 : index
    %c0_82 = arith.constant 0 : index
    %211 = vector.load %arg18[%c0_81, %c0_82] : memref<8x256xf32, #tpu.memory_space<vmem>>, vector<8x256xf32>
    %cst_83 = arith.constant dense<0.000000e+00> : vector<8x384xf32>
    %212 = tpu.matmul %211, %10, %cst_83 {dimension_numbers = #tpu.dot_dimension_numbers<[1], [0], [0], [1], [0, 0, 1, 1], [], []>} : vector<8x256xf32>, vector<256x384xf32>, vector<8x384xf32> -> vector<8x384xf32>
    %213 = vector.broadcast %12 : vector<1x384xf32> to vector<8x384xf32>
    %214 = arith.addf %212, %213 : vector<8x384xf32>
    %cst_84 = arith.constant dense<0.000000e+00> : vector<8x384xf32>
    %215 = tpu.matmul %160, %11, %cst_84 {dimension_numbers = #tpu.dot_dimension_numbers<[1], [0], [0], [1], [0, 0, 1, 1], [], []>} : vector<8x128xf32>, vector<128x384xf32>, vector<8x384xf32> -> vector<8x384xf32>
    %216 = vector.broadcast %13 : vector<1x384xf32> to vector<8x384xf32>
    %217 = arith.addf %215, %216 : vector<8x384xf32>
    %218 = vector.extract_strided_slice %214 {offsets = [0, 0], sizes = [8, 128], strides = [1, 1]} : vector<8x384xf32> to vector<8x128xf32>
    %219 = vector.extract_strided_slice %217 {offsets = [0, 0], sizes = [8, 128], strides = [1, 1]} : vector<8x384xf32> to vector<8x128xf32>
    %220 = arith.addf %218, %219 : vector<8x128xf32>
    %221 = arith.negf %220 : vector<8x128xf32>
    %222 = math.exp %221 : vector<8x128xf32>
    %cst_85 = arith.constant 1.000000e+00 : f32
    %223 = vector.broadcast %cst_85 : f32 to vector<8x128xf32>
    %224 = arith.addf %223, %222 : vector<8x128xf32>
    %225 = arith.divf %223, %224 : vector<8x128xf32>
    %226 = vector.extract_strided_slice %214 {offsets = [0, 128], sizes = [8, 128], strides = [1, 1]} : vector<8x384xf32> to vector<8x128xf32>
    %227 = vector.extract_strided_slice %217 {offsets = [0, 128], sizes = [8, 128], strides = [1, 1]} : vector<8x384xf32> to vector<8x128xf32>
    %228 = arith.addf %226, %227 : vector<8x128xf32>
    %229 = arith.negf %228 : vector<8x128xf32>
    %230 = math.exp %229 : vector<8x128xf32>
    %cst_86 = arith.constant 1.000000e+00 : f32
    %231 = vector.broadcast %cst_86 : f32 to vector<8x128xf32>
    %232 = arith.addf %231, %230 : vector<8x128xf32>
    %233 = arith.divf %231, %232 : vector<8x128xf32>
    %234 = vector.extract_strided_slice %214 {offsets = [0, 256], sizes = [8, 128], strides = [1, 1]} : vector<8x384xf32> to vector<8x128xf32>
    %235 = vector.extract_strided_slice %217 {offsets = [0, 256], sizes = [8, 128], strides = [1, 1]} : vector<8x384xf32> to vector<8x128xf32>
    %236 = arith.mulf %225, %235 : vector<8x128xf32>
    %237 = arith.addf %234, %236 : vector<8x128xf32>
    %238 = math.tanh %237 : vector<8x128xf32>
    %cst_87 = arith.constant 1.000000e+00 : f32
    %239 = vector.broadcast %cst_87 : f32 to vector<8x128xf32>
    %240 = arith.subf %239, %233 : vector<8x128xf32>
    %241 = arith.mulf %240, %238 : vector<8x128xf32>
    %242 = arith.mulf %233, %160 : vector<8x128xf32>
    %243 = arith.addf %241, %242 : vector<8x128xf32>
    %cst_88 = arith.constant dense<0.000000e+00> : vector<8x128xf32>
    %244 = tpu.matmul %243, %14, %cst_88 {dimension_numbers = #tpu.dot_dimension_numbers<[1], [0], [0], [1], [0, 0, 1, 1], [], []>} : vector<8x128xf32>, vector<128x128xf32>, vector<8x128xf32> -> vector<8x128xf32>
    %245 = vector.broadcast %15 : vector<1x128xf32> to vector<8x128xf32>
    %246 = arith.addf %244, %245 : vector<8x128xf32>
    %247 = arith.index_cast %c2_i32 : i32 to index
    %c0_89 = arith.constant 0 : index
    %c0_90 = arith.constant 0 : index
    %248 = vector.load %arg16[%247, %c0_89, %c0_90] : memref<7x8x128xf32, #tpu.memory_space<vmem>>, vector<1x8x128xf32>
    %249 = vector.shape_cast %248 : vector<1x8x128xf32> to vector<8x128xf32>
    %250 = vector.shape_cast %246 : vector<8x128xf32> to vector<1x8x128xf32>
    tpu.vector_store %arg16[%247, %c0_89, %c0_90], %250 {strides = array<i32>} : memref<7x8x128xf32, #tpu.memory_space<vmem>>, vector<1x8x128xf32>,
    %251 = tpu.iota {dimensions = array<i32: 1>} : vector<8x128xi32>
    %cst_91 = arith.constant dense<0xFF800000> : vector<8xf32>
    %252 = vector.multi_reduction <maximumf>, %246, %cst_91 [1] : vector<8x128xf32> to vector<8xf32>
    %253 = vector.shape_cast %252 : vector<8xf32> to vector<8x1xf32>
    %254 = vector.broadcast %253 : vector<8x1xf32> to vector<8x128xf32>
    %255 = arith.cmpf oeq, %246, %254 : vector<8x128xf32>
    %c128_i32_92 = arith.constant 128 : i32
    %256 = vector.broadcast %c128_i32_92 : i32 to vector<8x128xi32>
    %257 = arith.select %255, %251, %256 : vector<8x128xi1>, vector<8x128xi32>
    %cst_93 = arith.constant dense<2147483647> : vector<8xi32>
    %258 = vector.multi_reduction <minsi>, %257, %cst_93 [1] : vector<8x128xi32> to vector<8xi32>
    %259 = vector.shape_cast %258 : vector<8xi32> to vector<8x1xi32>
    %260 = vector.broadcast %259 : vector<8x1xi32> to vector<8x128xi32>
    %261 = arith.cmpi eq, %251, %260 : vector<8x128xi32>
    %262 = arith.extui %261 : vector<8x128xi1> to vector<8x128xi32>
    %263 = arith.sitofp %262 : vector<8x128xi32> to vector<8x128xf32>
    %cst_94 = arith.constant dense<0.000000e+00> : vector<8x128xf32>
    %264 = tpu.matmul %263, %9, %cst_94 {dimension_numbers = #tpu.dot_dimension_numbers<[1], [0], [0], [1], [0, 0, 1, 1], [], []>} : vector<8x128xf32>, vector<128x128xf32>, vector<8x128xf32> -> vector<8x128xf32>
    %c0_95 = arith.constant 0 : index
    %c128_96 = arith.constant 128 : index
    %265 = vector.load %arg18[%c0_95, %c128_96] : memref<8x256xf32, #tpu.memory_space<vmem>>, vector<8x128xf32>
    tpu.vector_store %arg18[%c0_95, %c128_96], %264 {strides = array<i32>} : memref<8x256xf32, #tpu.memory_space<vmem>>, vector<8x128xf32>,
    %c3_i32 = arith.constant 3 : i32
    %cst_97 = arith.constant dense<0.000000e+00> : vector<8x128xf32>
    %266 = tpu.matmul %243, %5, %cst_97 {dimension_numbers = #tpu.dot_dimension_numbers<[1], [0], [0], [1], [0, 0, 1, 1], [], []>} : vector<8x128xf32>, vector<128x128xf32>, vector<8x128xf32> -> vector<8x128xf32>
    %267 = vector.broadcast %6 : vector<1x128xf32> to vector<8x128xf32>
    %268 = arith.addf %266, %267 : vector<8x128xf32>
    %269 = vector.shape_cast %268 : vector<8x128xf32> to vector<8x1x128xf32>
    %270 = vector.broadcast %269 : vector<8x1x128xf32> to vector<8x8x128xf32>
    %271 = arith.addf %4, %270 : vector<8x8x128xf32>
    %272 = math.tanh %271 : vector<8x8x128xf32>
    %273 = vector.shape_cast %7 : vector<1x128xf32> to vector<1x1x128xf32>
    %274 = vector.broadcast %273 : vector<1x1x128xf32> to vector<8x8x128xf32>
    %275 = arith.mulf %272, %274 : vector<8x8x128xf32>
    %cst_98 = arith.constant dense<0.000000e+00> : vector<8x8xf32>
    %276 = vector.multi_reduction <add>, %275, %cst_98 [2] : vector<8x8x128xf32> to vector<8x8xf32>
    %277 = vector.broadcast %8 : vector<1x1xf32> to vector<8x8xf32>
    %278 = arith.addf %276, %277 : vector<8x8xf32>
    %cst_99 = arith.constant dense<0xFF800000> : vector<8xf32>
    %279 = vector.multi_reduction <maximumf>, %278, %cst_99 [1] : vector<8x8xf32> to vector<8xf32>
    %280 = vector.shape_cast %279 : vector<8xf32> to vector<8x1xf32>
    %281 = vector.broadcast %280 : vector<8x1xf32> to vector<8x8xf32>
    %282 = arith.subf %278, %281 : vector<8x8xf32>
    %283 = math.exp %282 : vector<8x8xf32>
    %cst_100 = arith.constant dense<0.000000e+00> : vector<8xf32>
    %284 = vector.multi_reduction <add>, %283, %cst_100 [1] : vector<8x8xf32> to vector<8xf32>
    %285 = vector.shape_cast %284 : vector<8xf32> to vector<8x1xf32>
    %286 = tpu.reciprocal %285 {approx = true} : vector<8x1xf32> -> vector<8x1xf32>
    %287 = vector.broadcast %286 : vector<8x1xf32> to vector<8x8xf32>
    %288 = arith.mulf %283, %287 : vector<8x8xf32>
    %289 = vector.shape_cast %288 : vector<8x8xf32> to vector<8x8x1xf32>
    %290 = vector.broadcast %289 : vector<8x8x1xf32> to vector<8x8x128xf32>
    %291 = arith.mulf %290, %3 : vector<8x8x128xf32>
    %cst_101 = arith.constant dense<0.000000e+00> : vector<8x128xf32>
    %292 = vector.multi_reduction <add>, %291, %cst_101 [1] : vector<8x8x128xf32> to vector<8x128xf32>
    %c0_102 = arith.constant 0 : index
    %c0_103 = arith.constant 0 : index
    %293 = vector.load %arg18[%c0_102, %c0_103] : memref<8x256xf32, #tpu.memory_space<vmem>>, vector<8x128xf32>
    tpu.vector_store %arg18[%c0_102, %c0_103], %292 {strides = array<i32>} : memref<8x256xf32, #tpu.memory_space<vmem>>, vector<8x128xf32>,
    %c0_104 = arith.constant 0 : index
    %c0_105 = arith.constant 0 : index
    %294 = vector.load %arg18[%c0_104, %c0_105] : memref<8x256xf32, #tpu.memory_space<vmem>>, vector<8x256xf32>
    %cst_106 = arith.constant dense<0.000000e+00> : vector<8x384xf32>
    %295 = tpu.matmul %294, %10, %cst_106 {dimension_numbers = #tpu.dot_dimension_numbers<[1], [0], [0], [1], [0, 0, 1, 1], [], []>} : vector<8x256xf32>, vector<256x384xf32>, vector<8x384xf32> -> vector<8x384xf32>
    %296 = vector.broadcast %12 : vector<1x384xf32> to vector<8x384xf32>
    %297 = arith.addf %295, %296 : vector<8x384xf32>
    %cst_107 = arith.constant dense<0.000000e+00> : vector<8x384xf32>
    %298 = tpu.matmul %243, %11, %cst_107 {dimension_numbers = #tpu.dot_dimension_numbers<[1], [0], [0], [1], [0, 0, 1, 1], [], []>} : vector<8x128xf32>, vector<128x384xf32>, vector<8x384xf32> -> vector<8x384xf32>
    %299 = vector.broadcast %13 : vector<1x384xf32> to vector<8x384xf32>
    %300 = arith.addf %298, %299 : vector<8x384xf32>
    %301 = vector.extract_strided_slice %297 {offsets = [0, 0], sizes = [8, 128], strides = [1, 1]} : vector<8x384xf32> to vector<8x128xf32>
    %302 = vector.extract_strided_slice %300 {offsets = [0, 0], sizes = [8, 128], strides = [1, 1]} : vector<8x384xf32> to vector<8x128xf32>
    %303 = arith.addf %301, %302 : vector<8x128xf32>
    %304 = arith.negf %303 : vector<8x128xf32>
    %305 = math.exp %304 : vector<8x128xf32>
    %cst_108 = arith.constant 1.000000e+00 : f32
    %306 = vector.broadcast %cst_108 : f32 to vector<8x128xf32>
    %307 = arith.addf %306, %305 : vector<8x128xf32>
    %308 = arith.divf %306, %307 : vector<8x128xf32>
    %309 = vector.extract_strided_slice %297 {offsets = [0, 128], sizes = [8, 128], strides = [1, 1]} : vector<8x384xf32> to vector<8x128xf32>
    %310 = vector.extract_strided_slice %300 {offsets = [0, 128], sizes = [8, 128], strides = [1, 1]} : vector<8x384xf32> to vector<8x128xf32>
    %311 = arith.addf %309, %310 : vector<8x128xf32>
    %312 = arith.negf %311 : vector<8x128xf32>
    %313 = math.exp %312 : vector<8x128xf32>
    %cst_109 = arith.constant 1.000000e+00 : f32
    %314 = vector.broadcast %cst_109 : f32 to vector<8x128xf32>
    %315 = arith.addf %314, %313 : vector<8x128xf32>
    %316 = arith.divf %314, %315 : vector<8x128xf32>
    %317 = vector.extract_strided_slice %297 {offsets = [0, 256], sizes = [8, 128], strides = [1, 1]} : vector<8x384xf32> to vector<8x128xf32>
    %318 = vector.extract_strided_slice %300 {offsets = [0, 256], sizes = [8, 128], strides = [1, 1]} : vector<8x384xf32> to vector<8x128xf32>
    %319 = arith.mulf %308, %318 : vector<8x128xf32>
    %320 = arith.addf %317, %319 : vector<8x128xf32>
    %321 = math.tanh %320 : vector<8x128xf32>
    %cst_110 = arith.constant 1.000000e+00 : f32
    %322 = vector.broadcast %cst_110 : f32 to vector<8x128xf32>
    %323 = arith.subf %322, %316 : vector<8x128xf32>
    %324 = arith.mulf %323, %321 : vector<8x128xf32>
    %325 = arith.mulf %316, %243 : vector<8x128xf32>
    %326 = arith.addf %324, %325 : vector<8x128xf32>
    %cst_111 = arith.constant dense<0.000000e+00> : vector<8x128xf32>
    %327 = tpu.matmul %326, %14, %cst_111 {dimension_numbers = #tpu.dot_dimension_numbers<[1], [0], [0], [1], [0, 0, 1, 1], [], []>} : vector<8x128xf32>, vector<128x128xf32>, vector<8x128xf32> -> vector<8x128xf32>
    %328 = vector.broadcast %15 : vector<1x128xf32> to vector<8x128xf32>
    %329 = arith.addf %327, %328 : vector<8x128xf32>
    %330 = arith.index_cast %c3_i32 : i32 to index
    %c0_112 = arith.constant 0 : index
    %c0_113 = arith.constant 0 : index
    %331 = vector.load %arg16[%330, %c0_112, %c0_113] : memref<7x8x128xf32, #tpu.memory_space<vmem>>, vector<1x8x128xf32>
    %332 = vector.shape_cast %331 : vector<1x8x128xf32> to vector<8x128xf32>
    %333 = vector.shape_cast %329 : vector<8x128xf32> to vector<1x8x128xf32>
    tpu.vector_store %arg16[%330, %c0_112, %c0_113], %333 {strides = array<i32>} : memref<7x8x128xf32, #tpu.memory_space<vmem>>, vector<1x8x128xf32>,
    %334 = tpu.iota {dimensions = array<i32: 1>} : vector<8x128xi32>
    %cst_114 = arith.constant dense<0xFF800000> : vector<8xf32>
    %335 = vector.multi_reduction <maximumf>, %329, %cst_114 [1] : vector<8x128xf32> to vector<8xf32>
    %336 = vector.shape_cast %335 : vector<8xf32> to vector<8x1xf32>
    %337 = vector.broadcast %336 : vector<8x1xf32> to vector<8x128xf32>
    %338 = arith.cmpf oeq, %329, %337 : vector<8x128xf32>
    %c128_i32_115 = arith.constant 128 : i32
    %339 = vector.broadcast %c128_i32_115 : i32 to vector<8x128xi32>
    %340 = arith.select %338, %334, %339 : vector<8x128xi1>, vector<8x128xi32>
    %cst_116 = arith.constant dense<2147483647> : vector<8xi32>
    %341 = vector.multi_reduction <minsi>, %340, %cst_116 [1] : vector<8x128xi32> to vector<8xi32>
    %342 = vector.shape_cast %341 : vector<8xi32> to vector<8x1xi32>
    %343 = vector.broadcast %342 : vector<8x1xi32> to vector<8x128xi32>
    %344 = arith.cmpi eq, %334, %343 : vector<8x128xi32>
    %345 = arith.extui %344 : vector<8x128xi1> to vector<8x128xi32>
    %346 = arith.sitofp %345 : vector<8x128xi32> to vector<8x128xf32>
    %cst_117 = arith.constant dense<0.000000e+00> : vector<8x128xf32>
    %347 = tpu.matmul %346, %9, %cst_117 {dimension_numbers = #tpu.dot_dimension_numbers<[1], [0], [0], [1], [0, 0, 1, 1], [], []>} : vector<8x128xf32>, vector<128x128xf32>, vector<8x128xf32> -> vector<8x128xf32>
    %c0_118 = arith.constant 0 : index
    %c128_119 = arith.constant 128 : index
    %348 = vector.load %arg18[%c0_118, %c128_119] : memref<8x256xf32, #tpu.memory_space<vmem>>, vector<8x128xf32>
    tpu.vector_store %arg18[%c0_118, %c128_119], %347 {strides = array<i32>} : memref<8x256xf32, #tpu.memory_space<vmem>>, vector<8x128xf32>,
    %c4_i32 = arith.constant 4 : i32
    %cst_120 = arith.constant dense<0.000000e+00> : vector<8x128xf32>
    %349 = tpu.matmul %326, %5, %cst_120 {dimension_numbers = #tpu.dot_dimension_numbers<[1], [0], [0], [1], [0, 0, 1, 1], [], []>} : vector<8x128xf32>, vector<128x128xf32>, vector<8x128xf32> -> vector<8x128xf32>
    %350 = vector.broadcast %6 : vector<1x128xf32> to vector<8x128xf32>
    %351 = arith.addf %349, %350 : vector<8x128xf32>
    %352 = vector.shape_cast %351 : vector<8x128xf32> to vector<8x1x128xf32>
    %353 = vector.broadcast %352 : vector<8x1x128xf32> to vector<8x8x128xf32>
    %354 = arith.addf %4, %353 : vector<8x8x128xf32>
    %355 = math.tanh %354 : vector<8x8x128xf32>
    %356 = vector.shape_cast %7 : vector<1x128xf32> to vector<1x1x128xf32>
    %357 = vector.broadcast %356 : vector<1x1x128xf32> to vector<8x8x128xf32>
    %358 = arith.mulf %355, %357 : vector<8x8x128xf32>
    %cst_121 = arith.constant dense<0.000000e+00> : vector<8x8xf32>
    %359 = vector.multi_reduction <add>, %358, %cst_121 [2] : vector<8x8x128xf32> to vector<8x8xf32>
    %360 = vector.broadcast %8 : vector<1x1xf32> to vector<8x8xf32>
    %361 = arith.addf %359, %360 : vector<8x8xf32>
    %cst_122 = arith.constant dense<0xFF800000> : vector<8xf32>
    %362 = vector.multi_reduction <maximumf>, %361, %cst_122 [1] : vector<8x8xf32> to vector<8xf32>
    %363 = vector.shape_cast %362 : vector<8xf32> to vector<8x1xf32>
    %364 = vector.broadcast %363 : vector<8x1xf32> to vector<8x8xf32>
    %365 = arith.subf %361, %364 : vector<8x8xf32>
    %366 = math.exp %365 : vector<8x8xf32>
    %cst_123 = arith.constant dense<0.000000e+00> : vector<8xf32>
    %367 = vector.multi_reduction <add>, %366, %cst_123 [1] : vector<8x8xf32> to vector<8xf32>
    %368 = vector.shape_cast %367 : vector<8xf32> to vector<8x1xf32>
    %369 = tpu.reciprocal %368 {approx = true} : vector<8x1xf32> -> vector<8x1xf32>
    %370 = vector.broadcast %369 : vector<8x1xf32> to vector<8x8xf32>
    %371 = arith.mulf %366, %370 : vector<8x8xf32>
    %372 = vector.shape_cast %371 : vector<8x8xf32> to vector<8x8x1xf32>
    %373 = vector.broadcast %372 : vector<8x8x1xf32> to vector<8x8x128xf32>
    %374 = arith.mulf %373, %3 : vector<8x8x128xf32>
    %cst_124 = arith.constant dense<0.000000e+00> : vector<8x128xf32>
    %375 = vector.multi_reduction <add>, %374, %cst_124 [1] : vector<8x8x128xf32> to vector<8x128xf32>
    %c0_125 = arith.constant 0 : index
    %c0_126 = arith.constant 0 : index
    %376 = vector.load %arg18[%c0_125, %c0_126] : memref<8x256xf32, #tpu.memory_space<vmem>>, vector<8x128xf32>
    tpu.vector_store %arg18[%c0_125, %c0_126], %375 {strides = array<i32>} : memref<8x256xf32, #tpu.memory_space<vmem>>, vector<8x128xf32>,
    %c0_127 = arith.constant 0 : index
    %c0_128 = arith.constant 0 : index
    %377 = vector.load %arg18[%c0_127, %c0_128] : memref<8x256xf32, #tpu.memory_space<vmem>>, vector<8x256xf32>
    %cst_129 = arith.constant dense<0.000000e+00> : vector<8x384xf32>
    %378 = tpu.matmul %377, %10, %cst_129 {dimension_numbers = #tpu.dot_dimension_numbers<[1], [0], [0], [1], [0, 0, 1, 1], [], []>} : vector<8x256xf32>, vector<256x384xf32>, vector<8x384xf32> -> vector<8x384xf32>
    %379 = vector.broadcast %12 : vector<1x384xf32> to vector<8x384xf32>
    %380 = arith.addf %378, %379 : vector<8x384xf32>
    %cst_130 = arith.constant dense<0.000000e+00> : vector<8x384xf32>
    %381 = tpu.matmul %326, %11, %cst_130 {dimension_numbers = #tpu.dot_dimension_numbers<[1], [0], [0], [1], [0, 0, 1, 1], [], []>} : vector<8x128xf32>, vector<128x384xf32>, vector<8x384xf32> -> vector<8x384xf32>
    %382 = vector.broadcast %13 : vector<1x384xf32> to vector<8x384xf32>
    %383 = arith.addf %381, %382 : vector<8x384xf32>
    %384 = vector.extract_strided_slice %380 {offsets = [0, 0], sizes = [8, 128], strides = [1, 1]} : vector<8x384xf32> to vector<8x128xf32>
    %385 = vector.extract_strided_slice %383 {offsets = [0, 0], sizes = [8, 128], strides = [1, 1]} : vector<8x384xf32> to vector<8x128xf32>
    %386 = arith.addf %384, %385 : vector<8x128xf32>
    %387 = arith.negf %386 : vector<8x128xf32>
    %388 = math.exp %387 : vector<8x128xf32>
    %cst_131 = arith.constant 1.000000e+00 : f32
    %389 = vector.broadcast %cst_131 : f32 to vector<8x128xf32>
    %390 = arith.addf %389, %388 : vector<8x128xf32>
    %391 = arith.divf %389, %390 : vector<8x128xf32>
    %392 = vector.extract_strided_slice %380 {offsets = [0, 128], sizes = [8, 128], strides = [1, 1]} : vector<8x384xf32> to vector<8x128xf32>
    %393 = vector.extract_strided_slice %383 {offsets = [0, 128], sizes = [8, 128], strides = [1, 1]} : vector<8x384xf32> to vector<8x128xf32>
    %394 = arith.addf %392, %393 : vector<8x128xf32>
    %395 = arith.negf %394 : vector<8x128xf32>
    %396 = math.exp %395 : vector<8x128xf32>
    %cst_132 = arith.constant 1.000000e+00 : f32
    %397 = vector.broadcast %cst_132 : f32 to vector<8x128xf32>
    %398 = arith.addf %397, %396 : vector<8x128xf32>
    %399 = arith.divf %397, %398 : vector<8x128xf32>
    %400 = vector.extract_strided_slice %380 {offsets = [0, 256], sizes = [8, 128], strides = [1, 1]} : vector<8x384xf32> to vector<8x128xf32>
    %401 = vector.extract_strided_slice %383 {offsets = [0, 256], sizes = [8, 128], strides = [1, 1]} : vector<8x384xf32> to vector<8x128xf32>
    %402 = arith.mulf %391, %401 : vector<8x128xf32>
    %403 = arith.addf %400, %402 : vector<8x128xf32>
    %404 = math.tanh %403 : vector<8x128xf32>
    %cst_133 = arith.constant 1.000000e+00 : f32
    %405 = vector.broadcast %cst_133 : f32 to vector<8x128xf32>
    %406 = arith.subf %405, %399 : vector<8x128xf32>
    %407 = arith.mulf %406, %404 : vector<8x128xf32>
    %408 = arith.mulf %399, %326 : vector<8x128xf32>
    %409 = arith.addf %407, %408 : vector<8x128xf32>
    %cst_134 = arith.constant dense<0.000000e+00> : vector<8x128xf32>
    %410 = tpu.matmul %409, %14, %cst_134 {dimension_numbers = #tpu.dot_dimension_numbers<[1], [0], [0], [1], [0, 0, 1, 1], [], []>} : vector<8x128xf32>, vector<128x128xf32>, vector<8x128xf32> -> vector<8x128xf32>
    %411 = vector.broadcast %15 : vector<1x128xf32> to vector<8x128xf32>
    %412 = arith.addf %410, %411 : vector<8x128xf32>
    %413 = arith.index_cast %c4_i32 : i32 to index
    %c0_135 = arith.constant 0 : index
    %c0_136 = arith.constant 0 : index
    %414 = vector.load %arg16[%413, %c0_135, %c0_136] : memref<7x8x128xf32, #tpu.memory_space<vmem>>, vector<1x8x128xf32>
    %415 = vector.shape_cast %414 : vector<1x8x128xf32> to vector<8x128xf32>
    %416 = vector.shape_cast %412 : vector<8x128xf32> to vector<1x8x128xf32>
    tpu.vector_store %arg16[%413, %c0_135, %c0_136], %416 {strides = array<i32>} : memref<7x8x128xf32, #tpu.memory_space<vmem>>, vector<1x8x128xf32>,
    %417 = tpu.iota {dimensions = array<i32: 1>} : vector<8x128xi32>
    %cst_137 = arith.constant dense<0xFF800000> : vector<8xf32>
    %418 = vector.multi_reduction <maximumf>, %412, %cst_137 [1] : vector<8x128xf32> to vector<8xf32>
    %419 = vector.shape_cast %418 : vector<8xf32> to vector<8x1xf32>
    %420 = vector.broadcast %419 : vector<8x1xf32> to vector<8x128xf32>
    %421 = arith.cmpf oeq, %412, %420 : vector<8x128xf32>
    %c128_i32_138 = arith.constant 128 : i32
    %422 = vector.broadcast %c128_i32_138 : i32 to vector<8x128xi32>
    %423 = arith.select %421, %417, %422 : vector<8x128xi1>, vector<8x128xi32>
    %cst_139 = arith.constant dense<2147483647> : vector<8xi32>
    %424 = vector.multi_reduction <minsi>, %423, %cst_139 [1] : vector<8x128xi32> to vector<8xi32>
    %425 = vector.shape_cast %424 : vector<8xi32> to vector<8x1xi32>
    %426 = vector.broadcast %425 : vector<8x1xi32> to vector<8x128xi32>
    %427 = arith.cmpi eq, %417, %426 : vector<8x128xi32>
    %428 = arith.extui %427 : vector<8x128xi1> to vector<8x128xi32>
    %429 = arith.sitofp %428 : vector<8x128xi32> to vector<8x128xf32>
    %cst_140 = arith.constant dense<0.000000e+00> : vector<8x128xf32>
    %430 = tpu.matmul %429, %9, %cst_140 {dimension_numbers = #tpu.dot_dimension_numbers<[1], [0], [0], [1], [0, 0, 1, 1], [], []>} : vector<8x128xf32>, vector<128x128xf32>, vector<8x128xf32> -> vector<8x128xf32>
    %c0_141 = arith.constant 0 : index
    %c128_142 = arith.constant 128 : index
    %431 = vector.load %arg18[%c0_141, %c128_142] : memref<8x256xf32, #tpu.memory_space<vmem>>, vector<8x128xf32>
    tpu.vector_store %arg18[%c0_141, %c128_142], %430 {strides = array<i32>} : memref<8x256xf32, #tpu.memory_space<vmem>>, vector<8x128xf32>,
    %c5_i32 = arith.constant 5 : i32
    %cst_143 = arith.constant dense<0.000000e+00> : vector<8x128xf32>
    %432 = tpu.matmul %409, %5, %cst_143 {dimension_numbers = #tpu.dot_dimension_numbers<[1], [0], [0], [1], [0, 0, 1, 1], [], []>} : vector<8x128xf32>, vector<128x128xf32>, vector<8x128xf32> -> vector<8x128xf32>
    %433 = vector.broadcast %6 : vector<1x128xf32> to vector<8x128xf32>
    %434 = arith.addf %432, %433 : vector<8x128xf32>
    %435 = vector.shape_cast %434 : vector<8x128xf32> to vector<8x1x128xf32>
    %436 = vector.broadcast %435 : vector<8x1x128xf32> to vector<8x8x128xf32>
    %437 = arith.addf %4, %436 : vector<8x8x128xf32>
    %438 = math.tanh %437 : vector<8x8x128xf32>
    %439 = vector.shape_cast %7 : vector<1x128xf32> to vector<1x1x128xf32>
    %440 = vector.broadcast %439 : vector<1x1x128xf32> to vector<8x8x128xf32>
    %441 = arith.mulf %438, %440 : vector<8x8x128xf32>
    %cst_144 = arith.constant dense<0.000000e+00> : vector<8x8xf32>
    %442 = vector.multi_reduction <add>, %441, %cst_144 [2] : vector<8x8x128xf32> to vector<8x8xf32>
    %443 = vector.broadcast %8 : vector<1x1xf32> to vector<8x8xf32>
    %444 = arith.addf %442, %443 : vector<8x8xf32>
    %cst_145 = arith.constant dense<0xFF800000> : vector<8xf32>
    %445 = vector.multi_reduction <maximumf>, %444, %cst_145 [1] : vector<8x8xf32> to vector<8xf32>
    %446 = vector.shape_cast %445 : vector<8xf32> to vector<8x1xf32>
    %447 = vector.broadcast %446 : vector<8x1xf32> to vector<8x8xf32>
    %448 = arith.subf %444, %447 : vector<8x8xf32>
    %449 = math.exp %448 : vector<8x8xf32>
    %cst_146 = arith.constant dense<0.000000e+00> : vector<8xf32>
    %450 = vector.multi_reduction <add>, %449, %cst_146 [1] : vector<8x8xf32> to vector<8xf32>
    %451 = vector.shape_cast %450 : vector<8xf32> to vector<8x1xf32>
    %452 = tpu.reciprocal %451 {approx = true} : vector<8x1xf32> -> vector<8x1xf32>
    %453 = vector.broadcast %452 : vector<8x1xf32> to vector<8x8xf32>
    %454 = arith.mulf %449, %453 : vector<8x8xf32>
    %455 = vector.shape_cast %454 : vector<8x8xf32> to vector<8x8x1xf32>
    %456 = vector.broadcast %455 : vector<8x8x1xf32> to vector<8x8x128xf32>
    %457 = arith.mulf %456, %3 : vector<8x8x128xf32>
    %cst_147 = arith.constant dense<0.000000e+00> : vector<8x128xf32>
    %458 = vector.multi_reduction <add>, %457, %cst_147 [1] : vector<8x8x128xf32> to vector<8x128xf32>
    %c0_148 = arith.constant 0 : index
    %c0_149 = arith.constant 0 : index
    %459 = vector.load %arg18[%c0_148, %c0_149] : memref<8x256xf32, #tpu.memory_space<vmem>>, vector<8x128xf32>
    tpu.vector_store %arg18[%c0_148, %c0_149], %458 {strides = array<i32>} : memref<8x256xf32, #tpu.memory_space<vmem>>, vector<8x128xf32>,
    %c0_150 = arith.constant 0 : index
    %c0_151 = arith.constant 0 : index
    %460 = vector.load %arg18[%c0_150, %c0_151] : memref<8x256xf32, #tpu.memory_space<vmem>>, vector<8x256xf32>
    %cst_152 = arith.constant dense<0.000000e+00> : vector<8x384xf32>
    %461 = tpu.matmul %460, %10, %cst_152 {dimension_numbers = #tpu.dot_dimension_numbers<[1], [0], [0], [1], [0, 0, 1, 1], [], []>} : vector<8x256xf32>, vector<256x384xf32>, vector<8x384xf32> -> vector<8x384xf32>
    %462 = vector.broadcast %12 : vector<1x384xf32> to vector<8x384xf32>
    %463 = arith.addf %461, %462 : vector<8x384xf32>
    %cst_153 = arith.constant dense<0.000000e+00> : vector<8x384xf32>
    %464 = tpu.matmul %409, %11, %cst_153 {dimension_numbers = #tpu.dot_dimension_numbers<[1], [0], [0], [1], [0, 0, 1, 1], [], []>} : vector<8x128xf32>, vector<128x384xf32>, vector<8x384xf32> -> vector<8x384xf32>
    %465 = vector.broadcast %13 : vector<1x384xf32> to vector<8x384xf32>
    %466 = arith.addf %464, %465 : vector<8x384xf32>
    %467 = vector.extract_strided_slice %463 {offsets = [0, 0], sizes = [8, 128], strides = [1, 1]} : vector<8x384xf32> to vector<8x128xf32>
    %468 = vector.extract_strided_slice %466 {offsets = [0, 0], sizes = [8, 128], strides = [1, 1]} : vector<8x384xf32> to vector<8x128xf32>
    %469 = arith.addf %467, %468 : vector<8x128xf32>
    %470 = arith.negf %469 : vector<8x128xf32>
    %471 = math.exp %470 : vector<8x128xf32>
    %cst_154 = arith.constant 1.000000e+00 : f32
    %472 = vector.broadcast %cst_154 : f32 to vector<8x128xf32>
    %473 = arith.addf %472, %471 : vector<8x128xf32>
    %474 = arith.divf %472, %473 : vector<8x128xf32>
    %475 = vector.extract_strided_slice %463 {offsets = [0, 128], sizes = [8, 128], strides = [1, 1]} : vector<8x384xf32> to vector<8x128xf32>
    %476 = vector.extract_strided_slice %466 {offsets = [0, 128], sizes = [8, 128], strides = [1, 1]} : vector<8x384xf32> to vector<8x128xf32>
    %477 = arith.addf %475, %476 : vector<8x128xf32>
    %478 = arith.negf %477 : vector<8x128xf32>
    %479 = math.exp %478 : vector<8x128xf32>
    %cst_155 = arith.constant 1.000000e+00 : f32
    %480 = vector.broadcast %cst_155 : f32 to vector<8x128xf32>
    %481 = arith.addf %480, %479 : vector<8x128xf32>
    %482 = arith.divf %480, %481 : vector<8x128xf32>
    %483 = vector.extract_strided_slice %463 {offsets = [0, 256], sizes = [8, 128], strides = [1, 1]} : vector<8x384xf32> to vector<8x128xf32>
    %484 = vector.extract_strided_slice %466 {offsets = [0, 256], sizes = [8, 128], strides = [1, 1]} : vector<8x384xf32> to vector<8x128xf32>
    %485 = arith.mulf %474, %484 : vector<8x128xf32>
    %486 = arith.addf %483, %485 : vector<8x128xf32>
    %487 = math.tanh %486 : vector<8x128xf32>
    %cst_156 = arith.constant 1.000000e+00 : f32
    %488 = vector.broadcast %cst_156 : f32 to vector<8x128xf32>
    %489 = arith.subf %488, %482 : vector<8x128xf32>
    %490 = arith.mulf %489, %487 : vector<8x128xf32>
    %491 = arith.mulf %482, %409 : vector<8x128xf32>
    %492 = arith.addf %490, %491 : vector<8x128xf32>
    %cst_157 = arith.constant dense<0.000000e+00> : vector<8x128xf32>
    %493 = tpu.matmul %492, %14, %cst_157 {dimension_numbers = #tpu.dot_dimension_numbers<[1], [0], [0], [1], [0, 0, 1, 1], [], []>} : vector<8x128xf32>, vector<128x128xf32>, vector<8x128xf32> -> vector<8x128xf32>
    %494 = vector.broadcast %15 : vector<1x128xf32> to vector<8x128xf32>
    %495 = arith.addf %493, %494 : vector<8x128xf32>
    %496 = arith.index_cast %c5_i32 : i32 to index
    %c0_158 = arith.constant 0 : index
    %c0_159 = arith.constant 0 : index
    %497 = vector.load %arg16[%496, %c0_158, %c0_159] : memref<7x8x128xf32, #tpu.memory_space<vmem>>, vector<1x8x128xf32>
    %498 = vector.shape_cast %497 : vector<1x8x128xf32> to vector<8x128xf32>
    %499 = vector.shape_cast %495 : vector<8x128xf32> to vector<1x8x128xf32>
    tpu.vector_store %arg16[%496, %c0_158, %c0_159], %499 {strides = array<i32>} : memref<7x8x128xf32, #tpu.memory_space<vmem>>, vector<1x8x128xf32>,
    %500 = tpu.iota {dimensions = array<i32: 1>} : vector<8x128xi32>
    %cst_160 = arith.constant dense<0xFF800000> : vector<8xf32>
    %501 = vector.multi_reduction <maximumf>, %495, %cst_160 [1] : vector<8x128xf32> to vector<8xf32>
    %502 = vector.shape_cast %501 : vector<8xf32> to vector<8x1xf32>
    %503 = vector.broadcast %502 : vector<8x1xf32> to vector<8x128xf32>
    %504 = arith.cmpf oeq, %495, %503 : vector<8x128xf32>
    %c128_i32_161 = arith.constant 128 : i32
    %505 = vector.broadcast %c128_i32_161 : i32 to vector<8x128xi32>
    %506 = arith.select %504, %500, %505 : vector<8x128xi1>, vector<8x128xi32>
    %cst_162 = arith.constant dense<2147483647> : vector<8xi32>
    %507 = vector.multi_reduction <minsi>, %506, %cst_162 [1] : vector<8x128xi32> to vector<8xi32>
    %508 = vector.shape_cast %507 : vector<8xi32> to vector<8x1xi32>
    %509 = vector.broadcast %508 : vector<8x1xi32> to vector<8x128xi32>
    %510 = arith.cmpi eq, %500, %509 : vector<8x128xi32>
    %511 = arith.extui %510 : vector<8x128xi1> to vector<8x128xi32>
    %512 = arith.sitofp %511 : vector<8x128xi32> to vector<8x128xf32>
    %cst_163 = arith.constant dense<0.000000e+00> : vector<8x128xf32>
    %513 = tpu.matmul %512, %9, %cst_163 {dimension_numbers = #tpu.dot_dimension_numbers<[1], [0], [0], [1], [0, 0, 1, 1], [], []>} : vector<8x128xf32>, vector<128x128xf32>, vector<8x128xf32> -> vector<8x128xf32>
    %c0_164 = arith.constant 0 : index
    %c128_165 = arith.constant 128 : index
    %514 = vector.load %arg18[%c0_164, %c128_165] : memref<8x256xf32, #tpu.memory_space<vmem>>, vector<8x128xf32>
    tpu.vector_store %arg18[%c0_164, %c128_165], %513 {strides = array<i32>} : memref<8x256xf32, #tpu.memory_space<vmem>>, vector<8x128xf32>,
    %c6_i32 = arith.constant 6 : i32
    %cst_166 = arith.constant dense<0.000000e+00> : vector<8x128xf32>
    %515 = tpu.matmul %492, %5, %cst_166 {dimension_numbers = #tpu.dot_dimension_numbers<[1], [0], [0], [1], [0, 0, 1, 1], [], []>} : vector<8x128xf32>, vector<128x128xf32>, vector<8x128xf32> -> vector<8x128xf32>
    %516 = vector.broadcast %6 : vector<1x128xf32> to vector<8x128xf32>
    %517 = arith.addf %515, %516 : vector<8x128xf32>
    %518 = vector.shape_cast %517 : vector<8x128xf32> to vector<8x1x128xf32>
    %519 = vector.broadcast %518 : vector<8x1x128xf32> to vector<8x8x128xf32>
    %520 = arith.addf %4, %519 : vector<8x8x128xf32>
    %521 = math.tanh %520 : vector<8x8x128xf32>
    %522 = vector.shape_cast %7 : vector<1x128xf32> to vector<1x1x128xf32>
    %523 = vector.broadcast %522 : vector<1x1x128xf32> to vector<8x8x128xf32>
    %524 = arith.mulf %521, %523 : vector<8x8x128xf32>
    %cst_167 = arith.constant dense<0.000000e+00> : vector<8x8xf32>
    %525 = vector.multi_reduction <add>, %524, %cst_167 [2] : vector<8x8x128xf32> to vector<8x8xf32>
    %526 = vector.broadcast %8 : vector<1x1xf32> to vector<8x8xf32>
    %527 = arith.addf %525, %526 : vector<8x8xf32>
    %cst_168 = arith.constant dense<0xFF800000> : vector<8xf32>
    %528 = vector.multi_reduction <maximumf>, %527, %cst_168 [1] : vector<8x8xf32> to vector<8xf32>
    %529 = vector.shape_cast %528 : vector<8xf32> to vector<8x1xf32>
    %530 = vector.broadcast %529 : vector<8x1xf32> to vector<8x8xf32>
    %531 = arith.subf %527, %530 : vector<8x8xf32>
    %532 = math.exp %531 : vector<8x8xf32>
    %cst_169 = arith.constant dense<0.000000e+00> : vector<8xf32>
    %533 = vector.multi_reduction <add>, %532, %cst_169 [1] : vector<8x8xf32> to vector<8xf32>
    %534 = vector.shape_cast %533 : vector<8xf32> to vector<8x1xf32>
    %535 = tpu.reciprocal %534 {approx = true} : vector<8x1xf32> -> vector<8x1xf32>
    %536 = vector.broadcast %535 : vector<8x1xf32> to vector<8x8xf32>
    %537 = arith.mulf %532, %536 : vector<8x8xf32>
    %538 = vector.shape_cast %537 : vector<8x8xf32> to vector<8x8x1xf32>
    %539 = vector.broadcast %538 : vector<8x8x1xf32> to vector<8x8x128xf32>
    %540 = arith.mulf %539, %3 : vector<8x8x128xf32>
    %cst_170 = arith.constant dense<0.000000e+00> : vector<8x128xf32>
    %541 = vector.multi_reduction <add>, %540, %cst_170 [1] : vector<8x8x128xf32> to vector<8x128xf32>
    %c0_171 = arith.constant 0 : index
    %c0_172 = arith.constant 0 : index
    %542 = vector.load %arg18[%c0_171, %c0_172] : memref<8x256xf32, #tpu.memory_space<vmem>>, vector<8x128xf32>
    tpu.vector_store %arg18[%c0_171, %c0_172], %541 {strides = array<i32>} : memref<8x256xf32, #tpu.memory_space<vmem>>, vector<8x128xf32>,
    %c0_173 = arith.constant 0 : index
    %c0_174 = arith.constant 0 : index
    %543 = vector.load %arg18[%c0_173, %c0_174] : memref<8x256xf32, #tpu.memory_space<vmem>>, vector<8x256xf32>
    %cst_175 = arith.constant dense<0.000000e+00> : vector<8x384xf32>
    %544 = tpu.matmul %543, %10, %cst_175 {dimension_numbers = #tpu.dot_dimension_numbers<[1], [0], [0], [1], [0, 0, 1, 1], [], []>} : vector<8x256xf32>, vector<256x384xf32>, vector<8x384xf32> -> vector<8x384xf32>
    %545 = vector.broadcast %12 : vector<1x384xf32> to vector<8x384xf32>
    %546 = arith.addf %544, %545 : vector<8x384xf32>
    %cst_176 = arith.constant dense<0.000000e+00> : vector<8x384xf32>
    %547 = tpu.matmul %492, %11, %cst_176 {dimension_numbers = #tpu.dot_dimension_numbers<[1], [0], [0], [1], [0, 0, 1, 1], [], []>} : vector<8x128xf32>, vector<128x384xf32>, vector<8x384xf32> -> vector<8x384xf32>
    %548 = vector.broadcast %13 : vector<1x384xf32> to vector<8x384xf32>
    %549 = arith.addf %547, %548 : vector<8x384xf32>
    %550 = vector.extract_strided_slice %546 {offsets = [0, 0], sizes = [8, 128], strides = [1, 1]} : vector<8x384xf32> to vector<8x128xf32>
    %551 = vector.extract_strided_slice %549 {offsets = [0, 0], sizes = [8, 128], strides = [1, 1]} : vector<8x384xf32> to vector<8x128xf32>
    %552 = arith.addf %550, %551 : vector<8x128xf32>
    %553 = arith.negf %552 : vector<8x128xf32>
    %554 = math.exp %553 : vector<8x128xf32>
    %cst_177 = arith.constant 1.000000e+00 : f32
    %555 = vector.broadcast %cst_177 : f32 to vector<8x128xf32>
    %556 = arith.addf %555, %554 : vector<8x128xf32>
    %557 = arith.divf %555, %556 : vector<8x128xf32>
    %558 = vector.extract_strided_slice %546 {offsets = [0, 128], sizes = [8, 128], strides = [1, 1]} : vector<8x384xf32> to vector<8x128xf32>
    %559 = vector.extract_strided_slice %549 {offsets = [0, 128], sizes = [8, 128], strides = [1, 1]} : vector<8x384xf32> to vector<8x128xf32>
    %560 = arith.addf %558, %559 : vector<8x128xf32>
    %561 = arith.negf %560 : vector<8x128xf32>
    %562 = math.exp %561 : vector<8x128xf32>
    %cst_178 = arith.constant 1.000000e+00 : f32
    %563 = vector.broadcast %cst_178 : f32 to vector<8x128xf32>
    %564 = arith.addf %563, %562 : vector<8x128xf32>
    %565 = arith.divf %563, %564 : vector<8x128xf32>
    %566 = vector.extract_strided_slice %546 {offsets = [0, 256], sizes = [8, 128], strides = [1, 1]} : vector<8x384xf32> to vector<8x128xf32>
    %567 = vector.extract_strided_slice %549 {offsets = [0, 256], sizes = [8, 128], strides = [1, 1]} : vector<8x384xf32> to vector<8x128xf32>
    %568 = arith.mulf %557, %567 : vector<8x128xf32>
    %569 = arith.addf %566, %568 : vector<8x128xf32>
    %570 = math.tanh %569 : vector<8x128xf32>
    %cst_179 = arith.constant 1.000000e+00 : f32
    %571 = vector.broadcast %cst_179 : f32 to vector<8x128xf32>
    %572 = arith.subf %571, %565 : vector<8x128xf32>
    %573 = arith.mulf %572, %570 : vector<8x128xf32>
    %574 = arith.mulf %565, %492 : vector<8x128xf32>
    %575 = arith.addf %573, %574 : vector<8x128xf32>
    %cst_180 = arith.constant dense<0.000000e+00> : vector<8x128xf32>
    %576 = tpu.matmul %575, %14, %cst_180 {dimension_numbers = #tpu.dot_dimension_numbers<[1], [0], [0], [1], [0, 0, 1, 1], [], []>} : vector<8x128xf32>, vector<128x128xf32>, vector<8x128xf32> -> vector<8x128xf32>
    %577 = vector.broadcast %15 : vector<1x128xf32> to vector<8x128xf32>
    %578 = arith.addf %576, %577 : vector<8x128xf32>
    %579 = arith.index_cast %c6_i32 : i32 to index
    %c0_181 = arith.constant 0 : index
    %c0_182 = arith.constant 0 : index
    %580 = vector.load %arg16[%579, %c0_181, %c0_182] : memref<7x8x128xf32, #tpu.memory_space<vmem>>, vector<1x8x128xf32>
    %581 = vector.shape_cast %580 : vector<1x8x128xf32> to vector<8x128xf32>
    %582 = vector.shape_cast %578 : vector<8x128xf32> to vector<1x8x128xf32>
    tpu.vector_store %arg16[%579, %c0_181, %c0_182], %582 {strides = array<i32>} : memref<7x8x128xf32, #tpu.memory_space<vmem>>, vector<1x8x128xf32>,
    %583 = tpu.iota {dimensions = array<i32: 1>} : vector<8x128xi32>
    %cst_183 = arith.constant dense<0xFF800000> : vector<8xf32>
    %584 = vector.multi_reduction <maximumf>, %578, %cst_183 [1] : vector<8x128xf32> to vector<8xf32>
    %585 = vector.shape_cast %584 : vector<8xf32> to vector<8x1xf32>
    %586 = vector.broadcast %585 : vector<8x1xf32> to vector<8x128xf32>
    %587 = arith.cmpf oeq, %578, %586 : vector<8x128xf32>
    %c128_i32_184 = arith.constant 128 : i32
    %588 = vector.broadcast %c128_i32_184 : i32 to vector<8x128xi32>
    %589 = arith.select %587, %583, %588 : vector<8x128xi1>, vector<8x128xi32>
    %cst_185 = arith.constant dense<2147483647> : vector<8xi32>
    %590 = vector.multi_reduction <minsi>, %589, %cst_185 [1] : vector<8x128xi32> to vector<8xi32>
    %591 = vector.shape_cast %590 : vector<8xi32> to vector<8x1xi32>
    %592 = vector.broadcast %591 : vector<8x1xi32> to vector<8x128xi32>
    %593 = arith.cmpi eq, %583, %592 : vector<8x128xi32>
    %594 = arith.extui %593 : vector<8x128xi1> to vector<8x128xi32>
    %595 = arith.sitofp %594 : vector<8x128xi32> to vector<8x128xf32>
    %cst_186 = arith.constant dense<0.000000e+00> : vector<8x128xf32>
    %596 = tpu.matmul %595, %9, %cst_186 {dimension_numbers = #tpu.dot_dimension_numbers<[1], [0], [0], [1], [0, 0, 1, 1], [], []>} : vector<8x128xf32>, vector<128x128xf32>, vector<8x128xf32> -> vector<8x128xf32>
    %c0_187 = arith.constant 0 : index
    %c128_188 = arith.constant 128 : index
    %597 = vector.load %arg18[%c0_187, %c128_188] : memref<8x256xf32, #tpu.memory_space<vmem>>, vector<8x128xf32>
    tpu.vector_store %arg18[%c0_187, %c128_188], %596 {strides = array<i32>} : memref<8x256xf32, #tpu.memory_space<vmem>>, vector<8x128xf32>,
    %c7_i32 = arith.constant 7 : i32
    %c0_189 = arith.constant 0 : index
    %c0_190 = arith.constant 0 : index
    %598 = vector.load %arg17[%c0_189, %c0_190] : memref<8x128xf32, #tpu.memory_space<vmem>>, vector<8x128xf32>
    tpu.vector_store %arg17[%c0_189, %c0_190], %575 {strides = array<i32>} : memref<8x128xf32, #tpu.memory_space<vmem>>, vector<8x128xf32>,
    return
  }
  func.func @transform_0(%arg0: i32) -> (i32, i32, i32) {
    %c0_i32 = arith.constant 0 : i32
    %c0_i32_0 = arith.constant 0 : i32
    %c0_i32_1 = arith.constant 0 : i32
    %c0_i32_2 = arith.constant 0 : i32
    return %c0_i32, %c0_i32_0, %c0_i32_1 : i32, i32, i32
  }
  func.func @transform_1(%arg0: i32) -> (i32, i32, i32) {
    %c0_i32 = arith.constant 0 : i32
    %c0_i32_0 = arith.constant 0 : i32
    %c0_i32_1 = arith.constant 0 : i32
    %c0_i32_2 = arith.constant 0 : i32
    return %c0_i32, %c0_i32_0, %c0_i32_1 : i32, i32, i32
  }
  func.func @transform_2(%arg0: i32) -> (i32, i32) {
    %c0_i32 = arith.constant 0 : i32
    %c0_i32_0 = arith.constant 0 : i32
    %c0_i32_1 = arith.constant 0 : i32
    return %c0_i32, %c0_i32_0 : i32, i32
  }
  func.func @transform_3(%arg0: i32) -> (i32, i32) {
    %c0_i32 = arith.constant 0 : i32
    %c0_i32_0 = arith.constant 0 : i32
    %c0_i32_1 = arith.constant 0 : i32
    return %c0_i32, %c0_i32_0 : i32, i32
  }
  func.func @transform_4(%arg0: i32) -> (i32, i32) {
    %c0_i32 = arith.constant 0 : i32
    %c0_i32_0 = arith.constant 0 : i32
    %c0_i32_1 = arith.constant 0 : i32
    return %c0_i32, %c0_i32_0 : i32, i32
  }
  func.func @transform_5(%arg0: i32) -> (i32, i32) {
    %c0_i32 = arith.constant 0 : i32
    %c0_i32_0 = arith.constant 0 : i32
    %c0_i32_1 = arith.constant 0 : i32
    return %c0_i32, %c0_i32_0 : i32, i32
  }
  func.func @transform_6(%arg0: i32) -> (i32, i32) {
    %c0_i32 = arith.constant 0 : i32
    %c0_i32_0 = arith.constant 0 : i32
    %c0_i32_1 = arith.constant 0 : i32
    return %c0_i32, %c0_i32_0 : i32, i32
  }
  func.func @transform_7(%arg0: i32) -> (i32, i32) {
    %c0_i32 = arith.constant 0 : i32
    %c0_i32_0 = arith.constant 0 : i32
    %c0_i32_1 = arith.constant 0 : i32
    return %c0_i32, %c0_i32_0 : i32, i32
  }
  func.func @transform_8(%arg0: i32) -> (i32, i32) {
    %c0_i32 = arith.constant 0 : i32
    %c0_i32_0 = arith.constant 0 : i32
    %c0_i32_1 = arith.constant 0 : i32
    return %c0_i32, %c0_i32_0 : i32, i32
  }
  func.func @transform_9(%arg0: i32) -> (i32, i32) {
    %c0_i32 = arith.constant 0 : i32
    %c0_i32_0 = arith.constant 0 : i32
    %c0_i32_1 = arith.constant 0 : i32
    return %c0_i32, %c0_i32_0 : i32, i32
  }
  func.func @transform_10(%arg0: i32) -> (i32, i32) {
    %c0_i32 = arith.constant 0 : i32
    %c0_i32_0 = arith.constant 0 : i32
    %c0_i32_1 = arith.constant 0 : i32
    return %c0_i32, %c0_i32_0 : i32, i32
  }
  func.func @transform_11(%arg0: i32) -> (i32, i32) {
    %c0_i32 = arith.constant 0 : i32
    %c0_i32_0 = arith.constant 0 : i32
    %c0_i32_1 = arith.constant 0 : i32
    return %c0_i32, %c0_i32_0 : i32, i32
  }
  func.func @transform_12(%arg0: i32) -> (i32, i32) {
    %c0_i32 = arith.constant 0 : i32
    %c0_i32_0 = arith.constant 0 : i32
    %c0_i32_1 = arith.constant 0 : i32
    return %c0_i32, %c0_i32_0 : i32, i32
  }
  func.func @transform_13(%arg0: i32) -> (i32, i32) {
    %c0_i32 = arith.constant 0 : i32
    %c0_i32_0 = arith.constant 0 : i32
    %c0_i32_1 = arith.constant 0 : i32
    return %c0_i32, %c0_i32_0 : i32, i32
  }
  func.func @transform_14(%arg0: i32) -> (i32, i32) {
    %c0_i32 = arith.constant 0 : i32
    %c0_i32_0 = arith.constant 0 : i32
    %c0_i32_1 = arith.constant 0 : i32
    return %c0_i32, %c0_i32_0 : i32, i32
  }
  func.func @transform_15(%arg0: i32) -> (i32, i32, i32) {
    %c0_i32 = arith.constant 0 : i32
    %c0_i32_0 = arith.constant 0 : i32
    %c0_i32_1 = arith.constant 0 : i32
    return %arg0, %c0_i32, %c0_i32_0 : i32, i32, i32
  }
}

</mosaic_0001>

<llo_original>
// kernel: seq2seq_forward.6
$region0: #{seq2seq_forward.6}
  #allocation0 [shape = 'u32[]', space=smem, size = 0x4, offset = 0x4, fixed_abs, tag = 'smem constant byte address 0x4 - core index']
  #allocation1 [shape = 'u32[144,128]{1,0:T(1,128)}', space=vmem, size = 0x12000, scoped, tag = 'internal scratch']
  %s0 = inlined_call_operand.vmem [shape: f32[64,128], index: 0, kind: input, shape index: {}]
  %s1 = inlined_call_operand.vmem [shape: f32[128,128], index: 1, kind: input, shape index: {}]
  %s2 = inlined_call_operand.vmem [shape: f32[1,128], index: 2, kind: input, shape index: {}]
  %s3 = inlined_call_operand.vmem [shape: f32[64,128], index: 3, kind: output, shape index: {}]
  %s4 = sld [smem:[#allocation0]]
  $region22: #{seq2seq_forward.6} parent=0
    _
  %s6 = ssub.s32 1, %s4
  %s7 = scalar_select 0, %s6, %s4
  // Predicated region
  $region2: #{seq2seq_forward.6} parent=0 // pred_check
    _
  $region3: #{seq2seq_forward.6} parent=0 // pred_check_branch
    %9 = sbr.rel (0) target = $region5
  $region4: #{seq2seq_forward.6} parent=0 // pred_region
    _
  $region5: #{seq2seq_forward.6} parent=0 // pred_fallthru
    _
  // Predicated region
  $region6: #{seq2seq_forward.6} parent=0 // pred_check
    _
  $region7: #{seq2seq_forward.6} parent=0 // pred_check_branch
    %11 = sbr.rel (0) target = $region9
  $region8: #{seq2seq_forward.6} parent=0 // pred_region
    _
  $region9: #{seq2seq_forward.6} parent=0 // pred_fallthru
    _
  // Predicated region
  $region10: #{seq2seq_forward.6} parent=0 // pred_check
    _
  $region11: #{seq2seq_forward.6} parent=0 // pred_check_branch
    %13 = sbr.rel (0) target = $region13
  $region12: #{seq2seq_forward.6} parent=0 // pred_region
    _
  $region13: #{seq2seq_forward.6} parent=0 // pred_fallthru
    _
  %v14 = vld [vmem:[%s0] sm:$0xff]
  %v15 = vld [vmem:[%s0 + $0x8] sm:$0xff]
  %v16 = vld [vmem:[%s0 + $0x10] sm:$0xff]
  %v17 = vld [vmem:[%s0 + $0x18] sm:$0xff]
  %v18 = vld [vmem:[%s0 + $0x20] sm:$0xff]
  %v19 = vld [vmem:[%s0 + $0x28] sm:$0xff]
  %v20 = vld [vmem:[%s0 + $0x30] sm:$0xff]
  %v21 = vld [vmem:[%s0 + $0x38] sm:$0xff]
  %v22 = vld [vmem:[%s1] sm:$0xff]
  %v23 = vld [vmem:[%s1 + $0x8] sm:$0xff]
  %v24 = vld [vmem:[%s1 + $0x10] sm:$0xff]
  %v25 = vld [vmem:[%s1 + $0x18] sm:$0xff]
  %v26 = vld [vmem:[%s1 + $0x20] sm:$0xff]
  %v27 = vld [vmem:[%s1 + $0x28] sm:$0xff]
  %v28 = vld [vmem:[%s1 + $0x30] sm:$0xff]
  %v29 = vld [vmem:[%s1 + $0x38] sm:$0xff]
  %v30 = vld [vmem:[%s1 + $0x40] sm:$0xff]
  %v31 = vld [vmem:[%s1 + $0x48] sm:$0xff]
  %v32 = vld [vmem:[%s1 + $0x50] sm:$0xff]
  %v33 = vld [vmem:[%s1 + $0x58] sm:$0xff]
  %v34 = vld [vmem:[%s1 + $0x60] sm:$0xff]
  %v35 = vld [vmem:[%s1 + $0x68] sm:$0xff]
  %v36 = vld [vmem:[%s1 + $0x70] sm:$0xff]
  %v37 = vld [vmem:[%s1 + $0x78] sm:$0xff]
  %v38 = vld [vmem:[%s2] sm:$0x1]
  %v40 = vlaneseq
  %v41 = vshrl.u32 %v40, 7
  %v42 = vsub.s32 0, %v41
  %v43 = vrot.slane %v38, %v42
  %45 = vmatprep.subr.mxu0 0.0
  %46 = vmatpush1.msra.mxu0 %v37
  %47 = vmatprep.subr.mxu0 0.0
  %48 = vmatpush1.msra.mxu0 %v36
  %49 = vmatprep.subr.mxu0 0.0
  %50 = vmatpush1.msra.mxu0 %v35
  %51 = vmatprep.subr.mxu0 0.0
  %52 = vmatpush1.msra.mxu0 %v34
  %53 = vmatprep.subr.mxu0 0.0
  %54 = vmatpush1.msra.mxu0 %v33
  %55 = vmatprep.subr.mxu0 0.0
  %56 = vmatpush1.msra.mxu0 %v32
  %57 = vmatprep.subr.mxu0 0.0
  %58 = vmatpush1.msra.mxu0 %v31
  %59 = vmatprep.subr.mxu0 0.0
  %60 = vmatpush1.msra.mxu0 %v30
  %61 = vmatprep.subr.mxu0 0.0
  %62 = vmatpush1.msra.mxu0 %v29
  %63 = vmatprep.subr.mxu0 0.0
  %64 = vmatpush1.msra.mxu0 %v28
  %65 = vmatprep.subr.mxu0 0.0
  %66 = vmatpush1.msra.mxu0 %v27
  %67 = vmatprep.subr.mxu0 0.0
  %68 = vmatpush1.msra.mxu0 %v26
  %69 = vmatprep.subr.mxu0 0.0
  %70 = vmatpush1.msra.mxu0 %v25
  %71 = vmatprep.subr.mxu0 0.0
  %72 = vmatpush1.msra.mxu0 %v24
  %73 = vmatprep.subr.mxu0 0.0
  %74 = vmatpush1.msra.mxu0 %v23
  %75 = vmatprep.subr.mxu0 0.0
  %76 = vmatpush1.msra.mxu0 %v22
  %77 = vmatprep.subr.mxu0 0.0
  %78 = vmatpush2.msra.mxu0 0.0
  %79 = vmatprep.subr.mxu0 0.0
  %80 = vmatpush2.msra.mxu0 0.0
  %81 = vmatprep.subr.mxu0 0.0
  %82 = vmatpush2.msra.mxu0 0.0
  %83 = vmatprep.subr.mxu0 0.0
  %84 = vmatpush2.msra.mxu0 0.0
  %85 = vmatprep.subr.mxu0 0.0
  %86 = vmatpush2.msra.mxu0 0.0
  %87 = vmatprep.subr.mxu0 0.0
  %88 = vmatpush2.msra.mxu0 0.0
  %89 = vmatprep.subr.mxu0 0.0
  %90 = vmatpush2.msra.mxu0 0.0
  %91 = vmatprep.subr.mxu0 0.0
  %92 = vmatpush2.msra.mxu0 0.0
  %93 = vmatprep.subr.mxu0 0.0
  %94 = vmatpush2.msra.mxu0 0.0
  %95 = vmatprep.subr.mxu0 0.0
  %96 = vmatpush2.msra.mxu0 0.0
  %97 = vmatprep.subr.mxu0 0.0
  %98 = vmatpush2.msra.mxu0 0.0
  %99 = vmatprep.subr.mxu0 0.0
  %100 = vmatpush2.msra.mxu0 0.0
  %101 = vmatprep.subr.mxu0 0.0
  %102 = vmatpush2.msra.mxu0 0.0
  %103 = vmatprep.subr.mxu0 0.0
  %104 = vmatpush2.msra.mxu0 0.0
  %105 = vmatprep.subr.mxu0 0.0
  %106 = vmatpush2.msra.mxu0 0.0
  %107 = vmatprep.subr.mxu0 0.0
  %108 = vmatpush2.msra.mxu0 0.0
  %109 = vmatprep.mubr.f32.mxu0 0.0
  %110 = vmatmul.mubr.f32.gmra.mxu0 %v14
  %v111 = vpop.f32.mrf.mxu0
  %v112 = vadd.f32 %v43, %v111
  %v113 = vpop.f32.mrf.mxu0
  %114 = vmatprep.mubr.f32.mxu0 0.0
  %115 = vmatmul.mubr.f32.gmra.mxu0 %v15
  %v116 = vpop.f32.mrf.mxu0
  %v117 = vadd.f32 %v43, %v116
  %v118 = vpop.f32.mrf.mxu0
  %119 = vmatprep.mubr.f32.mxu0 0.0
  %120 = vmatmul.mubr.f32.gmra.mxu0 %v16
  %v121 = vpop.f32.mrf.mxu0
  %v122 = vadd.f32 %v43, %v121
  %v123 = vpop.f32.mrf.mxu0
  %124 = vmatprep.mubr.f32.mxu0 0.0
  %125 = vmatmul.mubr.f32.gmra.mxu0 %v17
  %v126 = vpop.f32.mrf.mxu0
  %v127 = vadd.f32 %v43, %v126
  %v128 = vpop.f32.mrf.mxu0
  %129 = vmatprep.mubr.f32.mxu0 0.0
  %130 = vmatmul.mubr.f32.gmra.mxu0 %v18
  %v131 = vpop.f32.mrf.mxu0
  %v132 = vadd.f32 %v43, %v131
  %v133 = vpop.f32.mrf.mxu0
  %134 = vmatprep.mubr.f32.mxu0 0.0
  %135 = vmatmul.mubr.f32.gmra.mxu0 %v19
  %v136 = vpop.f32.mrf.mxu0
  %v137 = vadd.f32 %v43, %v136
  %v138 = vpop.f32.mrf.mxu0
  %139 = vmatprep.mubr.f32.mxu0 0.0
  %140 = vmatmul.mubr.f32.gmra.mxu0 %v20
  %v141 = vpop.f32.mrf.mxu0
  %v142 = vadd.f32 %v43, %v141
  %v143 = vpop.f32.mrf.mxu0
  %144 = vmatprep.mubr.f32.mxu0 0.0
  %145 = vmatmul.mubr.f32.gmra.mxu0 %v21
  %v146 = vpop.f32.mrf.mxu0
  %v147 = vadd.f32 %v43, %v146
  %v148 = vpop.f32.mrf.mxu0
  %149 = vdwg.mxu0
  %150 = vst [vmem:[%s3] sm:$0xff] %v112
  %151 = vst [vmem:[%s3 + $0x8] sm:$0xff] %v117
  %152 = vst [vmem:[%s3 + $0x10] sm:$0xff] %v122
  %153 = vst [vmem:[%s3 + $0x18] sm:$0xff] %v127
  %154 = vst [vmem:[%s3 + $0x20] sm:$0xff] %v132
  %155 = vst [vmem:[%s3 + $0x28] sm:$0xff] %v137
  %156 = vst [vmem:[%s3 + $0x30] sm:$0xff] %v142
  %157 = vst [vmem:[%s3 + $0x38] sm:$0xff] %v147
  // Predicated region
  $region14: #{seq2seq_forward.6} parent=0 // pred_check
    _
  $region15: #{seq2seq_forward.6} parent=0 // pred_check_branch
    %159 = sbr.rel (0) target = $region17
  $region16: #{seq2seq_forward.6} parent=0 // pred_region
    _
  $region17: #{seq2seq_forward.6} parent=0 // pred_fallthru
    _
  // Predicated region
  $region18: #{seq2seq_forward.6} parent=0 // pred_check
    _
  $region19: #{seq2seq_forward.6} parent=0 // pred_check_branch
    %161 = sbr.rel (0) target = $region21
  $region20: #{seq2seq_forward.6} parent=0 // pred_region
    _
  $region21: #{seq2seq_forward.6} parent=0 // pred_fallthru
    _

// kernel: seq2seq_forward.4
$region0: #{seq2seq_forward.4}
  #allocation0 [shape = 'u32[]', space=smem, size = 0x4, offset = 0x4, fixed_abs, tag = 'smem constant byte address 0x4 - core index']
  #allocation1 [shape = 'u32[144,128]{1,0:T(1,128)}', space=vmem, size = 0x12000, scoped, tag = 'internal scratch']
  %s0 = inlined_call_operand.vmem [shape: f32[64,128], index: 0, kind: input, shape index: {}]
  %s1 = inlined_call_operand.vmem [shape: f32[128,384], index: 1, kind: input, shape index: {}]
  %s2 = inlined_call_operand.vmem [shape: f32[1,384], index: 2, kind: input, shape index: {}]
  %s3 = inlined_call_operand.vmem [shape: f32[64,384], index: 3, kind: output, shape index: {}]
  %s4 = sld [smem:[#allocation0]]
  $region22: #{seq2seq_forward.4} parent=0
    _
  %s6 = ssub.s32 1, %s4
  %s7 = scalar_select 0, %s6, %s4
  // Predicated region
  $region2: #{seq2seq_forward.4} parent=0 // pred_check
    _
  $region3: #{seq2seq_forward.4} parent=0 // pred_check_branch
    %9 = sbr.rel (0) target = $region5
  $region4: #{seq2seq_forward.4} parent=0 // pred_region
    _
  $region5: #{seq2seq_forward.4} parent=0 // pred_fallthru
    _
  // Predicated region
  $region6: #{seq2seq_forward.4} parent=0 // pred_check
    _
  $region7: #{seq2seq_forward.4} parent=0 // pred_check_branch
    %11 = sbr.rel (0) target = $region9
  $region8: #{seq2seq_forward.4} parent=0 // pred_region
    _
  $region9: #{seq2seq_forward.4} parent=0 // pred_fallthru
    _
  // Predicated region
  $region10: #{seq2seq_forward.4} parent=0 // pred_check
    _
  $region11: #{seq2seq_forward.4} parent=0 // pred_check_branch
    %13 = sbr.rel (0) target = $region13
  $region12: #{seq2seq_forward.4} parent=0 // pred_region
    _
  $region13: #{seq2seq_forward.4} parent=0 // pred_fallthru
    _
  %v14 = vld [vmem:[%s0] sm:$0xff]
  %v15 = vld [vmem:[%s0 + $0x8] sm:$0xff]
  %v16 = vld [vmem:[%s0 + $0x10] sm:$0xff]
  %v17 = vld [vmem:[%s0 + $0x18] sm:$0xff]
  %v18 = vld [vmem:[%s0 + $0x20] sm:$0xff]
  %v19 = vld [vmem:[%s0 + $0x28] sm:$0xff]
  %v20 = vld [vmem:[%s0 + $0x30] sm:$0xff]
  %v21 = vld [vmem:[%s0 + $0x38] sm:$0xff]
  %v22 = vld [vmem:[%s1] sm:$0xff]
  %v23 = vld [vmem:[%s1 + $0x8] sm:$0xff]
  %v24 = vld [vmem:[%s1 + $0x10] sm:$0xff]
  %v25 = vld [vmem:[%s1 + $0x18] sm:$0xff]
  %v26 = vld [vmem:[%s1 + $0x20] sm:$0xff]
  %v27 = vld [vmem:[%s1 + $0x28] sm:$0xff]
  %v28 = vld [vmem:[%s1 + $0x30] sm:$0xff]
  %v29 = vld [vmem:[%s1 + $0x38] sm:$0xff]
  %v30 = vld [vmem:[%s1 + $0x40] sm:$0xff]
  %v31 = vld [vmem:[%s1 + $0x48] sm:$0xff]
  %v32 = vld [vmem:[%s1 + $0x50] sm:$0xff]
  %v33 = vld [vmem:[%s1 + $0x58] sm:$0xff]
  %v34 = vld [vmem:[%s1 + $0x60] sm:$0xff]
  %v35 = vld [vmem:[%s1 + $0x68] sm:$0xff]
  %v36 = vld [vmem:[%s1 + $0x70] sm:$0xff]
  %v37 = vld [vmem:[%s1 + $0x78] sm:$0xff]
  %v38 = vld [vmem:[%s1 + $0x80] sm:$0xff]
  %v39 = vld [vmem:[%s1 + $0x88] sm:$0xff]
  %v40 = vld [vmem:[%s1 + $0x90] sm:$0xff]
  %v41 = vld [vmem:[%s1 + $0x98] sm:$0xff]
  %v42 = vld [vmem:[%s1 + $0xa0] sm:$0xff]
  %v43 = vld [vmem:[%s1 + $0xa8] sm:$0xff]
  %v44 = vld [vmem:[%s1 + $0xb0] sm:$0xff]
  %v45 = vld [vmem:[%s1 + $0xb8] sm:$0xff]
  %v46 = vld [vmem:[%s1 + $0xc0] sm:$0xff]
  %v47 = vld [vmem:[%s1 + $0xc8] sm:$0xff]
  %v48 = vld [vmem:[%s1 + $0xd0] sm:$0xff]
  %v49 = vld [vmem:[%s1 + $0xd8] sm:$0xff]
  %v50 = vld [vmem:[%s1 + $0xe0] sm:$0xff]
  %v51 = vld [vmem:[%s1 + $0xe8] sm:$0xff]
  %v52 = vld [vmem:[%s1 + $0xf0] sm:$0xff]
  %v53 = vld [vmem:[%s1 + $0xf8] sm:$0xff]
  %v54 = vld [vmem:[%s1 + $0x100] sm:$0xff]
  %v55 = vld [vmem:[%s1 + $0x108] sm:$0xff]
  %v56 = vld [vmem:[%s1 + $0x110] sm:$0xff]
  %v57 = vld [vmem:[%s1 + $0x118] sm:$0xff]
  %v58 = vld [vmem:[%s1 + $0x120] sm:$0xff]
  %v59 = vld [vmem:[%s1 + $0x128] sm:$0xff]
  %v60 = vld [vmem:[%s1 + $0x130] sm:$0xff]
  %v61 = vld [vmem:[%s1 + $0x138] sm:$0xff]
  %v62 = vld [vmem:[%s1 + $0x140] sm:$0xff]
  %v63 = vld [vmem:[%s1 + $0x148] sm:$0xff]
  %v64 = vld [vmem:[%s1 + $0x150] sm:$0xff]
  %v65 = vld [vmem:[%s1 + $0x158] sm:$0xff]
  %v66 = vld [vmem:[%s1 + $0x160] sm:$0xff]
  %v67 = vld [vmem:[%s1 + $0x168] sm:$0xff]
  %v68 = vld [vmem:[%s1 + $0x170] sm:$0xff]
  %v69 = vld [vmem:[%s1 + $0x178] sm:$0xff]
  %v70 = vld [vmem:[%s2] sm:$0x7]
  %v72 = vlaneseq
  %v73 = vshrl.u32 %v72, 7
  %v74 = vsub.s32 0, %v73
  %v75 = vrot.slane %v70, %v74
  %v76 = vlaneseq
  %v77 = vshrl.u32 %v76, 7
  %v78 = vsub.s32 1, %v77
  %v79 = vrot.slane %v70, %v78
  %v80 = vlaneseq
  %v81 = vshrl.u32 %v80, 7
  %v82 = vsub.s32 2, %v81
  %v83 = vrot.slane %v70, %v82
  %87 = vmatprep.subr.mxu0 %v68
  %88 = vmatpush1.msra.mxu0 %v67
  %89 = vmatprep.subr.mxu0 %v65
  %90 = vmatpush1.msra.mxu0 %v64
  %91 = vmatprep.subr.mxu0 %v62
  %92 = vmatpush1.msra.mxu0 %v61
  %93 = vmatprep.subr.mxu0 %v59
  %94 = vmatpush1.msra.mxu0 %v58
  %95 = vmatprep.subr.mxu0 %v56
  %96 = vmatpush1.msra.mxu0 %v55
  %97 = vmatprep.subr.mxu0 %v53
  %98 = vmatpush1.msra.mxu0 %v52
  %99 = vmatprep.subr.mxu0 %v50
  %100 = vmatpush1.msra.mxu0 %v49
  %101 = vmatprep.subr.mxu0 %v47
  %102 = vmatpush1.msra.mxu0 %v46
  %103 = vmatprep.subr.mxu0 %v44
  %104 = vmatpush1.msra.mxu0 %v43
  %105 = vmatprep.subr.mxu0 %v41
  %106 = vmatpush1.msra.mxu0 %v40
  %107 = vmatprep.subr.mxu0 %v38
  %108 = vmatpush1.msra.mxu0 %v37
  %109 = vmatprep.subr.mxu0 %v35
  %110 = vmatpush1.msra.mxu0 %v34
  %111 = vmatprep.subr.mxu0 %v32
  %112 = vmatpush1.msra.mxu0 %v31
  %113 = vmatprep.subr.mxu0 %v29
  %114 = vmatpush1.msra.mxu0 %v28
  %115 = vmatprep.subr.mxu0 %v26
  %116 = vmatpush1.msra.mxu0 %v25
  %117 = vmatprep.subr.mxu0 %v23
  %118 = vmatpush1.msra.mxu0 %v22
  %119 = vmatprep.subr.mxu0 0.0
  %120 = vmatpush2.msra.mxu0 0.0
  %121 = vmatprep.subr.mxu0 0.0
  %122 = vmatpush2.msra.mxu0 0.0
  %123 = vmatprep.subr.mxu0 0.0
  %124 = vmatpush2.msra.mxu0 0.0
  %125 = vmatprep.subr.mxu0 0.0
  %126 = vmatpush2.msra.mxu0 0.0
  %127 = vmatprep.subr.mxu0 0.0
  %128 = vmatpush2.msra.mxu0 0.0
  %129 = vmatprep.subr.mxu0 0.0
  %130 = vmatpush2.msra.mxu0 0.0
  %131 = vmatprep.subr.mxu0 0.0
  %132 = vmatpush2.msra.mxu0 0.0
  %133 = vmatprep.subr.mxu0 0.0
  %134 = vmatpush2.msra.mxu0 0.0
  %135 = vmatprep.subr.mxu0 0.0
  %136 = vmatpush2.msra.mxu0 0.0
  %137 = vmatprep.subr.mxu0 0.0
  %138 = vmatpush2.msra.mxu0 0.0
  %139 = vmatprep.subr.mxu0 0.0
  %140 = vmatpush2.msra.mxu0 0.0
  %141 = vmatprep.subr.mxu0 0.0
  %142 = vmatpush2.msra.mxu0 0.0
  %143 = vmatprep.subr.mxu0 0.0
  %144 = vmatpush2.msra.mxu0 0.0
  %145 = vmatprep.subr.mxu0 0.0
  %146 = vmatpush2.msra.mxu0 0.0
  %147 = vmatprep.subr.mxu0 0.0
  %148 = vmatpush2.msra.mxu0 0.0
  %149 = vmatprep.subr.mxu0 0.0
  %150 = vmatpush2.msra.mxu0 0.0
  %151 = vmatprep.mubr.f32.mxu0 0.0
  %152 = vmatmul.mubr.f32.gmra.mxu0 %v14
  %v153 = vpop.f32.mrf.mxu0
  %v154 = vadd.f32 %v75, %v153
  %v155 = vpop.f32.mrf.mxu0
  %v156 = vadd.f32 %v79, %v155
  %157 = vmatprep.mubr.f32.mxu0 0.0
  %158 = vmatmul.mubr.f32.gmra.mxu0 %v15
  %v159 = vpop.f32.mrf.mxu0
  %v160 = vadd.f32 %v75, %v159
  %v161 = vpop.f32.mrf.mxu0
  %v162 = vadd.f32 %v79, %v161
  %163 = vmatprep.mubr.f32.mxu0 0.0
  %164 = vmatmul.mubr.f32.gmra.mxu0 %v16
  %v165 = vpop.f32.mrf.mxu0
  %v166 = vadd.f32 %v75, %v165
  %v167 = vpop.f32.mrf.mxu0
  %v168 = vadd.f32 %v79, %v167
  %169 = vmatprep.mubr.f32.mxu0 0.0
  %170 = vmatmul.mubr.f32.gmra.mxu0 %v17
  %v171 = vpop.f32.mrf.mxu0
  %v172 = vadd.f32 %v75, %v171
  %v173 = vpop.f32.mrf.mxu0
  %v174 = vadd.f32 %v79, %v173
  %175 = vmatprep.mubr.f32.mxu0 0.0
  %176 = vmatmul.mubr.f32.gmra.mxu0 %v18
  %v177 = vpop.f32.mrf.mxu0
  %v178 = vadd.f32 %v75, %v177
  %v179 = vpop.f32.mrf.mxu0
  %v180 = vadd.f32 %v79, %v179
  %181 = vmatprep.mubr.f32.mxu0 0.0
  %182 = vmatmul.mubr.f32.gmra.mxu0 %v19
  %v183 = vpop.f32.mrf.mxu0
  %v184 = vadd.f32 %v75, %v183
  %v185 = vpop.f32.mrf.mxu0
  %v186 = vadd.f32 %v79, %v185
  %187 = vmatprep.mubr.f32.mxu0 0.0
  %188 = vmatmul.mubr.f32.gmra.mxu0 %v20
  %v189 = vpop.f32.mrf.mxu0
  %v190 = vadd.f32 %v75, %v189
  %v191 = vpop.f32.mrf.mxu0
  %v192 = vadd.f32 %v79, %v191
  %193 = vmatprep.mubr.f32.mxu0 0.0
  %194 = vmatmul.mubr.f32.gmra.mxu0 %v21
  %v195 = vpop.f32.mrf.mxu0
  %v196 = vadd.f32 %v75, %v195
  %v197 = vpop.f32.mrf.mxu0
  %v198 = vadd.f32 %v79, %v197
  %199 = vdwg.mxu0
  %200 = vmatprep.subr.mxu0 0.0
  %201 = vmatpush1.msra.mxu0 %v69
  %202 = vmatprep.subr.mxu0 0.0
  %203 = vmatpush1.msra.mxu0 %v66
  %204 = vmatprep.subr.mxu0 0.0
  %205 = vmatpush1.msra.mxu0 %v63
  %206 = vmatprep.subr.mxu0 0.0
  %207 = vmatpush1.msra.mxu0 %v60
  %208 = vmatprep.subr.mxu0 0.0
  %209 = vmatpush1.msra.mxu0 %v57
  %210 = vmatprep.subr.mxu0 0.0
  %211 = vmatpush1.msra.mxu0 %v54
  %212 = vmatprep.subr.mxu0 0.0
  %213 = vmatpush1.msra.mxu0 %v51
  %214 = vmatprep.subr.mxu0 0.0
  %215 = vmatpush1.msra.mxu0 %v48
  %216 = vmatprep.subr.mxu0 0.0
  %217 = vmatpush1.msra.mxu0 %v45
  %218 = vmatprep.subr.mxu0 0.0
  %219 = vmatpush1.msra.mxu0 %v42
  %220 = vmatprep.subr.mxu0 0.0
  %221 = vmatpush1.msra.mxu0 %v39
  %222 = vmatprep.subr.mxu0 0.0
  %223 = vmatpush1.msra.mxu0 %v36
  %224 = vmatprep.subr.mxu0 0.0
  %225 = vmatpush1.msra.mxu0 %v33
  %226 = vmatprep.subr.mxu0 0.0
  %227 = vmatpush1.msra.mxu0 %v30
  %228 = vmatprep.subr.mxu0 0.0
  %229 = vmatpush1.msra.mxu0 %v27
  %230 = vmatprep.subr.mxu0 0.0
  %231 = vmatpush1.msra.mxu0 %v24
  %232 = vmatprep.subr.mxu0 0.0
  %233 = vmatpush2.msra.mxu0 0.0
  %234 = vmatprep.subr.mxu0 0.0
  %235 = vmatpush2.msra.mxu0 0.0
  %236 = vmatprep.subr.mxu0 0.0
  %237 = vmatpush2.msra.mxu0 0.0
  %238 = vmatprep.subr.mxu0 0.0
  %239 = vmatpush2.msra.mxu0 0.0
  %240 = vmatprep.subr.mxu0 0.0
  %241 = vmatpush2.msra.mxu0 0.0
  %242 = vmatprep.subr.mxu0 0.0
  %243 = vmatpush2.msra.mxu0 0.0
  %244 = vmatprep.subr.mxu0 0.0
  %245 = vmatpush2.msra.mxu0 0.0
  %246 = vmatprep.subr.mxu0 0.0
  %247 = vmatpush2.msra.mxu0 0.0
  %248 = vmatprep.subr.mxu0 0.0
  %249 = vmatpush2.msra.mxu0 0.0
  %250 = vmatprep.subr.mxu0 0.0
  %251 = vmatpush2.msra.mxu0 0.0
  %252 = vmatprep.subr.mxu0 0.0
  %253 = vmatpush2.msra.mxu0 0.0
  %254 = vmatprep.subr.mxu0 0.0
  %255 = vmatpush2.msra.mxu0 0.0
  %256 = vmatprep.subr.mxu0 0.0
  %257 = vmatpush2.msra.mxu0 0.0
  %258 = vmatprep.subr.mxu0 0.0
  %259 = vmatpush2.msra.mxu0 0.0
  %260 = vmatprep.subr.mxu0 0.0
  %261 = vmatpush2.msra.mxu0 0.0
  %262 = vmatprep.subr.mxu0 0.0
  %263 = vmatpush2.msra.mxu0 0.0
  %264 = vmatprep.mubr.f32.mxu0 0.0
  %265 = vmatmul.mubr.f32.gmra.mxu0 %v14
  %v266 = vpop.f32.mrf.mxu0
  %v267 = vadd.f32 %v83, %v266
  %v268 = vpop.f32.mrf.mxu0
  %269 = vmatprep.mubr.f32.mxu0 0.0
  %270 = vmatmul.mubr.f32.gmra.mxu0 %v15
  %v271 = vpop.f32.mrf.mxu0
  %v272 = vadd.f32 %v83, %v271
  %v273 = vpop.f32.mrf.mxu0
  %274 = vmatprep.mubr.f32.mxu0 0.0
  %275 = vmatmul.mubr.f32.gmra.mxu0 %v16
  %v276 = vpop.f32.mrf.mxu0
  %v277 = vadd.f32 %v83, %v276
  %v278 = vpop.f32.mrf.mxu0
  %279 = vmatprep.mubr.f32.mxu0 0.0
  %280 = vmatmul.mubr.f32.gmra.mxu0 %v17
  %v281 = vpop.f32.mrf.mxu0
  %v282 = vadd.f32 %v83, %v281
  %v283 = vpop.f32.mrf.mxu0
  %284 = vmatprep.mubr.f32.mxu0 0.0
  %285 = vmatmul.mubr.f32.gmra.mxu0 %v18
  %v286 = vpop.f32.mrf.mxu0
  %v287 = vadd.f32 %v83, %v286
  %v288 = vpop.f32.mrf.mxu0
  %289 = vmatprep.mubr.f32.mxu0 0.0
  %290 = vmatmul.mubr.f32.gmra.mxu0 %v19
  %v291 = vpop.f32.mrf.mxu0
  %v292 = vadd.f32 %v83, %v291
  %v293 = vpop.f32.mrf.mxu0
  %294 = vmatprep.mubr.f32.mxu0 0.0
  %295 = vmatmul.mubr.f32.gmra.mxu0 %v20
  %v296 = vpop.f32.mrf.mxu0
  %v297 = vadd.f32 %v83, %v296
  %v298 = vpop.f32.mrf.mxu0
  %299 = vmatprep.mubr.f32.mxu0 0.0
  %300 = vmatmul.mubr.f32.gmra.mxu0 %v21
  %v301 = vpop.f32.mrf.mxu0
  %v302 = vadd.f32 %v83, %v301
  %v303 = vpop.f32.mrf.mxu0
  %304 = vdwg.mxu0
  %305 = vst [vmem:[%s3] sm:$0xff] %v154
  %306 = vst [vmem:[%s3 + $0x8] sm:$0xff] %v156
  %307 = vst [vmem:[%s3 + $0x10] sm:$0xff] %v267
  %308 = vst [vmem:[%s3 + $0x18] sm:$0xff] %v160
  %309 = vst [vmem:[%s3 + $0x20] sm:$0xff] %v162
  %310 = vst [vmem:[%s3 + $0x28] sm:$0xff] %v272
  %311 = vst [vmem:[%s3 + $0x30] sm:$0xff] %v166
  %312 = vst [vmem:[%s3 + $0x38] sm:$0xff] %v168
  %313 = vst [vmem:[%s3 + $0x40] sm:$0xff] %v277
  %314 = vst [vmem:[%s3 + $0x48] sm:$0xff] %v172
  %315 = vst [vmem:[%s3 + $0x50] sm:$0xff] %v174
  %316 = vst [vmem:[%s3 + $0x58] sm:$0xff] %v282
  %317 = vst [vmem:[%s3 + $0x60] sm:$0xff] %v178
  %318 = vst [vmem:[%s3 + $0x68] sm:$0xff] %v180
  %319 = vst [vmem:[%s3 + $0x70] sm:$0xff] %v287
  %320 = vst [vmem:[%s3 + $0x78] sm:$0xff] %v184
  %321 = vst [vmem:[%s3 + $0x80] sm:$0xff] %v186
  %322 = vst [vmem:[%s3 + $0x88] sm:$0xff] %v292
  %323 = vst [vmem:[%s3 + $0x90] sm:$0xff] %v190
  %324 = vst [vmem:[%s3 + $0x98] sm:$0xff] %v192
  %325 = vst [vmem:[%s3 + $0xa0] sm:$0xff] %v297
  %326 = vst [vmem:[%s3 + $0xa8] sm:$0xff] %v196
  %327 = vst [vmem:[%s3 + $0xb0] sm:$0xff] %v198
  %328 = vst [vmem:[%s3 + $0xb8] sm:$0xff] %v302
  // Predicated region
  $region14: #{seq2seq_forward.4} parent=0 // pred_check
    _
  $region15: #{seq2seq_forward.4} parent=0 // pred_check_branch
    %330 = sbr.rel (0) target = $region17
  $region16: #{seq2seq_forward.4} parent=0 // pred_region
    _
  $region17: #{seq2seq_forward.4} parent=0 // pred_fallthru
    _
  // Predicated region
  $region18: #{seq2seq_forward.4} parent=0 // pred_check
    _
  $region19: #{seq2seq_forward.4} parent=0 // pred_check_branch
    %332 = sbr.rel (0) target = $region21
  $region20: #{seq2seq_forward.4} parent=0 // pred_region
    _
  $region21: #{seq2seq_forward.4} parent=0 // pred_fallthru
    _

// kernel: seq2seq_forward.5
$region0: #{seq2seq_forward.5}
  #allocation0 [shape = 'u32[]', space=smem, size = 0x4, offset = 0x4, fixed_abs, tag = 'smem constant byte address 0x4 - core index']
  #allocation1 [shape = 'u32[144,128]{1,0:T(1,128)}', space=vmem, size = 0x12000, scoped, tag = 'internal scratch']
  #allocation2 [shape = 'f32[8,128]{1,0:T(8,128)}', space=vmem, size = 0x1000, scoped, tag = 'scratch operand']
  %s0 = inlined_call_operand.vmem [shape: s32[8,1], index: 0, kind: input, shape index: {}]
  %s1 = inlined_call_operand.vmem [shape: f32[8,8,384], index: 1, kind: input, shape index: {}]
  %s2 = inlined_call_operand.vmem [shape: f32[128,384], index: 2, kind: input, shape index: {}]
  %s3 = inlined_call_operand.vmem [shape: f32[1,384], index: 3, kind: input, shape index: {}]
  %s4 = inlined_call_operand.vmem [shape: f32[8,8,128], index: 4, kind: output, shape index: {0}]
  %s5 = inlined_call_operand.vmem [shape: f32[8,128], index: 5, kind: output, shape index: {1}]
  %6 = xla_tuple %s4, %s5
  %s7 = sld [smem:[#allocation0]]
  $region42: #{seq2seq_forward.5} parent=0
    _
  %s9 = ssub.s32 1, %s7
  %s10 = scalar_select 0, %s9, %s7
  // Predicated region
  $region2: #{seq2seq_forward.5} parent=0 // pred_check
    _
  $region3: #{seq2seq_forward.5} parent=0 // pred_check_branch
    %12 = sbr.rel (0) target = $region5
  $region4: #{seq2seq_forward.5} parent=0 // pred_region
    _
  $region5: #{seq2seq_forward.5} parent=0 // pred_fallthru
    _
  // Predicated region
  $region6: #{seq2seq_forward.5} parent=0 // pred_check
    _
  $region7: #{seq2seq_forward.5} parent=0 // pred_check_branch
    %14 = sbr.rel (0) target = $region9
  $region8: #{seq2seq_forward.5} parent=0 // pred_region
    _
  $region9: #{seq2seq_forward.5} parent=0 // pred_fallthru
    _
  // Predicated region
  $region10: #{seq2seq_forward.5} parent=0 // pred_check
    _
  $region11: #{seq2seq_forward.5} parent=0 // pred_check_branch
    %16 = sbr.rel (0) target = $region13
  $region12: #{seq2seq_forward.5} parent=0 // pred_region
    _
  $region13: #{seq2seq_forward.5} parent=0 // pred_fallthru
    _
  // Predicated region
  $region14: #{seq2seq_forward.5} parent=0 // pred_check
    _
  $region15: #{seq2seq_forward.5} parent=0 // pred_check_branch
    %18 = sbr.rel (0) target = $region17
  $region16: #{seq2seq_forward.5} parent=0 // pred_region
    _
  $region17: #{seq2seq_forward.5} parent=0 // pred_fallthru
    _
  %p19 = scmp.eq.s32.totalorder 0, 0
  // Predicated region
  $region18: #{seq2seq_forward.5} parent=0 // pred_check
    %p20 = pneg %p19
  $region19: #{seq2seq_forward.5} parent=0 // pred_check_branch
    %22 = sbr.rel (%p20) target = $region21
  $region20: #{seq2seq_forward.5} parent=0 // pred_region
    %23 = vst [vmem:[#allocation2] sm:$0xff] 0.0
  $region21: #{seq2seq_forward.5} parent=0 // pred_fallthru
    _
  %v24 = vld [vmem:[%s2] sm:$0xff]
  %v25 = vld [vmem:[%s2 + $0x8] sm:$0xff]
  %v26 = vld [vmem:[%s2 + $0x10] sm:$0xff]
  %v27 = vld [vmem:[%s2 + $0x18] sm:$0xff]
  %v28 = vld [vmem:[%s2 + $0x20] sm:$0xff]
  %v29 = vld [vmem:[%s2 + $0x28] sm:$0xff]
  %v30 = vld [vmem:[%s2 + $0x30] sm:$0xff]
  %v31 = vld [vmem:[%s2 + $0x38] sm:$0xff]
  %v32 = vld [vmem:[%s2 + $0x40] sm:$0xff]
  %v33 = vld [vmem:[%s2 + $0x48] sm:$0xff]
  %v34 = vld [vmem:[%s2 + $0x50] sm:$0xff]
  %v35 = vld [vmem:[%s2 + $0x58] sm:$0xff]
  %v36 = vld [vmem:[%s2 + $0x60] sm:$0xff]
  %v37 = vld [vmem:[%s2 + $0x68] sm:$0xff]
  %v38 = vld [vmem:[%s2 + $0x70] sm:$0xff]
  %v39 = vld [vmem:[%s2 + $0x78] sm:$0xff]
  %v40 = vld [vmem:[%s2 + $0x80] sm:$0xff]
  %v41 = vld [vmem:[%s2 + $0x88] sm:$0xff]
  %v42 = vld [vmem:[%s2 + $0x90] sm:$0xff]
  %v43 = vld [vmem:[%s2 + $0x98] sm:$0xff]
  %v44 = vld [vmem:[%s2 + $0xa0] sm:$0xff]
  %v45 = vld [vmem:[%s2 + $0xa8] sm:$0xff]
  %v46 = vld [vmem:[%s2 + $0xb0] sm:$0xff]
  %v47 = vld [vmem:[%s2 + $0xb8] sm:$0xff]
  %v48 = vld [vmem:[%s2 + $0xc0] sm:$0xff]
  %v49 = vld [vmem:[%s2 + $0xc8] sm:$0xff]
  %v50 = vld [vmem:[%s2 + $0xd0] sm:$0xff]
  %v51 = vld [vmem:[%s2 + $0xd8] sm:$0xff]
  %v52 = vld [vmem:[%s2 + $0xe0] sm:$0xff]
  %v53 = vld [vmem:[%s2 + $0xe8] sm:$0xff]
  %v54 = vld [vmem:[%s2 + $0xf0] sm:$0xff]
  %v55 = vld [vmem:[%s2 + $0xf8] sm:$0xff]
  %v56 = vld [vmem:[%s2 + $0x100] sm:$0xff]
  %v57 = vld [vmem:[%s2 + $0x108] sm:$0xff]
  %v58 = vld [vmem:[%s2 + $0x110] sm:$0xff]
  %v59 = vld [vmem:[%s2 + $0x118] sm:$0xff]
  %v60 = vld [vmem:[%s2 + $0x120] sm:$0xff]
  %v61 = vld [vmem:[%s2 + $0x128] sm:$0xff]
  %v62 = vld [vmem:[%s2 + $0x130] sm:$0xff]
  %v63 = vld [vmem:[%s2 + $0x138] sm:$0xff]
  %v64 = vld [vmem:[%s2 + $0x140] sm:$0xff]
  %v65 = vld [vmem:[%s2 + $0x148] sm:$0xff]
  %v66 = vld [vmem:[%s2 + $0x150] sm:$0xff]
  %v67 = vld [vmem:[%s2 + $0x158] sm:$0xff]
  %v68 = vld [vmem:[%s2 + $0x160] sm:$0xff]
  %v69 = vld [vmem:[%s2 + $0x168] sm:$0xff]
  %v70 = vld [vmem:[%s2 + $0x170] sm:$0xff]
  %v71 = vld [vmem:[%s2 + $0x178] sm:$0xff]
  %v72 = vld [vmem:[%s3] sm:$0x7]
  %v73 = vld [vmem:[%s0] sm:$0xff]
  %s74 = smul.u32 0, 8
  %v75 = vld [vmem:[#allocation2] sm:$0xff]
  %v76 = vld [vmem:[%s1] sm:$0xff]
  %v77 = vld [vmem:[%s1 + $0x8] sm:$0xff]
  %v78 = vld [vmem:[%s1 + $0x10] sm:$0xff]
  %v80 = vlaneseq
  %v81 = vshrl.u32 %v80, 7
  %v82 = vsub.s32 0, %v81
  %v83 = vrot.slane %v72, %v82
  %v84 = vlaneseq
  %v85 = vshrl.u32 %v84, 7
  %v86 = vsub.s32 1, %v85
  %v87 = vrot.slane %v72, %v86
  %v88 = vlaneseq
  %v89 = vshrl.u32 %v88, 7
  %v90 = vsub.s32 2, %v89
  %v91 = vrot.slane %v72, %v90
  %95 = vmatprep.subr.mxu0 %v70
  %96 = vmatpush1.msra.mxu0 %v69
  %97 = vmatprep.subr.mxu0 %v67
  %98 = vmatpush1.msra.mxu0 %v66
  %99 = vmatprep.subr.mxu0 %v64
  %100 = vmatpush1.msra.mxu0 %v63
  %101 = vmatprep.subr.mxu0 %v61
  %102 = vmatpush1.msra.mxu0 %v60
  %103 = vmatprep.subr.mxu0 %v58
  %104 = vmatpush1.msra.mxu0 %v57
  %105 = vmatprep.subr.mxu0 %v55
  %106 = vmatpush1.msra.mxu0 %v54
  %107 = vmatprep.subr.mxu0 %v52
  %108 = vmatpush1.msra.mxu0 %v51
  %109 = vmatprep.subr.mxu0 %v49
  %110 = vmatpush1.msra.mxu0 %v48
  %111 = vmatprep.subr.mxu0 %v46
  %112 = vmatpush1.msra.mxu0 %v45
  %113 = vmatprep.subr.mxu0 %v43
  %114 = vmatpush1.msra.mxu0 %v42
  %115 = vmatprep.subr.mxu0 %v40
  %116 = vmatpush1.msra.mxu0 %v39
  %117 = vmatprep.subr.mxu0 %v37
  %118 = vmatpush1.msra.mxu0 %v36
  %119 = vmatprep.subr.mxu0 %v34
  %120 = vmatpush1.msra.mxu0 %v33
  %121 = vmatprep.subr.mxu0 %v31
  %122 = vmatpush1.msra.mxu0 %v30
  %123 = vmatprep.subr.mxu0 %v28
  %124 = vmatpush1.msra.mxu0 %v27
  %125 = vmatprep.subr.mxu0 %v25
  %126 = vmatpush1.msra.mxu0 %v24
  %127 = vmatprep.subr.mxu0 0.0
  %128 = vmatpush2.msra.mxu0 0.0
  %129 = vmatprep.subr.mxu0 0.0
  %130 = vmatpush2.msra.mxu0 0.0
  %131 = vmatprep.subr.mxu0 0.0
  %132 = vmatpush2.msra.mxu0 0.0
  %133 = vmatprep.subr.mxu0 0.0
  %134 = vmatpush2.msra.mxu0 0.0
  %135 = vmatprep.subr.mxu0 0.0
  %136 = vmatpush2.msra.mxu0 0.0
  %137 = vmatprep.subr.mxu0 0.0
  %138 = vmatpush2.msra.mxu0 0.0
  %139 = vmatprep.subr.mxu0 0.0
  %140 = vmatpush2.msra.mxu0 0.0
  %141 = vmatprep.subr.mxu0 0.0
  %142 = vmatpush2.msra.mxu0 0.0
  %143 = vmatprep.subr.mxu0 0.0
  %144 = vmatpush2.msra.mxu0 0.0
  %145 = vmatprep.subr.mxu0 0.0
  %146 = vmatpush2.msra.mxu0 0.0
  %147 = vmatprep.subr.mxu0 0.0
  %148 = vmatpush2.msra.mxu0 0.0
  %149 = vmatprep.subr.mxu0 0.0
  %150 = vmatpush2.msra.mxu0 0.0
  %151 = vmatprep.subr.mxu0 0.0
  %152 = vmatpush2.msra.mxu0 0.0
  %153 = vmatprep.subr.mxu0 0.0
  %154 = vmatpush2.msra.mxu0 0.0
  %155 = vmatprep.subr.mxu0 0.0
  %156 = vmatpush2.msra.mxu0 0.0
  %157 = vmatprep.subr.mxu0 0.0
  %158 = vmatpush2.msra.mxu0 0.0
  %159 = vmatprep.mubr.f32.mxu0 0.0
  %160 = vmatmul.mubr.f32.gmra.mxu0 %v75
  %v161 = vpop.f32.mrf.mxu0
  %v162 = vadd.f32 %v83, %v161
  %v163 = vpop.f32.mrf.mxu0
  %v164 = vadd.f32 %v87, %v163
  %165 = vdwg.mxu0
  %166 = vmatprep.subr.mxu0 0.0
  %167 = vmatpush1.msra.mxu0 %v71
  %168 = vmatprep.subr.mxu0 0.0
  %169 = vmatpush1.msra.mxu0 %v68
  %170 = vmatprep.subr.mxu0 0.0
  %171 = vmatpush1.msra.mxu0 %v65
  %172 = vmatprep.subr.mxu0 0.0
  %173 = vmatpush1.msra.mxu0 %v62
  %174 = vmatprep.subr.mxu0 0.0
  %175 = vmatpush1.msra.mxu0 %v59
  %176 = vmatprep.subr.mxu0 0.0
  %177 = vmatpush1.msra.mxu0 %v56
  %178 = vmatprep.subr.mxu0 0.0
  %179 = vmatpush1.msra.mxu0 %v53
  %180 = vmatprep.subr.mxu0 0.0
  %181 = vmatpush1.msra.mxu0 %v50
  %182 = vmatprep.subr.mxu0 0.0
  %183 = vmatpush1.msra.mxu0 %v47
  %184 = vmatprep.subr.mxu0 0.0
  %185 = vmatpush1.msra.mxu0 %v44
  %186 = vmatprep.subr.mxu0 0.0
  %187 = vmatpush1.msra.mxu0 %v41
  %188 = vmatprep.subr.mxu0 0.0
  %189 = vmatpush1.msra.mxu0 %v38
  %190 = vmatprep.subr.mxu0 0.0
  %191 = vmatpush1.msra.mxu0 %v35
  %192 = vmatprep.subr.mxu0 0.0
  %193 = vmatpush1.msra.mxu0 %v32
  %194 = vmatprep.subr.mxu0 0.0
  %195 = vmatpush1.msra.mxu0 %v29
  %196 = vmatprep.subr.mxu0 0.0
  %197 = vmatpush1.msra.mxu0 %v26
  %198 = vmatprep.subr.mxu0 0.0
  %199 = vmatpush2.msra.mxu0 0.0
  %200 = vmatprep.subr.mxu0 0.0
  %201 = vmatpush2.msra.mxu0 0.0
  %202 = vmatprep.subr.mxu0 0.0
  %203 = vmatpush2.msra.mxu0 0.0
  %204 = vmatprep.subr.mxu0 0.0
  %205 = vmatpush2.msra.mxu0 0.0
  %206 = vmatprep.subr.mxu0 0.0
  %207 = vmatpush2.msra.mxu0 0.0
  %208 = vmatprep.subr.mxu0 0.0
  %209 = vmatpush2.msra.mxu0 0.0
  %210 = vmatprep.subr.mxu0 0.0
  %211 = vmatpush2.msra.mxu0 0.0
  %212 = vmatprep.subr.mxu0 0.0
  %213 = vmatpush2.msra.mxu0 0.0
  %214 = vmatprep.subr.mxu0 0.0
  %215 = vmatpush2.msra.mxu0 0.0
  %216 = vmatprep.subr.mxu0 0.0
  %217 = vmatpush2.msra.mxu0 0.0
  %218 = vmatprep.subr.mxu0 0.0
  %219 = vmatpush2.msra.mxu0 0.0
  %220 = vmatprep.subr.mxu0 0.0
  %221 = vmatpush2.msra.mxu0 0.0
  %222 = vmatprep.subr.mxu0 0.0
  %223 = vmatpush2.msra.mxu0 0.0
  %224 = vmatprep.subr.mxu0 0.0
  %225 = vmatpush2.msra.mxu0 0.0
  %226 = vmatprep.subr.mxu0 0.0
  %227 = vmatpush2.msra.mxu0 0.0
  %228 = vmatprep.subr.mxu0 0.0
  %229 = vmatpush2.msra.mxu0 0.0
  %230 = vmatprep.mubr.f32.mxu0 0.0
  %231 = vmatmul.mubr.f32.gmra.mxu0 %v75
  %v232 = vpop.f32.mrf.mxu0
  %v233 = vadd.f32 %v91, %v232
  %v234 = vpop.f32.mrf.mxu0
  %235 = vdwg.mxu0
  %v236 = vadd.f32 %v76, %v162
  %v237 = vxor.u32 %v236, 2147483648
  %v238 = vmul.f32 %v237, 1.442695
  %v239 = vpow.pop %v238
  %v240 = vadd.f32 %v239, 1.0
  %v241 = vrcp.pop %v240
  %v242 = vmul.f32 1.0, %v241
  %v243 = vadd.f32 %v77, %v164
  %v244 = vxor.u32 %v243, 2147483648
  %v245 = vmul.f32 %v244, 1.442695
  %v246 = vpow.pop %v245
  %v247 = vadd.f32 %v246, 1.0
  %v248 = vrcp.pop %v247
  %v249 = vmul.f32 1.0, %v248
  %v250 = vmul.f32 %v242, %v233
  %v251 = vadd.f32 %v78, %v250
  %v252 = vtanh.pop %v251
  %v253 = vsub.f32 1.0, %v249
  %v254 = vmul.f32 %v253, %v252
  %v255 = vmul.f32 %v249, %v75
  %v256 = vadd.f32 %v254, %v255
  %v257 = vstv %s74
  %vm258 = vcmp.lt.s32.totalorder %v257, %v73
  %v259 = vsel %vm258, 1, 0
  %v260 = vcvt.s32.f32 %v259
  %262 = vset.pattern.permute.xlu0 0
  %263 = vperm.xlu0 %262, %v260
  %v264 = vpop.permute.xlu0 %263
  %v266 = vmul.f32 %v264, %v256
  %267 = vst [vmem:[%s4] sm:$0xff] %v266
  %v268 = vsub.f32 1.0, %v260
  %270 = vset.pattern.permute.xlu0 0
  %271 = vperm.xlu0 %270, %v268
  %v272 = vpop.permute.xlu0 %271
  %v274 = vmul.f32 %v272, %v75
  %v275 = vadd.f32 %v266, %v274
  %s276 = scalar_lea.vmem %s1, 24
  %v277 = vld [vmem:[%s276] sm:$0xff]
  %v278 = vld [vmem:[%s276 + $0x8] sm:$0xff]
  %v279 = vld [vmem:[%s276 + $0x10] sm:$0xff]
  %280 = vmatprep.subr.mxu0 %v70
  %281 = vmatpush1.msra.mxu0 %v69
  %282 = vmatprep.subr.mxu0 %v67
  %283 = vmatpush1.msra.mxu0 %v66
  %284 = vmatprep.subr.mxu0 %v64
  %285 = vmatpush1.msra.mxu0 %v63
  %286 = vmatprep.subr.mxu0 %v61
  %287 = vmatpush1.msra.mxu0 %v60
  %288 = vmatprep.subr.mxu0 %v58
  %289 = vmatpush1.msra.mxu0 %v57
  %290 = vmatprep.subr.mxu0 %v55
  %291 = vmatpush1.msra.mxu0 %v54
  %292 = vmatprep.subr.mxu0 %v52
  %293 = vmatpush1.msra.mxu0 %v51
  %294 = vmatprep.subr.mxu0 %v49
  %295 = vmatpush1.msra.mxu0 %v48
  %296 = vmatprep.subr.mxu0 %v46
  %297 = vmatpush1.msra.mxu0 %v45
  %298 = vmatprep.subr.mxu0 %v43
  %299 = vmatpush1.msra.mxu0 %v42
  %300 = vmatprep.subr.mxu0 %v40
  %301 = vmatpush1.msra.mxu0 %v39
  %302 = vmatprep.subr.mxu0 %v37
  %303 = vmatpush1.msra.mxu0 %v36
  %304 = vmatprep.subr.mxu0 %v34
  %305 = vmatpush1.msra.mxu0 %v33
  %306 = vmatprep.subr.mxu0 %v31
  %307 = vmatpush1.msra.mxu0 %v30
  %308 = vmatprep.subr.mxu0 %v28
  %309 = vmatpush1.msra.mxu0 %v27
  %310 = vmatprep.subr.mxu0 %v25
  %311 = vmatpush1.msra.mxu0 %v24
  %312 = vmatprep.subr.mxu0 0.0
  %313 = vmatpush2.msra.mxu0 0.0
  %314 = vmatprep.subr.mxu0 0.0
  %315 = vmatpush2.msra.mxu0 0.0
  %316 = vmatprep.subr.mxu0 0.0
  %317 = vmatpush2.msra.mxu0 0.0
  %318 = vmatprep.subr.mxu0 0.0
  %319 = vmatpush2.msra.mxu0 0.0
  %320 = vmatprep.subr.mxu0 0.0
  %321 = vmatpush2.msra.mxu0 0.0
  %322 = vmatprep.subr.mxu0 0.0
  %323 = vmatpush2.msra.mxu0 0.0
  %324 = vmatprep.subr.mxu0 0.0
  %325 = vmatpush2.msra.mxu0 0.0
  %326 = vmatprep.subr.mxu0 0.0
  %327 = vmatpush2.msra.mxu0 0.0
  %328 = vmatprep.subr.mxu0 0.0
  %329 = vmatpush2.msra.mxu0 0.0
  %330 = vmatprep.subr.mxu0 0.0
  %331 = vmatpush2.msra.mxu0 0.0
  %332 = vmatprep.subr.mxu0 0.0
  %333 = vmatpush2.msra.mxu0 0.0
  %334 = vmatprep.subr.mxu0 0.0
  %335 = vmatpush2.msra.mxu0 0.0
  %336 = vmatprep.subr.mxu0 0.0
  %337 = vmatpush2.msra.mxu0 0.0
  %338 = vmatprep.subr.mxu0 0.0
  %339 = vmatpush2.msra.mxu0 0.0
  %340 = vmatprep.subr.mxu0 0.0
  %341 = vmatpush2.msra.mxu0 0.0
  %342 = vmatprep.subr.mxu0 0.0
  %343 = vmatpush2.msra.mxu0 0.0
  %344 = vmatprep.mubr.f32.mxu0 0.0
  %345 = vmatmul.mubr.f32.gmra.mxu0 %v275
  %v346 = vpop.f32.mrf.mxu0
  %v347 = vadd.f32 %v83, %v346
  %v348 = vpop.f32.mrf.mxu0
  %v349 = vadd.f32 %v87, %v348
  %350 = vdwg.mxu0
  %351 = vmatprep.subr.mxu0 0.0
  %352 = vmatpush1.msra.mxu0 %v71
  %353 = vmatprep.subr.mxu0 0.0
  %354 = vmatpush1.msra.mxu0 %v68
  %355 = vmatprep.subr.mxu0 0.0
  %356 = vmatpush1.msra.mxu0 %v65
  %357 = vmatprep.subr.mxu0 0.0
  %358 = vmatpush1.msra.mxu0 %v62
  %359 = vmatprep.subr.mxu0 0.0
  %360 = vmatpush1.msra.mxu0 %v59
  %361 = vmatprep.subr.mxu0 0.0
  %362 = vmatpush1.msra.mxu0 %v56
  %363 = vmatprep.subr.mxu0 0.0
  %364 = vmatpush1.msra.mxu0 %v53
  %365 = vmatprep.subr.mxu0 0.0
  %366 = vmatpush1.msra.mxu0 %v50
  %367 = vmatprep.subr.mxu0 0.0
  %368 = vmatpush1.msra.mxu0 %v47
  %369 = vmatprep.subr.mxu0 0.0
  %370 = vmatpush1.msra.mxu0 %v44
  %371 = vmatprep.subr.mxu0 0.0
  %372 = vmatpush1.msra.mxu0 %v41
  %373 = vmatprep.subr.mxu0 0.0
  %374 = vmatpush1.msra.mxu0 %v38
  %375 = vmatprep.subr.mxu0 0.0
  %376 = vmatpush1.msra.mxu0 %v35
  %377 = vmatprep.subr.mxu0 0.0
  %378 = vmatpush1.msra.mxu0 %v32
  %379 = vmatprep.subr.mxu0 0.0
  %380 = vmatpush1.msra.mxu0 %v29
  %381 = vmatprep.subr.mxu0 0.0
  %382 = vmatpush1.msra.mxu0 %v26
  %383 = vmatprep.subr.mxu0 0.0
  %384 = vmatpush2.msra.mxu0 0.0
  %385 = vmatprep.subr.mxu0 0.0
  %386 = vmatpush2.msra.mxu0 0.0
  %387 = vmatprep.subr.mxu0 0.0
  %388 = vmatpush2.msra.mxu0 0.0
  %389 = vmatprep.subr.mxu0 0.0
  %390 = vmatpush2.msra.mxu0 0.0
  %391 = vmatprep.subr.mxu0 0.0
  %392 = vmatpush2.msra.mxu0 0.0
  %393 = vmatprep.subr.mxu0 0.0
  %394 = vmatpush2.msra.mxu0 0.0
  %395 = vmatprep.subr.mxu0 0.0
  %396 = vmatpush2.msra.mxu0 0.0
  %397 = vmatprep.subr.mxu0 0.0
  %398 = vmatpush2.msra.mxu0 0.0
  %399 = vmatprep.subr.mxu0 0.0
  %400 = vmatpush2.msra.mxu0 0.0
  %401 = vmatprep.subr.mxu0 0.0
  %402 = vmatpush2.msra.mxu0 0.0
  %403 = vmatprep.subr.mxu0 0.0
  %404 = vmatpush2.msra.mxu0 0.0
  %405 = vmatprep.subr.mxu0 0.0
  %406 = vmatpush2.msra.mxu0 0.0
  %407 = vmatprep.subr.mxu0 0.0
  %408 = vmatpush2.msra.mxu0 0.0
  %409 = vmatprep.subr.mxu0 0.0
  %410 = vmatpush2.msra.mxu0 0.0
  %411 = vmatprep.subr.mxu0 0.0
  %412 = vmatpush2.msra.mxu0 0.0
  %413 = vmatprep.subr.mxu0 0.0
  %414 = vmatpush2.msra.mxu0 0.0
  %415 = vmatprep.mubr.f32.mxu0 0.0
  %416 = vmatmul.mubr.f32.gmra.mxu0 %v275
  %v417 = vpop.f32.mrf.mxu0
  %v418 = vadd.f32 %v91, %v417
  %v419 = vpop.f32.mrf.mxu0
  %420 = vdwg.mxu0
  %v421 = vadd.f32 %v277, %v347
  %v422 = vxor.u32 %v421, 2147483648
  %v423 = vmul.f32 %v422, 1.442695
  %v424 = vpow.pop %v423
  %v425 = vadd.f32 %v424, 1.0
  %v426 = vrcp.pop %v425
  %v427 = vmul.f32 1.0, %v426
  %v428 = vadd.f32 %v278, %v349
  %v429 = vxor.u32 %v428, 2147483648
  %v430 = vmul.f32 %v429, 1.442695
  %v431 = vpow.pop %v430
  %v432 = vadd.f32 %v431, 1.0
  %v433 = vrcp.pop %v432
  %v434 = vmul.f32 1.0, %v433
  %v435 = vmul.f32 %v427, %v418
  %v436 = vadd.f32 %v279, %v435
  %v437 = vtanh.pop %v436
  %v438 = vsub.f32 1.0, %v434
  %v439 = vmul.f32 %v438, %v437
  %v440 = vmul.f32 %v434, %v275
  %v441 = vadd.f32 %v439, %v440
  %s442 = sadd.s32 %s74, 1
  %v443 = vstv %s442
  %vm444 = vcmp.lt.s32.totalorder %v443, %v73
  %v445 = vsel %vm444, 1, 0
  %v446 = vcvt.s32.f32 %v445
  %448 = vset.pattern.permute.xlu0 0
  %449 = vperm.xlu0 %448, %v446
  %v450 = vpop.permute.xlu0 %449
  %v452 = vmul.f32 %v450, %v441
  %s453 = scalar_lea.vmem %s4, 8
  %454 = vst [vmem:[%s453] sm:$0xff] %v452
  %v455 = vsub.f32 1.0, %v446
  %457 = vset.pattern.permute.xlu0 0
  %458 = vperm.xlu0 %457, %v455
  %v459 = vpop.permute.xlu0 %458
  %v461 = vmul.f32 %v459, %v275
  %v462 = vadd.f32 %v452, %v461
  %s463 = scalar_lea.vmem %s1, 48
  %v464 = vld [vmem:[%s463] sm:$0xff]
  %v465 = vld [vmem:[%s463 + $0x8] sm:$0xff]
  %v466 = vld [vmem:[%s463 + $0x10] sm:$0xff]
  %467 = vmatprep.subr.mxu0 %v70
  %468 = vmatpush1.msra.mxu0 %v69
  %469 = vmatprep.subr.mxu0 %v67
  %470 = vmatpush1.msra.mxu0 %v66
  %471 = vmatprep.subr.mxu0 %v64
  %472 = vmatpush1.msra.mxu0 %v63
  %473 = vmatprep.subr.mxu0 %v61
  %474 = vmatpush1.msra.mxu0 %v60
  %475 = vmatprep.subr.mxu0 %v58
  %476 = vmatpush1.msra.mxu0 %v57
  %477 = vmatprep.subr.mxu0 %v55
  %478 = vmatpush1.msra.mxu0 %v54
  %479 = vmatprep.subr.mxu0 %v52
  %480 = vmatpush1.msra.mxu0 %v51
  %481 = vmatprep.subr.mxu0 %v49
  %482 = vmatpush1.msra.mxu0 %v48
  %483 = vmatprep.subr.mxu0 %v46
  %484 = vmatpush1.msra.mxu0 %v45
  %485 = vmatprep.subr.mxu0 %v43
  %486 = vmatpush1.msra.mxu0 %v42
  %487 = vmatprep.subr.mxu0 %v40
  %488 = vmatpush1.msra.mxu0 %v39
  %489 = vmatprep.subr.mxu0 %v37
  %490 = vmatpush1.msra.mxu0 %v36
  %491 = vmatprep.subr.mxu0 %v34
  %492 = vmatpush1.msra.mxu0 %v33
  %493 = vmatprep.subr.mxu0 %v31
  %494 = vmatpush1.msra.mxu0 %v30
  %495 = vmatprep.subr.mxu0 %v28
  %496 = vmatpush1.msra.mxu0 %v27
  %497 = vmatprep.subr.mxu0 %v25
  %498 = vmatpush1.msra.mxu0 %v24
  %499 = vmatprep.subr.mxu0 0.0
  %500 = vmatpush2.msra.mxu0 0.0
  %501 = vmatprep.subr.mxu0 0.0
  %502 = vmatpush2.msra.mxu0 0.0
  %503 = vmatprep.subr.mxu0 0.0
  %504 = vmatpush2.msra.mxu0 0.0
  %505 = vmatprep.subr.mxu0 0.0
  %506 = vmatpush2.msra.mxu0 0.0
  %507 = vmatprep.subr.mxu0 0.0
  %508 = vmatpush2.msra.mxu0 0.0
  %509 = vmatprep.subr.mxu0 0.0
  %510 = vmatpush2.msra.mxu0 0.0
  %511 = vmatprep.subr.mxu0 0.0
  %512 = vmatpush2.msra.mxu0 0.0
  %513 = vmatprep.subr.mxu0 0.0
  %514 = vmatpush2.msra.mxu0 0.0
  %515 = vmatprep.subr.mxu0 0.0
  %516 = vmatpush2.msra.mxu0 0.0
  %517 = vmatprep.subr.mxu0 0.0
  %518 = vmatpush2.msra.mxu0 0.0
  %519 = vmatprep.subr.mxu0 0.0
  %520 = vmatpush2.msra.mxu0 0.0
  %521 = vmatprep.subr.mxu0 0.0
  %522 = vmatpush2.msra.mxu0 0.0
  %523 = vmatprep.subr.mxu0 0.0
  %524 = vmatpush2.msra.mxu0 0.0
  %525 = vmatprep.subr.mxu0 0.0
  %526 = vmatpush2.msra.mxu0 0.0
  %527 = vmatprep.subr.mxu0 0.0
  %528 = vmatpush2.msra.mxu0 0.0
  %529 = vmatprep.subr.mxu0 0.0
  %530 = vmatpush2.msra.mxu0 0.0
  %531 = vmatprep.mubr.f32.mxu0 0.0
  %532 = vmatmul.mubr.f32.gmra.mxu0 %v462
  %v533 = vpop.f32.mrf.mxu0
  %v534 = vadd.f32 %v83, %v533
  %v535 = vpop.f32.mrf.mxu0
  %v536 = vadd.f32 %v87, %v535
  %537 = vdwg.mxu0
  %538 = vmatprep.subr.mxu0 0.0
  %539 = vmatpush1.msra.mxu0 %v71
  %540 = vmatprep.subr.mxu0 0.0
  %541 = vmatpush1.msra.mxu0 %v68
  %542 = vmatprep.subr.mxu0 0.0
  %543 = vmatpush1.msra.mxu0 %v65
  %544 = vmatprep.subr.mxu0 0.0
  %545 = vmatpush1.msra.mxu0 %v62
  %546 = vmatprep.subr.mxu0 0.0
  %547 = vmatpush1.msra.mxu0 %v59
  %548 = vmatprep.subr.mxu0 0.0
  %549 = vmatpush1.msra.mxu0 %v56
  %550 = vmatprep.subr.mxu0 0.0
  %551 = vmatpush1.msra.mxu0 %v53
  %552 = vmatprep.subr.mxu0 0.0
  %553 = vmatpush1.msra.mxu0 %v50
  %554 = vmatprep.subr.mxu0 0.0
  %555 = vmatpush1.msra.mxu0 %v47
  %556 = vmatprep.subr.mxu0 0.0
  %557 = vmatpush1.msra.mxu0 %v44
  %558 = vmatprep.subr.mxu0 0.0
  %559 = vmatpush1.msra.mxu0 %v41
  %560 = vmatprep.subr.mxu0 0.0
  %561 = vmatpush1.msra.mxu0 %v38
  %562 = vmatprep.subr.mxu0 0.0
  %563 = vmatpush1.msra.mxu0 %v35
  %564 = vmatprep.subr.mxu0 0.0
  %565 = vmatpush1.msra.mxu0 %v32
  %566 = vmatprep.subr.mxu0 0.0
  %567 = vmatpush1.msra.mxu0 %v29
  %568 = vmatprep.subr.mxu0 0.0
  %569 = vmatpush1.msra.mxu0 %v26
  %570 = vmatprep.subr.mxu0 0.0
  %571 = vmatpush2.msra.mxu0 0.0
  %572 = vmatprep.subr.mxu0 0.0
  %573 = vmatpush2.msra.mxu0 0.0
  %574 = vmatprep.subr.mxu0 0.0
  %575 = vmatpush2.msra.mxu0 0.0
  %576 = vmatprep.subr.mxu0 0.0
  %577 = vmatpush2.msra.mxu0 0.0
  %578 = vmatprep.subr.mxu0 0.0
  %579 = vmatpush2.msra.mxu0 0.0
  %580 = vmatprep.subr.mxu0 0.0
  %581 = vmatpush2.msra.mxu0 0.0
  %582 = vmatprep.subr.mxu0 0.0
  %583 = vmatpush2.msra.mxu0 0.0
  %584 = vmatprep.subr.mxu0 0.0
  %585 = vmatpush2.msra.mxu0 0.0
  %586 = vmatprep.subr.mxu0 0.0
  %587 = vmatpush2.msra.mxu0 0.0
  %588 = vmatprep.subr.mxu0 0.0
  %589 = vmatpush2.msra.mxu0 0.0
  %590 = vmatprep.subr.mxu0 0.0
  %591 = vmatpush2.msra.mxu0 0.0
  %592 = vmatprep.subr.mxu0 0.0
  %593 = vmatpush2.msra.mxu0 0.0
  %594 = vmatprep.subr.mxu0 0.0
  %595 = vmatpush2.msra.mxu0 0.0
  %596 = vmatprep.subr.mxu0 0.0
  %597 = vmatpush2.msra.mxu0 0.0
  %598 = vmatprep.subr.mxu0 0.0
  %599 = vmatpush2.msra.mxu0 0.0
  %600 = vmatprep.subr.mxu0 0.0
  %601 = vmatpush2.msra.mxu0 0.0
  %602 = vmatprep.mubr.f32.mxu0 0.0
  %603 = vmatmul.mubr.f32.gmra.mxu0 %v462
  %v604 = vpop.f32.mrf.mxu0
  %v605 = vadd.f32 %v91, %v604
  %v606 = vpop.f32.mrf.mxu0
  %607 = vdwg.mxu0
  %v608 = vadd.f32 %v464, %v534
  %v609 = vxor.u32 %v608, 2147483648
  %v610 = vmul.f32 %v609, 1.442695
  %v611 = vpow.pop %v610
  %v612 = vadd.f32 %v611, 1.0
  %v613 = vrcp.pop %v612
  %v614 = vmul.f32 1.0, %v613
  %v615 = vadd.f32 %v465, %v536
  %v616 = vxor.u32 %v615, 2147483648
  %v617 = vmul.f32 %v616, 1.442695
  %v618 = vpow.pop %v617
  %v619 = vadd.f32 %v618, 1.0
  %v620 = vrcp.pop %v619
  %v621 = vmul.f32 1.0, %v620
  %v622 = vmul.f32 %v614, %v605
  %v623 = vadd.f32 %v466, %v622
  %v624 = vtanh.pop %v623
  %v625 = vsub.f32 1.0, %v621
  %v626 = vmul.f32 %v625, %v624
  %v627 = vmul.f32 %v621, %v462
  %v628 = vadd.f32 %v626, %v627
  %s629 = sadd.s32 %s74, 2
  %v630 = vstv %s629
  %vm631 = vcmp.lt.s32.totalorder %v630, %v73
  %v632 = vsel %vm631, 1, 0
  %v633 = vcvt.s32.f32 %v632
  %635 = vset.pattern.permute.xlu0 0
  %636 = vperm.xlu0 %635, %v633
  %v637 = vpop.permute.xlu0 %636
  %v639 = vmul.f32 %v637, %v628
  %s640 = scalar_lea.vmem %s4, 16
  %641 = vst [vmem:[%s640] sm:$0xff] %v639
  %v642 = vsub.f32 1.0, %v633
  %644 = vset.pattern.permute.xlu0 0
  %645 = vperm.xlu0 %644, %v642
  %v646 = vpop.permute.xlu0 %645
  %v648 = vmul.f32 %v646, %v462
  %v649 = vadd.f32 %v639, %v648
  %s650 = scalar_lea.vmem %s1, 72
  %v651 = vld [vmem:[%s650] sm:$0xff]
  %v652 = vld [vmem:[%s650 + $0x8] sm:$0xff]
  %v653 = vld [vmem:[%s650 + $0x10] sm:$0xff]
  %654 = vmatprep.subr.mxu0 %v70
  %655 = vmatpush1.msra.mxu0 %v69
  %656 = vmatprep.subr.mxu0 %v67
  %657 = vmatpush1.msra.mxu0 %v66
  %658 = vmatprep.subr.mxu0 %v64
  %659 = vmatpush1.msra.mxu0 %v63
  %660 = vmatprep.subr.mxu0 %v61
  %661 = vmatpush1.msra.mxu0 %v60
  %662 = vmatprep.subr.mxu0 %v58
  %663 = vmatpush1.msra.mxu0 %v57
  %664 = vmatprep.subr.mxu0 %v55
  %665 = vmatpush1.msra.mxu0 %v54
  %666 = vmatprep.subr.mxu0 %v52
  %667 = vmatpush1.msra.mxu0 %v51
  %668 = vmatprep.subr.mxu0 %v49
  %669 = vmatpush1.msra.mxu0 %v48
  %670 = vmatprep.subr.mxu0 %v46
  %671 = vmatpush1.msra.mxu0 %v45
  %672 = vmatprep.subr.mxu0 %v43
  %673 = vmatpush1.msra.mxu0 %v42
  %674 = vmatprep.subr.mxu0 %v40
  %675 = vmatpush1.msra.mxu0 %v39
  %676 = vmatprep.subr.mxu0 %v37
  %677 = vmatpush1.msra.mxu0 %v36
  %678 = vmatprep.subr.mxu0 %v34
  %679 = vmatpush1.msra.mxu0 %v33
  %680 = vmatprep.subr.mxu0 %v31
  %681 = vmatpush1.msra.mxu0 %v30
  %682 = vmatprep.subr.mxu0 %v28
  %683 = vmatpush1.msra.mxu0 %v27
  %684 = vmatprep.subr.mxu0 %v25
  %685 = vmatpush1.msra.mxu0 %v24
  %686 = vmatprep.subr.mxu0 0.0
  %687 = vmatpush2.msra.mxu0 0.0
  %688 = vmatprep.subr.mxu0 0.0
  %689 = vmatpush2.msra.mxu0 0.0
  %690 = vmatprep.subr.mxu0 0.0
  %691 = vmatpush2.msra.mxu0 0.0
  %692 = vmatprep.subr.mxu0 0.0
  %693 = vmatpush2.msra.mxu0 0.0
  %694 = vmatprep.subr.mxu0 0.0
  %695 = vmatpush2.msra.mxu0 0.0
  %696 = vmatprep.subr.mxu0 0.0
  %697 = vmatpush2.msra.mxu0 0.0
  %698 = vmatprep.subr.mxu0 0.0
  %699 = vmatpush2.msra.mxu0 0.0
  %700 = vmatprep.subr.mxu0 0.0
  %701 = vmatpush2.msra.mxu0 0.0
  %702 = vmatprep.subr.mxu0 0.0
  %703 = vmatpush2.msra.mxu0 0.0
  %704 = vmatprep.subr.mxu0 0.0
  %705 = vmatpush2.msra.mxu0 0.0
  %706 = vmatprep.subr.mxu0 0.0
  %707 = vmatpush2.msra.mxu0 0.0
  %708 = vmatprep.subr.mxu0 0.0
  %709 = vmatpush2.msra.mxu0 0.0
  %710 = vmatprep.subr.mxu0 0.0
  %711 = vmatpush2.msra.mxu0 0.0
  %712 = vmatprep.subr.mxu0 0.0
  %713 = vmatpush2.msra.mxu0 0.0
  %714 = vmatprep.subr.mxu0 0.0
  %715 = vmatpush2.msra.mxu0 0.0
  %716 = vmatprep.subr.mxu0 0.0
  %717 = vmatpush2.msra.mxu0 0.0
  %718 = vmatprep.mubr.f32.mxu0 0.0
  %719 = vmatmul.mubr.f32.gmra.mxu0 %v649
  %v720 = vpop.f32.mrf.mxu0
  %v721 = vadd.f32 %v83, %v720
  %v722 = vpop.f32.mrf.mxu0
  %v723 = vadd.f32 %v87, %v722
  %724 = vdwg.mxu0
  %725 = vmatprep.subr.mxu0 0.0
  %726 = vmatpush1.msra.mxu0 %v71
  %727 = vmatprep.subr.mxu0 0.0
  %728 = vmatpush1.msra.mxu0 %v68
  %729 = vmatprep.subr.mxu0 0.0
  %730 = vmatpush1.msra.mxu0 %v65
  %731 = vmatprep.subr.mxu0 0.0
  %732 = vmatpush1.msra.mxu0 %v62
  %733 = vmatprep.subr.mxu0 0.0
  %734 = vmatpush1.msra.mxu0 %v59
  %735 = vmatprep.subr.mxu0 0.0
  %736 = vmatpush1.msra.mxu0 %v56
  %737 = vmatprep.subr.mxu0 0.0
  %738 = vmatpush1.msra.mxu0 %v53
  %739 = vmatprep.subr.mxu0 0.0
  %740 = vmatpush1.msra.mxu0 %v50
  %741 = vmatprep.subr.mxu0 0.0
  %742 = vmatpush1.msra.mxu0 %v47
  %743 = vmatprep.subr.mxu0 0.0
  %744 = vmatpush1.msra.mxu0 %v44
  %745 = vmatprep.subr.mxu0 0.0
  %746 = vmatpush1.msra.mxu0 %v41
  %747 = vmatprep.subr.mxu0 0.0
  %748 = vmatpush1.msra.mxu0 %v38
  %749 = vmatprep.subr.mxu0 0.0
  %750 = vmatpush1.msra.mxu0 %v35
  %751 = vmatprep.subr.mxu0 0.0
  %752 = vmatpush1.msra.mxu0 %v32
  %753 = vmatprep.subr.mxu0 0.0
  %754 = vmatpush1.msra.mxu0 %v29
  %755 = vmatprep.subr.mxu0 0.0
  %756 = vmatpush1.msra.mxu0 %v26
  %757 = vmatprep.subr.mxu0 0.0
  %758 = vmatpush2.msra.mxu0 0.0
  %759 = vmatprep.subr.mxu0 0.0
  %760 = vmatpush2.msra.mxu0 0.0
  %761 = vmatprep.subr.mxu0 0.0
  %762 = vmatpush2.msra.mxu0 0.0
  %763 = vmatprep.subr.mxu0 0.0
  %764 = vmatpush2.msra.mxu0 0.0
  %765 = vmatprep.subr.mxu0 0.0
  %766 = vmatpush2.msra.mxu0 0.0
  %767 = vmatprep.subr.mxu0 0.0
  %768 = vmatpush2.msra.mxu0 0.0
  %769 = vmatprep.subr.mxu0 0.0
  %770 = vmatpush2.msra.mxu0 0.0
  %771 = vmatprep.subr.mxu0 0.0
  %772 = vmatpush2.msra.mxu0 0.0
  %773 = vmatprep.subr.mxu0 0.0
  %774 = vmatpush2.msra.mxu0 0.0
  %775 = vmatprep.subr.mxu0 0.0
  %776 = vmatpush2.msra.mxu0 0.0
  %777 = vmatprep.subr.mxu0 0.0
  %778 = vmatpush2.msra.mxu0 0.0
  %779 = vmatprep.subr.mxu0 0.0
  %780 = vmatpush2.msra.mxu0 0.0
  %781 = vmatprep.subr.mxu0 0.0
  %782 = vmatpush2.msra.mxu0 0.0
  %783 = vmatprep.subr.mxu0 0.0
  %784 = vmatpush2.msra.mxu0 0.0
  %785 = vmatprep.subr.mxu0 0.0
  %786 = vmatpush2.msra.mxu0 0.0
  %787 = vmatprep.subr.mxu0 0.0
  %788 = vmatpush2.msra.mxu0 0.0
  %789 = vmatprep.mubr.f32.mxu0 0.0
  %790 = vmatmul.mubr.f32.gmra.mxu0 %v649
  %v791 = vpop.f32.mrf.mxu0
  %v792 = vadd.f32 %v91, %v791
  %v793 = vpop.f32.mrf.mxu0
  %794 = vdwg.mxu0
  %v795 = vadd.f32 %v651, %v721
  %v796 = vxor.u32 %v795, 2147483648
  %v797 = vmul.f32 %v796, 1.442695
  %v798 = vpow.pop %v797
  %v799 = vadd.f32 %v798, 1.0
  %v800 = vrcp.pop %v799
  %v801 = vmul.f32 1.0, %v800
  %v802 = vadd.f32 %v652, %v723
  %v803 = vxor.u32 %v802, 2147483648
  %v804 = vmul.f32 %v803, 1.442695
  %v805 = vpow.pop %v804
  %v806 = vadd.f32 %v805, 1.0
  %v807 = vrcp.pop %v806
  %v808 = vmul.f32 1.0, %v807
  %v809 = vmul.f32 %v801, %v792
  %v810 = vadd.f32 %v653, %v809
  %v811 = vtanh.pop %v810
  %v812 = vsub.f32 1.0, %v808
  %v813 = vmul.f32 %v812, %v811
  %v814 = vmul.f32 %v808, %v649
  %v815 = vadd.f32 %v813, %v814
  %s816 = sadd.s32 %s74, 3
  %v817 = vstv %s816
  %vm818 = vcmp.lt.s32.totalorder %v817, %v73
  %v819 = vsel %vm818, 1, 0
  %v820 = vcvt.s32.f32 %v819
  %822 = vset.pattern.permute.xlu0 0
  %823 = vperm.xlu0 %822, %v820
  %v824 = vpop.permute.xlu0 %823
  %v826 = vmul.f32 %v824, %v815
  %s827 = scalar_lea.vmem %s4, 24
  %828 = vst [vmem:[%s827] sm:$0xff] %v826
  %v829 = vsub.f32 1.0, %v820
  %831 = vset.pattern.permute.xlu0 0
  %832 = vperm.xlu0 %831, %v829
  %v833 = vpop.permute.xlu0 %832
  %v835 = vmul.f32 %v833, %v649
  %v836 = vadd.f32 %v826, %v835
  %s837 = scalar_lea.vmem %s1, 96
  %v838 = vld [vmem:[%s837] sm:$0xff]
  %v839 = vld [vmem:[%s837 + $0x8] sm:$0xff]
  %v840 = vld [vmem:[%s837 + $0x10] sm:$0xff]
  %841 = vmatprep.subr.mxu0 %v70
  %842 = vmatpush1.msra.mxu0 %v69
  %843 = vmatprep.subr.mxu0 %v67
  %844 = vmatpush1.msra.mxu0 %v66
  %845 = vmatprep.subr.mxu0 %v64
  %846 = vmatpush1.msra.mxu0 %v63
  %847 = vmatprep.subr.mxu0 %v61
  %848 = vmatpush1.msra.mxu0 %v60
  %849 = vmatprep.subr.mxu0 %v58
  %850 = vmatpush1.msra.mxu0 %v57
  %851 = vmatprep.subr.mxu0 %v55
  %852 = vmatpush1.msra.mxu0 %v54
  %853 = vmatprep.subr.mxu0 %v52
  %854 = vmatpush1.msra.mxu0 %v51
  %855 = vmatprep.subr.mxu0 %v49
  %856 = vmatpush1.msra.mxu0 %v48
  %857 = vmatprep.subr.mxu0 %v46
  %858 = vmatpush1.msra.mxu0 %v45
  %859 = vmatprep.subr.mxu0 %v43
  %860 = vmatpush1.msra.mxu0 %v42
  %861 = vmatprep.subr.mxu0 %v40
  %862 = vmatpush1.msra.mxu0 %v39
  %863 = vmatprep.subr.mxu0 %v37
  %864 = vmatpush1.msra.mxu0 %v36
  %865 = vmatprep.subr.mxu0 %v34
  %866 = vmatpush1.msra.mxu0 %v33
  %867 = vmatprep.subr.mxu0 %v31
  %868 = vmatpush1.msra.mxu0 %v30
  %869 = vmatprep.subr.mxu0 %v28
  %870 = vmatpush1.msra.mxu0 %v27
  %871 = vmatprep.subr.mxu0 %v25
  %872 = vmatpush1.msra.mxu0 %v24
  %873 = vmatprep.subr.mxu0 0.0
  %874 = vmatpush2.msra.mxu0 0.0
  %875 = vmatprep.subr.mxu0 0.0
  %876 = vmatpush2.msra.mxu0 0.0
  %877 = vmatprep.subr.mxu0 0.0
  %878 = vmatpush2.msra.mxu0 0.0
  %879 = vmatprep.subr.mxu0 0.0
  %880 = vmatpush2.msra.mxu0 0.0
  %881 = vmatprep.subr.mxu0 0.0
  %882 = vmatpush2.msra.mxu0 0.0
  %883 = vmatprep.subr.mxu0 0.0
  %884 = vmatpush2.msra.mxu0 0.0
  %885 = vmatprep.subr.mxu0 0.0
  %886 = vmatpush2.msra.mxu0 0.0
  %887 = vmatprep.subr.mxu0 0.0
  %888 = vmatpush2.msra.mxu0 0.0
  %889 = vmatprep.subr.mxu0 0.0
  %890 = vmatpush2.msra.mxu0 0.0
  %891 = vmatprep.subr.mxu0 0.0
  %892 = vmatpush2.msra.mxu0 0.0
  %893 = vmatprep.subr.mxu0 0.0
  %894 = vmatpush2.msra.mxu0 0.0
  %895 = vmatprep.subr.mxu0 0.0
  %896 = vmatpush2.msra.mxu0 0.0
  %897 = vmatprep.subr.mxu0 0.0
  %898 = vmatpush2.msra.mxu0 0.0
  %899 = vmatprep.subr.mxu0 0.0
  %900 = vmatpush2.msra.mxu0 0.0
  %901 = vmatprep.subr.mxu0 0.0
  %902 = vmatpush2.msra.mxu0 0.0
  %903 = vmatprep.subr.mxu0 0.0
  %904 = vmatpush2.msra.mxu0 0.0
  %905 = vmatprep.mubr.f32.mxu0 0.0
  %906 = vmatmul.mubr.f32.gmra.mxu0 %v836
  %v907 = vpop.f32.mrf.mxu0
  %v908 = vadd.f32 %v83, %v907
  %v909 = vpop.f32.mrf.mxu0
  %v910 = vadd.f32 %v87, %v909
  %911 = vdwg.mxu0
  %912 = vmatprep.subr.mxu0 0.0
  %913 = vmatpush1.msra.mxu0 %v71
  %914 = vmatprep.subr.mxu0 0.0
  %915 = vmatpush1.msra.mxu0 %v68
  %916 = vmatprep.subr.mxu0 0.0
  %917 = vmatpush1.msra.mxu0 %v65
  %918 = vmatprep.subr.mxu0 0.0
  %919 = vmatpush1.msra.mxu0 %v62
  %920 = vmatprep.subr.mxu0 0.0
  %921 = vmatpush1.msra.mxu0 %v59
  %922 = vmatprep.subr.mxu0 0.0
  %923 = vmatpush1.msra.mxu0 %v56
  %924 = vmatprep.subr.mxu0 0.0
  %925 = vmatpush1.msra.mxu0 %v53
  %926 = vmatprep.subr.mxu0 0.0
  %927 = vmatpush1.msra.mxu0 %v50
  %928 = vmatprep.subr.mxu0 0.0
  %929 = vmatpush1.msra.mxu0 %v47
  %930 = vmatprep.subr.mxu0 0.0
  %931 = vmatpush1.msra.mxu0 %v44
  %932 = vmatprep.subr.mxu0 0.0
  %933 = vmatpush1.msra.mxu0 %v41
  %934 = vmatprep.subr.mxu0 0.0
  %935 = vmatpush1.msra.mxu0 %v38
  %936 = vmatprep.subr.mxu0 0.0
  %937 = vmatpush1.msra.mxu0 %v35
  %938 = vmatprep.subr.mxu0 0.0
  %939 = vmatpush1.msra.mxu0 %v32
  %940 = vmatprep.subr.mxu0 0.0
  %941 = vmatpush1.msra.mxu0 %v29
  %942 = vmatprep.subr.mxu0 0.0
  %943 = vmatpush1.msra.mxu0 %v26
  %944 = vmatprep.subr.mxu0 0.0
  %945 = vmatpush2.msra.mxu0 0.0
  %946 = vmatprep.subr.mxu0 0.0
  %947 = vmatpush2.msra.mxu0 0.0
  %948 = vmatprep.subr.mxu0 0.0
  %949 = vmatpush2.msra.mxu0 0.0
  %950 = vmatprep.subr.mxu0 0.0
  %951 = vmatpush2.msra.mxu0 0.0
  %952 = vmatprep.subr.mxu0 0.0
  %953 = vmatpush2.msra.mxu0 0.0
  %954 = vmatprep.subr.mxu0 0.0
  %955 = vmatpush2.msra.mxu0 0.0
  %956 = vmatprep.subr.mxu0 0.0
  %957 = vmatpush2.msra.mxu0 0.0
  %958 = vmatprep.subr.mxu0 0.0
  %959 = vmatpush2.msra.mxu0 0.0
  %960 = vmatprep.subr.mxu0 0.0
  %961 = vmatpush2.msra.mxu0 0.0
  %962 = vmatprep.subr.mxu0 0.0
  %963 = vmatpush2.msra.mxu0 0.0
  %964 = vmatprep.subr.mxu0 0.0
  %965 = vmatpush2.msra.mxu0 0.0
  %966 = vmatprep.subr.mxu0 0.0
  %967 = vmatpush2.msra.mxu0 0.0
  %968 = vmatprep.subr.mxu0 0.0
  %969 = vmatpush2.msra.mxu0 0.0
  %970 = vmatprep.subr.mxu0 0.0
  %971 = vmatpush2.msra.mxu0 0.0
  %972 = vmatprep.subr.mxu0 0.0
  %973 = vmatpush2.msra.mxu0 0.0
  %974 = vmatprep.subr.mxu0 0.0
  %975 = vmatpush2.msra.mxu0 0.0
  %976 = vmatprep.mubr.f32.mxu0 0.0
  %977 = vmatmul.mubr.f32.gmra.mxu0 %v836
  %v978 = vpop.f32.mrf.mxu0
  %v979 = vadd.f32 %v91, %v978
  %v980 = vpop.f32.mrf.mxu0
  %981 = vdwg.mxu0
  %v982 = vadd.f32 %v838, %v908
  %v983 = vxor.u32 %v982, 2147483648
  %v984 = vmul.f32 %v983, 1.442695
  %v985 = vpow.pop %v984
  %v986 = vadd.f32 %v985, 1.0
  %v987 = vrcp.pop %v986
  %v988 = vmul.f32 1.0, %v987
  %v989 = vadd.f32 %v839, %v910
  %v990 = vxor.u32 %v989, 2147483648
  %v991 = vmul.f32 %v990, 1.442695
  %v992 = vpow.pop %v991
  %v993 = vadd.f32 %v992, 1.0
  %v994 = vrcp.pop %v993
  %v995 = vmul.f32 1.0, %v994
  %v996 = vmul.f32 %v988, %v979
  %v997 = vadd.f32 %v840, %v996
  %v998 = vtanh.pop %v997
  %v999 = vsub.f32 1.0, %v995
  %v1000 = vmul.f32 %v999, %v998
  %v1001 = vmul.f32 %v995, %v836
  %v1002 = vadd.f32 %v1000, %v1001
  %s1003 = sadd.s32 %s74, 4
  %v1004 = vstv %s1003
  %vm1005 = vcmp.lt.s32.totalorder %v1004, %v73
  %v1006 = vsel %vm1005, 1, 0
  %v1007 = vcvt.s32.f32 %v1006
  %1009 = vset.pattern.permute.xlu0 0
  %1010 = vperm.xlu0 %1009, %v1007
  %v1011 = vpop.permute.xlu0 %1010
  %v1013 = vmul.f32 %v1011, %v1002
  %s1014 = scalar_lea.vmem %s4, 32
  %1015 = vst [vmem:[%s1014] sm:$0xff] %v1013
  %v1016 = vsub.f32 1.0, %v1007
  %1018 = vset.pattern.permute.xlu0 0
  %1019 = vperm.xlu0 %1018, %v1016
  %v1020 = vpop.permute.xlu0 %1019
  %v1022 = vmul.f32 %v1020, %v836
  %v1023 = vadd.f32 %v1013, %v1022
  %s1024 = scalar_lea.vmem %s1, 120
  %v1025 = vld [vmem:[%s1024] sm:$0xff]
  %v1026 = vld [vmem:[%s1024 + $0x8] sm:$0xff]
  %v1027 = vld [vmem:[%s1024 + $0x10] sm:$0xff]
  %1028 = vmatprep.subr.mxu0 %v70
  %1029 = vmatpush1.msra.mxu0 %v69
  %1030 = vmatprep.subr.mxu0 %v67
  %1031 = vmatpush1.msra.mxu0 %v66
  %1032 = vmatprep.subr.mxu0 %v64
  %1033 = vmatpush1.msra.mxu0 %v63
  %1034 = vmatprep.subr.mxu0 %v61
  %1035 = vmatpush1.msra.mxu0 %v60
  %1036 = vmatprep.subr.mxu0 %v58
  %1037 = vmatpush1.msra.mxu0 %v57
  %1038 = vmatprep.subr.mxu0 %v55
  %1039 = vmatpush1.msra.mxu0 %v54
  %1040 = vmatprep.subr.mxu0 %v52
  %1041 = vmatpush1.msra.mxu0 %v51
  %1042 = vmatprep.subr.mxu0 %v49
  %1043 = vmatpush1.msra.mxu0 %v48
  %1044 = vmatprep.subr.mxu0 %v46
  %1045 = vmatpush1.msra.mxu0 %v45
  %1046 = vmatprep.subr.mxu0 %v43
  %1047 = vmatpush1.msra.mxu0 %v42
  %1048 = vmatprep.subr.mxu0 %v40
  %1049 = vmatpush1.msra.mxu0 %v39
  %1050 = vmatprep.subr.mxu0 %v37
  %1051 = vmatpush1.msra.mxu0 %v36
  %1052 = vmatprep.subr.mxu0 %v34
  %1053 = vmatpush1.msra.mxu0 %v33
  %1054 = vmatprep.subr.mxu0 %v31
  %1055 = vmatpush1.msra.mxu0 %v30
  %1056 = vmatprep.subr.mxu0 %v28
  %1057 = vmatpush1.msra.mxu0 %v27
  %1058 = vmatprep.subr.mxu0 %v25
  %1059 = vmatpush1.msra.mxu0 %v24
  %1060 = vmatprep.subr.mxu0 0.0
  %1061 = vmatpush2.msra.mxu0 0.0
  %1062 = vmatprep.subr.mxu0 0.0
  %1063 = vmatpush2.msra.mxu0 0.0
  %1064 = vmatprep.subr.mxu0 0.0
  %1065 = vmatpush2.msra.mxu0 0.0
  %1066 = vmatprep.subr.mxu0 0.0
  %1067 = vmatpush2.msra.mxu0 0.0
  %1068 = vmatprep.subr.mxu0 0.0
  %1069 = vmatpush2.msra.mxu0 0.0
  %1070 = vmatprep.subr.mxu0 0.0
  %1071 = vmatpush2.msra.mxu0 0.0
  %1072 = vmatprep.subr.mxu0 0.0
  %1073 = vmatpush2.msra.mxu0 0.0
  %1074 = vmatprep.subr.mxu0 0.0
  %1075 = vmatpush2.msra.mxu0 0.0
  %1076 = vmatprep.subr.mxu0 0.0
  %1077 = vmatpush2.msra.mxu0 0.0
  %1078 = vmatprep.subr.mxu0 0.0
  %1079 = vmatpush2.msra.mxu0 0.0
  %1080 = vmatprep.subr.mxu0 0.0
  %1081 = vmatpush2.msra.mxu0 0.0
  %1082 = vmatprep.subr.mxu0 0.0
  %1083 = vmatpush2.msra.mxu0 0.0
  %1084 = vmatprep.subr.mxu0 0.0
  %1085 = vmatpush2.msra.mxu0 0.0
  %1086 = vmatprep.subr.mxu0 0.0
  %1087 = vmatpush2.msra.mxu0 0.0
  %1088 = vmatprep.subr.mxu0 0.0
  %1089 = vmatpush2.msra.mxu0 0.0
  %1090 = vmatprep.subr.mxu0 0.0
  %1091 = vmatpush2.msra.mxu0 0.0
  %1092 = vmatprep.mubr.f32.mxu0 0.0
  %1093 = vmatmul.mubr.f32.gmra.mxu0 %v1023
  %v1094 = vpop.f32.mrf.mxu0
  %v1095 = vadd.f32 %v83, %v1094
  %v1096 = vpop.f32.mrf.mxu0
  %v1097 = vadd.f32 %v87, %v1096
  %1098 = vdwg.mxu0
  %1099 = vmatprep.subr.mxu0 0.0
  %1100 = vmatpush1.msra.mxu0 %v71
  %1101 = vmatprep.subr.mxu0 0.0
  %1102 = vmatpush1.msra.mxu0 %v68
  %1103 = vmatprep.subr.mxu0 0.0
  %1104 = vmatpush1.msra.mxu0 %v65
  %1105 = vmatprep.subr.mxu0 0.0
  %1106 = vmatpush1.msra.mxu0 %v62
  %1107 = vmatprep.subr.mxu0 0.0
  %1108 = vmatpush1.msra.mxu0 %v59
  %1109 = vmatprep.subr.mxu0 0.0
  %1110 = vmatpush1.msra.mxu0 %v56
  %1111 = vmatprep.subr.mxu0 0.0
  %1112 = vmatpush1.msra.mxu0 %v53
  %1113 = vmatprep.subr.mxu0 0.0
  %1114 = vmatpush1.msra.mxu0 %v50
  %1115 = vmatprep.subr.mxu0 0.0
  %1116 = vmatpush1.msra.mxu0 %v47
  %1117 = vmatprep.subr.mxu0 0.0
  %1118 = vmatpush1.msra.mxu0 %v44
  %1119 = vmatprep.subr.mxu0 0.0
  %1120 = vmatpush1.msra.mxu0 %v41
  %1121 = vmatprep.subr.mxu0 0.0
  %1122 = vmatpush1.msra.mxu0 %v38
  %1123 = vmatprep.subr.mxu0 0.0
  %1124 = vmatpush1.msra.mxu0 %v35
  %1125 = vmatprep.subr.mxu0 0.0
  %1126 = vmatpush1.msra.mxu0 %v32
  %1127 = vmatprep.subr.mxu0 0.0
  %1128 = vmatpush1.msra.mxu0 %v29
  %1129 = vmatprep.subr.mxu0 0.0
  %1130 = vmatpush1.msra.mxu0 %v26
  %1131 = vmatprep.subr.mxu0 0.0
  %1132 = vmatpush2.msra.mxu0 0.0
  %1133 = vmatprep.subr.mxu0 0.0
  %1134 = vmatpush2.msra.mxu0 0.0
  %1135 = vmatprep.subr.mxu0 0.0
  %1136 = vmatpush2.msra.mxu0 0.0
  %1137 = vmatprep.subr.mxu0 0.0
  %1138 = vmatpush2.msra.mxu0 0.0
  %1139 = vmatprep.subr.mxu0 0.0
  %1140 = vmatpush2.msra.mxu0 0.0
  %1141 = vmatprep.subr.mxu0 0.0
  %1142 = vmatpush2.msra.mxu0 0.0
  %1143 = vmatprep.subr.mxu0 0.0
  %1144 = vmatpush2.msra.mxu0 0.0
  %1145 = vmatprep.subr.mxu0 0.0
  %1146 = vmatpush2.msra.mxu0 0.0
  %1147 = vmatprep.subr.mxu0 0.0
  %1148 = vmatpush2.msra.mxu0 0.0
  %1149 = vmatprep.subr.mxu0 0.0
  %1150 = vmatpush2.msra.mxu0 0.0
  %1151 = vmatprep.subr.mxu0 0.0
  %1152 = vmatpush2.msra.mxu0 0.0
  %1153 = vmatprep.subr.mxu0 0.0
  %1154 = vmatpush2.msra.mxu0 0.0
  %1155 = vmatprep.subr.mxu0 0.0
  %1156 = vmatpush2.msra.mxu0 0.0
  %1157 = vmatprep.subr.mxu0 0.0
  %1158 = vmatpush2.msra.mxu0 0.0
  %1159 = vmatprep.subr.mxu0 0.0
  %1160 = vmatpush2.msra.mxu0 0.0
  %1161 = vmatprep.subr.mxu0 0.0
  %1162 = vmatpush2.msra.mxu0 0.0
  %1163 = vmatprep.mubr.f32.mxu0 0.0
  %1164 = vmatmul.mubr.f32.gmra.mxu0 %v1023
  %v1165 = vpop.f32.mrf.mxu0
  %v1166 = vadd.f32 %v91, %v1165
  %v1167 = vpop.f32.mrf.mxu0
  %1168 = vdwg.mxu0
  %v1169 = vadd.f32 %v1025, %v1095
  %v1170 = vxor.u32 %v1169, 2147483648
  %v1171 = vmul.f32 %v1170, 1.442695
  %v1172 = vpow.pop %v1171
  %v1173 = vadd.f32 %v1172, 1.0
  %v1174 = vrcp.pop %v1173
  %v1175 = vmul.f32 1.0, %v1174
  %v1176 = vadd.f32 %v1026, %v1097
  %v1177 = vxor.u32 %v1176, 2147483648
  %v1178 = vmul.f32 %v1177, 1.442695
  %v1179 = vpow.pop %v1178
  %v1180 = vadd.f32 %v1179, 1.0
  %v1181 = vrcp.pop %v1180
  %v1182 = vmul.f32 1.0, %v1181
  %v1183 = vmul.f32 %v1175, %v1166
  %v1184 = vadd.f32 %v1027, %v1183
  %v1185 = vtanh.pop %v1184
  %v1186 = vsub.f32 1.0, %v1182
  %v1187 = vmul.f32 %v1186, %v1185
  %v1188 = vmul.f32 %v1182, %v1023
  %v1189 = vadd.f32 %v1187, %v1188
  %s1190 = sadd.s32 %s74, 5
  %v1191 = vstv %s1190
  %vm1192 = vcmp.lt.s32.totalorder %v1191, %v73
  %v1193 = vsel %vm1192, 1, 0
  %v1194 = vcvt.s32.f32 %v1193
  %1196 = vset.pattern.permute.xlu0 0
  %1197 = vperm.xlu0 %1196, %v1194
  %v1198 = vpop.permute.xlu0 %1197
  %v1200 = vmul.f32 %v1198, %v1189
  %s1201 = scalar_lea.vmem %s4, 40
  %1202 = vst [vmem:[%s1201] sm:$0xff] %v1200
  %v1203 = vsub.f32 1.0, %v1194
  %1205 = vset.pattern.permute.xlu0 0
  %1206 = vperm.xlu0 %1205, %v1203
  %v1207 = vpop.permute.xlu0 %1206
  %v1209 = vmul.f32 %v1207, %v1023
  %v1210 = vadd.f32 %v1200, %v1209
  %s1211 = scalar_lea.vmem %s1, 144
  %v1212 = vld [vmem:[%s1211] sm:$0xff]
  %v1213 = vld [vmem:[%s1211 + $0x8] sm:$0xff]
  %v1214 = vld [vmem:[%s1211 + $0x10] sm:$0xff]
  %1215 = vmatprep.subr.mxu0 %v70
  %1216 = vmatpush1.msra.mxu0 %v69
  %1217 = vmatprep.subr.mxu0 %v67
  %1218 = vmatpush1.msra.mxu0 %v66
  %1219 = vmatprep.subr.mxu0 %v64
  %1220 = vmatpush1.msra.mxu0 %v63
  %1221 = vmatprep.subr.mxu0 %v61
  %1222 = vmatpush1.msra.mxu0 %v60
  %1223 = vmatprep.subr.mxu0 %v58
  %1224 = vmatpush1.msra.mxu0 %v57
  %1225 = vmatprep.subr.mxu0 %v55
  %1226 = vmatpush1.msra.mxu0 %v54
  %1227 = vmatprep.subr.mxu0 %v52
  %1228 = vmatpush1.msra.mxu0 %v51
  %1229 = vmatprep.subr.mxu0 %v49
  %1230 = vmatpush1.msra.mxu0 %v48
  %1231 = vmatprep.subr.mxu0 %v46
  %1232 = vmatpush1.msra.mxu0 %v45
  %1233 = vmatprep.subr.mxu0 %v43
  %1234 = vmatpush1.msra.mxu0 %v42
  %1235 = vmatprep.subr.mxu0 %v40
  %1236 = vmatpush1.msra.mxu0 %v39
  %1237 = vmatprep.subr.mxu0 %v37
  %1238 = vmatpush1.msra.mxu0 %v36
  %1239 = vmatprep.subr.mxu0 %v34
  %1240 = vmatpush1.msra.mxu0 %v33
  %1241 = vmatprep.subr.mxu0 %v31
  %1242 = vmatpush1.msra.mxu0 %v30
  %1243 = vmatprep.subr.mxu0 %v28
  %1244 = vmatpush1.msra.mxu0 %v27
  %1245 = vmatprep.subr.mxu0 %v25
  %1246 = vmatpush1.msra.mxu0 %v24
  %1247 = vmatprep.subr.mxu0 0.0
  %1248 = vmatpush2.msra.mxu0 0.0
  %1249 = vmatprep.subr.mxu0 0.0
  %1250 = vmatpush2.msra.mxu0 0.0
  %1251 = vmatprep.subr.mxu0 0.0
  %1252 = vmatpush2.msra.mxu0 0.0
  %1253 = vmatprep.subr.mxu0 0.0
  %1254 = vmatpush2.msra.mxu0 0.0
  %1255 = vmatprep.subr.mxu0 0.0
  %1256 = vmatpush2.msra.mxu0 0.0
  %1257 = vmatprep.subr.mxu0 0.0
  %1258 = vmatpush2.msra.mxu0 0.0
  %1259 = vmatprep.subr.mxu0 0.0
  %1260 = vmatpush2.msra.mxu0 0.0
  %1261 = vmatprep.subr.mxu0 0.0
  %1262 = vmatpush2.msra.mxu0 0.0
  %1263 = vmatprep.subr.mxu0 0.0
  %1264 = vmatpush2.msra.mxu0 0.0
  %1265 = vmatprep.subr.mxu0 0.0
  %1266 = vmatpush2.msra.mxu0 0.0
  %1267 = vmatprep.subr.mxu0 0.0
  %1268 = vmatpush2.msra.mxu0 0.0
  %1269 = vmatprep.subr.mxu0 0.0
  %1270 = vmatpush2.msra.mxu0 0.0
  %1271 = vmatprep.subr.mxu0 0.0
  %1272 = vmatpush2.msra.mxu0 0.0
  %1273 = vmatprep.subr.mxu0 0.0
  %1274 = vmatpush2.msra.mxu0 0.0
  %1275 = vmatprep.subr.mxu0 0.0
  %1276 = vmatpush2.msra.mxu0 0.0
  %1277 = vmatprep.subr.mxu0 0.0
  %1278 = vmatpush2.msra.mxu0 0.0
  %1279 = vmatprep.mubr.f32.mxu0 0.0
  %1280 = vmatmul.mubr.f32.gmra.mxu0 %v1210
  %v1281 = vpop.f32.mrf.mxu0
  %v1282 = vadd.f32 %v83, %v1281
  %v1283 = vpop.f32.mrf.mxu0
  %v1284 = vadd.f32 %v87, %v1283
  %1285 = vdwg.mxu0
  %1286 = vmatprep.subr.mxu0 0.0
  %1287 = vmatpush1.msra.mxu0 %v71
  %1288 = vmatprep.subr.mxu0 0.0
  %1289 = vmatpush1.msra.mxu0 %v68
  %1290 = vmatprep.subr.mxu0 0.0
  %1291 = vmatpush1.msra.mxu0 %v65
  %1292 = vmatprep.subr.mxu0 0.0
  %1293 = vmatpush1.msra.mxu0 %v62
  %1294 = vmatprep.subr.mxu0 0.0
  %1295 = vmatpush1.msra.mxu0 %v59
  %1296 = vmatprep.subr.mxu0 0.0
  %1297 = vmatpush1.msra.mxu0 %v56
  %1298 = vmatprep.subr.mxu0 0.0
  %1299 = vmatpush1.msra.mxu0 %v53
  %1300 = vmatprep.subr.mxu0 0.0
  %1301 = vmatpush1.msra.mxu0 %v50
  %1302 = vmatprep.subr.mxu0 0.0
  %1303 = vmatpush1.msra.mxu0 %v47
  %1304 = vmatprep.subr.mxu0 0.0
  %1305 = vmatpush1.msra.mxu0 %v44
  %1306 = vmatprep.subr.mxu0 0.0
  %1307 = vmatpush1.msra.mxu0 %v41
  %1308 = vmatprep.subr.mxu0 0.0
  %1309 = vmatpush1.msra.mxu0 %v38
  %1310 = vmatprep.subr.mxu0 0.0
  %1311 = vmatpush1.msra.mxu0 %v35
  %1312 = vmatprep.subr.mxu0 0.0
  %1313 = vmatpush1.msra.mxu0 %v32
  %1314 = vmatprep.subr.mxu0 0.0
  %1315 = vmatpush1.msra.mxu0 %v29
  %1316 = vmatprep.subr.mxu0 0.0
  %1317 = vmatpush1.msra.mxu0 %v26
  %1318 = vmatprep.subr.mxu0 0.0
  %1319 = vmatpush2.msra.mxu0 0.0
  %1320 = vmatprep.subr.mxu0 0.0
  %1321 = vmatpush2.msra.mxu0 0.0
  %1322 = vmatprep.subr.mxu0 0.0
  %1323 = vmatpush2.msra.mxu0 0.0
  %1324 = vmatprep.subr.mxu0 0.0
  %1325 = vmatpush2.msra.mxu0 0.0
  %1326 = vmatprep.subr.mxu0 0.0
  %1327 = vmatpush2.msra.mxu0 0.0
  %1328 = vmatprep.subr.mxu0 0.0
  %1329 = vmatpush2.msra.mxu0 0.0
  %1330 = vmatprep.subr.mxu0 0.0
  %1331 = vmatpush2.msra.mxu0 0.0
  %1332 = vmatprep.subr.mxu0 0.0
  %1333 = vmatpush2.msra.mxu0 0.0
  %1334 = vmatprep.subr.mxu0 0.0
  %1335 = vmatpush2.msra.mxu0 0.0
  %1336 = vmatprep.subr.mxu0 0.0
  %1337 = vmatpush2.msra.mxu0 0.0
  %1338 = vmatprep.subr.mxu0 0.0
  %1339 = vmatpush2.msra.mxu0 0.0
  %1340 = vmatprep.subr.mxu0 0.0
  %1341 = vmatpush2.msra.mxu0 0.0
  %1342 = vmatprep.subr.mxu0 0.0
  %1343 = vmatpush2.msra.mxu0 0.0
  %1344 = vmatprep.subr.mxu0 0.0
  %1345 = vmatpush2.msra.mxu0 0.0
  %1346 = vmatprep.subr.mxu0 0.0
  %1347 = vmatpush2.msra.mxu0 0.0
  %1348 = vmatprep.subr.mxu0 0.0
  %1349 = vmatpush2.msra.mxu0 0.0
  %1350 = vmatprep.mubr.f32.mxu0 0.0
  %1351 = vmatmul.mubr.f32.gmra.mxu0 %v1210
  %v1352 = vpop.f32.mrf.mxu0
  %v1353 = vadd.f32 %v91, %v1352
  %v1354 = vpop.f32.mrf.mxu0
  %1355 = vdwg.mxu0
  %v1356 = vadd.f32 %v1212, %v1282
  %v1357 = vxor.u32 %v1356, 2147483648
  %v1358 = vmul.f32 %v1357, 1.442695
  %v1359 = vpow.pop %v1358
  %v1360 = vadd.f32 %v1359, 1.0
  %v1361 = vrcp.pop %v1360
  %v1362 = vmul.f32 1.0, %v1361
  %v1363 = vadd.f32 %v1213, %v1284
  %v1364 = vxor.u32 %v1363, 2147483648
  %v1365 = vmul.f32 %v1364, 1.442695
  %v1366 = vpow.pop %v1365
  %v1367 = vadd.f32 %v1366, 1.0
  %v1368 = vrcp.pop %v1367
  %v1369 = vmul.f32 1.0, %v1368
  %v1370 = vmul.f32 %v1362, %v1353
  %v1371 = vadd.f32 %v1214, %v1370
  %v1372 = vtanh.pop %v1371
  %v1373 = vsub.f32 1.0, %v1369
  %v1374 = vmul.f32 %v1373, %v1372
  %v1375 = vmul.f32 %v1369, %v1210
  %v1376 = vadd.f32 %v1374, %v1375
  %s1377 = sadd.s32 %s74, 6
  %v1378 = vstv %s1377
  %vm1379 = vcmp.lt.s32.totalorder %v1378, %v73
  %v1380 = vsel %vm1379, 1, 0
  %v1381 = vcvt.s32.f32 %v1380
  %1383 = vset.pattern.permute.xlu0 0
  %1384 = vperm.xlu0 %1383, %v1381
  %v1385 = vpop.permute.xlu0 %1384
  %v1387 = vmul.f32 %v1385, %v1376
  %s1388 = scalar_lea.vmem %s4, 48
  %1389 = vst [vmem:[%s1388] sm:$0xff] %v1387
  %v1390 = vsub.f32 1.0, %v1381
  %1392 = vset.pattern.permute.xlu0 0
  %1393 = vperm.xlu0 %1392, %v1390
  %v1394 = vpop.permute.xlu0 %1393
  %v1396 = vmul.f32 %v1394, %v1210
  %v1397 = vadd.f32 %v1387, %v1396
  %s1398 = scalar_lea.vmem %s1, 168
  %v1399 = vld [vmem:[%s1398] sm:$0xff]
  %v1400 = vld [vmem:[%s1398 + $0x8] sm:$0xff]
  %v1401 = vld [vmem:[%s1398 + $0x10] sm:$0xff]
  %1402 = vmatprep.subr.mxu0 %v70
  %1403 = vmatpush1.msra.mxu0 %v69
  %1404 = vmatprep.subr.mxu0 %v67
  %1405 = vmatpush1.msra.mxu0 %v66
  %1406 = vmatprep.subr.mxu0 %v64
  %1407 = vmatpush1.msra.mxu0 %v63
  %1408 = vmatprep.subr.mxu0 %v61
  %1409 = vmatpush1.msra.mxu0 %v60
  %1410 = vmatprep.subr.mxu0 %v58
  %1411 = vmatpush1.msra.mxu0 %v57
  %1412 = vmatprep.subr.mxu0 %v55
  %1413 = vmatpush1.msra.mxu0 %v54
  %1414 = vmatprep.subr.mxu0 %v52
  %1415 = vmatpush1.msra.mxu0 %v51
  %1416 = vmatprep.subr.mxu0 %v49
  %1417 = vmatpush1.msra.mxu0 %v48
  %1418 = vmatprep.subr.mxu0 %v46
  %1419 = vmatpush1.msra.mxu0 %v45
  %1420 = vmatprep.subr.mxu0 %v43
  %1421 = vmatpush1.msra.mxu0 %v42
  %1422 = vmatprep.subr.mxu0 %v40
  %1423 = vmatpush1.msra.mxu0 %v39
  %1424 = vmatprep.subr.mxu0 %v37
  %1425 = vmatpush1.msra.mxu0 %v36
  %1426 = vmatprep.subr.mxu0 %v34
  %1427 = vmatpush1.msra.mxu0 %v33
  %1428 = vmatprep.subr.mxu0 %v31
  %1429 = vmatpush1.msra.mxu0 %v30
  %1430 = vmatprep.subr.mxu0 %v28
  %1431 = vmatpush1.msra.mxu0 %v27
  %1432 = vmatprep.subr.mxu0 %v25
  %1433 = vmatpush1.msra.mxu0 %v24
  %1434 = vmatprep.subr.mxu0 0.0
  %1435 = vmatpush2.msra.mxu0 0.0
  %1436 = vmatprep.subr.mxu0 0.0
  %1437 = vmatpush2.msra.mxu0 0.0
  %1438 = vmatprep.subr.mxu0 0.0
  %1439 = vmatpush2.msra.mxu0 0.0
  %1440 = vmatprep.subr.mxu0 0.0
  %1441 = vmatpush2.msra.mxu0 0.0
  %1442 = vmatprep.subr.mxu0 0.0
  %1443 = vmatpush2.msra.mxu0 0.0
  %1444 = vmatprep.subr.mxu0 0.0
  %1445 = vmatpush2.msra.mxu0 0.0
  %1446 = vmatprep.subr.mxu0 0.0
  %1447 = vmatpush2.msra.mxu0 0.0
  %1448 = vmatprep.subr.mxu0 0.0
  %1449 = vmatpush2.msra.mxu0 0.0
  %1450 = vmatprep.subr.mxu0 0.0
  %1451 = vmatpush2.msra.mxu0 0.0
  %1452 = vmatprep.subr.mxu0 0.0
  %1453 = vmatpush2.msra.mxu0 0.0
  %1454 = vmatprep.subr.mxu0 0.0
  %1455 = vmatpush2.msra.mxu0 0.0
  %1456 = vmatprep.subr.mxu0 0.0
  %1457 = vmatpush2.msra.mxu0 0.0
  %1458 = vmatprep.subr.mxu0 0.0
  %1459 = vmatpush2.msra.mxu0 0.0
  %1460 = vmatprep.subr.mxu0 0.0
  %1461 = vmatpush2.msra.mxu0 0.0
  %1462 = vmatprep.subr.mxu0 0.0
  %1463 = vmatpush2.msra.mxu0 0.0
  %1464 = vmatprep.subr.mxu0 0.0
  %1465 = vmatpush2.msra.mxu0 0.0
  %1466 = vmatprep.mubr.f32.mxu0 0.0
  %1467 = vmatmul.mubr.f32.gmra.mxu0 %v1397
  %v1468 = vpop.f32.mrf.mxu0
  %v1469 = vadd.f32 %v83, %v1468
  %v1470 = vpop.f32.mrf.mxu0
  %v1471 = vadd.f32 %v87, %v1470
  %1472 = vdwg.mxu0
  %1473 = vmatprep.subr.mxu0 0.0
  %1474 = vmatpush1.msra.mxu0 %v71
  %1475 = vmatprep.subr.mxu0 0.0
  %1476 = vmatpush1.msra.mxu0 %v68
  %1477 = vmatprep.subr.mxu0 0.0
  %1478 = vmatpush1.msra.mxu0 %v65
  %1479 = vmatprep.subr.mxu0 0.0
  %1480 = vmatpush1.msra.mxu0 %v62
  %1481 = vmatprep.subr.mxu0 0.0
  %1482 = vmatpush1.msra.mxu0 %v59
  %1483 = vmatprep.subr.mxu0 0.0
  %1484 = vmatpush1.msra.mxu0 %v56
  %1485 = vmatprep.subr.mxu0 0.0
  %1486 = vmatpush1.msra.mxu0 %v53
  %1487 = vmatprep.subr.mxu0 0.0
  %1488 = vmatpush1.msra.mxu0 %v50
  %1489 = vmatprep.subr.mxu0 0.0
  %1490 = vmatpush1.msra.mxu0 %v47
  %1491 = vmatprep.subr.mxu0 0.0
  %1492 = vmatpush1.msra.mxu0 %v44
  %1493 = vmatprep.subr.mxu0 0.0
  %1494 = vmatpush1.msra.mxu0 %v41
  %1495 = vmatprep.subr.mxu0 0.0
  %1496 = vmatpush1.msra.mxu0 %v38
  %1497 = vmatprep.subr.mxu0 0.0
  %1498 = vmatpush1.msra.mxu0 %v35
  %1499 = vmatprep.subr.mxu0 0.0
  %1500 = vmatpush1.msra.mxu0 %v32
  %1501 = vmatprep.subr.mxu0 0.0
  %1502 = vmatpush1.msra.mxu0 %v29
  %1503 = vmatprep.subr.mxu0 0.0
  %1504 = vmatpush1.msra.mxu0 %v26
  %1505 = vmatprep.subr.mxu0 0.0
  %1506 = vmatpush2.msra.mxu0 0.0
  %1507 = vmatprep.subr.mxu0 0.0
  %1508 = vmatpush2.msra.mxu0 0.0
  %1509 = vmatprep.subr.mxu0 0.0
  %1510 = vmatpush2.msra.mxu0 0.0
  %1511 = vmatprep.subr.mxu0 0.0
  %1512 = vmatpush2.msra.mxu0 0.0
  %1513 = vmatprep.subr.mxu0 0.0
  %1514 = vmatpush2.msra.mxu0 0.0
  %1515 = vmatprep.subr.mxu0 0.0
  %1516 = vmatpush2.msra.mxu0 0.0
  %1517 = vmatprep.subr.mxu0 0.0
  %1518 = vmatpush2.msra.mxu0 0.0
  %1519 = vmatprep.subr.mxu0 0.0
  %1520 = vmatpush2.msra.mxu0 0.0
  %1521 = vmatprep.subr.mxu0 0.0
  %1522 = vmatpush2.msra.mxu0 0.0
  %1523 = vmatprep.subr.mxu0 0.0
  %1524 = vmatpush2.msra.mxu0 0.0
  %1525 = vmatprep.subr.mxu0 0.0
  %1526 = vmatpush2.msra.mxu0 0.0
  %1527 = vmatprep.subr.mxu0 0.0
  %1528 = vmatpush2.msra.mxu0 0.0
  %1529 = vmatprep.subr.mxu0 0.0
  %1530 = vmatpush2.msra.mxu0 0.0
  %1531 = vmatprep.subr.mxu0 0.0
  %1532 = vmatpush2.msra.mxu0 0.0
  %1533 = vmatprep.subr.mxu0 0.0
  %1534 = vmatpush2.msra.mxu0 0.0
  %1535 = vmatprep.subr.mxu0 0.0
  %1536 = vmatpush2.msra.mxu0 0.0
  %1537 = vmatprep.mubr.f32.mxu0 0.0
  %1538 = vmatmul.mubr.f32.gmra.mxu0 %v1397
  %v1539 = vpop.f32.mrf.mxu0
  %v1540 = vadd.f32 %v91, %v1539
  %v1541 = vpop.f32.mrf.mxu0
  %1542 = vdwg.mxu0
  %v1543 = vadd.f32 %v1399, %v1469
  %v1544 = vxor.u32 %v1543, 2147483648
  %v1545 = vmul.f32 %v1544, 1.442695
  %v1546 = vpow.pop %v1545
  %v1547 = vadd.f32 %v1546, 1.0
  %v1548 = vrcp.pop %v1547
  %v1549 = vmul.f32 1.0, %v1548
  %v1550 = vadd.f32 %v1400, %v1471
  %v1551 = vxor.u32 %v1550, 2147483648
  %v1552 = vmul.f32 %v1551, 1.442695
  %v1553 = vpow.pop %v1552
  %v1554 = vadd.f32 %v1553, 1.0
  %v1555 = vrcp.pop %v1554
  %v1556 = vmul.f32 1.0, %v1555
  %v1557 = vmul.f32 %v1549, %v1540
  %v1558 = vadd.f32 %v1401, %v1557
  %v1559 = vtanh.pop %v1558
  %v1560 = vsub.f32 1.0, %v1556
  %v1561 = vmul.f32 %v1560, %v1559
  %v1562 = vmul.f32 %v1556, %v1397
  %v1563 = vadd.f32 %v1561, %v1562
  %s1564 = sadd.s32 %s74, 7
  %v1565 = vstv %s1564
  %vm1566 = vcmp.lt.s32.totalorder %v1565, %v73
  %v1567 = vsel %vm1566, 1, 0
  %v1568 = vcvt.s32.f32 %v1567
  %1570 = vset.pattern.permute.xlu0 0
  %1571 = vperm.xlu0 %1570, %v1568
  %v1572 = vpop.permute.xlu0 %1571
  %v1574 = vmul.f32 %v1572, %v1563
  %s1575 = scalar_lea.vmem %s4, 56
  %1576 = vst [vmem:[%s1575] sm:$0xff] %v1574
  %v1577 = vsub.f32 1.0, %v1568
  %1579 = vset.pattern.permute.xlu0 0
  %1580 = vperm.xlu0 %1579, %v1577
  %v1581 = vpop.permute.xlu0 %1580
  %v1583 = vmul.f32 %v1581, %v1397
  %v1584 = vadd.f32 %v1574, %v1583
  %1585 = vst [vmem:[#allocation2] sm:$0xff] %v1584
  // Predicated region
  $region22: #{seq2seq_forward.5} parent=0 // pred_check
    %p1586 = pneg %p19
  $region23: #{seq2seq_forward.5} parent=0 // pred_check_branch
    %1588 = sbr.rel (%p1586) target = $region25
  $region24: #{seq2seq_forward.5} parent=0 // pred_region
    %1589 = vst [vmem:[%s5] sm:$0xff] %v1584
  $region25: #{seq2seq_forward.5} parent=0 // pred_fallthru
    _
  // Predicated region
  $region26: #{seq2seq_forward.5} parent=0 // pred_check
    _
  $region27: #{seq2seq_forward.5} parent=0 // pred_check_branch
    %1591 = sbr.rel (0) target = $region29
  $region28: #{seq2seq_forward.5} parent=0 // pred_region
    _
  $region29: #{seq2seq_forward.5} parent=0 // pred_fallthru
    _
  // Predicated region
  $region30: #{seq2seq_forward.5} parent=0 // pred_check
    _
  $region31: #{seq2seq_forward.5} parent=0 // pred_check_branch
    %1593 = sbr.rel (0) target = $region33
  $region32: #{seq2seq_forward.5} parent=0 // pred_region
    _
  $region33: #{seq2seq_forward.5} parent=0 // pred_fallthru
    _
  // Predicated region
  $region34: #{seq2seq_forward.5} parent=0 // pred_check
    _
  $region35: #{seq2seq_forward.5} parent=0 // pred_check_branch
    %1595 = sbr.rel (0) target = $region37
  $region36: #{seq2seq_forward.5} parent=0 // pred_region
    _
  $region37: #{seq2seq_forward.5} parent=0 // pred_fallthru
    _
  // Predicated region
  $region38: #{seq2seq_forward.5} parent=0 // pred_check
    _
  $region39: #{seq2seq_forward.5} parent=0 // pred_check_branch
    %1597 = sbr.rel (0) target = $region41
  $region40: #{seq2seq_forward.5} parent=0 // pred_region
    _
  $region41: #{seq2seq_forward.5} parent=0 // pred_fallthru
    _

// kernel: seq2seq_forward.7
$region0: #{seq2seq_forward.7}
  #allocation0 [shape = 'u32[]', space=smem, size = 0x4, offset = 0x4, fixed_abs, tag = 'smem constant byte address 0x4 - core index']
  #allocation1 [shape = 'u32[144,128]{1,0:T(1,128)}', space=vmem, size = 0x12000, scoped, tag = 'internal scratch']
  #allocation2 [shape = 'f32[8,128]{1,0:T(8,128)}', space=vmem, size = 0x1000, scoped, tag = 'scratch operand']
  #allocation3 [shape = 'f32[8,256]{1,0:T(8,128)}', space=vmem, size = 0x2000, scoped, tag = 'scratch operand']
  #allocation4 [shape = 'f32[1,1]{1,0:T(1,128)S(1)}', space=vmem, size = 0x200, scoped, tag = 'scoped memory for seq2seq_forward.7']
  %s0 = inlined_call_operand.vmem [shape: f32[8,8,128], index: 0, kind: input, shape index: {}]
  %s1 = inlined_call_operand.vmem [shape: f32[8,8,128], index: 1, kind: input, shape index: {}]
  %s2 = inlined_call_operand.vmem [shape: f32[128,128], index: 2, kind: input, shape index: {}]
  %s3 = inlined_call_operand.vmem [shape: f32[1,128], index: 3, kind: input, shape index: {}]
  %s4 = inlined_call_operand.vmem [shape: f32[1,128], index: 4, kind: input, shape index: {}]
  %s5 = inlined_call_operand.<no memory space> [shape: f32[1,1], index: 5, kind: input, shape index: {}]
  %s6 = inlined_call_operand.vmem [shape: f32[128,128], index: 6, kind: input, shape index: {}]
  %s7 = inlined_call_operand.vmem [shape: f32[256,384], index: 7, kind: input, shape index: {}]
  %s8 = inlined_call_operand.vmem [shape: f32[128,384], index: 8, kind: input, shape index: {}]
  %s9 = inlined_call_operand.vmem [shape: f32[1,384], index: 9, kind: input, shape index: {}]
  %s10 = inlined_call_operand.vmem [shape: f32[1,384], index: 10, kind: input, shape index: {}]
  %s11 = inlined_call_operand.vmem [shape: f32[128,128], index: 11, kind: input, shape index: {}]
  %s12 = inlined_call_operand.vmem [shape: f32[1,128], index: 12, kind: input, shape index: {}]
  %s13 = inlined_call_operand.vmem [shape: f32[8,128], index: 13, kind: input, shape index: {}]
  %s14 = inlined_call_operand.vmem [shape: f32[8,128], index: 14, kind: input, shape index: {}]
  %s15 = inlined_call_operand.vmem [shape: f32[7,8,128], index: 15, kind: output, shape index: {}]
  %s16 = sld [smem:[#allocation0]]
  $region74: #{seq2seq_forward.7} parent=0
    _
  %s18 = ssub.s32 1, %s16
  %s19 = scalar_select 0, %s18, %s16
  %v20 = vstv %s5
  %21 = vst [vmem:[#allocation4] sm:$0x1] %v20
  // Predicated region
  $region2: #{seq2seq_forward.7} parent=0 // pred_check
    _
  $region3: #{seq2seq_forward.7} parent=0 // pred_check_branch
    %23 = sbr.rel (0) target = $region5
  $region4: #{seq2seq_forward.7} parent=0 // pred_region
    _
  $region5: #{seq2seq_forward.7} parent=0 // pred_fallthru
    _
  // Predicated region
  $region6: #{seq2seq_forward.7} parent=0 // pred_check
    _
  $region7: #{seq2seq_forward.7} parent=0 // pred_check_branch
    %25 = sbr.rel (0) target = $region9
  $region8: #{seq2seq_forward.7} parent=0 // pred_region
    _
  $region9: #{seq2seq_forward.7} parent=0 // pred_fallthru
    _
  // Predicated region
  $region10: #{seq2seq_forward.7} parent=0 // pred_check
    _
  $region11: #{seq2seq_forward.7} parent=0 // pred_check_branch
    %27 = sbr.rel (0) target = $region13
  $region12: #{seq2seq_forward.7} parent=0 // pred_region
    _
  $region13: #{seq2seq_forward.7} parent=0 // pred_fallthru
    _
  // Predicated region
  $region14: #{seq2seq_forward.7} parent=0 // pred_check
    _
  $region15: #{seq2seq_forward.7} parent=0 // pred_check_branch
    %29 = sbr.rel (0) target = $region17
  $region16: #{seq2seq_forward.7} parent=0 // pred_region
    _
  $region17: #{seq2seq_forward.7} parent=0 // pred_fallthru
    _
  // Predicated region
  $region18: #{seq2seq_forward.7} parent=0 // pred_check
    _
  $region19: #{seq2seq_forward.7} parent=0 // pred_check_branch
    %31 = sbr.rel (0) target = $region21
  $region20: #{seq2seq_forward.7} parent=0 // pred_region
    _
  $region21: #{seq2seq_forward.7} parent=0 // pred_fallthru
    _
  // Predicated region
  $region22: #{seq2seq_forward.7} parent=0 // pred_check
    _
  $region23: #{seq2seq_forward.7} parent=0 // pred_check_branch
    %33 = sbr.rel (0) target = $region25
  $region24: #{seq2seq_forward.7} parent=0 // pred_region
    _
  $region25: #{seq2seq_forward.7} parent=0 // pred_fallthru
    _
  // Predicated region
  $region26: #{seq2seq_forward.7} parent=0 // pred_check
    _
  $region27: #{seq2seq_forward.7} parent=0 // pred_check_branch
    %35 = sbr.rel (0) target = $region29
  $region28: #{seq2seq_forward.7} parent=0 // pred_region
    _
  $region29: #{seq2seq_forward.7} parent=0 // pred_fallthru
    _
  // Predicated region
  $region30: #{seq2seq_forward.7} parent=0 // pred_check
    _
  $region31: #{seq2seq_forward.7} parent=0 // pred_check_branch
    %37 = sbr.rel (0) target = $region33
  $region32: #{seq2seq_forward.7} parent=0 // pred_region
    _
  $region33: #{seq2seq_forward.7} parent=0 // pred_fallthru
    _
  // Predicated region
  $region34: #{seq2seq_forward.7} parent=0 // pred_check
    _
  $region35: #{seq2seq_forward.7} parent=0 // pred_check_branch
    %39 = sbr.rel (0) target = $region37
  $region36: #{seq2seq_forward.7} parent=0 // pred_region
    _
  $region37: #{seq2seq_forward.7} parent=0 // pred_fallthru
    _
  // Predicated region
  $region38: #{seq2seq_forward.7} parent=0 // pred_check
    _
  $region39: #{seq2seq_forward.7} parent=0 // pred_check_branch
    %41 = sbr.rel (0) target = $region41
  $region40: #{seq2seq_forward.7} parent=0 // pred_region
    _
  $region41: #{seq2seq_forward.7} parent=0 // pred_fallthru
    _
  // Predicated region
  $region42: #{seq2seq_forward.7} parent=0 // pred_check
    _
  $region43: #{seq2seq_forward.7} parent=0 // pred_check_branch
    %43 = sbr.rel (0) target = $region45
  $region44: #{seq2seq_forward.7} parent=0 // pred_region
    _
  $region45: #{seq2seq_forward.7} parent=0 // pred_fallthru
    _
  // Predicated region
  $region46: #{seq2seq_forward.7} parent=0 // pred_check
    _
  $region47: #{seq2seq_forward.7} parent=0 // pred_check_branch
    %45 = sbr.rel (0) target = $region49
  $region48: #{seq2seq_forward.7} parent=0 // pred_region
    _
  $region49: #{seq2seq_forward.7} parent=0 // pred_fallthru
    _
  // Predicated region
  $region50: #{seq2seq_forward.7} parent=0 // pred_check
    _
  $region51: #{seq2seq_forward.7} parent=0 // pred_check_branch
    %47 = sbr.rel (0) target = $region53
  $region52: #{seq2seq_forward.7} parent=0 // pred_region
    _
  $region53: #{seq2seq_forward.7} parent=0 // pred_fallthru
    _
  // Predicated region
  $region54: #{seq2seq_forward.7} parent=0 // pred_check
    _
  $region55: #{seq2seq_forward.7} parent=0 // pred_check_branch
    %49 = sbr.rel (0) target = $region57
  $region56: #{seq2seq_forward.7} parent=0 // pred_region
    _
  $region57: #{seq2seq_forward.7} parent=0 // pred_fallthru
    _
  // Predicated region
  $region58: #{seq2seq_forward.7} parent=0 // pred_check
    _
  $region59: #{seq2seq_forward.7} parent=0 // pred_check_branch
    %51 = sbr.rel (0) target = $region61
  $region60: #{seq2seq_forward.7} parent=0 // pred_region
    _
  $region61: #{seq2seq_forward.7} parent=0 // pred_fallthru
    _
  %p52 = scmp.eq.s32.totalorder 0, 0
  // Predicated region
  $region62: #{seq2seq_forward.7} parent=0 // pred_check
    %p53 = pneg %p52
  $region63: #{seq2seq_forward.7} parent=0 // pred_check_branch
    %55 = sbr.rel (%p53) target = $region65
  $region64: #{seq2seq_forward.7} parent=0 // pred_region
    %v56 = vld [vmem:[%s13] sm:$0xff]
    %57 = vst [vmem:[#allocation2] sm:$0xff] %v56
    %v58 = vld [vmem:[%s14] sm:$0xff]
    %59 = vst [vmem:[#allocation3 + $0x8] sm:$0xff] %v58
  $region65: #{seq2seq_forward.7} parent=0 // pred_fallthru
    _
  %v60 = vld [vmem:[%s0] sm:$0xff]
  %v61 = vld [vmem:[%s0 + $0x8] sm:$0xff]
  %v62 = vld [vmem:[%s0 + $0x10] sm:$0xff]
  %v63 = vld [vmem:[%s0 + $0x18] sm:$0xff]
  %v64 = vld [vmem:[%s0 + $0x20] sm:$0xff]
  %v65 = vld [vmem:[%s0 + $0x28] sm:$0xff]
  %v66 = vld [vmem:[%s0 + $0x30] sm:$0xff]
  %v67 = vld [vmem:[%s0 + $0x38] sm:$0xff]
  %v68 = vld [vmem:[%s1] sm:$0xff]
  %v69 = vld [vmem:[%s1 + $0x8] sm:$0xff]
  %v70 = vld [vmem:[%s1 + $0x10] sm:$0xff]
  %v71 = vld [vmem:[%s1 + $0x18] sm:$0xff]
  %v72 = vld [vmem:[%s1 + $0x20] sm:$0xff]
  %v73 = vld [vmem:[%s1 + $0x28] sm:$0xff]
  %v74 = vld [vmem:[%s1 + $0x30] sm:$0xff]
  %v75 = vld [vmem:[%s1 + $0x38] sm:$0xff]
  %v76 = vld [vmem:[%s2] sm:$0xff]
  %v77 = vld [vmem:[%s2 + $0x8] sm:$0xff]
  %v78 = vld [vmem:[%s2 + $0x10] sm:$0xff]
  %v79 = vld [vmem:[%s2 + $0x18] sm:$0xff]
  %v80 = vld [vmem:[%s2 + $0x20] sm:$0xff]
  %v81 = vld [vmem:[%s2 + $0x28] sm:$0xff]
  %v82 = vld [vmem:[%s2 + $0x30] sm:$0xff]
  %v83 = vld [vmem:[%s2 + $0x38] sm:$0xff]
  %v84 = vld [vmem:[%s2 + $0x40] sm:$0xff]
  %v85 = vld [vmem:[%s2 + $0x48] sm:$0xff]
  %v86 = vld [vmem:[%s2 + $0x50] sm:$0xff]
  %v87 = vld [vmem:[%s2 + $0x58] sm:$0xff]
  %v88 = vld [vmem:[%s2 + $0x60] sm:$0xff]
  %v89 = vld [vmem:[%s2 + $0x68] sm:$0xff]
  %v90 = vld [vmem:[%s2 + $0x70] sm:$0xff]
  %v91 = vld [vmem:[%s2 + $0x78] sm:$0xff]
  %v92 = vld [vmem:[%s3] sm:$0x1]
  %v93 = vld [vmem:[%s4] sm:$0x1]
  %v94 = vld [vmem:[#allocation4] sm:$0x1]
  %v95 = vld [vmem:[%s6] sm:$0xff]
  %v96 = vld [vmem:[%s6 + $0x8] sm:$0xff]
  %v97 = vld [vmem:[%s6 + $0x10] sm:$0xff]
  %v98 = vld [vmem:[%s6 + $0x18] sm:$0xff]
  %v99 = vld [vmem:[%s6 + $0x20] sm:$0xff]
  %v100 = vld [vmem:[%s6 + $0x28] sm:$0xff]
  %v101 = vld [vmem:[%s6 + $0x30] sm:$0xff]
  %v102 = vld [vmem:[%s6 + $0x38] sm:$0xff]
  %v103 = vld [vmem:[%s6 + $0x40] sm:$0xff]
  %v104 = vld [vmem:[%s6 + $0x48] sm:$0xff]
  %v105 = vld [vmem:[%s6 + $0x50] sm:$0xff]
  %v106 = vld [vmem:[%s6 + $0x58] sm:$0xff]
  %v107 = vld [vmem:[%s6 + $0x60] sm:$0xff]
  %v108 = vld [vmem:[%s6 + $0x68] sm:$0xff]
  %v109 = vld [vmem:[%s6 + $0x70] sm:$0xff]
  %v110 = vld [vmem:[%s6 + $0x78] sm:$0xff]
  %v111 = vld [vmem:[%s7] sm:$0xff]
  %v112 = vld [vmem:[%s7 + $0x8] sm:$0xff]
  %v113 = vld [vmem:[%s7 + $0x10] sm:$0xff]
  %v114 = vld [vmem:[%s7 + $0x18] sm:$0xff]
  %v115 = vld [vmem:[%s7 + $0x20] sm:$0xff]
  %v116 = vld [vmem:[%s7 + $0x28] sm:$0xff]
  %v117 = vld [vmem:[%s7 + $0x30] sm:$0xff]
  %v118 = vld [vmem:[%s7 + $0x38] sm:$0xff]
  %v119 = vld [vmem:[%s7 + $0x40] sm:$0xff]
  %v120 = vld [vmem:[%s7 + $0x48] sm:$0xff]
  %v121 = vld [vmem:[%s7 + $0x50] sm:$0xff]
  %v122 = vld [vmem:[%s7 + $0x58] sm:$0xff]
  %v123 = vld [vmem:[%s7 + $0x60] sm:$0xff]
  %v124 = vld [vmem:[%s7 + $0x68] sm:$0xff]
  %v125 = vld [vmem:[%s7 + $0x70] sm:$0xff]
  %v126 = vld [vmem:[%s7 + $0x78] sm:$0xff]
  %v127 = vld [vmem:[%s7 + $0x80] sm:$0xff]
  %v128 = vld [vmem:[%s7 + $0x88] sm:$0xff]
  %v129 = vld [vmem:[%s7 + $0x90] sm:$0xff]
  %v130 = vld [vmem:[%s7 + $0x98] sm:$0xff]
  %v131 = vld [vmem:[%s7 + $0xa0] sm:$0xff]
  %v132 = vld [vmem:[%s7 + $0xa8] sm:$0xff]
  %v133 = vld [vmem:[%s7 + $0xb0] sm:$0xff]
  %v134 = vld [vmem:[%s7 + $0xb8] sm:$0xff]
  %v135 = vld [vmem:[%s7 + $0xc0] sm:$0xff]
  %v136 = vld [vmem:[%s7 + $0xc8] sm:$0xff]
  %v137 = vld [vmem:[%s7 + $0xd0] sm:$0xff]
  %v138 = vld [vmem:[%s7 + $0xd8] sm:$0xff]
  %v139 = vld [vmem:[%s7 + $0xe0] sm:$0xff]
  %v140 = vld [vmem:[%s7 + $0xe8] sm:$0xff]
  %v141 = vld [vmem:[%s7 + $0xf0] sm:$0xff]
  %v142 = vld [vmem:[%s7 + $0xf8] sm:$0xff]
  %v143 = vld [vmem:[%s7 + $0x100] sm:$0xff]
  %v144 = vld [vmem:[%s7 + $0x108] sm:$0xff]
  %v145 = vld [vmem:[%s7 + $0x110] sm:$0xff]
  %v146 = vld [vmem:[%s7 + $0x118] sm:$0xff]
  %v147 = vld [vmem:[%s7 + $0x120] sm:$0xff]
  %v148 = vld [vmem:[%s7 + $0x128] sm:$0xff]
  %v149 = vld [vmem:[%s7 + $0x130] sm:$0xff]
  %v150 = vld [vmem:[%s7 + $0x138] sm:$0xff]
  %v151 = vld [vmem:[%s7 + $0x140] sm:$0xff]
  %v152 = vld [vmem:[%s7 + $0x148] sm:$0xff]
  %v153 = vld [vmem:[%s7 + $0x150] sm:$0xff]
  %v154 = vld [vmem:[%s7 + $0x158] sm:$0xff]
  %v155 = vld [vmem:[%s7 + $0x160] sm:$0xff]
  %v156 = vld [vmem:[%s7 + $0x168] sm:$0xff]
  %v157 = vld [vmem:[%s7 + $0x170] sm:$0xff]
  %v158 = vld [vmem:[%s7 + $0x178] sm:$0xff]
  %v159 = vld [vmem:[%s7 + $0x180] sm:$0xff]
  %v160 = vld [vmem:[%s7 + $0x188] sm:$0xff]
  %v161 = vld [vmem:[%s7 + $0x190] sm:$0xff]
  %v162 = vld [vmem:[%s7 + $0x198] sm:$0xff]
  %v163 = vld [vmem:[%s7 + $0x1a0] sm:$0xff]
  %v164 = vld [vmem:[%s7 + $0x1a8] sm:$0xff]
  %v165 = vld [vmem:[%s7 + $0x1b0] sm:$0xff]
  %v166 = vld [vmem:[%s7 + $0x1b8] sm:$0xff]
  %v167 = vld [vmem:[%s7 + $0x1c0] sm:$0xff]
  %v168 = vld [vmem:[%s7 + $0x1c8] sm:$0xff]
  %v169 = vld [vmem:[%s7 + $0x1d0] sm:$0xff]
  %v170 = vld [vmem:[%s7 + $0x1d8] sm:$0xff]
  %v171 = vld [vmem:[%s7 + $0x1e0] sm:$0xff]
  %v172 = vld [vmem:[%s7 + $0x1e8] sm:$0xff]
  %v173 = vld [vmem:[%s7 + $0x1f0] sm:$0xff]
  %v174 = vld [vmem:[%s7 + $0x1f8] sm:$0xff]
  %v175 = vld [vmem:[%s7 + $0x200] sm:$0xff]
  %v176 = vld [vmem:[%s7 + $0x208] sm:$0xff]
  %v177 = vld [vmem:[%s7 + $0x210] sm:$0xff]
  %v178 = vld [vmem:[%s7 + $0x218] sm:$0xff]
  %v179 = vld [vmem:[%s7 + $0x220] sm:$0xff]
  %v180 = vld [vmem:[%s7 + $0x228] sm:$0xff]
  %v181 = vld [vmem:[%s7 + $0x230] sm:$0xff]
  %v182 = vld [vmem:[%s7 + $0x238] sm:$0xff]
  %v183 = vld [vmem:[%s7 + $0x240] sm:$0xff]
  %v184 = vld [vmem:[%s7 + $0x248] sm:$0xff]
  %v185 = vld [vmem:[%s7 + $0x250] sm:$0xff]
  %v186 = vld [vmem:[%s7 + $0x258] sm:$0xff]
  %v187 = vld [vmem:[%s7 + $0x260] sm:$0xff]
  %v188 = vld [vmem:[%s7 + $0x268] sm:$0xff]
  %v189 = vld [vmem:[%s7 + $0x270] sm:$0xff]
  %v190 = vld [vmem:[%s7 + $0x278] sm:$0xff]
  %v191 = vld [vmem:[%s7 + $0x280] sm:$0xff]
  %v192 = vld [vmem:[%s7 + $0x288] sm:$0xff]
  %v193 = vld [vmem:[%s7 + $0x290] sm:$0xff]
  %v194 = vld [vmem:[%s7 + $0x298] sm:$0xff]
  %v195 = vld [vmem:[%s7 + $0x2a0] sm:$0xff]
  %v196 = vld [vmem:[%s7 + $0x2a8] sm:$0xff]
  %v197 = vld [vmem:[%s7 + $0x2b0] sm:$0xff]
  %v198 = vld [vmem:[%s7 + $0x2b8] sm:$0xff]
  %v199 = vld [vmem:[%s7 + $0x2c0] sm:$0xff]
  %v200 = vld [vmem:[%s7 + $0x2c8] sm:$0xff]
  %v201 = vld [vmem:[%s7 + $0x2d0] sm:$0xff]
  %v202 = vld [vmem:[%s7 + $0x2d8] sm:$0xff]
  %v203 = vld [vmem:[%s7 + $0x2e0] sm:$0xff]
  %v204 = vld [vmem:[%s7 + $0x2e8] sm:$0xff]
  %v205 = vld [vmem:[%s7 + $0x2f0] sm:$0xff]
  %v206 = vld [vmem:[%s7 + $0x2f8] sm:$0xff]
  %v207 = vld [vmem:[%s8] sm:$0xff]
  %v208 = vld [vmem:[%s8 + $0x8] sm:$0xff]
  %v209 = vld [vmem:[%s8 + $0x10] sm:$0xff]
  %v210 = vld [vmem:[%s8 + $0x18] sm:$0xff]
  %v211 = vld [vmem:[%s8 + $0x20] sm:$0xff]
  %v212 = vld [vmem:[%s8 + $0x28] sm:$0xff]
  %v213 = vld [vmem:[%s8 + $0x30] sm:$0xff]
  %v214 = vld [vmem:[%s8 + $0x38] sm:$0xff]
  %v215 = vld [vmem:[%s8 + $0x40] sm:$0xff]
  %v216 = vld [vmem:[%s8 + $0x48] sm:$0xff]
  %v217 = vld [vmem:[%s8 + $0x50] sm:$0xff]
  %v218 = vld [vmem:[%s8 + $0x58] sm:$0xff]
  %v219 = vld [vmem:[%s8 + $0x60] sm:$0xff]
  %v220 = vld [vmem:[%s8 + $0x68] sm:$0xff]
  %v221 = vld [vmem:[%s8 + $0x70] sm:$0xff]
  %v222 = vld [vmem:[%s8 + $0x78] sm:$0xff]
  %v223 = vld [vmem:[%s8 + $0x80] sm:$0xff]
  %v224 = vld [vmem:[%s8 + $0x88] sm:$0xff]
  %v225 = vld [vmem:[%s8 + $0x90] sm:$0xff]
  %v226 = vld [vmem:[%s8 + $0x98] sm:$0xff]
  %v227 = vld [vmem:[%s8 + $0xa0] sm:$0xff]
  %v228 = vld [vmem:[%s8 + $0xa8] sm:$0xff]
  %v229 = vld [vmem:[%s8 + $0xb0] sm:$0xff]
  %v230 = vld [vmem:[%s8 + $0xb8] sm:$0xff]
  %v231 = vld [vmem:[%s8 + $0xc0] sm:$0xff]
  %v232 = vld [vmem:[%s8 + $0xc8] sm:$0xff]
  %v233 = vld [vmem:[%s8 + $0xd0] sm:$0xff]
  %v234 = vld [vmem:[%s8 + $0xd8] sm:$0xff]
  %v235 = vld [vmem:[%s8 + $0xe0] sm:$0xff]
  %v236 = vld [vmem:[%s8 + $0xe8] sm:$0xff]
  %v237 = vld [vmem:[%s8 + $0xf0] sm:$0xff]
  %v238 = vld [vmem:[%s8 + $0xf8] sm:$0xff]
  %v239 = vld [vmem:[%s8 + $0x100] sm:$0xff]
  %v240 = vld [vmem:[%s8 + $0x108] sm:$0xff]
  %v241 = vld [vmem:[%s8 + $0x110] sm:$0xff]
  %v242 = vld [vmem:[%s8 + $0x118] sm:$0xff]
  %v243 = vld [vmem:[%s8 + $0x120] sm:$0xff]
  %v244 = vld [vmem:[%s8 + $0x128] sm:$0xff]
  %v245 = vld [vmem:[%s8 + $0x130] sm:$0xff]
  %v246 = vld [vmem:[%s8 + $0x138] sm:$0xff]
  %v247 = vld [vmem:[%s8 + $0x140] sm:$0xff]
  %v248 = vld [vmem:[%s8 + $0x148] sm:$0xff]
  %v249 = vld [vmem:[%s8 + $0x150] sm:$0xff]
  %v250 = vld [vmem:[%s8 + $0x158] sm:$0xff]
  %v251 = vld [vmem:[%s8 + $0x160] sm:$0xff]
  %v252 = vld [vmem:[%s8 + $0x168] sm:$0xff]
  %v253 = vld [vmem:[%s8 + $0x170] sm:$0xff]
  %v254 = vld [vmem:[%s8 + $0x178] sm:$0xff]
  %v255 = vld [vmem:[%s9] sm:$0x7]
  %v256 = vld [vmem:[%s10] sm:$0x7]
  %v257 = vld [vmem:[%s11] sm:$0xff]
  %v258 = vld [vmem:[%s11 + $0x8] sm:$0xff]
  %v259 = vld [vmem:[%s11 + $0x10] sm:$0xff]
  %v260 = vld [vmem:[%s11 + $0x18] sm:$0xff]
  %v261 = vld [vmem:[%s11 + $0x20] sm:$0xff]
  %v262 = vld [vmem:[%s11 + $0x28] sm:$0xff]
  %v263 = vld [vmem:[%s11 + $0x30] sm:$0xff]
  %v264 = vld [vmem:[%s11 + $0x38] sm:$0xff]
  %v265 = vld [vmem:[%s11 + $0x40] sm:$0xff]
  %v266 = vld [vmem:[%s11 + $0x48] sm:$0xff]
  %v267 = vld [vmem:[%s11 + $0x50] sm:$0xff]
  %v268 = vld [vmem:[%s11 + $0x58] sm:$0xff]
  %v269 = vld [vmem:[%s11 + $0x60] sm:$0xff]
  %v270 = vld [vmem:[%s11 + $0x68] sm:$0xff]
  %v271 = vld [vmem:[%s11 + $0x70] sm:$0xff]
  %v272 = vld [vmem:[%s11 + $0x78] sm:$0xff]
  %v273 = vld [vmem:[%s12] sm:$0x1]
  %v274 = vld [vmem:[#allocation2] sm:$0xff]
  %v276 = vlaneseq
  %v277 = vshrl.u32 %v276, 7
  %v278 = vsub.s32 0, %v277
  %v279 = vrot.slane %v92, %v278
  %281 = vmatprep.subr.mxu0 0.0
  %282 = vmatpush1.msra.mxu0 %v91
  %283 = vmatprep.subr.mxu0 0.0
  %284 = vmatpush1.msra.mxu0 %v90
  %285 = vmatprep.subr.mxu0 0.0
  %286 = vmatpush1.msra.mxu0 %v89
  %287 = vmatprep.subr.mxu0 0.0
  %288 = vmatpush1.msra.mxu0 %v88
  %289 = vmatprep.subr.mxu0 0.0
  %290 = vmatpush1.msra.mxu0 %v87
  %291 = vmatprep.subr.mxu0 0.0
  %292 = vmatpush1.msra.mxu0 %v86
  %293 = vmatprep.subr.mxu0 0.0
  %294 = vmatpush1.msra.mxu0 %v85
  %295 = vmatprep.subr.mxu0 0.0
  %296 = vmatpush1.msra.mxu0 %v84
  %297 = vmatprep.subr.mxu0 0.0
  %298 = vmatpush1.msra.mxu0 %v83
  %299 = vmatprep.subr.mxu0 0.0
  %300 = vmatpush1.msra.mxu0 %v82
  %301 = vmatprep.subr.mxu0 0.0
  %302 = vmatpush1.msra.mxu0 %v81
  %303 = vmatprep.subr.mxu0 0.0
  %304 = vmatpush1.msra.mxu0 %v80
  %305 = vmatprep.subr.mxu0 0.0
  %306 = vmatpush1.msra.mxu0 %v79
  %307 = vmatprep.subr.mxu0 0.0
  %308 = vmatpush1.msra.mxu0 %v78
  %309 = vmatprep.subr.mxu0 0.0
  %310 = vmatpush1.msra.mxu0 %v77
  %311 = vmatprep.subr.mxu0 0.0
  %312 = vmatpush1.msra.mxu0 %v76
  %313 = vmatprep.subr.mxu0 0.0
  %314 = vmatpush2.msra.mxu0 0.0
  %315 = vmatprep.subr.mxu0 0.0
  %316 = vmatpush2.msra.mxu0 0.0
  %317 = vmatprep.subr.mxu0 0.0
  %318 = vmatpush2.msra.mxu0 0.0
  %319 = vmatprep.subr.mxu0 0.0
  %320 = vmatpush2.msra.mxu0 0.0
  %321 = vmatprep.subr.mxu0 0.0
  %322 = vmatpush2.msra.mxu0 0.0
  %323 = vmatprep.subr.mxu0 0.0
  %324 = vmatpush2.msra.mxu0 0.0
  %325 = vmatprep.subr.mxu0 0.0
  %326 = vmatpush2.msra.mxu0 0.0
  %327 = vmatprep.subr.mxu0 0.0
  %328 = vmatpush2.msra.mxu0 0.0
  %329 = vmatprep.subr.mxu0 0.0
  %330 = vmatpush2.msra.mxu0 0.0
  %331 = vmatprep.subr.mxu0 0.0
  %332 = vmatpush2.msra.mxu0 0.0
  %333 = vmatprep.subr.mxu0 0.0
  %334 = vmatpush2.msra.mxu0 0.0
  %335 = vmatprep.subr.mxu0 0.0
  %336 = vmatpush2.msra.mxu0 0.0
  %337 = vmatprep.subr.mxu0 0.0
  %338 = vmatpush2.msra.mxu0 0.0
  %339 = vmatprep.subr.mxu0 0.0
  %340 = vmatpush2.msra.mxu0 0.0
  %341 = vmatprep.subr.mxu0 0.0
  %342 = vmatpush2.msra.mxu0 0.0
  %343 = vmatprep.subr.mxu0 0.0
  %344 = vmatpush2.msra.mxu0 0.0
  %345 = vmatprep.mubr.f32.mxu0 0.0
  %346 = vmatmul.mubr.f32.gmra.mxu0 %v274
  %v347 = vpop.f32.mrf.mxu0
  %v348 = vadd.f32 %v279, %v347
  %v349 = vpop.f32.mrf.mxu0
  %350 = vdwg.mxu0
  %v352 = vcombine.high %v348, %v348
  %v354 = vunpack.c.l.s4 1966171168
  %v355 = vunpack.c.0.s8 %v354
  %v356 = vlaneseq
  %v357 = vshrl.u32 %v356, 7
  %v358 = vsub.s32 %v355, %v357
  %v359 = vrot.slane %v348, %v358
  %v361 = vunpack.c.l.s4 1966171168
  %v362 = vunpack.c.0.s8 %v361
  %v363 = vlaneseq
  %v364 = vshrl.u32 %v363, 7
  %v365 = vsub.s32 %v362, %v364
  %v366 = vrot.slane %v352, %v365
  %v367 = vcombine.high %v359, %v359
  %v368 = vcombine.high %v366, %v366
  %v370 = vunpack.c.l.s4 1966171168
  %v371 = vunpack.c.0.s8 %v370
  %v372 = vlaneseq
  %v373 = vshrl.u32 %v372, 7
  %v374 = vsub.s32 %v371, %v373
  %v375 = vrot.slane %v359, %v374
  %v377 = vunpack.c.l.s4 1966171168
  %v378 = vunpack.c.0.s8 %v377
  %v379 = vlaneseq
  %v380 = vshrl.u32 %v379, 7
  %v381 = vsub.s32 %v378, %v380
  %v382 = vrot.slane %v366, %v381
  %v384 = vunpack.c.l.s4 1966171168
  %v385 = vunpack.c.0.s8 %v384
  %v386 = vlaneseq
  %v387 = vshrl.u32 %v386, 7
  %v388 = vsub.s32 %v385, %v387
  %v389 = vrot.slane %v367, %v388
  %v391 = vunpack.c.l.s4 1966171168
  %v392 = vunpack.c.0.s8 %v391
  %v393 = vlaneseq
  %v394 = vshrl.u32 %v393, 7
  %v395 = vsub.s32 %v392, %v394
  %v396 = vrot.slane %v368, %v395
  %v397 = vcombine.high %v375, %v375
  %v398 = vcombine.high %v382, %v382
  %v399 = vcombine.high %v389, %v389
  %v400 = vcombine.high %v396, %v396
  %v401 = vlaneseq
  %v402 = vshrl.u32 %v401, 7
  %v403 = vsub.s32 0, %v402
  %v404 = vrot.slane %v375, %v403
  %v405 = vlaneseq
  %v406 = vshrl.u32 %v405, 7
  %v407 = vsub.s32 0, %v406
  %v408 = vrot.slane %v389, %v407
  %v409 = vlaneseq
  %v410 = vshrl.u32 %v409, 7
  %v411 = vsub.s32 0, %v410
  %v412 = vrot.slane %v397, %v411
  %v413 = vlaneseq
  %v414 = vshrl.u32 %v413, 7
  %v415 = vsub.s32 0, %v414
  %v416 = vrot.slane %v399, %v415
  %v417 = vlaneseq
  %v418 = vshrl.u32 %v417, 7
  %v419 = vsub.s32 0, %v418
  %v420 = vrot.slane %v382, %v419
  %v421 = vlaneseq
  %v422 = vshrl.u32 %v421, 7
  %v423 = vsub.s32 0, %v422
  %v424 = vrot.slane %v396, %v423
  %v425 = vlaneseq
  %v426 = vshrl.u32 %v425, 7
  %v427 = vsub.s32 0, %v426
  %v428 = vrot.slane %v398, %v427
  %v429 = vlaneseq
  %v430 = vshrl.u32 %v429, 7
  %v431 = vsub.s32 0, %v430
  %v432 = vrot.slane %v400, %v431
  %v441 = vadd.f32 %v68, %v404
  %v442 = vadd.f32 %v69, %v408
  %v443 = vadd.f32 %v70, %v412
  %v444 = vadd.f32 %v71, %v416
  %v445 = vadd.f32 %v72, %v420
  %v446 = vadd.f32 %v73, %v424
  %v447 = vadd.f32 %v74, %v428
  %v448 = vadd.f32 %v75, %v432
  %v449 = vtanh.pop %v441
  %v450 = vtanh.pop %v442
  %v451 = vtanh.pop %v443
  %v452 = vtanh.pop %v444
  %v453 = vtanh.pop %v445
  %v454 = vtanh.pop %v446
  %v455 = vtanh.pop %v447
  %v456 = vtanh.pop %v448
  %v458 = vlaneseq
  %v459 = vshrl.u32 %v458, 7
  %v460 = vsub.s32 0, %v459
  %v461 = vrot.slane %v93, %v460
  %v463 = vmul.f32 %v449, %v461
  %v464 = vmul.f32 %v450, %v461
  %v465 = vmul.f32 %v451, %v461
  %v466 = vmul.f32 %v452, %v461
  %v467 = vmul.f32 %v453, %v461
  %v468 = vmul.f32 %v454, %v461
  %v469 = vmul.f32 %v455, %v461
  %v470 = vmul.f32 %v456, %v461
  %471 = vadd.xlane.f32.xlu0 %v463
  %v472 = vpop.xlane.xlu0 %471
  %473 = vadd.xlane.f32.xlu0 %v464
  %v474 = vpop.xlane.xlu0 %473
  %475 = vadd.xlane.f32.xlu0 %v465
  %v476 = vpop.xlane.xlu0 %475
  %477 = vadd.xlane.f32.xlu0 %v466
  %v478 = vpop.xlane.xlu0 %477
  %479 = vadd.xlane.f32.xlu0 %v467
  %v480 = vpop.xlane.xlu0 %479
  %481 = vadd.xlane.f32.xlu0 %v468
  %v482 = vpop.xlane.xlu0 %481
  %483 = vadd.xlane.f32.xlu0 %v469
  %v484 = vpop.xlane.xlu0 %483
  %485 = vadd.xlane.f32.xlu0 %v470
  %v486 = vpop.xlane.xlu0 %485
  %v488 = vlaneseq
  %v489 = vshrl.u32 %v488, 7
  %v490 = vsub.s32 0, %v489
  %v491 = vrot.slane %v94, %v490
  %492 = vset.pattern.permute.xlu0 0
  %493 = vperm.xlu0 %492, %v491
  %v494 = vpop.permute.xlu0 %493
  %v496 = vadd.f32 %v472, %v494
  %v497 = vadd.f32 %v474, %v494
  %v498 = vadd.f32 %v476, %v494
  %v499 = vadd.f32 %v478, %v494
  %v500 = vadd.f32 %v480, %v494
  %v501 = vadd.f32 %v482, %v494
  %v502 = vadd.f32 %v484, %v494
  %v503 = vadd.f32 %v486, %v494
  %v512 = vlaneseq
  %v513 = vand.u32 %v512, 127
  %v514 = vlaneseq
  %v515 = vshrl.u32 %v514, 7
  %v516 = vsub.s32 %v513, %v515
  %v517 = vrot.slane %v496, %v516
  %v518 = vlaneseq
  %v519 = vshrl.u32 %v518, 7
  %v520 = vsub.s32 %v513, %v519
  %v521 = vrot.slane %v497, %v520
  %v522 = vlaneseq
  %v523 = vshrl.u32 %v522, 7
  %v524 = vsub.s32 %v513, %v523
  %v525 = vrot.slane %v498, %v524
  %v526 = vlaneseq
  %v527 = vshrl.u32 %v526, 7
  %v528 = vsub.s32 %v513, %v527
  %v529 = vrot.slane %v499, %v528
  %v530 = vlaneseq
  %v531 = vshrl.u32 %v530, 7
  %v532 = vsub.s32 %v513, %v531
  %v533 = vrot.slane %v500, %v532
  %v534 = vlaneseq
  %v535 = vshrl.u32 %v534, 7
  %v536 = vsub.s32 %v513, %v535
  %v537 = vrot.slane %v501, %v536
  %v538 = vlaneseq
  %v539 = vshrl.u32 %v538, 7
  %v540 = vsub.s32 %v513, %v539
  %v541 = vrot.slane %v502, %v540
  %v542 = vlaneseq
  %v543 = vshrl.u32 %v542, 7
  %v544 = vsub.s32 %v513, %v543
  %v545 = vrot.slane %v503, %v544
  %vm546 = vcmask 1041409
  %v547 = vsel %vm546, %v521, %v517
  %vm548 = vcmask 1042434
  %v549 = vsel %vm548, %v525, %v547
  %vm550 = vcmask 1043459
  %v551 = vsel %vm550, %v529, %v549
  %vm552 = vcmask 1044484
  %v553 = vsel %vm552, %v533, %v551
  %vm554 = vcmask 1045509
  %v555 = vsel %vm554, %v537, %v553
  %vm556 = vcmask 1046534
  %v557 = vsel %vm556, %v541, %v555
  %vm558 = vcmask 1047559
  %v559 = vsel %vm558, %v545, %v557
  %vm561 = vcmask 64512
  %v562 = vsel %vm561, %v559, -inf
  %563 = vmax.xlane.f32.xlu0 %v562
  %v564 = vpop.xlane.xlu0 %563
  %v566 = vlaneseq
  %v567 = vshrl.u32 %v566, 7
  %v568 = vsub.s32 0, %v567
  %v569 = vrot.slane %v564, %v568
  %v570 = vlaneseq
  %v571 = vshrl.u32 %v570, 7
  %v572 = vsub.s32 1, %v571
  %v573 = vrot.slane %v564, %v572
  %v574 = vlaneseq
  %v575 = vshrl.u32 %v574, 7
  %v576 = vsub.s32 2, %v575
  %v577 = vrot.slane %v564, %v576
  %v578 = vlaneseq
  %v579 = vshrl.u32 %v578, 7
  %v580 = vsub.s32 3, %v579
  %v581 = vrot.slane %v564, %v580
  %v582 = vlaneseq
  %v583 = vshrl.u32 %v582, 7
  %v584 = vsub.s32 4, %v583
  %v585 = vrot.slane %v564, %v584
  %v586 = vlaneseq
  %v587 = vshrl.u32 %v586, 7
  %v588 = vsub.s32 5, %v587
  %v589 = vrot.slane %v564, %v588
  %v590 = vlaneseq
  %v591 = vshrl.u32 %v590, 7
  %v592 = vsub.s32 6, %v591
  %v593 = vrot.slane %v564, %v592
  %v594 = vlaneseq
  %v595 = vshrl.u32 %v594, 7
  %v596 = vsub.s32 7, %v595
  %v597 = vrot.slane %v564, %v596
  %v606 = vsub.f32 %v496, %v569
  %v607 = vsub.f32 %v497, %v573
  %v608 = vsub.f32 %v498, %v577
  %v609 = vsub.f32 %v499, %v581
  %v610 = vsub.f32 %v500, %v585
  %v611 = vsub.f32 %v501, %v589
  %v612 = vsub.f32 %v502, %v593
  %v613 = vsub.f32 %v503, %v597
  %v614 = vmul.f32 %v606, 1.442695
  %v615 = vpow.pop %v614
  %v616 = vmul.f32 %v607, 1.442695
  %v617 = vpow.pop %v616
  %v618 = vmul.f32 %v608, 1.442695
  %v619 = vpow.pop %v618
  %v620 = vmul.f32 %v609, 1.442695
  %v621 = vpow.pop %v620
  %v622 = vmul.f32 %v610, 1.442695
  %v623 = vpow.pop %v622
  %v624 = vmul.f32 %v611, 1.442695
  %v625 = vpow.pop %v624
  %v626 = vmul.f32 %v612, 1.442695
  %v627 = vpow.pop %v626
  %v628 = vmul.f32 %v613, 1.442695
  %v629 = vpow.pop %v628
  %638 = vset.pattern.permute.xlu0 0
  %639 = vperm.xlu0 %638, %v615
  %v640 = vpop.permute.xlu0 %639
  %641 = vset.pattern.permute.xlu0 0
  %642 = vperm.xlu0 %641, %v617
  %v643 = vpop.permute.xlu0 %642
  %644 = vset.pattern.permute.xlu0 0
  %645 = vperm.xlu0 %644, %v619
  %v646 = vpop.permute.xlu0 %645
  %647 = vset.pattern.permute.xlu0 0
  %648 = vperm.xlu0 %647, %v621
  %v649 = vpop.permute.xlu0 %648
  %650 = vset.pattern.permute.xlu0 0
  %651 = vperm.xlu0 %650, %v623
  %v652 = vpop.permute.xlu0 %651
  %653 = vset.pattern.permute.xlu0 0
  %654 = vperm.xlu0 %653, %v625
  %v655 = vpop.permute.xlu0 %654
  %656 = vset.pattern.permute.xlu0 0
  %657 = vperm.xlu0 %656, %v627
  %v658 = vpop.permute.xlu0 %657
  %659 = vset.pattern.permute.xlu0 0
  %660 = vperm.xlu0 %659, %v629
  %v661 = vpop.permute.xlu0 %660
  %v662 = vlaneseq
  %v663 = vshrl.u32 %v662, 7
  %v664 = vsub.s32 %v513, %v663
  %v665 = vrot.slane %v640, %v664
  %v666 = vlaneseq
  %v667 = vshrl.u32 %v666, 7
  %v668 = vsub.s32 %v513, %v667
  %v669 = vrot.slane %v643, %v668
  %v670 = vlaneseq
  %v671 = vshrl.u32 %v670, 7
  %v672 = vsub.s32 %v513, %v671
  %v673 = vrot.slane %v646, %v672
  %v674 = vlaneseq
  %v675 = vshrl.u32 %v674, 7
  %v676 = vsub.s32 %v513, %v675
  %v677 = vrot.slane %v649, %v676
  %v678 = vlaneseq
  %v679 = vshrl.u32 %v678, 7
  %v680 = vsub.s32 %v513, %v679
  %v681 = vrot.slane %v652, %v680
  %v682 = vlaneseq
  %v683 = vshrl.u32 %v682, 7
  %v684 = vsub.s32 %v513, %v683
  %v685 = vrot.slane %v655, %v684
  %v686 = vlaneseq
  %v687 = vshrl.u32 %v686, 7
  %v688 = vsub.s32 %v513, %v687
  %v689 = vrot.slane %v658, %v688
  %v690 = vlaneseq
  %v691 = vshrl.u32 %v690, 7
  %v692 = vsub.s32 %v513, %v691
  %v693 = vrot.slane %v661, %v692
  %v694 = vsel %vm546, %v669, %v665
  %v695 = vsel %vm548, %v673, %v694
  %v696 = vsel %vm550, %v677, %v695
  %v697 = vsel %vm552, %v681, %v696
  %v698 = vsel %vm554, %v685, %v697
  %v699 = vsel %vm556, %v689, %v698
  %v700 = vsel %vm558, %v693, %v699
  %v702 = vsel %vm561, %v700, 0.0
  %703 = vadd.xlane.f32.xlu0 %v702
  %v704 = vpop.xlane.xlu0 %703
  %v705 = vrcp.pop %v704
  %v707 = vlaneseq
  %v708 = vshrl.u32 %v707, 7
  %v709 = vsub.s32 0, %v708
  %v710 = vrot.slane %v705, %v709
  %v711 = vlaneseq
  %v712 = vshrl.u32 %v711, 7
  %v713 = vsub.s32 1, %v712
  %v714 = vrot.slane %v705, %v713
  %v715 = vlaneseq
  %v716 = vshrl.u32 %v715, 7
  %v717 = vsub.s32 2, %v716
  %v718 = vrot.slane %v705, %v717
  %v719 = vlaneseq
  %v720 = vshrl.u32 %v719, 7
  %v721 = vsub.s32 3, %v720
  %v722 = vrot.slane %v705, %v721
  %v723 = vlaneseq
  %v724 = vshrl.u32 %v723, 7
  %v725 = vsub.s32 4, %v724
  %v726 = vrot.slane %v705, %v725
  %v727 = vlaneseq
  %v728 = vshrl.u32 %v727, 7
  %v729 = vsub.s32 5, %v728
  %v730 = vrot.slane %v705, %v729
  %v731 = vlaneseq
  %v732 = vshrl.u32 %v731, 7
  %v733 = vsub.s32 6, %v732
  %v734 = vrot.slane %v705, %v733
  %v735 = vlaneseq
  %v736 = vshrl.u32 %v735, 7
  %v737 = vsub.s32 7, %v736
  %v738 = vrot.slane %v705, %v737
  %v747 = vmul.f32 %v615, %v710
  %v748 = vmul.f32 %v617, %v714
  %v749 = vmul.f32 %v619, %v718
  %v750 = vmul.f32 %v621, %v722
  %v751 = vmul.f32 %v623, %v726
  %v752 = vmul.f32 %v625, %v730
  %v753 = vmul.f32 %v627, %v734
  %v754 = vmul.f32 %v629, %v738
  %756 = vset.pattern.permute.xlu0 0
  %757 = vperm.xlu0 %756, %v747
  %v758 = vpop.permute.xlu0 %757
  %761 = vset.pattern.permute.xlu0 0
  %762 = vperm.xlu0 %761, %v748
  %v763 = vpop.permute.xlu0 %762
  %766 = vset.pattern.permute.xlu0 0
  %767 = vperm.xlu0 %766, %v749
  %v768 = vpop.permute.xlu0 %767
  %771 = vset.pattern.permute.xlu0 0
  %772 = vperm.xlu0 %771, %v750
  %v773 = vpop.permute.xlu0 %772
  %776 = vset.pattern.permute.xlu0 0
  %777 = vperm.xlu0 %776, %v751
  %v778 = vpop.permute.xlu0 %777
  %781 = vset.pattern.permute.xlu0 0
  %782 = vperm.xlu0 %781, %v752
  %v783 = vpop.permute.xlu0 %782
  %786 = vset.pattern.permute.xlu0 0
  %787 = vperm.xlu0 %786, %v753
  %v788 = vpop.permute.xlu0 %787
  %791 = vset.pattern.permute.xlu0 0
  %792 = vperm.xlu0 %791, %v754
  %v793 = vpop.permute.xlu0 %792
  %v795 = vmul.f32 %v758, %v60
  %v796 = vmul.f32 %v763, %v61
  %v797 = vmul.f32 %v768, %v62
  %v798 = vmul.f32 %v773, %v63
  %v799 = vmul.f32 %v778, %v64
  %v800 = vmul.f32 %v783, %v65
  %v801 = vmul.f32 %v788, %v66
  %v802 = vmul.f32 %v793, %v67
  %v803 = vrot.slane %v795, 4
  %v804 = vadd.f32 %v795, %v803
  %v805 = vrot.slane %v804, 2
  %v806 = vadd.f32 %v804, %v805
  %v807 = vrot.slane %v806, 1
  %v808 = vadd.f32 %v806, %v807
  %v809 = vrot.slane %v796, 4
  %v810 = vadd.f32 %v796, %v809
  %v811 = vrot.slane %v810, 2
  %v812 = vadd.f32 %v810, %v811
  %v813 = vrot.slane %v812, 1
  %v814 = vadd.f32 %v812, %v813
  %v815 = vrot.slane %v797, 4
  %v816 = vadd.f32 %v797, %v815
  %v817 = vrot.slane %v816, 2
  %v818 = vadd.f32 %v816, %v817
  %v819 = vrot.slane %v818, 1
  %v820 = vadd.f32 %v818, %v819
  %v821 = vrot.slane %v798, 4
  %v822 = vadd.f32 %v798, %v821
  %v823 = vrot.slane %v822, 2
  %v824 = vadd.f32 %v822, %v823
  %v825 = vrot.slane %v824, 1
  %v826 = vadd.f32 %v824, %v825
  %v827 = vrot.slane %v799, 4
  %v828 = vadd.f32 %v799, %v827
  %v829 = vrot.slane %v828, 2
  %v830 = vadd.f32 %v828, %v829
  %v831 = vrot.slane %v830, 1
  %v832 = vadd.f32 %v830, %v831
  %v833 = vrot.slane %v800, 4
  %v834 = vadd.f32 %v800, %v833
  %v835 = vrot.slane %v834, 2
  %v836 = vadd.f32 %v834, %v835
  %v837 = vrot.slane %v836, 1
  %v838 = vadd.f32 %v836, %v837
  %v839 = vrot.slane %v801, 4
  %v840 = vadd.f32 %v801, %v839
  %v841 = vrot.slane %v840, 2
  %v842 = vadd.f32 %v840, %v841
  %v843 = vrot.slane %v842, 1
  %v844 = vadd.f32 %v842, %v843
  %v845 = vrot.slane %v802, 4
  %v846 = vadd.f32 %v802, %v845
  %v847 = vrot.slane %v846, 2
  %v848 = vadd.f32 %v846, %v847
  %v849 = vrot.slane %v848, 1
  %v850 = vadd.f32 %v848, %v849
  %v859 = vsel %vm546, %v814, %v808
  %v860 = vsel %vm548, %v820, %v859
  %v861 = vsel %vm550, %v826, %v860
  %v862 = vsel %vm552, %v832, %v861
  %v863 = vsel %vm554, %v838, %v862
  %v864 = vsel %vm556, %v844, %v863
  %v865 = vsel %vm558, %v850, %v864
  %867 = vst [vmem:[#allocation3] sm:$0xff] %v865
  %v868 = vld [vmem:[#allocation3] sm:$0xff]
  %v869 = vld [vmem:[#allocation3 + $0x8] sm:$0xff]
  %v871 = vlaneseq
  %v872 = vshrl.u32 %v871, 7
  %v873 = vsub.s32 0, %v872
  %v874 = vrot.slane %v255, %v873
  %v875 = vlaneseq
  %v876 = vshrl.u32 %v875, 7
  %v877 = vsub.s32 1, %v876
  %v878 = vrot.slane %v255, %v877
  %v879 = vlaneseq
  %v880 = vshrl.u32 %v879, 7
  %v881 = vsub.s32 2, %v880
  %v882 = vrot.slane %v255, %v881
  %886 = vmatprep.subr.mxu0 %v157
  %887 = vmatpush1.msra.mxu0 %v156
  %888 = vmatprep.subr.mxu0 %v154
  %889 = vmatpush1.msra.mxu0 %v153
  %890 = vmatprep.subr.mxu0 %v151
  %891 = vmatpush1.msra.mxu0 %v150
  %892 = vmatprep.subr.mxu0 %v148
  %893 = vmatpush1.msra.mxu0 %v147
  %894 = vmatprep.subr.mxu0 %v145
  %895 = vmatpush1.msra.mxu0 %v144
  %896 = vmatprep.subr.mxu0 %v142
  %897 = vmatpush1.msra.mxu0 %v141
  %898 = vmatprep.subr.mxu0 %v139
  %899 = vmatpush1.msra.mxu0 %v138
  %900 = vmatprep.subr.mxu0 %v136
  %901 = vmatpush1.msra.mxu0 %v135
  %902 = vmatprep.subr.mxu0 %v133
  %903 = vmatpush1.msra.mxu0 %v132
  %904 = vmatprep.subr.mxu0 %v130
  %905 = vmatpush1.msra.mxu0 %v129
  %906 = vmatprep.subr.mxu0 %v127
  %907 = vmatpush1.msra.mxu0 %v126
  %908 = vmatprep.subr.mxu0 %v124
  %909 = vmatpush1.msra.mxu0 %v123
  %910 = vmatprep.subr.mxu0 %v121
  %911 = vmatpush1.msra.mxu0 %v120
  %912 = vmatprep.subr.mxu0 %v118
  %913 = vmatpush1.msra.mxu0 %v117
  %914 = vmatprep.subr.mxu0 %v115
  %915 = vmatpush1.msra.mxu0 %v114
  %916 = vmatprep.subr.mxu0 %v112
  %917 = vmatpush1.msra.mxu0 %v111
  %918 = vmatprep.subr.mxu0 %v205
  %919 = vmatpush2.msra.mxu0 %v204
  %920 = vmatprep.subr.mxu0 %v202
  %921 = vmatpush2.msra.mxu0 %v201
  %922 = vmatprep.subr.mxu0 %v199
  %923 = vmatpush2.msra.mxu0 %v198
  %924 = vmatprep.subr.mxu0 %v196
  %925 = vmatpush2.msra.mxu0 %v195
  %926 = vmatprep.subr.mxu0 %v193
  %927 = vmatpush2.msra.mxu0 %v192
  %928 = vmatprep.subr.mxu0 %v190
  %929 = vmatpush2.msra.mxu0 %v189
  %930 = vmatprep.subr.mxu0 %v187
  %931 = vmatpush2.msra.mxu0 %v186
  %932 = vmatprep.subr.mxu0 %v184
  %933 = vmatpush2.msra.mxu0 %v183
  %934 = vmatprep.subr.mxu0 %v181
  %935 = vmatpush2.msra.mxu0 %v180
  %936 = vmatprep.subr.mxu0 %v178
  %937 = vmatpush2.msra.mxu0 %v177
  %938 = vmatprep.subr.mxu0 %v175
  %939 = vmatpush2.msra.mxu0 %v174
  %940 = vmatprep.subr.mxu0 %v172
  %941 = vmatpush2.msra.mxu0 %v171
  %942 = vmatprep.subr.mxu0 %v169
  %943 = vmatpush2.msra.mxu0 %v168
  %944 = vmatprep.subr.mxu0 %v166
  %945 = vmatpush2.msra.mxu0 %v165
  %946 = vmatprep.subr.mxu0 %v163
  %947 = vmatpush2.msra.mxu0 %v162
  %948 = vmatprep.subr.mxu0 %v160
  %949 = vmatpush2.msra.mxu0 %v159
  %950 = vmatprep.mubr.f32.mxu0 %v869
  %951 = vmatmul.mubr.f32.gmra.mxu0 %v868
  %v952 = vpop.f32.mrf.mxu0
  %v953 = vadd.f32 %v874, %v952
  %v954 = vpop.f32.mrf.mxu0
  %v955 = vadd.f32 %v878, %v954
  %956 = vdwg.mxu0
  %957 = vmatprep.subr.mxu0 0.0
  %958 = vmatpush1.msra.mxu0 %v158
  %959 = vmatprep.subr.mxu0 0.0
  %960 = vmatpush1.msra.mxu0 %v155
  %961 = vmatprep.subr.mxu0 0.0
  %962 = vmatpush1.msra.mxu0 %v152
  %963 = vmatprep.subr.mxu0 0.0
  %964 = vmatpush1.msra.mxu0 %v149
  %965 = vmatprep.subr.mxu0 0.0
  %966 = vmatpush1.msra.mxu0 %v146
  %967 = vmatprep.subr.mxu0 0.0
  %968 = vmatpush1.msra.mxu0 %v143
  %969 = vmatprep.subr.mxu0 0.0
  %970 = vmatpush1.msra.mxu0 %v140
  %971 = vmatprep.subr.mxu0 0.0
  %972 = vmatpush1.msra.mxu0 %v137
  %973 = vmatprep.subr.mxu0 0.0
  %974 = vmatpush1.msra.mxu0 %v134
  %975 = vmatprep.subr.mxu0 0.0
  %976 = vmatpush1.msra.mxu0 %v131
  %977 = vmatprep.subr.mxu0 0.0
  %978 = vmatpush1.msra.mxu0 %v128
  %979 = vmatprep.subr.mxu0 0.0
  %980 = vmatpush1.msra.mxu0 %v125
  %981 = vmatprep.subr.mxu0 0.0
  %982 = vmatpush1.msra.mxu0 %v122
  %983 = vmatprep.subr.mxu0 0.0
  %984 = vmatpush1.msra.mxu0 %v119
  %985 = vmatprep.subr.mxu0 0.0
  %986 = vmatpush1.msra.mxu0 %v116
  %987 = vmatprep.subr.mxu0 0.0
  %988 = vmatpush1.msra.mxu0 %v113
  %989 = vmatprep.subr.mxu0 0.0
  %990 = vmatpush2.msra.mxu0 %v206
  %991 = vmatprep.subr.mxu0 0.0
  %992 = vmatpush2.msra.mxu0 %v203
  %993 = vmatprep.subr.mxu0 0.0
  %994 = vmatpush2.msra.mxu0 %v200
  %995 = vmatprep.subr.mxu0 0.0
  %996 = vmatpush2.msra.mxu0 %v197
  %997 = vmatprep.subr.mxu0 0.0
  %998 = vmatpush2.msra.mxu0 %v194
  %999 = vmatprep.subr.mxu0 0.0
  %1000 = vmatpush2.msra.mxu0 %v191
  %1001 = vmatprep.subr.mxu0 0.0
  %1002 = vmatpush2.msra.mxu0 %v188
  %1003 = vmatprep.subr.mxu0 0.0
  %1004 = vmatpush2.msra.mxu0 %v185
  %1005 = vmatprep.subr.mxu0 0.0
  %1006 = vmatpush2.msra.mxu0 %v182
  %1007 = vmatprep.subr.mxu0 0.0
  %1008 = vmatpush2.msra.mxu0 %v179
  %1009 = vmatprep.subr.mxu0 0.0
  %1010 = vmatpush2.msra.mxu0 %v176
  %1011 = vmatprep.subr.mxu0 0.0
  %1012 = vmatpush2.msra.mxu0 %v173
  %1013 = vmatprep.subr.mxu0 0.0
  %1014 = vmatpush2.msra.mxu0 %v170
  %1015 = vmatprep.subr.mxu0 0.0
  %1016 = vmatpush2.msra.mxu0 %v167
  %1017 = vmatprep.subr.mxu0 0.0
  %1018 = vmatpush2.msra.mxu0 %v164
  %1019 = vmatprep.subr.mxu0 0.0
  %1020 = vmatpush2.msra.mxu0 %v161
  %1021 = vmatprep.mubr.f32.mxu0 %v869
  %1022 = vmatmul.mubr.f32.gmra.mxu0 %v868
  %v1023 = vpop.f32.mrf.mxu0
  %v1024 = vadd.f32 %v882, %v1023
  %v1025 = vpop.f32.mrf.mxu0
  %1026 = vdwg.mxu0
  %v1028 = vlaneseq
  %v1029 = vshrl.u32 %v1028, 7
  %v1030 = vsub.s32 0, %v1029
  %v1031 = vrot.slane %v256, %v1030
  %v1032 = vlaneseq
  %v1033 = vshrl.u32 %v1032, 7
  %v1034 = vsub.s32 1, %v1033
  %v1035 = vrot.slane %v256, %v1034
  %v1036 = vlaneseq
  %v1037 = vshrl.u32 %v1036, 7
  %v1038 = vsub.s32 2, %v1037
  %v1039 = vrot.slane %v256, %v1038
  %1043 = vmatprep.subr.mxu0 %v253
  %1044 = vmatpush1.msra.mxu0 %v252
  %1045 = vmatprep.subr.mxu0 %v250
  %1046 = vmatpush1.msra.mxu0 %v249
  %1047 = vmatprep.subr.mxu0 %v247
  %1048 = vmatpush1.msra.mxu0 %v246
  %1049 = vmatprep.subr.mxu0 %v244
  %1050 = vmatpush1.msra.mxu0 %v243
  %1051 = vmatprep.subr.mxu0 %v241
  %1052 = vmatpush1.msra.mxu0 %v240
  %1053 = vmatprep.subr.mxu0 %v238
  %1054 = vmatpush1.msra.mxu0 %v237
  %1055 = vmatprep.subr.mxu0 %v235
  %1056 = vmatpush1.msra.mxu0 %v234
  %1057 = vmatprep.subr.mxu0 %v232
  %1058 = vmatpush1.msra.mxu0 %v231
  %1059 = vmatprep.subr.mxu0 %v229
  %1060 = vmatpush1.msra.mxu0 %v228
  %1061 = vmatprep.subr.mxu0 %v226
  %1062 = vmatpush1.msra.mxu0 %v225
  %1063 = vmatprep.subr.mxu0 %v223
  %1064 = vmatpush1.msra.mxu0 %v222
  %1065 = vmatprep.subr.mxu0 %v220
  %1066 = vmatpush1.msra.mxu0 %v219
  %1067 = vmatprep.subr.mxu0 %v217
  %1068 = vmatpush1.msra.mxu0 %v216
  %1069 = vmatprep.subr.mxu0 %v214
  %1070 = vmatpush1.msra.mxu0 %v213
  %1071 = vmatprep.subr.mxu0 %v211
  %1072 = vmatpush1.msra.mxu0 %v210
  %1073 = vmatprep.subr.mxu0 %v208
  %1074 = vmatpush1.msra.mxu0 %v207
  %1075 = vmatprep.subr.mxu0 0.0
  %1076 = vmatpush2.msra.mxu0 0.0
  %1077 = vmatprep.subr.mxu0 0.0
  %1078 = vmatpush2.msra.mxu0 0.0
  %1079 = vmatprep.subr.mxu0 0.0
  %1080 = vmatpush2.msra.mxu0 0.0
  %1081 = vmatprep.subr.mxu0 0.0
  %1082 = vmatpush2.msra.mxu0 0.0
  %1083 = vmatprep.subr.mxu0 0.0
  %1084 = vmatpush2.msra.mxu0 0.0
  %1085 = vmatprep.subr.mxu0 0.0
  %1086 = vmatpush2.msra.mxu0 0.0
  %1087 = vmatprep.subr.mxu0 0.0
  %1088 = vmatpush2.msra.mxu0 0.0
  %1089 = vmatprep.subr.mxu0 0.0
  %1090 = vmatpush2.msra.mxu0 0.0
  %1091 = vmatprep.subr.mxu0 0.0
  %1092 = vmatpush2.msra.mxu0 0.0
  %1093 = vmatprep.subr.mxu0 0.0
  %1094 = vmatpush2.msra.mxu0 0.0
  %1095 = vmatprep.subr.mxu0 0.0
  %1096 = vmatpush2.msra.mxu0 0.0
  %1097 = vmatprep.subr.mxu0 0.0
  %1098 = vmatpush2.msra.mxu0 0.0
  %1099 = vmatprep.subr.mxu0 0.0
  %1100 = vmatpush2.msra.mxu0 0.0
  %1101 = vmatprep.subr.mxu0 0.0
  %1102 = vmatpush2.msra.mxu0 0.0
  %1103 = vmatprep.subr.mxu0 0.0
  %1104 = vmatpush2.msra.mxu0 0.0
  %1105 = vmatprep.subr.mxu0 0.0
  %1106 = vmatpush2.msra.mxu0 0.0
  %1107 = vmatprep.mubr.f32.mxu0 0.0
  %1108 = vmatmul.mubr.f32.gmra.mxu0 %v274
  %v1109 = vpop.f32.mrf.mxu0
  %v1110 = vadd.f32 %v1031, %v1109
  %v1111 = vpop.f32.mrf.mxu0
  %v1112 = vadd.f32 %v1035, %v1111
  %1113 = vdwg.mxu0
  %1114 = vmatprep.subr.mxu0 0.0
  %1115 = vmatpush1.msra.mxu0 %v254
  %1116 = vmatprep.subr.mxu0 0.0
  %1117 = vmatpush1.msra.mxu0 %v251
  %1118 = vmatprep.subr.mxu0 0.0
  %1119 = vmatpush1.msra.mxu0 %v248
  %1120 = vmatprep.subr.mxu0 0.0
  %1121 = vmatpush1.msra.mxu0 %v245
  %1122 = vmatprep.subr.mxu0 0.0
  %1123 = vmatpush1.msra.mxu0 %v242
  %1124 = vmatprep.subr.mxu0 0.0
  %1125 = vmatpush1.msra.mxu0 %v239
  %1126 = vmatprep.subr.mxu0 0.0
  %1127 = vmatpush1.msra.mxu0 %v236
  %1128 = vmatprep.subr.mxu0 0.0
  %1129 = vmatpush1.msra.mxu0 %v233
  %1130 = vmatprep.subr.mxu0 0.0
  %1131 = vmatpush1.msra.mxu0 %v230
  %1132 = vmatprep.subr.mxu0 0.0
  %1133 = vmatpush1.msra.mxu0 %v227
  %1134 = vmatprep.subr.mxu0 0.0
  %1135 = vmatpush1.msra.mxu0 %v224
  %1136 = vmatprep.subr.mxu0 0.0
  %1137 = vmatpush1.msra.mxu0 %v221
  %1138 = vmatprep.subr.mxu0 0.0
  %1139 = vmatpush1.msra.mxu0 %v218
  %1140 = vmatprep.subr.mxu0 0.0
  %1141 = vmatpush1.msra.mxu0 %v215
  %1142 = vmatprep.subr.mxu0 0.0
  %1143 = vmatpush1.msra.mxu0 %v212
  %1144 = vmatprep.subr.mxu0 0.0
  %1145 = vmatpush1.msra.mxu0 %v209
  %1146 = vmatprep.subr.mxu0 0.0
  %1147 = vmatpush2.msra.mxu0 0.0
  %1148 = vmatprep.subr.mxu0 0.0
  %1149 = vmatpush2.msra.mxu0 0.0
  %1150 = vmatprep.subr.mxu0 0.0
  %1151 = vmatpush2.msra.mxu0 0.0
  %1152 = vmatprep.subr.mxu0 0.0
  %1153 = vmatpush2.msra.mxu0 0.0
  %1154 = vmatprep.subr.mxu0 0.0
  %1155 = vmatpush2.msra.mxu0 0.0
  %1156 = vmatprep.subr.mxu0 0.0
  %1157 = vmatpush2.msra.mxu0 0.0
  %1158 = vmatprep.subr.mxu0 0.0
  %1159 = vmatpush2.msra.mxu0 0.0
  %1160 = vmatprep.subr.mxu0 0.0
  %1161 = vmatpush2.msra.mxu0 0.0
  %1162 = vmatprep.subr.mxu0 0.0
  %1163 = vmatpush2.msra.mxu0 0.0
  %1164 = vmatprep.subr.mxu0 0.0
  %1165 = vmatpush2.msra.mxu0 0.0
  %1166 = vmatprep.subr.mxu0 0.0
  %1167 = vmatpush2.msra.mxu0 0.0
  %1168 = vmatprep.subr.mxu0 0.0
  %1169 = vmatpush2.msra.mxu0 0.0
  %1170 = vmatprep.subr.mxu0 0.0
  %1171 = vmatpush2.msra.mxu0 0.0
  %1172 = vmatprep.subr.mxu0 0.0
  %1173 = vmatpush2.msra.mxu0 0.0
  %1174 = vmatprep.subr.mxu0 0.0
  %1175 = vmatpush2.msra.mxu0 0.0
  %1176 = vmatprep.subr.mxu0 0.0
  %1177 = vmatpush2.msra.mxu0 0.0
  %1178 = vmatprep.mubr.f32.mxu0 0.0
  %1179 = vmatmul.mubr.f32.gmra.mxu0 %v274
  %v1180 = vpop.f32.mrf.mxu0
  %v1181 = vadd.f32 %v1039, %v1180
  %v1182 = vpop.f32.mrf.mxu0
  %1183 = vdwg.mxu0
  %v1184 = vadd.f32 %v953, %v1110
  %v1185 = vxor.u32 %v1184, 2147483648
  %v1186 = vmul.f32 %v1185, 1.442695
  %v1187 = vpow.pop %v1186
  %v1188 = vadd.f32 %v1187, 1.0
  %v1189 = vrcp.pop %v1188
  %v1190 = vmul.f32 1.0, %v1189
  %v1191 = vadd.f32 %v955, %v1112
  %v1192 = vxor.u32 %v1191, 2147483648
  %v1193 = vmul.f32 %v1192, 1.442695
  %v1194 = vpow.pop %v1193
  %v1195 = vadd.f32 %v1194, 1.0
  %v1196 = vrcp.pop %v1195
  %v1197 = vmul.f32 1.0, %v1196
  %v1198 = vmul.f32 %v1190, %v1181
  %v1199 = vadd.f32 %v1024, %v1198
  %v1200 = vtanh.pop %v1199
  %v1201 = vsub.f32 1.0, %v1197
  %v1202 = vmul.f32 %v1201, %v1200
  %v1203 = vmul.f32 %v1197, %v274
  %v1204 = vadd.f32 %v1202, %v1203
  %v1206 = vlaneseq
  %v1207 = vshrl.u32 %v1206, 7
  %v1208 = vsub.s32 0, %v1207
  %v1209 = vrot.slane %v273, %v1208
  %1211 = vmatprep.subr.mxu0 0.0
  %1212 = vmatpush1.msra.mxu0 %v272
  %1213 = vmatprep.subr.mxu0 0.0
  %1214 = vmatpush1.msra.mxu0 %v271
  %1215 = vmatprep.subr.mxu0 0.0
  %1216 = vmatpush1.msra.mxu0 %v270
  %1217 = vmatprep.subr.mxu0 0.0
  %1218 = vmatpush1.msra.mxu0 %v269
  %1219 = vmatprep.subr.mxu0 0.0
  %1220 = vmatpush1.msra.mxu0 %v268
  %1221 = vmatprep.subr.mxu0 0.0
  %1222 = vmatpush1.msra.mxu0 %v267
  %1223 = vmatprep.subr.mxu0 0.0
  %1224 = vmatpush1.msra.mxu0 %v266
  %1225 = vmatprep.subr.mxu0 0.0
  %1226 = vmatpush1.msra.mxu0 %v265
  %1227 = vmatprep.subr.mxu0 0.0
  %1228 = vmatpush1.msra.mxu0 %v264
  %1229 = vmatprep.subr.mxu0 0.0
  %1230 = vmatpush1.msra.mxu0 %v263
  %1231 = vmatprep.subr.mxu0 0.0
  %1232 = vmatpush1.msra.mxu0 %v262
  %1233 = vmatprep.subr.mxu0 0.0
  %1234 = vmatpush1.msra.mxu0 %v261
  %1235 = vmatprep.subr.mxu0 0.0
  %1236 = vmatpush1.msra.mxu0 %v260
  %1237 = vmatprep.subr.mxu0 0.0
  %1238 = vmatpush1.msra.mxu0 %v259
  %1239 = vmatprep.subr.mxu0 0.0
  %1240 = vmatpush1.msra.mxu0 %v258
  %1241 = vmatprep.subr.mxu0 0.0
  %1242 = vmatpush1.msra.mxu0 %v257
  %1243 = vmatprep.subr.mxu0 0.0
  %1244 = vmatpush2.msra.mxu0 0.0
  %1245 = vmatprep.subr.mxu0 0.0
  %1246 = vmatpush2.msra.mxu0 0.0
  %1247 = vmatprep.subr.mxu0 0.0
  %1248 = vmatpush2.msra.mxu0 0.0
  %1249 = vmatprep.subr.mxu0 0.0
  %1250 = vmatpush2.msra.mxu0 0.0
  %1251 = vmatprep.subr.mxu0 0.0
  %1252 = vmatpush2.msra.mxu0 0.0
  %1253 = vmatprep.subr.mxu0 0.0
  %1254 = vmatpush2.msra.mxu0 0.0
  %1255 = vmatprep.subr.mxu0 0.0
  %1256 = vmatpush2.msra.mxu0 0.0
  %1257 = vmatprep.subr.mxu0 0.0
  %1258 = vmatpush2.msra.mxu0 0.0
  %1259 = vmatprep.subr.mxu0 0.0
  %1260 = vmatpush2.msra.mxu0 0.0
  %1261 = vmatprep.subr.mxu0 0.0
  %1262 = vmatpush2.msra.mxu0 0.0
  %1263 = vmatprep.subr.mxu0 0.0
  %1264 = vmatpush2.msra.mxu0 0.0
  %1265 = vmatprep.subr.mxu0 0.0
  %1266 = vmatpush2.msra.mxu0 0.0
  %1267 = vmatprep.subr.mxu0 0.0
  %1268 = vmatpush2.msra.mxu0 0.0
  %1269 = vmatprep.subr.mxu0 0.0
  %1270 = vmatpush2.msra.mxu0 0.0
  %1271 = vmatprep.subr.mxu0 0.0
  %1272 = vmatpush2.msra.mxu0 0.0
  %1273 = vmatprep.subr.mxu0 0.0
  %1274 = vmatpush2.msra.mxu0 0.0
  %1275 = vmatprep.mubr.f32.mxu0 0.0
  %1276 = vmatmul.mubr.f32.gmra.mxu0 %v1204
  %v1277 = vpop.f32.mrf.mxu0
  %v1278 = vadd.f32 %v1209, %v1277
  %v1279 = vpop.f32.mrf.mxu0
  %1280 = vdwg.mxu0
  %1281 = vst [vmem:[%s15] sm:$0xff] %v1278
  %1282 = vmax.xlane.f32.xlu0 %v1278
  %v1283 = vpop.xlane.xlu0 %1282
  %vm1284 = vcmp.eq.f32.partialorder %v1278, %v1283
  %v1285 = vsel %vm1284, %v513, 128
  %v1286 = vand.u32 %v1285, 65535
  %v1287 = vshra.s32 %v1285, 16
  %v1288 = vcvt.s32.f32 %v1286
  %v1289 = vcvt.s32.f32 %v1287
  %1290 = vmin.xlane.f32.xlu0 %v1289
  %v1291 = vpop.xlane.xlu0 %1290
  %vm1292 = vcmp.eq.f32.partialorder %v1289, %v1291
  %v1293 = vsel %vm1292, %v1288, inf
  %1294 = vmin.xlane.f32.xlu0 %v1293
  %v1295 = vpop.xlane.xlu0 %1294
  %v1296 = vcvt.f32.s32 %v1295
  %v1297 = vcvt.f32.s32 %v1291
  %v1298 = vshll.u32 %v1297, 16
  %v1299 = vadd.s32 %v1298, %v1296
  %vm1300 = vcmp.eq.s32.totalorder %v513, %v1299
  %v1301 = vsel %vm1300, 1, 0
  %v1302 = vcvt.s32.f32 %v1301
  %1303 = vmatprep.subr.mxu0 0.0
  %1304 = vmatpush1.msra.mxu0 %v110
  %1305 = vmatprep.subr.mxu0 0.0
  %1306 = vmatpush1.msra.mxu0 %v109
  %1307 = vmatprep.subr.mxu0 0.0
  %1308 = vmatpush1.msra.mxu0 %v108
  %1309 = vmatprep.subr.mxu0 0.0
  %1310 = vmatpush1.msra.mxu0 %v107
  %1311 = vmatprep.subr.mxu0 0.0
  %1312 = vmatpush1.msra.mxu0 %v106
  %1313 = vmatprep.subr.mxu0 0.0
  %1314 = vmatpush1.msra.mxu0 %v105
  %1315 = vmatprep.subr.mxu0 0.0
  %1316 = vmatpush1.msra.mxu0 %v104
  %1317 = vmatprep.subr.mxu0 0.0
  %1318 = vmatpush1.msra.mxu0 %v103
  %1319 = vmatprep.subr.mxu0 0.0
  %1320 = vmatpush1.msra.mxu0 %v102
  %1321 = vmatprep.subr.mxu0 0.0
  %1322 = vmatpush1.msra.mxu0 %v101
  %1323 = vmatprep.subr.mxu0 0.0
  %1324 = vmatpush1.msra.mxu0 %v100
  %1325 = vmatprep.subr.mxu0 0.0
  %1326 = vmatpush1.msra.mxu0 %v99
  %1327 = vmatprep.subr.mxu0 0.0
  %1328 = vmatpush1.msra.mxu0 %v98
  %1329 = vmatprep.subr.mxu0 0.0
  %1330 = vmatpush1.msra.mxu0 %v97
  %1331 = vmatprep.subr.mxu0 0.0
  %1332 = vmatpush1.msra.mxu0 %v96
  %1333 = vmatprep.subr.mxu0 0.0
  %1334 = vmatpush1.msra.mxu0 %v95
  %1335 = vmatprep.subr.mxu0 0.0
  %1336 = vmatpush2.msra.mxu0 0.0
  %1337 = vmatprep.subr.mxu0 0.0
  %1338 = vmatpush2.msra.mxu0 0.0
  %1339 = vmatprep.subr.mxu0 0.0
  %1340 = vmatpush2.msra.mxu0 0.0
  %1341 = vmatprep.subr.mxu0 0.0
  %1342 = vmatpush2.msra.mxu0 0.0
  %1343 = vmatprep.subr.mxu0 0.0
  %1344 = vmatpush2.msra.mxu0 0.0
  %1345 = vmatprep.subr.mxu0 0.0
  %1346 = vmatpush2.msra.mxu0 0.0
  %1347 = vmatprep.subr.mxu0 0.0
  %1348 = vmatpush2.msra.mxu0 0.0
  %1349 = vmatprep.subr.mxu0 0.0
  %1350 = vmatpush2.msra.mxu0 0.0
  %1351 = vmatprep.subr.mxu0 0.0
  %1352 = vmatpush2.msra.mxu0 0.0
  %1353 = vmatprep.subr.mxu0 0.0
  %1354 = vmatpush2.msra.mxu0 0.0
  %1355 = vmatprep.subr.mxu0 0.0
  %1356 = vmatpush2.msra.mxu0 0.0
  %1357 = vmatprep.subr.mxu0 0.0
  %1358 = vmatpush2.msra.mxu0 0.0
  %1359 = vmatprep.subr.mxu0 0.0
  %1360 = vmatpush2.msra.mxu0 0.0
  %1361 = vmatprep.subr.mxu0 0.0
  %1362 = vmatpush2.msra.mxu0 0.0
  %1363 = vmatprep.subr.mxu0 0.0
  %1364 = vmatpush2.msra.mxu0 0.0
  %1365 = vmatprep.subr.mxu0 0.0
  %1366 = vmatpush2.msra.mxu0 0.0
  %1367 = vmatprep.mubr.f32.mxu0 0.0
  %1368 = vmatmul.mubr.f32.gmra.mxu0 %v1302
  %v1369 = vpop.f32.mrf.mxu0
  %v1370 = vadd.f32 0.0, %v1369
  %v1371 = vpop.f32.mrf.mxu0
  %1372 = vdwg.mxu0
  %1373 = vst [vmem:[#allocation3 + $0x8] sm:$0xff] %v1370
  %1374 = vmatprep.subr.mxu0 0.0
  %1375 = vmatpush1.msra.mxu0 %v91
  %1376 = vmatprep.subr.mxu0 0.0
  %1377 = vmatpush1.msra.mxu0 %v90
  %1378 = vmatprep.subr.mxu0 0.0
  %1379 = vmatpush1.msra.mxu0 %v89
  %1380 = vmatprep.subr.mxu0 0.0
  %1381 = vmatpush1.msra.mxu0 %v88
  %1382 = vmatprep.subr.mxu0 0.0
  %1383 = vmatpush1.msra.mxu0 %v87
  %1384 = vmatprep.subr.mxu0 0.0
  %1385 = vmatpush1.msra.mxu0 %v86
  %1386 = vmatprep.subr.mxu0 0.0
  %1387 = vmatpush1.msra.mxu0 %v85
  %1388 = vmatprep.subr.mxu0 0.0
  %1389 = vmatpush1.msra.mxu0 %v84
  %1390 = vmatprep.subr.mxu0 0.0
  %1391 = vmatpush1.msra.mxu0 %v83
  %1392 = vmatprep.subr.mxu0 0.0
  %1393 = vmatpush1.msra.mxu0 %v82
  %1394 = vmatprep.subr.mxu0 0.0
  %1395 = vmatpush1.msra.mxu0 %v81
  %1396 = vmatprep.subr.mxu0 0.0
  %1397 = vmatpush1.msra.mxu0 %v80
  %1398 = vmatprep.subr.mxu0 0.0
  %1399 = vmatpush1.msra.mxu0 %v79
  %1400 = vmatprep.subr.mxu0 0.0
  %1401 = vmatpush1.msra.mxu0 %v78
  %1402 = vmatprep.subr.mxu0 0.0
  %1403 = vmatpush1.msra.mxu0 %v77
  %1404 = vmatprep.subr.mxu0 0.0
  %1405 = vmatpush1.msra.mxu0 %v76
  %1406 = vmatprep.subr.mxu0 0.0
  %1407 = vmatpush2.msra.mxu0 0.0
  %1408 = vmatprep.subr.mxu0 0.0
  %1409 = vmatpush2.msra.mxu0 0.0
  %1410 = vmatprep.subr.mxu0 0.0
  %1411 = vmatpush2.msra.mxu0 0.0
  %1412 = vmatprep.subr.mxu0 0.0
  %1413 = vmatpush2.msra.mxu0 0.0
  %1414 = vmatprep.subr.mxu0 0.0
  %1415 = vmatpush2.msra.mxu0 0.0
  %1416 = vmatprep.subr.mxu0 0.0
  %1417 = vmatpush2.msra.mxu0 0.0
  %1418 = vmatprep.subr.mxu0 0.0
  %1419 = vmatpush2.msra.mxu0 0.0
  %1420 = vmatprep.subr.mxu0 0.0
  %1421 = vmatpush2.msra.mxu0 0.0
  %1422 = vmatprep.subr.mxu0 0.0
  %1423 = vmatpush2.msra.mxu0 0.0
  %1424 = vmatprep.subr.mxu0 0.0
  %1425 = vmatpush2.msra.mxu0 0.0
  %1426 = vmatprep.subr.mxu0 0.0
  %1427 = vmatpush2.msra.mxu0 0.0
  %1428 = vmatprep.subr.mxu0 0.0
  %1429 = vmatpush2.msra.mxu0 0.0
  %1430 = vmatprep.subr.mxu0 0.0
  %1431 = vmatpush2.msra.mxu0 0.0
  %1432 = vmatprep.subr.mxu0 0.0
  %1433 = vmatpush2.msra.mxu0 0.0
  %1434 = vmatprep.subr.mxu0 0.0
  %1435 = vmatpush2.msra.mxu0 0.0
  %1436 = vmatprep.subr.mxu0 0.0
  %1437 = vmatpush2.msra.mxu0 0.0
  %1438 = vmatprep.mubr.f32.mxu0 0.0
  %1439 = vmatmul.mubr.f32.gmra.mxu0 %v1204
  %v1440 = vpop.f32.mrf.mxu0
  %v1441 = vadd.f32 %v279, %v1440
  %v1442 = vpop.f32.mrf.mxu0
  %1443 = vdwg.mxu0
  %v1445 = vcombine.high %v1441, %v1441
  %v1447 = vunpack.c.l.s4 1966171168
  %v1448 = vunpack.c.0.s8 %v1447
  %v1449 = vlaneseq
  %v1450 = vshrl.u32 %v1449, 7
  %v1451 = vsub.s32 %v1448, %v1450
  %v1452 = vrot.slane %v1441, %v1451
  %v1454 = vunpack.c.l.s4 1966171168
  %v1455 = vunpack.c.0.s8 %v1454
  %v1456 = vlaneseq
  %v1457 = vshrl.u32 %v1456, 7
  %v1458 = vsub.s32 %v1455, %v1457
  %v1459 = vrot.slane %v1445, %v1458
  %v1460 = vcombine.high %v1452, %v1452
  %v1461 = vcombine.high %v1459, %v1459
  %v1463 = vunpack.c.l.s4 1966171168
  %v1464 = vunpack.c.0.s8 %v1463
  %v1465 = vlaneseq
  %v1466 = vshrl.u32 %v1465, 7
  %v1467 = vsub.s32 %v1464, %v1466
  %v1468 = vrot.slane %v1452, %v1467
  %v1470 = vunpack.c.l.s4 1966171168
  %v1471 = vunpack.c.0.s8 %v1470
  %v1472 = vlaneseq
  %v1473 = vshrl.u32 %v1472, 7
  %v1474 = vsub.s32 %v1471, %v1473
  %v1475 = vrot.slane %v1459, %v1474
  %v1477 = vunpack.c.l.s4 1966171168
  %v1478 = vunpack.c.0.s8 %v1477
  %v1479 = vlaneseq
  %v1480 = vshrl.u32 %v1479, 7
  %v1481 = vsub.s32 %v1478, %v1480
  %v1482 = vrot.slane %v1460, %v1481
  %v1484 = vunpack.c.l.s4 1966171168
  %v1485 = vunpack.c.0.s8 %v1484
  %v1486 = vlaneseq
  %v1487 = vshrl.u32 %v1486, 7
  %v1488 = vsub.s32 %v1485, %v1487
  %v1489 = vrot.slane %v1461, %v1488
  %v1490 = vcombine.high %v1468, %v1468
  %v1491 = vcombine.high %v1475, %v1475
  %v1492 = vcombine.high %v1482, %v1482
  %v1493 = vcombine.high %v1489, %v1489
  %v1494 = vlaneseq
  %v1495 = vshrl.u32 %v1494, 7
  %v1496 = vsub.s32 0, %v1495
  %v1497 = vrot.slane %v1468, %v1496
  %v1498 = vlaneseq
  %v1499 = vshrl.u32 %v1498, 7
  %v1500 = vsub.s32 0, %v1499
  %v1501 = vrot.slane %v1482, %v1500
  %v1502 = vlaneseq
  %v1503 = vshrl.u32 %v1502, 7
  %v1504 = vsub.s32 0, %v1503
  %v1505 = vrot.slane %v1490, %v1504
  %v1506 = vlaneseq
  %v1507 = vshrl.u32 %v1506, 7
  %v1508 = vsub.s32 0, %v1507
  %v1509 = vrot.slane %v1492, %v1508
  %v1510 = vlaneseq
  %v1511 = vshrl.u32 %v1510, 7
  %v1512 = vsub.s32 0, %v1511
  %v1513 = vrot.slane %v1475, %v1512
  %v1514 = vlaneseq
  %v1515 = vshrl.u32 %v1514, 7
  %v1516 = vsub.s32 0, %v1515
  %v1517 = vrot.slane %v1489, %v1516
  %v1518 = vlaneseq
  %v1519 = vshrl.u32 %v1518, 7
  %v1520 = vsub.s32 0, %v1519
  %v1521 = vrot.slane %v1491, %v1520
  %v1522 = vlaneseq
  %v1523 = vshrl.u32 %v1522, 7
  %v1524 = vsub.s32 0, %v1523
  %v1525 = vrot.slane %v1493, %v1524
  %v1534 = vadd.f32 %v68, %v1497
  %v1535 = vadd.f32 %v69, %v1501
  %v1536 = vadd.f32 %v70, %v1505
  %v1537 = vadd.f32 %v71, %v1509
  %v1538 = vadd.f32 %v72, %v1513
  %v1539 = vadd.f32 %v73, %v1517
  %v1540 = vadd.f32 %v74, %v1521
  %v1541 = vadd.f32 %v75, %v1525
  %v1542 = vtanh.pop %v1534
  %v1543 = vtanh.pop %v1535
  %v1544 = vtanh.pop %v1536
  %v1545 = vtanh.pop %v1537
  %v1546 = vtanh.pop %v1538
  %v1547 = vtanh.pop %v1539
  %v1548 = vtanh.pop %v1540
  %v1549 = vtanh.pop %v1541
  %v1550 = vmul.f32 %v1542, %v461
  %v1551 = vmul.f32 %v1543, %v461
  %v1552 = vmul.f32 %v1544, %v461
  %v1553 = vmul.f32 %v1545, %v461
  %v1554 = vmul.f32 %v1546, %v461
  %v1555 = vmul.f32 %v1547, %v461
  %v1556 = vmul.f32 %v1548, %v461
  %v1557 = vmul.f32 %v1549, %v461
  %1558 = vadd.xlane.f32.xlu0 %v1550
  %v1559 = vpop.xlane.xlu0 %1558
  %1560 = vadd.xlane.f32.xlu0 %v1551
  %v1561 = vpop.xlane.xlu0 %1560
  %1562 = vadd.xlane.f32.xlu0 %v1552
  %v1563 = vpop.xlane.xlu0 %1562
  %1564 = vadd.xlane.f32.xlu0 %v1553
  %v1565 = vpop.xlane.xlu0 %1564
  %1566 = vadd.xlane.f32.xlu0 %v1554
  %v1567 = vpop.xlane.xlu0 %1566
  %1568 = vadd.xlane.f32.xlu0 %v1555
  %v1569 = vpop.xlane.xlu0 %1568
  %1570 = vadd.xlane.f32.xlu0 %v1556
  %v1571 = vpop.xlane.xlu0 %1570
  %1572 = vadd.xlane.f32.xlu0 %v1557
  %v1573 = vpop.xlane.xlu0 %1572
  %v1574 = vadd.f32 %v1559, %v494
  %v1575 = vadd.f32 %v1561, %v494
  %v1576 = vadd.f32 %v1563, %v494
  %v1577 = vadd.f32 %v1565, %v494
  %v1578 = vadd.f32 %v1567, %v494
  %v1579 = vadd.f32 %v1569, %v494
  %v1580 = vadd.f32 %v1571, %v494
  %v1581 = vadd.f32 %v1573, %v494
  %v1590 = vlaneseq
  %v1591 = vshrl.u32 %v1590, 7
  %v1592 = vsub.s32 %v513, %v1591
  %v1593 = vrot.slane %v1574, %v1592
  %v1594 = vlaneseq
  %v1595 = vshrl.u32 %v1594, 7
  %v1596 = vsub.s32 %v513, %v1595
  %v1597 = vrot.slane %v1575, %v1596
  %v1598 = vlaneseq
  %v1599 = vshrl.u32 %v1598, 7
  %v1600 = vsub.s32 %v513, %v1599
  %v1601 = vrot.slane %v1576, %v1600
  %v1602 = vlaneseq
  %v1603 = vshrl.u32 %v1602, 7
  %v1604 = vsub.s32 %v513, %v1603
  %v1605 = vrot.slane %v1577, %v1604
  %v1606 = vlaneseq
  %v1607 = vshrl.u32 %v1606, 7
  %v1608 = vsub.s32 %v513, %v1607
  %v1609 = vrot.slane %v1578, %v1608
  %v1610 = vlaneseq
  %v1611 = vshrl.u32 %v1610, 7
  %v1612 = vsub.s32 %v513, %v1611
  %v1613 = vrot.slane %v1579, %v1612
  %v1614 = vlaneseq
  %v1615 = vshrl.u32 %v1614, 7
  %v1616 = vsub.s32 %v513, %v1615
  %v1617 = vrot.slane %v1580, %v1616
  %v1618 = vlaneseq
  %v1619 = vshrl.u32 %v1618, 7
  %v1620 = vsub.s32 %v513, %v1619
  %v1621 = vrot.slane %v1581, %v1620
  %v1622 = vsel %vm546, %v1597, %v1593
  %v1623 = vsel %vm548, %v1601, %v1622
  %v1624 = vsel %vm550, %v1605, %v1623
  %v1625 = vsel %vm552, %v1609, %v1624
  %v1626 = vsel %vm554, %v1613, %v1625
  %v1627 = vsel %vm556, %v1617, %v1626
  %v1628 = vsel %vm558, %v1621, %v1627
  %v1630 = vsel %vm561, %v1628, -inf
  %1631 = vmax.xlane.f32.xlu0 %v1630
  %v1632 = vpop.xlane.xlu0 %1631
  %v1634 = vlaneseq
  %v1635 = vshrl.u32 %v1634, 7
  %v1636 = vsub.s32 0, %v1635
  %v1637 = vrot.slane %v1632, %v1636
  %v1638 = vlaneseq
  %v1639 = vshrl.u32 %v1638, 7
  %v1640 = vsub.s32 1, %v1639
  %v1641 = vrot.slane %v1632, %v1640
  %v1642 = vlaneseq
  %v1643 = vshrl.u32 %v1642, 7
  %v1644 = vsub.s32 2, %v1643
  %v1645 = vrot.slane %v1632, %v1644
  %v1646 = vlaneseq
  %v1647 = vshrl.u32 %v1646, 7
  %v1648 = vsub.s32 3, %v1647
  %v1649 = vrot.slane %v1632, %v1648
  %v1650 = vlaneseq
  %v1651 = vshrl.u32 %v1650, 7
  %v1652 = vsub.s32 4, %v1651
  %v1653 = vrot.slane %v1632, %v1652
  %v1654 = vlaneseq
  %v1655 = vshrl.u32 %v1654, 7
  %v1656 = vsub.s32 5, %v1655
  %v1657 = vrot.slane %v1632, %v1656
  %v1658 = vlaneseq
  %v1659 = vshrl.u32 %v1658, 7
  %v1660 = vsub.s32 6, %v1659
  %v1661 = vrot.slane %v1632, %v1660
  %v1662 = vlaneseq
  %v1663 = vshrl.u32 %v1662, 7
  %v1664 = vsub.s32 7, %v1663
  %v1665 = vrot.slane %v1632, %v1664
  %v1674 = vsub.f32 %v1574, %v1637
  %v1675 = vsub.f32 %v1575, %v1641
  %v1676 = vsub.f32 %v1576, %v1645
  %v1677 = vsub.f32 %v1577, %v1649
  %v1678 = vsub.f32 %v1578, %v1653
  %v1679 = vsub.f32 %v1579, %v1657
  %v1680 = vsub.f32 %v1580, %v1661
  %v1681 = vsub.f32 %v1581, %v1665
  %v1682 = vmul.f32 %v1674, 1.442695
  %v1683 = vpow.pop %v1682
  %v1684 = vmul.f32 %v1675, 1.442695
  %v1685 = vpow.pop %v1684
  %v1686 = vmul.f32 %v1676, 1.442695
  %v1687 = vpow.pop %v1686
  %v1688 = vmul.f32 %v1677, 1.442695
  %v1689 = vpow.pop %v1688
  %v1690 = vmul.f32 %v1678, 1.442695
  %v1691 = vpow.pop %v1690
  %v1692 = vmul.f32 %v1679, 1.442695
  %v1693 = vpow.pop %v1692
  %v1694 = vmul.f32 %v1680, 1.442695
  %v1695 = vpow.pop %v1694
  %v1696 = vmul.f32 %v1681, 1.442695
  %v1697 = vpow.pop %v1696
  %1706 = vset.pattern.permute.xlu0 0
  %1707 = vperm.xlu0 %1706, %v1683
  %v1708 = vpop.permute.xlu0 %1707
  %1709 = vset.pattern.permute.xlu0 0
  %1710 = vperm.xlu0 %1709, %v1685
  %v1711 = vpop.permute.xlu0 %1710
  %1712 = vset.pattern.permute.xlu0 0
  %1713 = vperm.xlu0 %1712, %v1687
  %v1714 = vpop.permute.xlu0 %1713
  %1715 = vset.pattern.permute.xlu0 0
  %1716 = vperm.xlu0 %1715, %v1689
  %v1717 = vpop.permute.xlu0 %1716
  %1718 = vset.pattern.permute.xlu0 0
  %1719 = vperm.xlu0 %1718, %v1691
  %v1720 = vpop.permute.xlu0 %1719
  %1721 = vset.pattern.permute.xlu0 0
  %1722 = vperm.xlu0 %1721, %v1693
  %v1723 = vpop.permute.xlu0 %1722
  %1724 = vset.pattern.permute.xlu0 0
  %1725 = vperm.xlu0 %1724, %v1695
  %v1726 = vpop.permute.xlu0 %1725
  %1727 = vset.pattern.permute.xlu0 0
  %1728 = vperm.xlu0 %1727, %v1697
  %v1729 = vpop.permute.xlu0 %1728
  %v1730 = vlaneseq
  %v1731 = vshrl.u32 %v1730, 7
  %v1732 = vsub.s32 %v513, %v1731
  %v1733 = vrot.slane %v1708, %v1732
  %v1734 = vlaneseq
  %v1735 = vshrl.u32 %v1734, 7
  %v1736 = vsub.s32 %v513, %v1735
  %v1737 = vrot.slane %v1711, %v1736
  %v1738 = vlaneseq
  %v1739 = vshrl.u32 %v1738, 7
  %v1740 = vsub.s32 %v513, %v1739
  %v1741 = vrot.slane %v1714, %v1740
  %v1742 = vlaneseq
  %v1743 = vshrl.u32 %v1742, 7
  %v1744 = vsub.s32 %v513, %v1743
  %v1745 = vrot.slane %v1717, %v1744
  %v1746 = vlaneseq
  %v1747 = vshrl.u32 %v1746, 7
  %v1748 = vsub.s32 %v513, %v1747
  %v1749 = vrot.slane %v1720, %v1748
  %v1750 = vlaneseq
  %v1751 = vshrl.u32 %v1750, 7
  %v1752 = vsub.s32 %v513, %v1751
  %v1753 = vrot.slane %v1723, %v1752
  %v1754 = vlaneseq
  %v1755 = vshrl.u32 %v1754, 7
  %v1756 = vsub.s32 %v513, %v1755
  %v1757 = vrot.slane %v1726, %v1756
  %v1758 = vlaneseq
  %v1759 = vshrl.u32 %v1758, 7
  %v1760 = vsub.s32 %v513, %v1759
  %v1761 = vrot.slane %v1729, %v1760
  %v1762 = vsel %vm546, %v1737, %v1733
  %v1763 = vsel %vm548, %v1741, %v1762
  %v1764 = vsel %vm550, %v1745, %v1763
  %v1765 = vsel %vm552, %v1749, %v1764
  %v1766 = vsel %vm554, %v1753, %v1765
  %v1767 = vsel %vm556, %v1757, %v1766
  %v1768 = vsel %vm558, %v1761, %v1767
  %v1770 = vsel %vm561, %v1768, 0.0
  %1771 = vadd.xlane.f32.xlu0 %v1770
  %v1772 = vpop.xlane.xlu0 %1771
  %v1773 = vrcp.pop %v1772
  %v1775 = vlaneseq
  %v1776 = vshrl.u32 %v1775, 7
  %v1777 = vsub.s32 0, %v1776
  %v1778 = vrot.slane %v1773, %v1777
  %v1779 = vlaneseq
  %v1780 = vshrl.u32 %v1779, 7
  %v1781 = vsub.s32 1, %v1780
  %v1782 = vrot.slane %v1773, %v1781
  %v1783 = vlaneseq
  %v1784 = vshrl.u32 %v1783, 7
  %v1785 = vsub.s32 2, %v1784
  %v1786 = vrot.slane %v1773, %v1785
  %v1787 = vlaneseq
  %v1788 = vshrl.u32 %v1787, 7
  %v1789 = vsub.s32 3, %v1788
  %v1790 = vrot.slane %v1773, %v1789
  %v1791 = vlaneseq
  %v1792 = vshrl.u32 %v1791, 7
  %v1793 = vsub.s32 4, %v1792
  %v1794 = vrot.slane %v1773, %v1793
  %v1795 = vlaneseq
  %v1796 = vshrl.u32 %v1795, 7
  %v1797 = vsub.s32 5, %v1796
  %v1798 = vrot.slane %v1773, %v1797
  %v1799 = vlaneseq
  %v1800 = vshrl.u32 %v1799, 7
  %v1801 = vsub.s32 6, %v1800
  %v1802 = vrot.slane %v1773, %v1801
  %v1803 = vlaneseq
  %v1804 = vshrl.u32 %v1803, 7
  %v1805 = vsub.s32 7, %v1804
  %v1806 = vrot.slane %v1773, %v1805
  %v1815 = vmul.f32 %v1683, %v1778
  %v1816 = vmul.f32 %v1685, %v1782
  %v1817 = vmul.f32 %v1687, %v1786
  %v1818 = vmul.f32 %v1689, %v1790
  %v1819 = vmul.f32 %v1691, %v1794
  %v1820 = vmul.f32 %v1693, %v1798
  %v1821 = vmul.f32 %v1695, %v1802
  %v1822 = vmul.f32 %v1697, %v1806
  %1824 = vset.pattern.permute.xlu0 0
  %1825 = vperm.xlu0 %1824, %v1815
  %v1826 = vpop.permute.xlu0 %1825
  %1829 = vset.pattern.permute.xlu0 0
  %1830 = vperm.xlu0 %1829, %v1816
  %v1831 = vpop.permute.xlu0 %1830
  %1834 = vset.pattern.permute.xlu0 0
  %1835 = vperm.xlu0 %1834, %v1817
  %v1836 = vpop.permute.xlu0 %1835
  %1839 = vset.pattern.permute.xlu0 0
  %1840 = vperm.xlu0 %1839, %v1818
  %v1841 = vpop.permute.xlu0 %1840
  %1844 = vset.pattern.permute.xlu0 0
  %1845 = vperm.xlu0 %1844, %v1819
  %v1846 = vpop.permute.xlu0 %1845
  %1849 = vset.pattern.permute.xlu0 0
  %1850 = vperm.xlu0 %1849, %v1820
  %v1851 = vpop.permute.xlu0 %1850
  %1854 = vset.pattern.permute.xlu0 0
  %1855 = vperm.xlu0 %1854, %v1821
  %v1856 = vpop.permute.xlu0 %1855
  %1859 = vset.pattern.permute.xlu0 0
  %1860 = vperm.xlu0 %1859, %v1822
  %v1861 = vpop.permute.xlu0 %1860
  %v1863 = vmul.f32 %v1826, %v60
  %v1864 = vmul.f32 %v1831, %v61
  %v1865 = vmul.f32 %v1836, %v62
  %v1866 = vmul.f32 %v1841, %v63
  %v1867 = vmul.f32 %v1846, %v64
  %v1868 = vmul.f32 %v1851, %v65
  %v1869 = vmul.f32 %v1856, %v66
  %v1870 = vmul.f32 %v1861, %v67
  %v1871 = vrot.slane %v1863, 4
  %v1872 = vadd.f32 %v1863, %v1871
  %v1873 = vrot.slane %v1872, 2
  %v1874 = vadd.f32 %v1872, %v1873
  %v1875 = vrot.slane %v1874, 1
  %v1876 = vadd.f32 %v1874, %v1875
  %v1877 = vrot.slane %v1864, 4
  %v1878 = vadd.f32 %v1864, %v1877
  %v1879 = vrot.slane %v1878, 2
  %v1880 = vadd.f32 %v1878, %v1879
  %v1881 = vrot.slane %v1880, 1
  %v1882 = vadd.f32 %v1880, %v1881
  %v1883 = vrot.slane %v1865, 4
  %v1884 = vadd.f32 %v1865, %v1883
  %v1885 = vrot.slane %v1884, 2
  %v1886 = vadd.f32 %v1884, %v1885
  %v1887 = vrot.slane %v1886, 1
  %v1888 = vadd.f32 %v1886, %v1887
  %v1889 = vrot.slane %v1866, 4
  %v1890 = vadd.f32 %v1866, %v1889
  %v1891 = vrot.slane %v1890, 2
  %v1892 = vadd.f32 %v1890, %v1891
  %v1893 = vrot.slane %v1892, 1
  %v1894 = vadd.f32 %v1892, %v1893
  %v1895 = vrot.slane %v1867, 4
  %v1896 = vadd.f32 %v1867, %v1895
  %v1897 = vrot.slane %v1896, 2
  %v1898 = vadd.f32 %v1896, %v1897
  %v1899 = vrot.slane %v1898, 1
  %v1900 = vadd.f32 %v1898, %v1899
  %v1901 = vrot.slane %v1868, 4
  %v1902 = vadd.f32 %v1868, %v1901
  %v1903 = vrot.slane %v1902, 2
  %v1904 = vadd.f32 %v1902, %v1903
  %v1905 = vrot.slane %v1904, 1
  %v1906 = vadd.f32 %v1904, %v1905
  %v1907 = vrot.slane %v1869, 4
  %v1908 = vadd.f32 %v1869, %v1907
  %v1909 = vrot.slane %v1908, 2
  %v1910 = vadd.f32 %v1908, %v1909
  %v1911 = vrot.slane %v1910, 1
  %v1912 = vadd.f32 %v1910, %v1911
  %v1913 = vrot.slane %v1870, 4
  %v1914 = vadd.f32 %v1870, %v1913
  %v1915 = vrot.slane %v1914, 2
  %v1916 = vadd.f32 %v1914, %v1915
  %v1917 = vrot.slane %v1916, 1
  %v1918 = vadd.f32 %v1916, %v1917
  %v1927 = vsel %vm546, %v1882, %v1876
  %v1928 = vsel %vm548, %v1888, %v1927
  %v1929 = vsel %vm550, %v1894, %v1928
  %v1930 = vsel %vm552, %v1900, %v1929
  %v1931 = vsel %vm554, %v1906, %v1930
  %v1932 = vsel %vm556, %v1912, %v1931
  %v1933 = vsel %vm558, %v1918, %v1932
  %1935 = vst [vmem:[#allocation3] sm:$0xff] %v1933
  %v1936 = vld [vmem:[#allocation3] sm:$0xff]
  %v1937 = vld [vmem:[#allocation3 + $0x8] sm:$0xff]
  %1938 = vmatprep.subr.mxu0 %v157
  %1939 = vmatpush1.msra.mxu0 %v156
  %1940 = vmatprep.subr.mxu0 %v154
  %1941 = vmatpush1.msra.mxu0 %v153
  %1942 = vmatprep.subr.mxu0 %v151
  %1943 = vmatpush1.msra.mxu0 %v150
  %1944 = vmatprep.subr.mxu0 %v148
  %1945 = vmatpush1.msra.mxu0 %v147
  %1946 = vmatprep.subr.mxu0 %v145
  %1947 = vmatpush1.msra.mxu0 %v144
  %1948 = vmatprep.subr.mxu0 %v142
  %1949 = vmatpush1.msra.mxu0 %v141
  %1950 = vmatprep.subr.mxu0 %v139
  %1951 = vmatpush1.msra.mxu0 %v138
  %1952 = vmatprep.subr.mxu0 %v136
  %1953 = vmatpush1.msra.mxu0 %v135
  %1954 = vmatprep.subr.mxu0 %v133
  %1955 = vmatpush1.msra.mxu0 %v132
  %1956 = vmatprep.subr.mxu0 %v130
  %1957 = vmatpush1.msra.mxu0 %v129
  %1958 = vmatprep.subr.mxu0 %v127
  %1959 = vmatpush1.msra.mxu0 %v126
  %1960 = vmatprep.subr.mxu0 %v124
  %1961 = vmatpush1.msra.mxu0 %v123
  %1962 = vmatprep.subr.mxu0 %v121
  %1963 = vmatpush1.msra.mxu0 %v120
  %1964 = vmatprep.subr.mxu0 %v118
  %1965 = vmatpush1.msra.mxu0 %v117
  %1966 = vmatprep.subr.mxu0 %v115
  %1967 = vmatpush1.msra.mxu0 %v114
  %1968 = vmatprep.subr.mxu0 %v112
  %1969 = vmatpush1.msra.mxu0 %v111
  %1970 = vmatprep.subr.mxu0 %v205
  %1971 = vmatpush2.msra.mxu0 %v204
  %1972 = vmatprep.subr.mxu0 %v202
  %1973 = vmatpush2.msra.mxu0 %v201
  %1974 = vmatprep.subr.mxu0 %v199
  %1975 = vmatpush2.msra.mxu0 %v198
  %1976 = vmatprep.subr.mxu0 %v196
  %1977 = vmatpush2.msra.mxu0 %v195
  %1978 = vmatprep.subr.mxu0 %v193
  %1979 = vmatpush2.msra.mxu0 %v192
  %1980 = vmatprep.subr.mxu0 %v190
  %1981 = vmatpush2.msra.mxu0 %v189
  %1982 = vmatprep.subr.mxu0 %v187
  %1983 = vmatpush2.msra.mxu0 %v186
  %1984 = vmatprep.subr.mxu0 %v184
  %1985 = vmatpush2.msra.mxu0 %v183
  %1986 = vmatprep.subr.mxu0 %v181
  %1987 = vmatpush2.msra.mxu0 %v180
  %1988 = vmatprep.subr.mxu0 %v178
  %1989 = vmatpush2.msra.mxu0 %v177
  %1990 = vmatprep.subr.mxu0 %v175
  %1991 = vmatpush2.msra.mxu0 %v174
  %1992 = vmatprep.subr.mxu0 %v172
  %1993 = vmatpush2.msra.mxu0 %v171
  %1994 = vmatprep.subr.mxu0 %v169
  %1995 = vmatpush2.msra.mxu0 %v168
  %1996 = vmatprep.subr.mxu0 %v166
  %1997 = vmatpush2.msra.mxu0 %v165
  %1998 = vmatprep.subr.mxu0 %v163
  %1999 = vmatpush2.msra.mxu0 %v162
  %2000 = vmatprep.subr.mxu0 %v160
  %2001 = vmatpush2.msra.mxu0 %v159
  %2002 = vmatprep.mubr.f32.mxu0 %v1937
  %2003 = vmatmul.mubr.f32.gmra.mxu0 %v1936
  %v2004 = vpop.f32.mrf.mxu0
  %v2005 = vadd.f32 %v874, %v2004
  %v2006 = vpop.f32.mrf.mxu0
  %v2007 = vadd.f32 %v878, %v2006
  %2008 = vdwg.mxu0
  %2009 = vmatprep.subr.mxu0 0.0
  %2010 = vmatpush1.msra.mxu0 %v158
  %2011 = vmatprep.subr.mxu0 0.0
  %2012 = vmatpush1.msra.mxu0 %v155
  %2013 = vmatprep.subr.mxu0 0.0
  %2014 = vmatpush1.msra.mxu0 %v152
  %2015 = vmatprep.subr.mxu0 0.0
  %2016 = vmatpush1.msra.mxu0 %v149
  %2017 = vmatprep.subr.mxu0 0.0
  %2018 = vmatpush1.msra.mxu0 %v146
  %2019 = vmatprep.subr.mxu0 0.0
  %2020 = vmatpush1.msra.mxu0 %v143
  %2021 = vmatprep.subr.mxu0 0.0
  %2022 = vmatpush1.msra.mxu0 %v140
  %2023 = vmatprep.subr.mxu0 0.0
  %2024 = vmatpush1.msra.mxu0 %v137
  %2025 = vmatprep.subr.mxu0 0.0
  %2026 = vmatpush1.msra.mxu0 %v134
  %2027 = vmatprep.subr.mxu0 0.0
  %2028 = vmatpush1.msra.mxu0 %v131
  %2029 = vmatprep.subr.mxu0 0.0
  %2030 = vmatpush1.msra.mxu0 %v128
  %2031 = vmatprep.subr.mxu0 0.0
  %2032 = vmatpush1.msra.mxu0 %v125
  %2033 = vmatprep.subr.mxu0 0.0
  %2034 = vmatpush1.msra.mxu0 %v122
  %2035 = vmatprep.subr.mxu0 0.0
  %2036 = vmatpush1.msra.mxu0 %v119
  %2037 = vmatprep.subr.mxu0 0.0
  %2038 = vmatpush1.msra.mxu0 %v116
  %2039 = vmatprep.subr.mxu0 0.0
  %2040 = vmatpush1.msra.mxu0 %v113
  %2041 = vmatprep.subr.mxu0 0.0
  %2042 = vmatpush2.msra.mxu0 %v206
  %2043 = vmatprep.subr.mxu0 0.0
  %2044 = vmatpush2.msra.mxu0 %v203
  %2045 = vmatprep.subr.mxu0 0.0
  %2046 = vmatpush2.msra.mxu0 %v200
  %2047 = vmatprep.subr.mxu0 0.0
  %2048 = vmatpush2.msra.mxu0 %v197
  %2049 = vmatprep.subr.mxu0 0.0
  %2050 = vmatpush2.msra.mxu0 %v194
  %2051 = vmatprep.subr.mxu0 0.0
  %2052 = vmatpush2.msra.mxu0 %v191
  %2053 = vmatprep.subr.mxu0 0.0
  %2054 = vmatpush2.msra.mxu0 %v188
  %2055 = vmatprep.subr.mxu0 0.0
  %2056 = vmatpush2.msra.mxu0 %v185
  %2057 = vmatprep.subr.mxu0 0.0
  %2058 = vmatpush2.msra.mxu0 %v182
  %2059 = vmatprep.subr.mxu0 0.0
  %2060 = vmatpush2.msra.mxu0 %v179
  %2061 = vmatprep.subr.mxu0 0.0
  %2062 = vmatpush2.msra.mxu0 %v176
  %2063 = vmatprep.subr.mxu0 0.0
  %2064 = vmatpush2.msra.mxu0 %v173
  %2065 = vmatprep.subr.mxu0 0.0
  %2066 = vmatpush2.msra.mxu0 %v170
  %2067 = vmatprep.subr.mxu0 0.0
  %2068 = vmatpush2.msra.mxu0 %v167
  %2069 = vmatprep.subr.mxu0 0.0
  %2070 = vmatpush2.msra.mxu0 %v164
  %2071 = vmatprep.subr.mxu0 0.0
  %2072 = vmatpush2.msra.mxu0 %v161
  %2073 = vmatprep.mubr.f32.mxu0 %v1937
  %2074 = vmatmul.mubr.f32.gmra.mxu0 %v1936
  %v2075 = vpop.f32.mrf.mxu0
  %v2076 = vadd.f32 %v882, %v2075
  %v2077 = vpop.f32.mrf.mxu0
  %2078 = vdwg.mxu0
  %2079 = vmatprep.subr.mxu0 %v253
  %2080 = vmatpush1.msra.mxu0 %v252
  %2081 = vmatprep.subr.mxu0 %v250
  %2082 = vmatpush1.msra.mxu0 %v249
  %2083 = vmatprep.subr.mxu0 %v247
  %2084 = vmatpush1.msra.mxu0 %v246
  %2085 = vmatprep.subr.mxu0 %v244
  %2086 = vmatpush1.msra.mxu0 %v243
  %2087 = vmatprep.subr.mxu0 %v241
  %2088 = vmatpush1.msra.mxu0 %v240
  %2089 = vmatprep.subr.mxu0 %v238
  %2090 = vmatpush1.msra.mxu0 %v237
  %2091 = vmatprep.subr.mxu0 %v235
  %2092 = vmatpush1.msra.mxu0 %v234
  %2093 = vmatprep.subr.mxu0 %v232
  %2094 = vmatpush1.msra.mxu0 %v231
  %2095 = vmatprep.subr.mxu0 %v229
  %2096 = vmatpush1.msra.mxu0 %v228
  %2097 = vmatprep.subr.mxu0 %v226
  %2098 = vmatpush1.msra.mxu0 %v225
  %2099 = vmatprep.subr.mxu0 %v223
  %2100 = vmatpush1.msra.mxu0 %v222
  %2101 = vmatprep.subr.mxu0 %v220
  %2102 = vmatpush1.msra.mxu0 %v219
  %2103 = vmatprep.subr.mxu0 %v217
  %2104 = vmatpush1.msra.mxu0 %v216
  %2105 = vmatprep.subr.mxu0 %v214
  %2106 = vmatpush1.msra.mxu0 %v213
  %2107 = vmatprep.subr.mxu0 %v211
  %2108 = vmatpush1.msra.mxu0 %v210
  %2109 = vmatprep.subr.mxu0 %v208
  %2110 = vmatpush1.msra.mxu0 %v207
  %2111 = vmatprep.subr.mxu0 0.0
  %2112 = vmatpush2.msra.mxu0 0.0
  %2113 = vmatprep.subr.mxu0 0.0
  %2114 = vmatpush2.msra.mxu0 0.0
  %2115 = vmatprep.subr.mxu0 0.0
  %2116 = vmatpush2.msra.mxu0 0.0
  %2117 = vmatprep.subr.mxu0 0.0
  %2118 = vmatpush2.msra.mxu0 0.0
  %2119 = vmatprep.subr.mxu0 0.0
  %2120 = vmatpush2.msra.mxu0 0.0
  %2121 = vmatprep.subr.mxu0 0.0
  %2122 = vmatpush2.msra.mxu0 0.0
  %2123 = vmatprep.subr.mxu0 0.0
  %2124 = vmatpush2.msra.mxu0 0.0
  %2125 = vmatprep.subr.mxu0 0.0
  %2126 = vmatpush2.msra.mxu0 0.0
  %2127 = vmatprep.subr.mxu0 0.0
  %2128 = vmatpush2.msra.mxu0 0.0
  %2129 = vmatprep.subr.mxu0 0.0
  %2130 = vmatpush2.msra.mxu0 0.0
  %2131 = vmatprep.subr.mxu0 0.0
  %2132 = vmatpush2.msra.mxu0 0.0
  %2133 = vmatprep.subr.mxu0 0.0
  %2134 = vmatpush2.msra.mxu0 0.0
  %2135 = vmatprep.subr.mxu0 0.0
  %2136 = vmatpush2.msra.mxu0 0.0
  %2137 = vmatprep.subr.mxu0 0.0
  %2138 = vmatpush2.msra.mxu0 0.0
  %2139 = vmatprep.subr.mxu0 0.0
  %2140 = vmatpush2.msra.mxu0 0.0
  %2141 = vmatprep.subr.mxu0 0.0
  %2142 = vmatpush2.msra.mxu0 0.0
  %2143 = vmatprep.mubr.f32.mxu0 0.0
  %2144 = vmatmul.mubr.f32.gmra.mxu0 %v1204
  %v2145 = vpop.f32.mrf.mxu0
  %v2146 = vadd.f32 %v1031, %v2145
  %v2147 = vpop.f32.mrf.mxu0
  %v2148 = vadd.f32 %v1035, %v2147
  %2149 = vdwg.mxu0
  %2150 = vmatprep.subr.mxu0 0.0
  %2151 = vmatpush1.msra.mxu0 %v254
  %2152 = vmatprep.subr.mxu0 0.0
  %2153 = vmatpush1.msra.mxu0 %v251
  %2154 = vmatprep.subr.mxu0 0.0
  %2155 = vmatpush1.msra.mxu0 %v248
  %2156 = vmatprep.subr.mxu0 0.0
  %2157 = vmatpush1.msra.mxu0 %v245
  %2158 = vmatprep.subr.mxu0 0.0
  %2159 = vmatpush1.msra.mxu0 %v242
  %2160 = vmatprep.subr.mxu0 0.0
  %2161 = vmatpush1.msra.mxu0 %v239
  %2162 = vmatprep.subr.mxu0 0.0
  %2163 = vmatpush1.msra.mxu0 %v236
  %2164 = vmatprep.subr.mxu0 0.0
  %2165 = vmatpush1.msra.mxu0 %v233
  %2166 = vmatprep.subr.mxu0 0.0
  %2167 = vmatpush1.msra.mxu0 %v230
  %2168 = vmatprep.subr.mxu0 0.0
  %2169 = vmatpush1.msra.mxu0 %v227
  %2170 = vmatprep.subr.mxu0 0.0
  %2171 = vmatpush1.msra.mxu0 %v224
  %2172 = vmatprep.subr.mxu0 0.0
  %2173 = vmatpush1.msra.mxu0 %v221
  %2174 = vmatprep.subr.mxu0 0.0
  %2175 = vmatpush1.msra.mxu0 %v218
  %2176 = vmatprep.subr.mxu0 0.0
  %2177 = vmatpush1.msra.mxu0 %v215
  %2178 = vmatprep.subr.mxu0 0.0
  %2179 = vmatpush1.msra.mxu0 %v212
  %2180 = vmatprep.subr.mxu0 0.0
  %2181 = vmatpush1.msra.mxu0 %v209
  %2182 = vmatprep.subr.mxu0 0.0
  %2183 = vmatpush2.msra.mxu0 0.0
  %2184 = vmatprep.subr.mxu0 0.0
  %2185 = vmatpush2.msra.mxu0 0.0
  %2186 = vmatprep.subr.mxu0 0.0
  %2187 = vmatpush2.msra.mxu0 0.0
  %2188 = vmatprep.subr.mxu0 0.0
  %2189 = vmatpush2.msra.mxu0 0.0
  %2190 = vmatprep.subr.mxu0 0.0
  %2191 = vmatpush2.msra.mxu0 0.0
  %2192 = vmatprep.subr.mxu0 0.0
  %2193 = vmatpush2.msra.mxu0 0.0
  %2194 = vmatprep.subr.mxu0 0.0
  %2195 = vmatpush2.msra.mxu0 0.0
  %2196 = vmatprep.subr.mxu0 0.0
  %2197 = vmatpush2.msra.mxu0 0.0
  %2198 = vmatprep.subr.mxu0 0.0
  %2199 = vmatpush2.msra.mxu0 0.0
  %2200 = vmatprep.subr.mxu0 0.0
  %2201 = vmatpush2.msra.mxu0 0.0
  %2202 = vmatprep.subr.mxu0 0.0
  %2203 = vmatpush2.msra.mxu0 0.0
  %2204 = vmatprep.subr.mxu0 0.0
  %2205 = vmatpush2.msra.mxu0 0.0
  %2206 = vmatprep.subr.mxu0 0.0
  %2207 = vmatpush2.msra.mxu0 0.0
  %2208 = vmatprep.subr.mxu0 0.0
  %2209 = vmatpush2.msra.mxu0 0.0
  %2210 = vmatprep.subr.mxu0 0.0
  %2211 = vmatpush2.msra.mxu0 0.0
  %2212 = vmatprep.subr.mxu0 0.0
  %2213 = vmatpush2.msra.mxu0 0.0
  %2214 = vmatprep.mubr.f32.mxu0 0.0
  %2215 = vmatmul.mubr.f32.gmra.mxu0 %v1204
  %v2216 = vpop.f32.mrf.mxu0
  %v2217 = vadd.f32 %v1039, %v2216
  %v2218 = vpop.f32.mrf.mxu0
  %2219 = vdwg.mxu0
  %v2220 = vadd.f32 %v2005, %v2146
  %v2221 = vxor.u32 %v2220, 2147483648
  %v2222 = vmul.f32 %v2221, 1.442695
  %v2223 = vpow.pop %v2222
  %v2224 = vadd.f32 %v2223, 1.0
  %v2225 = vrcp.pop %v2224
  %v2226 = vmul.f32 1.0, %v2225
  %v2227 = vadd.f32 %v2007, %v2148
  %v2228 = vxor.u32 %v2227, 2147483648
  %v2229 = vmul.f32 %v2228, 1.442695
  %v2230 = vpow.pop %v2229
  %v2231 = vadd.f32 %v2230, 1.0
  %v2232 = vrcp.pop %v2231
  %v2233 = vmul.f32 1.0, %v2232
  %v2234 = vmul.f32 %v2226, %v2217
  %v2235 = vadd.f32 %v2076, %v2234
  %v2236 = vtanh.pop %v2235
  %v2237 = vsub.f32 1.0, %v2233
  %v2238 = vmul.f32 %v2237, %v2236
  %v2239 = vmul.f32 %v2233, %v1204
  %v2240 = vadd.f32 %v2238, %v2239
  %2241 = vmatprep.subr.mxu0 0.0
  %2242 = vmatpush1.msra.mxu0 %v272
  %2243 = vmatprep.subr.mxu0 0.0
  %2244 = vmatpush1.msra.mxu0 %v271
  %2245 = vmatprep.subr.mxu0 0.0
  %2246 = vmatpush1.msra.mxu0 %v270
  %2247 = vmatprep.subr.mxu0 0.0
  %2248 = vmatpush1.msra.mxu0 %v269
  %2249 = vmatprep.subr.mxu0 0.0
  %2250 = vmatpush1.msra.mxu0 %v268
  %2251 = vmatprep.subr.mxu0 0.0
  %2252 = vmatpush1.msra.mxu0 %v267
  %2253 = vmatprep.subr.mxu0 0.0
  %2254 = vmatpush1.msra.mxu0 %v266
  %2255 = vmatprep.subr.mxu0 0.0
  %2256 = vmatpush1.msra.mxu0 %v265
  %2257 = vmatprep.subr.mxu0 0.0
  %2258 = vmatpush1.msra.mxu0 %v264
  %2259 = vmatprep.subr.mxu0 0.0
  %2260 = vmatpush1.msra.mxu0 %v263
  %2261 = vmatprep.subr.mxu0 0.0
  %2262 = vmatpush1.msra.mxu0 %v262
  %2263 = vmatprep.subr.mxu0 0.0
  %2264 = vmatpush1.msra.mxu0 %v261
  %2265 = vmatprep.subr.mxu0 0.0
  %2266 = vmatpush1.msra.mxu0 %v260
  %2267 = vmatprep.subr.mxu0 0.0
  %2268 = vmatpush1.msra.mxu0 %v259
  %2269 = vmatprep.subr.mxu0 0.0
  %2270 = vmatpush1.msra.mxu0 %v258
  %2271 = vmatprep.subr.mxu0 0.0
  %2272 = vmatpush1.msra.mxu0 %v257
  %2273 = vmatprep.subr.mxu0 0.0
  %2274 = vmatpush2.msra.mxu0 0.0
  %2275 = vmatprep.subr.mxu0 0.0
  %2276 = vmatpush2.msra.mxu0 0.0
  %2277 = vmatprep.subr.mxu0 0.0
  %2278 = vmatpush2.msra.mxu0 0.0
  %2279 = vmatprep.subr.mxu0 0.0
  %2280 = vmatpush2.msra.mxu0 0.0
  %2281 = vmatprep.subr.mxu0 0.0
  %2282 = vmatpush2.msra.mxu0 0.0
  %2283 = vmatprep.subr.mxu0 0.0
  %2284 = vmatpush2.msra.mxu0 0.0
  %2285 = vmatprep.subr.mxu0 0.0
  %2286 = vmatpush2.msra.mxu0 0.0
  %2287 = vmatprep.subr.mxu0 0.0
  %2288 = vmatpush2.msra.mxu0 0.0
  %2289 = vmatprep.subr.mxu0 0.0
  %2290 = vmatpush2.msra.mxu0 0.0
  %2291 = vmatprep.subr.mxu0 0.0
  %2292 = vmatpush2.msra.mxu0 0.0
  %2293 = vmatprep.subr.mxu0 0.0
  %2294 = vmatpush2.msra.mxu0 0.0
  %2295 = vmatprep.subr.mxu0 0.0
  %2296 = vmatpush2.msra.mxu0 0.0
  %2297 = vmatprep.subr.mxu0 0.0
  %2298 = vmatpush2.msra.mxu0 0.0
  %2299 = vmatprep.subr.mxu0 0.0
  %2300 = vmatpush2.msra.mxu0 0.0
  %2301 = vmatprep.subr.mxu0 0.0
  %2302 = vmatpush2.msra.mxu0 0.0
  %2303 = vmatprep.subr.mxu0 0.0
  %2304 = vmatpush2.msra.mxu0 0.0
  %2305 = vmatprep.mubr.f32.mxu0 0.0
  %2306 = vmatmul.mubr.f32.gmra.mxu0 %v2240
  %v2307 = vpop.f32.mrf.mxu0
  %v2308 = vadd.f32 %v1209, %v2307
  %v2309 = vpop.f32.mrf.mxu0
  %2310 = vdwg.mxu0
  %s2311 = scalar_lea.vmem %s15, 8
  %2312 = vst [vmem:[%s2311] sm:$0xff] %v2308
  %2313 = vmax.xlane.f32.xlu0 %v2308
  %v2314 = vpop.xlane.xlu0 %2313
  %vm2315 = vcmp.eq.f32.partialorder %v2308, %v2314
  %v2316 = vsel %vm2315, %v513, 128
  %v2317 = vand.u32 %v2316, 65535
  %v2318 = vshra.s32 %v2316, 16
  %v2319 = vcvt.s32.f32 %v2317
  %v2320 = vcvt.s32.f32 %v2318
  %2321 = vmin.xlane.f32.xlu0 %v2320
  %v2322 = vpop.xlane.xlu0 %2321
  %vm2323 = vcmp.eq.f32.partialorder %v2320, %v2322
  %v2324 = vsel %vm2323, %v2319, inf
  %2325 = vmin.xlane.f32.xlu0 %v2324
  %v2326 = vpop.xlane.xlu0 %2325
  %v2327 = vcvt.f32.s32 %v2326
  %v2328 = vcvt.f32.s32 %v2322
  %v2329 = vshll.u32 %v2328, 16
  %v2330 = vadd.s32 %v2329, %v2327
  %vm2331 = vcmp.eq.s32.totalorder %v513, %v2330
  %v2332 = vsel %vm2331, 1, 0
  %v2333 = vcvt.s32.f32 %v2332
  %2334 = vmatprep.subr.mxu0 0.0
  %2335 = vmatpush1.msra.mxu0 %v110
  %2336 = vmatprep.subr.mxu0 0.0
  %2337 = vmatpush1.msra.mxu0 %v109
  %2338 = vmatprep.subr.mxu0 0.0
  %2339 = vmatpush1.msra.mxu0 %v108
  %2340 = vmatprep.subr.mxu0 0.0
  %2341 = vmatpush1.msra.mxu0 %v107
  %2342 = vmatprep.subr.mxu0 0.0
  %2343 = vmatpush1.msra.mxu0 %v106
  %2344 = vmatprep.subr.mxu0 0.0
  %2345 = vmatpush1.msra.mxu0 %v105
  %2346 = vmatprep.subr.mxu0 0.0
  %2347 = vmatpush1.msra.mxu0 %v104
  %2348 = vmatprep.subr.mxu0 0.0
  %2349 = vmatpush1.msra.mxu0 %v103
  %2350 = vmatprep.subr.mxu0 0.0
  %2351 = vmatpush1.msra.mxu0 %v102
  %2352 = vmatprep.subr.mxu0 0.0
  %2353 = vmatpush1.msra.mxu0 %v101
  %2354 = vmatprep.subr.mxu0 0.0
  %2355 = vmatpush1.msra.mxu0 %v100
  %2356 = vmatprep.subr.mxu0 0.0
  %2357 = vmatpush1.msra.mxu0 %v99
  %2358 = vmatprep.subr.mxu0 0.0
  %2359 = vmatpush1.msra.mxu0 %v98
  %2360 = vmatprep.subr.mxu0 0.0
  %2361 = vmatpush1.msra.mxu0 %v97
  %2362 = vmatprep.subr.mxu0 0.0
  %2363 = vmatpush1.msra.mxu0 %v96
  %2364 = vmatprep.subr.mxu0 0.0
  %2365 = vmatpush1.msra.mxu0 %v95
  %2366 = vmatprep.subr.mxu0 0.0
  %2367 = vmatpush2.msra.mxu0 0.0
  %2368 = vmatprep.subr.mxu0 0.0
  %2369 = vmatpush2.msra.mxu0 0.0
  %2370 = vmatprep.subr.mxu0 0.0
  %2371 = vmatpush2.msra.mxu0 0.0
  %2372 = vmatprep.subr.mxu0 0.0
  %2373 = vmatpush2.msra.mxu0 0.0
  %2374 = vmatprep.subr.mxu0 0.0
  %2375 = vmatpush2.msra.mxu0 0.0
  %2376 = vmatprep.subr.mxu0 0.0
  %2377 = vmatpush2.msra.mxu0 0.0
  %2378 = vmatprep.subr.mxu0 0.0
  %2379 = vmatpush2.msra.mxu0 0.0
  %2380 = vmatprep.subr.mxu0 0.0
  %2381 = vmatpush2.msra.mxu0 0.0
  %2382 = vmatprep.subr.mxu0 0.0
  %2383 = vmatpush2.msra.mxu0 0.0
  %2384 = vmatprep.subr.mxu0 0.0
  %2385 = vmatpush2.msra.mxu0 0.0
  %2386 = vmatprep.subr.mxu0 0.0
  %2387 = vmatpush2.msra.mxu0 0.0
  %2388 = vmatprep.subr.mxu0 0.0
  %2389 = vmatpush2.msra.mxu0 0.0
  %2390 = vmatprep.subr.mxu0 0.0
  %2391 = vmatpush2.msra.mxu0 0.0
  %2392 = vmatprep.subr.mxu0 0.0
  %2393 = vmatpush2.msra.mxu0 0.0
  %2394 = vmatprep.subr.mxu0 0.0
  %2395 = vmatpush2.msra.mxu0 0.0
  %2396 = vmatprep.subr.mxu0 0.0
  %2397 = vmatpush2.msra.mxu0 0.0
  %2398 = vmatprep.mubr.f32.mxu0 0.0
  %2399 = vmatmul.mubr.f32.gmra.mxu0 %v2333
  %v2400 = vpop.f32.mrf.mxu0
  %v2401 = vadd.f32 0.0, %v2400
  %v2402 = vpop.f32.mrf.mxu0
  %2403 = vdwg.mxu0
  %2404 = vst [vmem:[#allocation3 + $0x8] sm:$0xff] %v2401
  %2405 = vmatprep.subr.mxu0 0.0
  %2406 = vmatpush1.msra.mxu0 %v91
  %2407 = vmatprep.subr.mxu0 0.0
  %2408 = vmatpush1.msra.mxu0 %v90
  %2409 = vmatprep.subr.mxu0 0.0
  %2410 = vmatpush1.msra.mxu0 %v89
  %2411 = vmatprep.subr.mxu0 0.0
  %2412 = vmatpush1.msra.mxu0 %v88
  %2413 = vmatprep.subr.mxu0 0.0
  %2414 = vmatpush1.msra.mxu0 %v87
  %2415 = vmatprep.subr.mxu0 0.0
  %2416 = vmatpush1.msra.mxu0 %v86
  %2417 = vmatprep.subr.mxu0 0.0
  %2418 = vmatpush1.msra.mxu0 %v85
  %2419 = vmatprep.subr.mxu0 0.0
  %2420 = vmatpush1.msra.mxu0 %v84
  %2421 = vmatprep.subr.mxu0 0.0
  %2422 = vmatpush1.msra.mxu0 %v83
  %2423 = vmatprep.subr.mxu0 0.0
  %2424 = vmatpush1.msra.mxu0 %v82
  %2425 = vmatprep.subr.mxu0 0.0
  %2426 = vmatpush1.msra.mxu0 %v81
  %2427 = vmatprep.subr.mxu0 0.0
  %2428 = vmatpush1.msra.mxu0 %v80
  %2429 = vmatprep.subr.mxu0 0.0
  %2430 = vmatpush1.msra.mxu0 %v79
  %2431 = vmatprep.subr.mxu0 0.0
  %2432 = vmatpush1.msra.mxu0 %v78
  %2433 = vmatprep.subr.mxu0 0.0
  %2434 = vmatpush1.msra.mxu0 %v77
  %2435 = vmatprep.subr.mxu0 0.0
  %2436 = vmatpush1.msra.mxu0 %v76
  %2437 = vmatprep.subr.mxu0 0.0
  %2438 = vmatpush2.msra.mxu0 0.0
  %2439 = vmatprep.subr.mxu0 0.0
  %2440 = vmatpush2.msra.mxu0 0.0
  %2441 = vmatprep.subr.mxu0 0.0
  %2442 = vmatpush2.msra.mxu0 0.0
  %2443 = vmatprep.subr.mxu0 0.0
  %2444 = vmatpush2.msra.mxu0 0.0
  %2445 = vmatprep.subr.mxu0 0.0
  %2446 = vmatpush2.msra.mxu0 0.0
  %2447 = vmatprep.subr.mxu0 0.0
  %2448 = vmatpush2.msra.mxu0 0.0
  %2449 = vmatprep.subr.mxu0 0.0
  %2450 = vmatpush2.msra.mxu0 0.0
  %2451 = vmatprep.subr.mxu0 0.0
  %2452 = vmatpush2.msra.mxu0 0.0
  %2453 = vmatprep.subr.mxu0 0.0
  %2454 = vmatpush2.msra.mxu0 0.0
  %2455 = vmatprep.subr.mxu0 0.0
  %2456 = vmatpush2.msra.mxu0 0.0
  %2457 = vmatprep.subr.mxu0 0.0
  %2458 = vmatpush2.msra.mxu0 0.0
  %2459 = vmatprep.subr.mxu0 0.0
  %2460 = vmatpush2.msra.mxu0 0.0
  %2461 = vmatprep.subr.mxu0 0.0
  %2462 = vmatpush2.msra.mxu0 0.0
  %2463 = vmatprep.subr.mxu0 0.0
  %2464 = vmatpush2.msra.mxu0 0.0
  %2465 = vmatprep.subr.mxu0 0.0
  %2466 = vmatpush2.msra.mxu0 0.0
  %2467 = vmatprep.subr.mxu0 0.0
  %2468 = vmatpush2.msra.mxu0 0.0
  %2469 = vmatprep.mubr.f32.mxu0 0.0
  %2470 = vmatmul.mubr.f32.gmra.mxu0 %v2240
  %v2471 = vpop.f32.mrf.mxu0
  %v2472 = vadd.f32 %v279, %v2471
  %v2473 = vpop.f32.mrf.mxu0
  %2474 = vdwg.mxu0
  %v2476 = vcombine.high %v2472, %v2472
  %v2478 = vunpack.c.l.s4 1966171168
  %v2479 = vunpack.c.0.s8 %v2478
  %v2480 = vlaneseq
  %v2481 = vshrl.u32 %v2480, 7
  %v2482 = vsub.s32 %v2479, %v2481
  %v2483 = vrot.slane %v2472, %v2482
  %v2485 = vunpack.c.l.s4 1966171168
  %v2486 = vunpack.c.0.s8 %v2485
  %v2487 = vlaneseq
  %v2488 = vshrl.u32 %v2487, 7
  %v2489 = vsub.s32 %v2486, %v2488
  %v2490 = vrot.slane %v2476, %v2489
  %v2491 = vcombine.high %v2483, %v2483
  %v2492 = vcombine.high %v2490, %v2490
  %v2494 = vunpack.c.l.s4 1966171168
  %v2495 = vunpack.c.0.s8 %v2494
  %v2496 = vlaneseq
  %v2497 = vshrl.u32 %v2496, 7
  %v2498 = vsub.s32 %v2495, %v2497
  %v2499 = vrot.slane %v2483, %v2498
  %v2501 = vunpack.c.l.s4 1966171168
  %v2502 = vunpack.c.0.s8 %v2501
  %v2503 = vlaneseq
  %v2504 = vshrl.u32 %v2503, 7
  %v2505 = vsub.s32 %v2502, %v2504
  %v2506 = vrot.slane %v2490, %v2505
  %v2508 = vunpack.c.l.s4 1966171168
  %v2509 = vunpack.c.0.s8 %v2508
  %v2510 = vlaneseq
  %v2511 = vshrl.u32 %v2510, 7
  %v2512 = vsub.s32 %v2509, %v2511
  %v2513 = vrot.slane %v2491, %v2512
  %v2515 = vunpack.c.l.s4 1966171168
  %v2516 = vunpack.c.0.s8 %v2515
  %v2517 = vlaneseq
  %v2518 = vshrl.u32 %v2517, 7
  %v2519 = vsub.s32 %v2516, %v2518
  %v2520 = vrot.slane %v2492, %v2519
  %v2521 = vcombine.high %v2499, %v2499
  %v2522 = vcombine.high %v2506, %v2506
  %v2523 = vcombine.high %v2513, %v2513
  %v2524 = vcombine.high %v2520, %v2520
  %v2525 = vlaneseq
  %v2526 = vshrl.u32 %v2525, 7
  %v2527 = vsub.s32 0, %v2526
  %v2528 = vrot.slane %v2499, %v2527
  %v2529 = vlaneseq
  %v2530 = vshrl.u32 %v2529, 7
  %v2531 = vsub.s32 0, %v2530
  %v2532 = vrot.slane %v2513, %v2531
  %v2533 = vlaneseq
  %v2534 = vshrl.u32 %v2533, 7
  %v2535 = vsub.s32 0, %v2534
  %v2536 = vrot.slane %v2521, %v2535
  %v2537 = vlaneseq
  %v2538 = vshrl.u32 %v2537, 7
  %v2539 = vsub.s32 0, %v2538
  %v2540 = vrot.slane %v2523, %v2539
  %v2541 = vlaneseq
  %v2542 = vshrl.u32 %v2541, 7
  %v2543 = vsub.s32 0, %v2542
  %v2544 = vrot.slane %v2506, %v2543
  %v2545 = vlaneseq
  %v2546 = vshrl.u32 %v2545, 7
  %v2547 = vsub.s32 0, %v2546
  %v2548 = vrot.slane %v2520, %v2547
  %v2549 = vlaneseq
  %v2550 = vshrl.u32 %v2549, 7
  %v2551 = vsub.s32 0, %v2550
  %v2552 = vrot.slane %v2522, %v2551
  %v2553 = vlaneseq
  %v2554 = vshrl.u32 %v2553, 7
  %v2555 = vsub.s32 0, %v2554
  %v2556 = vrot.slane %v2524, %v2555
  %v2565 = vadd.f32 %v68, %v2528
  %v2566 = vadd.f32 %v69, %v2532
  %v2567 = vadd.f32 %v70, %v2536
  %v2568 = vadd.f32 %v71, %v2540
  %v2569 = vadd.f32 %v72, %v2544
  %v2570 = vadd.f32 %v73, %v2548
  %v2571 = vadd.f32 %v74, %v2552
  %v2572 = vadd.f32 %v75, %v2556
  %v2573 = vtanh.pop %v2565
  %v2574 = vtanh.pop %v2566
  %v2575 = vtanh.pop %v2567
  %v2576 = vtanh.pop %v2568
  %v2577 = vtanh.pop %v2569
  %v2578 = vtanh.pop %v2570
  %v2579 = vtanh.pop %v2571
  %v2580 = vtanh.pop %v2572
  %v2581 = vmul.f32 %v2573, %v461
  %v2582 = vmul.f32 %v2574, %v461
  %v2583 = vmul.f32 %v2575, %v461
  %v2584 = vmul.f32 %v2576, %v461
  %v2585 = vmul.f32 %v2577, %v461
  %v2586 = vmul.f32 %v2578, %v461
  %v2587 = vmul.f32 %v2579, %v461
  %v2588 = vmul.f32 %v2580, %v461
  %2589 = vadd.xlane.f32.xlu0 %v2581
  %v2590 = vpop.xlane.xlu0 %2589
  %2591 = vadd.xlane.f32.xlu0 %v2582
  %v2592 = vpop.xlane.xlu0 %2591
  %2593 = vadd.xlane.f32.xlu0 %v2583
  %v2594 = vpop.xlane.xlu0 %2593
  %2595 = vadd.xlane.f32.xlu0 %v2584
  %v2596 = vpop.xlane.xlu0 %2595
  %2597 = vadd.xlane.f32.xlu0 %v2585
  %v2598 = vpop.xlane.xlu0 %2597
  %2599 = vadd.xlane.f32.xlu0 %v2586
  %v2600 = vpop.xlane.xlu0 %2599
  %2601 = vadd.xlane.f32.xlu0 %v2587
  %v2602 = vpop.xlane.xlu0 %2601
  %2603 = vadd.xlane.f32.xlu0 %v2588
  %v2604 = vpop.xlane.xlu0 %2603
  %v2605 = vadd.f32 %v2590, %v494
  %v2606 = vadd.f32 %v2592, %v494
  %v2607 = vadd.f32 %v2594, %v494
  %v2608 = vadd.f32 %v2596, %v494
  %v2609 = vadd.f32 %v2598, %v494
  %v2610 = vadd.f32 %v2600, %v494
  %v2611 = vadd.f32 %v2602, %v494
  %v2612 = vadd.f32 %v2604, %v494
  %v2621 = vlaneseq
  %v2622 = vshrl.u32 %v2621, 7
  %v2623 = vsub.s32 %v513, %v2622
  %v2624 = vrot.slane %v2605, %v2623
  %v2625 = vlaneseq
  %v2626 = vshrl.u32 %v2625, 7
  %v2627 = vsub.s32 %v513, %v2626
  %v2628 = vrot.slane %v2606, %v2627
  %v2629 = vlaneseq
  %v2630 = vshrl.u32 %v2629, 7
  %v2631 = vsub.s32 %v513, %v2630
  %v2632 = vrot.slane %v2607, %v2631
  %v2633 = vlaneseq
  %v2634 = vshrl.u32 %v2633, 7
  %v2635 = vsub.s32 %v513, %v2634
  %v2636 = vrot.slane %v2608, %v2635
  %v2637 = vlaneseq
  %v2638 = vshrl.u32 %v2637, 7
  %v2639 = vsub.s32 %v513, %v2638
  %v2640 = vrot.slane %v2609, %v2639
  %v2641 = vlaneseq
  %v2642 = vshrl.u32 %v2641, 7
  %v2643 = vsub.s32 %v513, %v2642
  %v2644 = vrot.slane %v2610, %v2643
  %v2645 = vlaneseq
  %v2646 = vshrl.u32 %v2645, 7
  %v2647 = vsub.s32 %v513, %v2646
  %v2648 = vrot.slane %v2611, %v2647
  %v2649 = vlaneseq
  %v2650 = vshrl.u32 %v2649, 7
  %v2651 = vsub.s32 %v513, %v2650
  %v2652 = vrot.slane %v2612, %v2651
  %v2653 = vsel %vm546, %v2628, %v2624
  %v2654 = vsel %vm548, %v2632, %v2653
  %v2655 = vsel %vm550, %v2636, %v2654
  %v2656 = vsel %vm552, %v2640, %v2655
  %v2657 = vsel %vm554, %v2644, %v2656
  %v2658 = vsel %vm556, %v2648, %v2657
  %v2659 = vsel %vm558, %v2652, %v2658
  %v2661 = vsel %vm561, %v2659, -inf
  %2662 = vmax.xlane.f32.xlu0 %v2661
  %v2663 = vpop.xlane.xlu0 %2662
  %v2665 = vlaneseq
  %v2666 = vshrl.u32 %v2665, 7
  %v2667 = vsub.s32 0, %v2666
  %v2668 = vrot.slane %v2663, %v2667
  %v2669 = vlaneseq
  %v2670 = vshrl.u32 %v2669, 7
  %v2671 = vsub.s32 1, %v2670
  %v2672 = vrot.slane %v2663, %v2671
  %v2673 = vlaneseq
  %v2674 = vshrl.u32 %v2673, 7
  %v2675 = vsub.s32 2, %v2674
  %v2676 = vrot.slane %v2663, %v2675
  %v2677 = vlaneseq
  %v2678 = vshrl.u32 %v2677, 7
  %v2679 = vsub.s32 3, %v2678
  %v2680 = vrot.slane %v2663, %v2679
  %v2681 = vlaneseq
  %v2682 = vshrl.u32 %v2681, 7
  %v2683 = vsub.s32 4, %v2682
  %v2684 = vrot.slane %v2663, %v2683
  %v2685 = vlaneseq
  %v2686 = vshrl.u32 %v2685, 7
  %v2687 = vsub.s32 5, %v2686
  %v2688 = vrot.slane %v2663, %v2687
  %v2689 = vlaneseq
  %v2690 = vshrl.u32 %v2689, 7
  %v2691 = vsub.s32 6, %v2690
  %v2692 = vrot.slane %v2663, %v2691
  %v2693 = vlaneseq
  %v2694 = vshrl.u32 %v2693, 7
  %v2695 = vsub.s32 7, %v2694
  %v2696 = vrot.slane %v2663, %v2695
  %v2705 = vsub.f32 %v2605, %v2668
  %v2706 = vsub.f32 %v2606, %v2672
  %v2707 = vsub.f32 %v2607, %v2676
  %v2708 = vsub.f32 %v2608, %v2680
  %v2709 = vsub.f32 %v2609, %v2684
  %v2710 = vsub.f32 %v2610, %v2688
  %v2711 = vsub.f32 %v2611, %v2692
  %v2712 = vsub.f32 %v2612, %v2696
  %v2713 = vmul.f32 %v2705, 1.442695
  %v2714 = vpow.pop %v2713
  %v2715 = vmul.f32 %v2706, 1.442695
  %v2716 = vpow.pop %v2715
  %v2717 = vmul.f32 %v2707, 1.442695
  %v2718 = vpow.pop %v2717
  %v2719 = vmul.f32 %v2708, 1.442695
  %v2720 = vpow.pop %v2719
  %v2721 = vmul.f32 %v2709, 1.442695
  %v2722 = vpow.pop %v2721
  %v2723 = vmul.f32 %v2710, 1.442695
  %v2724 = vpow.pop %v2723
  %v2725 = vmul.f32 %v2711, 1.442695
  %v2726 = vpow.pop %v2725
  %v2727 = vmul.f32 %v2712, 1.442695
  %v2728 = vpow.pop %v2727
  %2737 = vset.pattern.permute.xlu0 0
  %2738 = vperm.xlu0 %2737, %v2714
  %v2739 = vpop.permute.xlu0 %2738
  %2740 = vset.pattern.permute.xlu0 0
  %2741 = vperm.xlu0 %2740, %v2716
  %v2742 = vpop.permute.xlu0 %2741
  %2743 = vset.pattern.permute.xlu0 0
  %2744 = vperm.xlu0 %2743, %v2718
  %v2745 = vpop.permute.xlu0 %2744
  %2746 = vset.pattern.permute.xlu0 0
  %2747 = vperm.xlu0 %2746, %v2720
  %v2748 = vpop.permute.xlu0 %2747
  %2749 = vset.pattern.permute.xlu0 0
  %2750 = vperm.xlu0 %2749, %v2722
  %v2751 = vpop.permute.xlu0 %2750
  %2752 = vset.pattern.permute.xlu0 0
  %2753 = vperm.xlu0 %2752, %v2724
  %v2754 = vpop.permute.xlu0 %2753
  %2755 = vset.pattern.permute.xlu0 0
  %2756 = vperm.xlu0 %2755, %v2726
  %v2757 = vpop.permute.xlu0 %2756
  %2758 = vset.pattern.permute.xlu0 0
  %2759 = vperm.xlu0 %2758, %v2728
  %v2760 = vpop.permute.xlu0 %2759
  %v2761 = vlaneseq
  %v2762 = vshrl.u32 %v2761, 7
  %v2763 = vsub.s32 %v513, %v2762
  %v2764 = vrot.slane %v2739, %v2763
  %v2765 = vlaneseq
  %v2766 = vshrl.u32 %v2765, 7
  %v2767 = vsub.s32 %v513, %v2766
  %v2768 = vrot.slane %v2742, %v2767
  %v2769 = vlaneseq
  %v2770 = vshrl.u32 %v2769, 7
  %v2771 = vsub.s32 %v513, %v2770
  %v2772 = vrot.slane %v2745, %v2771
  %v2773 = vlaneseq
  %v2774 = vshrl.u32 %v2773, 7
  %v2775 = vsub.s32 %v513, %v2774
  %v2776 = vrot.slane %v2748, %v2775
  %v2777 = vlaneseq
  %v2778 = vshrl.u32 %v2777, 7
  %v2779 = vsub.s32 %v513, %v2778
  %v2780 = vrot.slane %v2751, %v2779
  %v2781 = vlaneseq
  %v2782 = vshrl.u32 %v2781, 7
  %v2783 = vsub.s32 %v513, %v2782
  %v2784 = vrot.slane %v2754, %v2783
  %v2785 = vlaneseq
  %v2786 = vshrl.u32 %v2785, 7
  %v2787 = vsub.s32 %v513, %v2786
  %v2788 = vrot.slane %v2757, %v2787
  %v2789 = vlaneseq
  %v2790 = vshrl.u32 %v2789, 7
  %v2791 = vsub.s32 %v513, %v2790
  %v2792 = vrot.slane %v2760, %v2791
  %v2793 = vsel %vm546, %v2768, %v2764
  %v2794 = vsel %vm548, %v2772, %v2793
  %v2795 = vsel %vm550, %v2776, %v2794
  %v2796 = vsel %vm552, %v2780, %v2795
  %v2797 = vsel %vm554, %v2784, %v2796
  %v2798 = vsel %vm556, %v2788, %v2797
  %v2799 = vsel %vm558, %v2792, %v2798
  %v2801 = vsel %vm561, %v2799, 0.0
  %2802 = vadd.xlane.f32.xlu0 %v2801
  %v2803 = vpop.xlane.xlu0 %2802
  %v2804 = vrcp.pop %v2803
  %v2806 = vlaneseq
  %v2807 = vshrl.u32 %v2806, 7
  %v2808 = vsub.s32 0, %v2807
  %v2809 = vrot.slane %v2804, %v2808
  %v2810 = vlaneseq
  %v2811 = vshrl.u32 %v2810, 7
  %v2812 = vsub.s32 1, %v2811
  %v2813 = vrot.slane %v2804, %v2812
  %v2814 = vlaneseq
  %v2815 = vshrl.u32 %v2814, 7
  %v2816 = vsub.s32 2, %v2815
  %v2817 = vrot.slane %v2804, %v2816
  %v2818 = vlaneseq
  %v2819 = vshrl.u32 %v2818, 7
  %v2820 = vsub.s32 3, %v2819
  %v2821 = vrot.slane %v2804, %v2820
  %v2822 = vlaneseq
  %v2823 = vshrl.u32 %v2822, 7
  %v2824 = vsub.s32 4, %v2823
  %v2825 = vrot.slane %v2804, %v2824
  %v2826 = vlaneseq
  %v2827 = vshrl.u32 %v2826, 7
  %v2828 = vsub.s32 5, %v2827
  %v2829 = vrot.slane %v2804, %v2828
  %v2830 = vlaneseq
  %v2831 = vshrl.u32 %v2830, 7
  %v2832 = vsub.s32 6, %v2831
  %v2833 = vrot.slane %v2804, %v2832
  %v2834 = vlaneseq
  %v2835 = vshrl.u32 %v2834, 7
  %v2836 = vsub.s32 7, %v2835
  %v2837 = vrot.slane %v2804, %v2836
  %v2846 = vmul.f32 %v2714, %v2809
  %v2847 = vmul.f32 %v2716, %v2813
  %v2848 = vmul.f32 %v2718, %v2817
  %v2849 = vmul.f32 %v2720, %v2821
  %v2850 = vmul.f32 %v2722, %v2825
  %v2851 = vmul.f32 %v2724, %v2829
  %v2852 = vmul.f32 %v2726, %v2833
  %v2853 = vmul.f32 %v2728, %v2837
  %2855 = vset.pattern.permute.xlu0 0
  %2856 = vperm.xlu0 %2855, %v2846
  %v2857 = vpop.permute.xlu0 %2856
  %2860 = vset.pattern.permute.xlu0 0
  %2861 = vperm.xlu0 %2860, %v2847
  %v2862 = vpop.permute.xlu0 %2861
  %2865 = vset.pattern.permute.xlu0 0
  %2866 = vperm.xlu0 %2865, %v2848
  %v2867 = vpop.permute.xlu0 %2866
  %2870 = vset.pattern.permute.xlu0 0
  %2871 = vperm.xlu0 %2870, %v2849
  %v2872 = vpop.permute.xlu0 %2871
  %2875 = vset.pattern.permute.xlu0 0
  %2876 = vperm.xlu0 %2875, %v2850
  %v2877 = vpop.permute.xlu0 %2876
  %2880 = vset.pattern.permute.xlu0 0
  %2881 = vperm.xlu0 %2880, %v2851
  %v2882 = vpop.permute.xlu0 %2881
  %2885 = vset.pattern.permute.xlu0 0
  %2886 = vperm.xlu0 %2885, %v2852
  %v2887 = vpop.permute.xlu0 %2886
  %2890 = vset.pattern.permute.xlu0 0
  %2891 = vperm.xlu0 %2890, %v2853
  %v2892 = vpop.permute.xlu0 %2891
  %v2894 = vmul.f32 %v2857, %v60
  %v2895 = vmul.f32 %v2862, %v61
  %v2896 = vmul.f32 %v2867, %v62
  %v2897 = vmul.f32 %v2872, %v63
  %v2898 = vmul.f32 %v2877, %v64
  %v2899 = vmul.f32 %v2882, %v65
  %v2900 = vmul.f32 %v2887, %v66
  %v2901 = vmul.f32 %v2892, %v67
  %v2902 = vrot.slane %v2894, 4
  %v2903 = vadd.f32 %v2894, %v2902
  %v2904 = vrot.slane %v2903, 2
  %v2905 = vadd.f32 %v2903, %v2904
  %v2906 = vrot.slane %v2905, 1
  %v2907 = vadd.f32 %v2905, %v2906
  %v2908 = vrot.slane %v2895, 4
  %v2909 = vadd.f32 %v2895, %v2908
  %v2910 = vrot.slane %v2909, 2
  %v2911 = vadd.f32 %v2909, %v2910
  %v2912 = vrot.slane %v2911, 1
  %v2913 = vadd.f32 %v2911, %v2912
  %v2914 = vrot.slane %v2896, 4
  %v2915 = vadd.f32 %v2896, %v2914
  %v2916 = vrot.slane %v2915, 2
  %v2917 = vadd.f32 %v2915, %v2916
  %v2918 = vrot.slane %v2917, 1
  %v2919 = vadd.f32 %v2917, %v2918
  %v2920 = vrot.slane %v2897, 4
  %v2921 = vadd.f32 %v2897, %v2920
  %v2922 = vrot.slane %v2921, 2
  %v2923 = vadd.f32 %v2921, %v2922
  %v2924 = vrot.slane %v2923, 1
  %v2925 = vadd.f32 %v2923, %v2924
  %v2926 = vrot.slane %v2898, 4
  %v2927 = vadd.f32 %v2898, %v2926
  %v2928 = vrot.slane %v2927, 2
  %v2929 = vadd.f32 %v2927, %v2928
  %v2930 = vrot.slane %v2929, 1
  %v2931 = vadd.f32 %v2929, %v2930
  %v2932 = vrot.slane %v2899, 4
  %v2933 = vadd.f32 %v2899, %v2932
  %v2934 = vrot.slane %v2933, 2
  %v2935 = vadd.f32 %v2933, %v2934
  %v2936 = vrot.slane %v2935, 1
  %v2937 = vadd.f32 %v2935, %v2936
  %v2938 = vrot.slane %v2900, 4
  %v2939 = vadd.f32 %v2900, %v2938
  %v2940 = vrot.slane %v2939, 2
  %v2941 = vadd.f32 %v2939, %v2940
  %v2942 = vrot.slane %v2941, 1
  %v2943 = vadd.f32 %v2941, %v2942
  %v2944 = vrot.slane %v2901, 4
  %v2945 = vadd.f32 %v2901, %v2944
  %v2946 = vrot.slane %v2945, 2
  %v2947 = vadd.f32 %v2945, %v2946
  %v2948 = vrot.slane %v2947, 1
  %v2949 = vadd.f32 %v2947, %v2948
  %v2958 = vsel %vm546, %v2913, %v2907
  %v2959 = vsel %vm548, %v2919, %v2958
  %v2960 = vsel %vm550, %v2925, %v2959
  %v2961 = vsel %vm552, %v2931, %v2960
  %v2962 = vsel %vm554, %v2937, %v2961
  %v2963 = vsel %vm556, %v2943, %v2962
  %v2964 = vsel %vm558, %v2949, %v2963
  %2966 = vst [vmem:[#allocation3] sm:$0xff] %v2964
  %v2967 = vld [vmem:[#allocation3] sm:$0xff]
  %v2968 = vld [vmem:[#allocation3 + $0x8] sm:$0xff]
  %2969 = vmatprep.subr.mxu0 %v157
  %2970 = vmatpush1.msra.mxu0 %v156
  %2971 = vmatprep.subr.mxu0 %v154
  %2972 = vmatpush1.msra.mxu0 %v153
  %2973 = vmatprep.subr.mxu0 %v151
  %2974 = vmatpush1.msra.mxu0 %v150
  %2975 = vmatprep.subr.mxu0 %v148
  %2976 = vmatpush1.msra.mxu0 %v147
  %2977 = vmatprep.subr.mxu0 %v145
  %2978 = vmatpush1.msra.mxu0 %v144
  %2979 = vmatprep.subr.mxu0 %v142
  %2980 = vmatpush1.msra.mxu0 %v141
  %2981 = vmatprep.subr.mxu0 %v139
  %2982 = vmatpush1.msra.mxu0 %v138
  %2983 = vmatprep.subr.mxu0 %v136
  %2984 = vmatpush1.msra.mxu0 %v135
  %2985 = vmatprep.subr.mxu0 %v133
  %2986 = vmatpush1.msra.mxu0 %v132
  %2987 = vmatprep.subr.mxu0 %v130
  %2988 = vmatpush1.msra.mxu0 %v129
  %2989 = vmatprep.subr.mxu0 %v127
  %2990 = vmatpush1.msra.mxu0 %v126
  %2991 = vmatprep.subr.mxu0 %v124
  %2992 = vmatpush1.msra.mxu0 %v123
  %2993 = vmatprep.subr.mxu0 %v121
  %2994 = vmatpush1.msra.mxu0 %v120
  %2995 = vmatprep.subr.mxu0 %v118
  %2996 = vmatpush1.msra.mxu0 %v117
  %2997 = vmatprep.subr.mxu0 %v115
  %2998 = vmatpush1.msra.mxu0 %v114
  %2999 = vmatprep.subr.mxu0 %v112
  %3000 = vmatpush1.msra.mxu0 %v111
  %3001 = vmatprep.subr.mxu0 %v205
  %3002 = vmatpush2.msra.mxu0 %v204
  %3003 = vmatprep.subr.mxu0 %v202
  %3004 = vmatpush2.msra.mxu0 %v201
  %3005 = vmatprep.subr.mxu0 %v199
  %3006 = vmatpush2.msra.mxu0 %v198
  %3007 = vmatprep.subr.mxu0 %v196
  %3008 = vmatpush2.msra.mxu0 %v195
  %3009 = vmatprep.subr.mxu0 %v193
  %3010 = vmatpush2.msra.mxu0 %v192
  %3011 = vmatprep.subr.mxu0 %v190
  %3012 = vmatpush2.msra.mxu0 %v189
  %3013 = vmatprep.subr.mxu0 %v187
  %3014 = vmatpush2.msra.mxu0 %v186
  %3015 = vmatprep.subr.mxu0 %v184
  %3016 = vmatpush2.msra.mxu0 %v183
  %3017 = vmatprep.subr.mxu0 %v181
  %3018 = vmatpush2.msra.mxu0 %v180
  %3019 = vmatprep.subr.mxu0 %v178
  %3020 = vmatpush2.msra.mxu0 %v177
  %3021 = vmatprep.subr.mxu0 %v175
  %3022 = vmatpush2.msra.mxu0 %v174
  %3023 = vmatprep.subr.mxu0 %v172
  %3024 = vmatpush2.msra.mxu0 %v171
  %3025 = vmatprep.subr.mxu0 %v169
  %3026 = vmatpush2.msra.mxu0 %v168
  %3027 = vmatprep.subr.mxu0 %v166
  %3028 = vmatpush2.msra.mxu0 %v165
  %3029 = vmatprep.subr.mxu0 %v163
  %3030 = vmatpush2.msra.mxu0 %v162
  %3031 = vmatprep.subr.mxu0 %v160
  %3032 = vmatpush2.msra.mxu0 %v159
  %3033 = vmatprep.mubr.f32.mxu0 %v2968
  %3034 = vmatmul.mubr.f32.gmra.mxu0 %v2967
  %v3035 = vpop.f32.mrf.mxu0
  %v3036 = vadd.f32 %v874, %v3035
  %v3037 = vpop.f32.mrf.mxu0
  %v3038 = vadd.f32 %v878, %v3037
  %3039 = vdwg.mxu0
  %3040 = vmatprep.subr.mxu0 0.0
  %3041 = vmatpush1.msra.mxu0 %v158
  %3042 = vmatprep.subr.mxu0 0.0
  %3043 = vmatpush1.msra.mxu0 %v155
  %3044 = vmatprep.subr.mxu0 0.0
  %3045 = vmatpush1.msra.mxu0 %v152
  %3046 = vmatprep.subr.mxu0 0.0
  %3047 = vmatpush1.msra.mxu0 %v149
  %3048 = vmatprep.subr.mxu0 0.0
  %3049 = vmatpush1.msra.mxu0 %v146
  %3050 = vmatprep.subr.mxu0 0.0
  %3051 = vmatpush1.msra.mxu0 %v143
  %3052 = vmatprep.subr.mxu0 0.0
  %3053 = vmatpush1.msra.mxu0 %v140
  %3054 = vmatprep.subr.mxu0 0.0
  %3055 = vmatpush1.msra.mxu0 %v137
  %3056 = vmatprep.subr.mxu0 0.0
  %3057 = vmatpush1.msra.mxu0 %v134
  %3058 = vmatprep.subr.mxu0 0.0
  %3059 = vmatpush1.msra.mxu0 %v131
  %3060 = vmatprep.subr.mxu0 0.0
  %3061 = vmatpush1.msra.mxu0 %v128
  %3062 = vmatprep.subr.mxu0 0.0
  %3063 = vmatpush1.msra.mxu0 %v125
  %3064 = vmatprep.subr.mxu0 0.0
  %3065 = vmatpush1.msra.mxu0 %v122
  %3066 = vmatprep.subr.mxu0 0.0
  %3067 = vmatpush1.msra.mxu0 %v119
  %3068 = vmatprep.subr.mxu0 0.0
  %3069 = vmatpush1.msra.mxu0 %v116
  %3070 = vmatprep.subr.mxu0 0.0
  %3071 = vmatpush1.msra.mxu0 %v113
  %3072 = vmatprep.subr.mxu0 0.0
  %3073 = vmatpush2.msra.mxu0 %v206
  %3074 = vmatprep.subr.mxu0 0.0
  %3075 = vmatpush2.msra.mxu0 %v203
  %3076 = vmatprep.subr.mxu0 0.0
  %3077 = vmatpush2.msra.mxu0 %v200
  %3078 = vmatprep.subr.mxu0 0.0
  %3079 = vmatpush2.msra.mxu0 %v197
  %3080 = vmatprep.subr.mxu0 0.0
  %3081 = vmatpush2.msra.mxu0 %v194
  %3082 = vmatprep.subr.mxu0 0.0
  %3083 = vmatpush2.msra.mxu0 %v191
  %3084 = vmatprep.subr.mxu0 0.0
  %3085 = vmatpush2.msra.mxu0 %v188
  %3086 = vmatprep.subr.mxu0 0.0
  %3087 = vmatpush2.msra.mxu0 %v185
  %3088 = vmatprep.subr.mxu0 0.0
  %3089 = vmatpush2.msra.mxu0 %v182
  %3090 = vmatprep.subr.mxu0 0.0
  %3091 = vmatpush2.msra.mxu0 %v179
  %3092 = vmatprep.subr.mxu0 0.0
  %3093 = vmatpush2.msra.mxu0 %v176
  %3094 = vmatprep.subr.mxu0 0.0
  %3095 = vmatpush2.msra.mxu0 %v173
  %3096 = vmatprep.subr.mxu0 0.0
  %3097 = vmatpush2.msra.mxu0 %v170
  %3098 = vmatprep.subr.mxu0 0.0
  %3099 = vmatpush2.msra.mxu0 %v167
  %3100 = vmatprep.subr.mxu0 0.0
  %3101 = vmatpush2.msra.mxu0 %v164
  %3102 = vmatprep.subr.mxu0 0.0
  %3103 = vmatpush2.msra.mxu0 %v161
  %3104 = vmatprep.mubr.f32.mxu0 %v2968
  %3105 = vmatmul.mubr.f32.gmra.mxu0 %v2967
  %v3106 = vpop.f32.mrf.mxu0
  %v3107 = vadd.f32 %v882, %v3106
  %v3108 = vpop.f32.mrf.mxu0
  %3109 = vdwg.mxu0
  %3110 = vmatprep.subr.mxu0 %v253
  %3111 = vmatpush1.msra.mxu0 %v252
  %3112 = vmatprep.subr.mxu0 %v250
  %3113 = vmatpush1.msra.mxu0 %v249
  %3114 = vmatprep.subr.mxu0 %v247
  %3115 = vmatpush1.msra.mxu0 %v246
  %3116 = vmatprep.subr.mxu0 %v244
  %3117 = vmatpush1.msra.mxu0 %v243
  %3118 = vmatprep.subr.mxu0 %v241
  %3119 = vmatpush1.msra.mxu0 %v240
  %3120 = vmatprep.subr.mxu0 %v238
  %3121 = vmatpush1.msra.mxu0 %v237
  %3122 = vmatprep.subr.mxu0 %v235
  %3123 = vmatpush1.msra.mxu0 %v234
  %3124 = vmatprep.subr.mxu0 %v232
  %3125 = vmatpush1.msra.mxu0 %v231
  %3126 = vmatprep.subr.mxu0 %v229
  %3127 = vmatpush1.msra.mxu0 %v228
  %3128 = vmatprep.subr.mxu0 %v226
  %3129 = vmatpush1.msra.mxu0 %v225
  %3130 = vmatprep.subr.mxu0 %v223
  %3131 = vmatpush1.msra.mxu0 %v222
  %3132 = vmatprep.subr.mxu0 %v220
  %3133 = vmatpush1.msra.mxu0 %v219
  %3134 = vmatprep.subr.mxu0 %v217
  %3135 = vmatpush1.msra.mxu0 %v216
  %3136 = vmatprep.subr.mxu0 %v214
  %3137 = vmatpush1.msra.mxu0 %v213
  %3138 = vmatprep.subr.mxu0 %v211
  %3139 = vmatpush1.msra.mxu0 %v210
  %3140 = vmatprep.subr.mxu0 %v208
  %3141 = vmatpush1.msra.mxu0 %v207
  %3142 = vmatprep.subr.mxu0 0.0
  %3143 = vmatpush2.msra.mxu0 0.0
  %3144 = vmatprep.subr.mxu0 0.0
  %3145 = vmatpush2.msra.mxu0 0.0
  %3146 = vmatprep.subr.mxu0 0.0
  %3147 = vmatpush2.msra.mxu0 0.0
  %3148 = vmatprep.subr.mxu0 0.0
  %3149 = vmatpush2.msra.mxu0 0.0
  %3150 = vmatprep.subr.mxu0 0.0
  %3151 = vmatpush2.msra.mxu0 0.0
  %3152 = vmatprep.subr.mxu0 0.0
  %3153 = vmatpush2.msra.mxu0 0.0
  %3154 = vmatprep.subr.mxu0 0.0
  %3155 = vmatpush2.msra.mxu0 0.0
  %3156 = vmatprep.subr.mxu0 0.0
  %3157 = vmatpush2.msra.mxu0 0.0
  %3158 = vmatprep.subr.mxu0 0.0
  %3159 = vmatpush2.msra.mxu0 0.0
  %3160 = vmatprep.subr.mxu0 0.0
  %3161 = vmatpush2.msra.mxu0 0.0
  %3162 = vmatprep.subr.mxu0 0.0
  %3163 = vmatpush2.msra.mxu0 0.0
  %3164 = vmatprep.subr.mxu0 0.0
  %3165 = vmatpush2.msra.mxu0 0.0
  %3166 = vmatprep.subr.mxu0 0.0
  %3167 = vmatpush2.msra.mxu0 0.0
  %3168 = vmatprep.subr.mxu0 0.0
  %3169 = vmatpush2.msra.mxu0 0.0
  %3170 = vmatprep.subr.mxu0 0.0
  %3171 = vmatpush2.msra.mxu0 0.0
  %3172 = vmatprep.subr.mxu0 0.0
  %3173 = vmatpush2.msra.mxu0 0.0
  %3174 = vmatprep.mubr.f32.mxu0 0.0
  %3175 = vmatmul.mubr.f32.gmra.mxu0 %v2240
  %v3176 = vpop.f32.mrf.mxu0
  %v3177 = vadd.f32 %v1031, %v3176
  %v3178 = vpop.f32.mrf.mxu0
  %v3179 = vadd.f32 %v1035, %v3178
  %3180 = vdwg.mxu0
  %3181 = vmatprep.subr.mxu0 0.0
  %3182 = vmatpush1.msra.mxu0 %v254
  %3183 = vmatprep.subr.mxu0 0.0
  %3184 = vmatpush1.msra.mxu0 %v251
  %3185 = vmatprep.subr.mxu0 0.0
  %3186 = vmatpush1.msra.mxu0 %v248
  %3187 = vmatprep.subr.mxu0 0.0
  %3188 = vmatpush1.msra.mxu0 %v245
  %3189 = vmatprep.subr.mxu0 0.0
  %3190 = vmatpush1.msra.mxu0 %v242
  %3191 = vmatprep.subr.mxu0 0.0
  %3192 = vmatpush1.msra.mxu0 %v239
  %3193 = vmatprep.subr.mxu0 0.0
  %3194 = vmatpush1.msra.mxu0 %v236
  %3195 = vmatprep.subr.mxu0 0.0
  %3196 = vmatpush1.msra.mxu0 %v233
  %3197 = vmatprep.subr.mxu0 0.0
  %3198 = vmatpush1.msra.mxu0 %v230
  %3199 = vmatprep.subr.mxu0 0.0
  %3200 = vmatpush1.msra.mxu0 %v227
  %3201 = vmatprep.subr.mxu0 0.0
  %3202 = vmatpush1.msra.mxu0 %v224
  %3203 = vmatprep.subr.mxu0 0.0
  %3204 = vmatpush1.msra.mxu0 %v221
  %3205 = vmatprep.subr.mxu0 0.0
  %3206 = vmatpush1.msra.mxu0 %v218
  %3207 = vmatprep.subr.mxu0 0.0
  %3208 = vmatpush1.msra.mxu0 %v215
  %3209 = vmatprep.subr.mxu0 0.0
  %3210 = vmatpush1.msra.mxu0 %v212
  %3211 = vmatprep.subr.mxu0 0.0
  %3212 = vmatpush1.msra.mxu0 %v209
  %3213 = vmatprep.subr.mxu0 0.0
  %3214 = vmatpush2.msra.mxu0 0.0
  %3215 = vmatprep.subr.mxu0 0.0
  %3216 = vmatpush2.msra.mxu0 0.0
  %3217 = vmatprep.subr.mxu0 0.0
  %3218 = vmatpush2.msra.mxu0 0.0
  %3219 = vmatprep.subr.mxu0 0.0
  %3220 = vmatpush2.msra.mxu0 0.0
  %3221 = vmatprep.subr.mxu0 0.0
  %3222 = vmatpush2.msra.mxu0 0.0
  %3223 = vmatprep.subr.mxu0 0.0
  %3224 = vmatpush2.msra.mxu0 0.0
  %3225 = vmatprep.subr.mxu0 0.0
  %3226 = vmatpush2.msra.mxu0 0.0
  %3227 = vmatprep.subr.mxu0 0.0
  %3228 = vmatpush2.msra.mxu0 0.0
  %3229 = vmatprep.subr.mxu0 0.0
  %3230 = vmatpush2.msra.mxu0 0.0
  %3231 = vmatprep.subr.mxu0 0.0
  %3232 = vmatpush2.msra.mxu0 0.0
  %3233 = vmatprep.subr.mxu0 0.0
  %3234 = vmatpush2.msra.mxu0 0.0
  %3235 = vmatprep.subr.mxu0 0.0
  %3236 = vmatpush2.msra.mxu0 0.0
  %3237 = vmatprep.subr.mxu0 0.0
  %3238 = vmatpush2.msra.mxu0 0.0
  %3239 = vmatprep.subr.mxu0 0.0
  %3240 = vmatpush2.msra.mxu0 0.0
  %3241 = vmatprep.subr.mxu0 0.0
  %3242 = vmatpush2.msra.mxu0 0.0
  %3243 = vmatprep.subr.mxu0 0.0
  %3244 = vmatpush2.msra.mxu0 0.0
  %3245 = vmatprep.mubr.f32.mxu0 0.0
  %3246 = vmatmul.mubr.f32.gmra.mxu0 %v2240
  %v3247 = vpop.f32.mrf.mxu0
  %v3248 = vadd.f32 %v1039, %v3247
  %v3249 = vpop.f32.mrf.mxu0
  %3250 = vdwg.mxu0
  %v3251 = vadd.f32 %v3036, %v3177
  %v3252 = vxor.u32 %v3251, 2147483648
  %v3253 = vmul.f32 %v3252, 1.442695
  %v3254 = vpow.pop %v3253
  %v3255 = vadd.f32 %v3254, 1.0
  %v3256 = vrcp.pop %v3255
  %v3257 = vmul.f32 1.0, %v3256
  %v3258 = vadd.f32 %v3038, %v3179
  %v3259 = vxor.u32 %v3258, 2147483648
  %v3260 = vmul.f32 %v3259, 1.442695
  %v3261 = vpow.pop %v3260
  %v3262 = vadd.f32 %v3261, 1.0
  %v3263 = vrcp.pop %v3262
  %v3264 = vmul.f32 1.0, %v3263
  %v3265 = vmul.f32 %v3257, %v3248
  %v3266 = vadd.f32 %v3107, %v3265
  %v3267 = vtanh.pop %v3266
  %v3268 = vsub.f32 1.0, %v3264
  %v3269 = vmul.f32 %v3268, %v3267
  %v3270 = vmul.f32 %v3264, %v2240
  %v3271 = vadd.f32 %v3269, %v3270
  %3272 = vmatprep.subr.mxu0 0.0
  %3273 = vmatpush1.msra.mxu0 %v272
  %3274 = vmatprep.subr.mxu0 0.0
  %3275 = vmatpush1.msra.mxu0 %v271
  %3276 = vmatprep.subr.mxu0 0.0
  %3277 = vmatpush1.msra.mxu0 %v270
  %3278 = vmatprep.subr.mxu0 0.0
  %3279 = vmatpush1.msra.mxu0 %v269
  %3280 = vmatprep.subr.mxu0 0.0
  %3281 = vmatpush1.msra.mxu0 %v268
  %3282 = vmatprep.subr.mxu0 0.0
  %3283 = vmatpush1.msra.mxu0 %v267
  %3284 = vmatprep.subr.mxu0 0.0
  %3285 = vmatpush1.msra.mxu0 %v266
  %3286 = vmatprep.subr.mxu0 0.0
  %3287 = vmatpush1.msra.mxu0 %v265
  %3288 = vmatprep.subr.mxu0 0.0
  %3289 = vmatpush1.msra.mxu0 %v264
  %3290 = vmatprep.subr.mxu0 0.0
  %3291 = vmatpush1.msra.mxu0 %v263
  %3292 = vmatprep.subr.mxu0 0.0
  %3293 = vmatpush1.msra.mxu0 %v262
  %3294 = vmatprep.subr.mxu0 0.0
  %3295 = vmatpush1.msra.mxu0 %v261
  %3296 = vmatprep.subr.mxu0 0.0
  %3297 = vmatpush1.msra.mxu0 %v260
  %3298 = vmatprep.subr.mxu0 0.0
  %3299 = vmatpush1.msra.mxu0 %v259
  %3300 = vmatprep.subr.mxu0 0.0
  %3301 = vmatpush1.msra.mxu0 %v258
  %3302 = vmatprep.subr.mxu0 0.0
  %3303 = vmatpush1.msra.mxu0 %v257
  %3304 = vmatprep.subr.mxu0 0.0
  %3305 = vmatpush2.msra.mxu0 0.0
  %3306 = vmatprep.subr.mxu0 0.0
  %3307 = vmatpush2.msra.mxu0 0.0
  %3308 = vmatprep.subr.mxu0 0.0
  %3309 = vmatpush2.msra.mxu0 0.0
  %3310 = vmatprep.subr.mxu0 0.0
  %3311 = vmatpush2.msra.mxu0 0.0
  %3312 = vmatprep.subr.mxu0 0.0
  %3313 = vmatpush2.msra.mxu0 0.0
  %3314 = vmatprep.subr.mxu0 0.0
  %3315 = vmatpush2.msra.mxu0 0.0
  %3316 = vmatprep.subr.mxu0 0.0
  %3317 = vmatpush2.msra.mxu0 0.0
  %3318 = vmatprep.subr.mxu0 0.0
  %3319 = vmatpush2.msra.mxu0 0.0
  %3320 = vmatprep.subr.mxu0 0.0
  %3321 = vmatpush2.msra.mxu0 0.0
  %3322 = vmatprep.subr.mxu0 0.0
  %3323 = vmatpush2.msra.mxu0 0.0
  %3324 = vmatprep.subr.mxu0 0.0
  %3325 = vmatpush2.msra.mxu0 0.0
  %3326 = vmatprep.subr.mxu0 0.0
  %3327 = vmatpush2.msra.mxu0 0.0
  %3328 = vmatprep.subr.mxu0 0.0
  %3329 = vmatpush2.msra.mxu0 0.0
  %3330 = vmatprep.subr.mxu0 0.0
  %3331 = vmatpush2.msra.mxu0 0.0
  %3332 = vmatprep.subr.mxu0 0.0
  %3333 = vmatpush2.msra.mxu0 0.0
  %3334 = vmatprep.subr.mxu0 0.0
  %3335 = vmatpush2.msra.mxu0 0.0
  %3336 = vmatprep.mubr.f32.mxu0 0.0
  %3337 = vmatmul.mubr.f32.gmra.mxu0 %v3271
  %v3338 = vpop.f32.mrf.mxu0
  %v3339 = vadd.f32 %v1209, %v3338
  %v3340 = vpop.f32.mrf.mxu0
  %3341 = vdwg.mxu0
  %s3342 = scalar_lea.vmem %s15, 16
  %3343 = vst [vmem:[%s3342] sm:$0xff] %v3339
  %3344 = vmax.xlane.f32.xlu0 %v3339
  %v3345 = vpop.xlane.xlu0 %3344
  %vm3346 = vcmp.eq.f32.partialorder %v3339, %v3345
  %v3347 = vsel %vm3346, %v513, 128
  %v3348 = vand.u32 %v3347, 65535
  %v3349 = vshra.s32 %v3347, 16
  %v3350 = vcvt.s32.f32 %v3348
  %v3351 = vcvt.s32.f32 %v3349
  %3352 = vmin.xlane.f32.xlu0 %v3351
  %v3353 = vpop.xlane.xlu0 %3352
  %vm3354 = vcmp.eq.f32.partialorder %v3351, %v3353
  %v3355 = vsel %vm3354, %v3350, inf
  %3356 = vmin.xlane.f32.xlu0 %v3355
  %v3357 = vpop.xlane.xlu0 %3356
  %v3358 = vcvt.f32.s32 %v3357
  %v3359 = vcvt.f32.s32 %v3353
  %v3360 = vshll.u32 %v3359, 16
  %v3361 = vadd.s32 %v3360, %v3358
  %vm3362 = vcmp.eq.s32.totalorder %v513, %v3361
  %v3363 = vsel %vm3362, 1, 0
  %v3364 = vcvt.s32.f32 %v3363
  %3365 = vmatprep.subr.mxu0 0.0
  %3366 = vmatpush1.msra.mxu0 %v110
  %3367 = vmatprep.subr.mxu0 0.0
  %3368 = vmatpush1.msra.mxu0 %v109
  %3369 = vmatprep.subr.mxu0 0.0
  %3370 = vmatpush1.msra.mxu0 %v108
  %3371 = vmatprep.subr.mxu0 0.0
  %3372 = vmatpush1.msra.mxu0 %v107
  %3373 = vmatprep.subr.mxu0 0.0
  %3374 = vmatpush1.msra.mxu0 %v106
  %3375 = vmatprep.subr.mxu0 0.0
  %3376 = vmatpush1.msra.mxu0 %v105
  %3377 = vmatprep.subr.mxu0 0.0
  %3378 = vmatpush1.msra.mxu0 %v104
  %3379 = vmatprep.subr.mxu0 0.0
  %3380 = vmatpush1.msra.mxu0 %v103
  %3381 = vmatprep.subr.mxu0 0.0
  %3382 = vmatpush1.msra.mxu0 %v102
  %3383 = vmatprep.subr.mxu0 0.0
  %3384 = vmatpush1.msra.mxu0 %v101
  %3385 = vmatprep.subr.mxu0 0.0
  %3386 = vmatpush1.msra.mxu0 %v100
  %3387 = vmatprep.subr.mxu0 0.0
  %3388 = vmatpush1.msra.mxu0 %v99
  %3389 = vmatprep.subr.mxu0 0.0
  %3390 = vmatpush1.msra.mxu0 %v98
  %3391 = vmatprep.subr.mxu0 0.0
  %3392 = vmatpush1.msra.mxu0 %v97
  %3393 = vmatprep.subr.mxu0 0.0
  %3394 = vmatpush1.msra.mxu0 %v96
  %3395 = vmatprep.subr.mxu0 0.0
  %3396 = vmatpush1.msra.mxu0 %v95
  %3397 = vmatprep.subr.mxu0 0.0
  %3398 = vmatpush2.msra.mxu0 0.0
  %3399 = vmatprep.subr.mxu0 0.0
  %3400 = vmatpush2.msra.mxu0 0.0
  %3401 = vmatprep.subr.mxu0 0.0
  %3402 = vmatpush2.msra.mxu0 0.0
  %3403 = vmatprep.subr.mxu0 0.0
  %3404 = vmatpush2.msra.mxu0 0.0
  %3405 = vmatprep.subr.mxu0 0.0
  %3406 = vmatpush2.msra.mxu0 0.0
  %3407 = vmatprep.subr.mxu0 0.0
  %3408 = vmatpush2.msra.mxu0 0.0
  %3409 = vmatprep.subr.mxu0 0.0
  %3410 = vmatpush2.msra.mxu0 0.0
  %3411 = vmatprep.subr.mxu0 0.0
  %3412 = vmatpush2.msra.mxu0 0.0
  %3413 = vmatprep.subr.mxu0 0.0
  %3414 = vmatpush2.msra.mxu0 0.0
  %3415 = vmatprep.subr.mxu0 0.0
  %3416 = vmatpush2.msra.mxu0 0.0
  %3417 = vmatprep.subr.mxu0 0.0
  %3418 = vmatpush2.msra.mxu0 0.0
  %3419 = vmatprep.subr.mxu0 0.0
  %3420 = vmatpush2.msra.mxu0 0.0
  %3421 = vmatprep.subr.mxu0 0.0
  %3422 = vmatpush2.msra.mxu0 0.0
  %3423 = vmatprep.subr.mxu0 0.0
  %3424 = vmatpush2.msra.mxu0 0.0
  %3425 = vmatprep.subr.mxu0 0.0
  %3426 = vmatpush2.msra.mxu0 0.0
  %3427 = vmatprep.subr.mxu0 0.0
  %3428 = vmatpush2.msra.mxu0 0.0
  %3429 = vmatprep.mubr.f32.mxu0 0.0
  %3430 = vmatmul.mubr.f32.gmra.mxu0 %v3364
  %v3431 = vpop.f32.mrf.mxu0
  %v3432 = vadd.f32 0.0, %v3431
  %v3433 = vpop.f32.mrf.mxu0
  %3434 = vdwg.mxu0
  %3435 = vst [vmem:[#allocation3 + $0x8] sm:$0xff] %v3432
  %3436 = vmatprep.subr.mxu0 0.0
  %3437 = vmatpush1.msra.mxu0 %v91
  %3438 = vmatprep.subr.mxu0 0.0
  %3439 = vmatpush1.msra.mxu0 %v90
  %3440 = vmatprep.subr.mxu0 0.0
  %3441 = vmatpush1.msra.mxu0 %v89
  %3442 = vmatprep.subr.mxu0 0.0
  %3443 = vmatpush1.msra.mxu0 %v88
  %3444 = vmatprep.subr.mxu0 0.0
  %3445 = vmatpush1.msra.mxu0 %v87
  %3446 = vmatprep.subr.mxu0 0.0
  %3447 = vmatpush1.msra.mxu0 %v86
  %3448 = vmatprep.subr.mxu0 0.0
  %3449 = vmatpush1.msra.mxu0 %v85
  %3450 = vmatprep.subr.mxu0 0.0
  %3451 = vmatpush1.msra.mxu0 %v84
  %3452 = vmatprep.subr.mxu0 0.0
  %3453 = vmatpush1.msra.mxu0 %v83
  %3454 = vmatprep.subr.mxu0 0.0
  %3455 = vmatpush1.msra.mxu0 %v82
  %3456 = vmatprep.subr.mxu0 0.0
  %3457 = vmatpush1.msra.mxu0 %v81
  %3458 = vmatprep.subr.mxu0 0.0
  %3459 = vmatpush1.msra.mxu0 %v80
  %3460 = vmatprep.subr.mxu0 0.0
  %3461 = vmatpush1.msra.mxu0 %v79
  %3462 = vmatprep.subr.mxu0 0.0
  %3463 = vmatpush1.msra.mxu0 %v78
  %3464 = vmatprep.subr.mxu0 0.0
  %3465 = vmatpush1.msra.mxu0 %v77
  %3466 = vmatprep.subr.mxu0 0.0
  %3467 = vmatpush1.msra.mxu0 %v76
  %3468 = vmatprep.subr.mxu0 0.0
  %3469 = vmatpush2.msra.mxu0 0.0
  %3470 = vmatprep.subr.mxu0 0.0
  %3471 = vmatpush2.msra.mxu0 0.0
  %3472 = vmatprep.subr.mxu0 0.0
  %3473 = vmatpush2.msra.mxu0 0.0
  %3474 = vmatprep.subr.mxu0 0.0
  %3475 = vmatpush2.msra.mxu0 0.0
  %3476 = vmatprep.subr.mxu0 0.0
  %3477 = vmatpush2.msra.mxu0 0.0
  %3478 = vmatprep.subr.mxu0 0.0
  %3479 = vmatpush2.msra.mxu0 0.0
  %3480 = vmatprep.subr.mxu0 0.0
  %3481 = vmatpush2.msra.mxu0 0.0
  %3482 = vmatprep.subr.mxu0 0.0
  %3483 = vmatpush2.msra.mxu0 0.0
  %3484 = vmatprep.subr.mxu0 0.0
  %3485 = vmatpush2.msra.mxu0 0.0
  %3486 = vmatprep.subr.mxu0 0.0
  %3487 = vmatpush2.msra.mxu0 0.0
  %3488 = vmatprep.subr.mxu0 0.0
  %3489 = vmatpush2.msra.mxu0 0.0
  %3490 = vmatprep.subr.mxu0 0.0
  %3491 = vmatpush2.msra.mxu0 0.0
  %3492 = vmatprep.subr.mxu0 0.0
  %3493 = vmatpush2.msra.mxu0 0.0
  %3494 = vmatprep.subr.mxu0 0.0
  %3495 = vmatpush2.msra.mxu0 0.0
  %3496 = vmatprep.subr.mxu0 0.0
  %3497 = vmatpush2.msra.mxu0 0.0
  %3498 = vmatprep.subr.mxu0 0.0
  %3499 = vmatpush2.msra.mxu0 0.0
  %3500 = vmatprep.mubr.f32.mxu0 0.0
  %3501 = vmatmul.mubr.f32.gmra.mxu0 %v3271
  %v3502 = vpop.f32.mrf.mxu0
  %v3503 = vadd.f32 %v279, %v3502
  %v3504 = vpop.f32.mrf.mxu0
  %3505 = vdwg.mxu0
  %v3507 = vcombine.high %v3503, %v3503
  %v3509 = vunpack.c.l.s4 1966171168
  %v3510 = vunpack.c.0.s8 %v3509
  %v3511 = vlaneseq
  %v3512 = vshrl.u32 %v3511, 7
  %v3513 = vsub.s32 %v3510, %v3512
  %v3514 = vrot.slane %v3503, %v3513
  %v3516 = vunpack.c.l.s4 1966171168
  %v3517 = vunpack.c.0.s8 %v3516
  %v3518 = vlaneseq
  %v3519 = vshrl.u32 %v3518, 7
  %v3520 = vsub.s32 %v3517, %v3519
  %v3521 = vrot.slane %v3507, %v3520
  %v3522 = vcombine.high %v3514, %v3514
  %v3523 = vcombine.high %v3521, %v3521
  %v3525 = vunpack.c.l.s4 1966171168
  %v3526 = vunpack.c.0.s8 %v3525
  %v3527 = vlaneseq
  %v3528 = vshrl.u32 %v3527, 7
  %v3529 = vsub.s32 %v3526, %v3528
  %v3530 = vrot.slane %v3514, %v3529
  %v3532 = vunpack.c.l.s4 1966171168
  %v3533 = vunpack.c.0.s8 %v3532
  %v3534 = vlaneseq
  %v3535 = vshrl.u32 %v3534, 7
  %v3536 = vsub.s32 %v3533, %v3535
  %v3537 = vrot.slane %v3521, %v3536
  %v3539 = vunpack.c.l.s4 1966171168
  %v3540 = vunpack.c.0.s8 %v3539
  %v3541 = vlaneseq
  %v3542 = vshrl.u32 %v3541, 7
  %v3543 = vsub.s32 %v3540, %v3542
  %v3544 = vrot.slane %v3522, %v3543
  %v3546 = vunpack.c.l.s4 1966171168
  %v3547 = vunpack.c.0.s8 %v3546
  %v3548 = vlaneseq
  %v3549 = vshrl.u32 %v3548, 7
  %v3550 = vsub.s32 %v3547, %v3549
  %v3551 = vrot.slane %v3523, %v3550
  %v3552 = vcombine.high %v3530, %v3530
  %v3553 = vcombine.high %v3537, %v3537
  %v3554 = vcombine.high %v3544, %v3544
  %v3555 = vcombine.high %v3551, %v3551
  %v3556 = vlaneseq
  %v3557 = vshrl.u32 %v3556, 7
  %v3558 = vsub.s32 0, %v3557
  %v3559 = vrot.slane %v3530, %v3558
  %v3560 = vlaneseq
  %v3561 = vshrl.u32 %v3560, 7
  %v3562 = vsub.s32 0, %v3561
  %v3563 = vrot.slane %v3544, %v3562
  %v3564 = vlaneseq
  %v3565 = vshrl.u32 %v3564, 7
  %v3566 = vsub.s32 0, %v3565
  %v3567 = vrot.slane %v3552, %v3566
  %v3568 = vlaneseq
  %v3569 = vshrl.u32 %v3568, 7
  %v3570 = vsub.s32 0, %v3569
  %v3571 = vrot.slane %v3554, %v3570
  %v3572 = vlaneseq
  %v3573 = vshrl.u32 %v3572, 7
  %v3574 = vsub.s32 0, %v3573
  %v3575 = vrot.slane %v3537, %v3574
  %v3576 = vlaneseq
  %v3577 = vshrl.u32 %v3576, 7
  %v3578 = vsub.s32 0, %v3577
  %v3579 = vrot.slane %v3551, %v3578
  %v3580 = vlaneseq
  %v3581 = vshrl.u32 %v3580, 7
  %v3582 = vsub.s32 0, %v3581
  %v3583 = vrot.slane %v3553, %v3582
  %v3584 = vlaneseq
  %v3585 = vshrl.u32 %v3584, 7
  %v3586 = vsub.s32 0, %v3585
  %v3587 = vrot.slane %v3555, %v3586
  %v3596 = vadd.f32 %v68, %v3559
  %v3597 = vadd.f32 %v69, %v3563
  %v3598 = vadd.f32 %v70, %v3567
  %v3599 = vadd.f32 %v71, %v3571
  %v3600 = vadd.f32 %v72, %v3575
  %v3601 = vadd.f32 %v73, %v3579
  %v3602 = vadd.f32 %v74, %v3583
  %v3603 = vadd.f32 %v75, %v3587
  %v3604 = vtanh.pop %v3596
  %v3605 = vtanh.pop %v3597
  %v3606 = vtanh.pop %v3598
  %v3607 = vtanh.pop %v3599
  %v3608 = vtanh.pop %v3600
  %v3609 = vtanh.pop %v3601
  %v3610 = vtanh.pop %v3602
  %v3611 = vtanh.pop %v3603
  %v3612 = vmul.f32 %v3604, %v461
  %v3613 = vmul.f32 %v3605, %v461
  %v3614 = vmul.f32 %v3606, %v461
  %v3615 = vmul.f32 %v3607, %v461
  %v3616 = vmul.f32 %v3608, %v461
  %v3617 = vmul.f32 %v3609, %v461
  %v3618 = vmul.f32 %v3610, %v461
  %v3619 = vmul.f32 %v3611, %v461
  %3620 = vadd.xlane.f32.xlu0 %v3612
  %v3621 = vpop.xlane.xlu0 %3620
  %3622 = vadd.xlane.f32.xlu0 %v3613
  %v3623 = vpop.xlane.xlu0 %3622
  %3624 = vadd.xlane.f32.xlu0 %v3614
  %v3625 = vpop.xlane.xlu0 %3624
  %3626 = vadd.xlane.f32.xlu0 %v3615
  %v3627 = vpop.xlane.xlu0 %3626
  %3628 = vadd.xlane.f32.xlu0 %v3616
  %v3629 = vpop.xlane.xlu0 %3628
  %3630 = vadd.xlane.f32.xlu0 %v3617
  %v3631 = vpop.xlane.xlu0 %3630
  %3632 = vadd.xlane.f32.xlu0 %v3618
  %v3633 = vpop.xlane.xlu0 %3632
  %3634 = vadd.xlane.f32.xlu0 %v3619
  %v3635 = vpop.xlane.xlu0 %3634
  %v3636 = vadd.f32 %v3621, %v494
  %v3637 = vadd.f32 %v3623, %v494
  %v3638 = vadd.f32 %v3625, %v494
  %v3639 = vadd.f32 %v3627, %v494
  %v3640 = vadd.f32 %v3629, %v494
  %v3641 = vadd.f32 %v3631, %v494
  %v3642 = vadd.f32 %v3633, %v494
  %v3643 = vadd.f32 %v3635, %v494
  %v3652 = vlaneseq
  %v3653 = vshrl.u32 %v3652, 7
  %v3654 = vsub.s32 %v513, %v3653
  %v3655 = vrot.slane %v3636, %v3654
  %v3656 = vlaneseq
  %v3657 = vshrl.u32 %v3656, 7
  %v3658 = vsub.s32 %v513, %v3657
  %v3659 = vrot.slane %v3637, %v3658
  %v3660 = vlaneseq
  %v3661 = vshrl.u32 %v3660, 7
  %v3662 = vsub.s32 %v513, %v3661
  %v3663 = vrot.slane %v3638, %v3662
  %v3664 = vlaneseq
  %v3665 = vshrl.u32 %v3664, 7
  %v3666 = vsub.s32 %v513, %v3665
  %v3667 = vrot.slane %v3639, %v3666
  %v3668 = vlaneseq
  %v3669 = vshrl.u32 %v3668, 7
  %v3670 = vsub.s32 %v513, %v3669
  %v3671 = vrot.slane %v3640, %v3670
  %v3672 = vlaneseq
  %v3673 = vshrl.u32 %v3672, 7
  %v3674 = vsub.s32 %v513, %v3673
  %v3675 = vrot.slane %v3641, %v3674
  %v3676 = vlaneseq
  %v3677 = vshrl.u32 %v3676, 7
  %v3678 = vsub.s32 %v513, %v3677
  %v3679 = vrot.slane %v3642, %v3678
  %v3680 = vlaneseq
  %v3681 = vshrl.u32 %v3680, 7
  %v3682 = vsub.s32 %v513, %v3681
  %v3683 = vrot.slane %v3643, %v3682
  %v3684 = vsel %vm546, %v3659, %v3655
  %v3685 = vsel %vm548, %v3663, %v3684
  %v3686 = vsel %vm550, %v3667, %v3685
  %v3687 = vsel %vm552, %v3671, %v3686
  %v3688 = vsel %vm554, %v3675, %v3687
  %v3689 = vsel %vm556, %v3679, %v3688
  %v3690 = vsel %vm558, %v3683, %v3689
  %v3692 = vsel %vm561, %v3690, -inf
  %3693 = vmax.xlane.f32.xlu0 %v3692
  %v3694 = vpop.xlane.xlu0 %3693
  %v3696 = vlaneseq
  %v3697 = vshrl.u32 %v3696, 7
  %v3698 = vsub.s32 0, %v3697
  %v3699 = vrot.slane %v3694, %v3698
  %v3700 = vlaneseq
  %v3701 = vshrl.u32 %v3700, 7
  %v3702 = vsub.s32 1, %v3701
  %v3703 = vrot.slane %v3694, %v3702
  %v3704 = vlaneseq
  %v3705 = vshrl.u32 %v3704, 7
  %v3706 = vsub.s32 2, %v3705
  %v3707 = vrot.slane %v3694, %v3706
  %v3708 = vlaneseq
  %v3709 = vshrl.u32 %v3708, 7
  %v3710 = vsub.s32 3, %v3709
  %v3711 = vrot.slane %v3694, %v3710
  %v3712 = vlaneseq
  %v3713 = vshrl.u32 %v3712, 7
  %v3714 = vsub.s32 4, %v3713
  %v3715 = vrot.slane %v3694, %v3714
  %v3716 = vlaneseq
  %v3717 = vshrl.u32 %v3716, 7
  %v3718 = vsub.s32 5, %v3717
  %v3719 = vrot.slane %v3694, %v3718
  %v3720 = vlaneseq
  %v3721 = vshrl.u32 %v3720, 7
  %v3722 = vsub.s32 6, %v3721
  %v3723 = vrot.slane %v3694, %v3722
  %v3724 = vlaneseq
  %v3725 = vshrl.u32 %v3724, 7
  %v3726 = vsub.s32 7, %v3725
  %v3727 = vrot.slane %v3694, %v3726
  %v3736 = vsub.f32 %v3636, %v3699
  %v3737 = vsub.f32 %v3637, %v3703
  %v3738 = vsub.f32 %v3638, %v3707
  %v3739 = vsub.f32 %v3639, %v3711
  %v3740 = vsub.f32 %v3640, %v3715
  %v3741 = vsub.f32 %v3641, %v3719
  %v3742 = vsub.f32 %v3642, %v3723
  %v3743 = vsub.f32 %v3643, %v3727
  %v3744 = vmul.f32 %v3736, 1.442695
  %v3745 = vpow.pop %v3744
  %v3746 = vmul.f32 %v3737, 1.442695
  %v3747 = vpow.pop %v3746
  %v3748 = vmul.f32 %v3738, 1.442695
  %v3749 = vpow.pop %v3748
  %v3750 = vmul.f32 %v3739, 1.442695
  %v3751 = vpow.pop %v3750
  %v3752 = vmul.f32 %v3740, 1.442695
  %v3753 = vpow.pop %v3752
  %v3754 = vmul.f32 %v3741, 1.442695
  %v3755 = vpow.pop %v3754
  %v3756 = vmul.f32 %v3742, 1.442695
  %v3757 = vpow.pop %v3756
  %v3758 = vmul.f32 %v3743, 1.442695
  %v3759 = vpow.pop %v3758
  %3768 = vset.pattern.permute.xlu0 0
  %3769 = vperm.xlu0 %3768, %v3745
  %v3770 = vpop.permute.xlu0 %3769
  %3771 = vset.pattern.permute.xlu0 0
  %3772 = vperm.xlu0 %3771, %v3747
  %v3773 = vpop.permute.xlu0 %3772
  %3774 = vset.pattern.permute.xlu0 0
  %3775 = vperm.xlu0 %3774, %v3749
  %v3776 = vpop.permute.xlu0 %3775
  %3777 = vset.pattern.permute.xlu0 0
  %3778 = vperm.xlu0 %3777, %v3751
  %v3779 = vpop.permute.xlu0 %3778
  %3780 = vset.pattern.permute.xlu0 0
  %3781 = vperm.xlu0 %3780, %v3753
  %v3782 = vpop.permute.xlu0 %3781
  %3783 = vset.pattern.permute.xlu0 0
  %3784 = vperm.xlu0 %3783, %v3755
  %v3785 = vpop.permute.xlu0 %3784
  %3786 = vset.pattern.permute.xlu0 0
  %3787 = vperm.xlu0 %3786, %v3757
  %v3788 = vpop.permute.xlu0 %3787
  %3789 = vset.pattern.permute.xlu0 0
  %3790 = vperm.xlu0 %3789, %v3759
  %v3791 = vpop.permute.xlu0 %3790
  %v3792 = vlaneseq
  %v3793 = vshrl.u32 %v3792, 7
  %v3794 = vsub.s32 %v513, %v3793
  %v3795 = vrot.slane %v3770, %v3794
  %v3796 = vlaneseq
  %v3797 = vshrl.u32 %v3796, 7
  %v3798 = vsub.s32 %v513, %v3797
  %v3799 = vrot.slane %v3773, %v3798
  %v3800 = vlaneseq
  %v3801 = vshrl.u32 %v3800, 7
  %v3802 = vsub.s32 %v513, %v3801
  %v3803 = vrot.slane %v3776, %v3802
  %v3804 = vlaneseq
  %v3805 = vshrl.u32 %v3804, 7
  %v3806 = vsub.s32 %v513, %v3805
  %v3807 = vrot.slane %v3779, %v3806
  %v3808 = vlaneseq
  %v3809 = vshrl.u32 %v3808, 7
  %v3810 = vsub.s32 %v513, %v3809
  %v3811 = vrot.slane %v3782, %v3810
  %v3812 = vlaneseq
  %v3813 = vshrl.u32 %v3812, 7
  %v3814 = vsub.s32 %v513, %v3813
  %v3815 = vrot.slane %v3785, %v3814
  %v3816 = vlaneseq
  %v3817 = vshrl.u32 %v3816, 7
  %v3818 = vsub.s32 %v513, %v3817
  %v3819 = vrot.slane %v3788, %v3818
  %v3820 = vlaneseq
  %v3821 = vshrl.u32 %v3820, 7
  %v3822 = vsub.s32 %v513, %v3821
  %v3823 = vrot.slane %v3791, %v3822
  %v3824 = vsel %vm546, %v3799, %v3795
  %v3825 = vsel %vm548, %v3803, %v3824
  %v3826 = vsel %vm550, %v3807, %v3825
  %v3827 = vsel %vm552, %v3811, %v3826
  %v3828 = vsel %vm554, %v3815, %v3827
  %v3829 = vsel %vm556, %v3819, %v3828
  %v3830 = vsel %vm558, %v3823, %v3829
  %v3832 = vsel %vm561, %v3830, 0.0
  %3833 = vadd.xlane.f32.xlu0 %v3832
  %v3834 = vpop.xlane.xlu0 %3833
  %v3835 = vrcp.pop %v3834
  %v3837 = vlaneseq
  %v3838 = vshrl.u32 %v3837, 7
  %v3839 = vsub.s32 0, %v3838
  %v3840 = vrot.slane %v3835, %v3839
  %v3841 = vlaneseq
  %v3842 = vshrl.u32 %v3841, 7
  %v3843 = vsub.s32 1, %v3842
  %v3844 = vrot.slane %v3835, %v3843
  %v3845 = vlaneseq
  %v3846 = vshrl.u32 %v3845, 7
  %v3847 = vsub.s32 2, %v3846
  %v3848 = vrot.slane %v3835, %v3847
  %v3849 = vlaneseq
  %v3850 = vshrl.u32 %v3849, 7
  %v3851 = vsub.s32 3, %v3850
  %v3852 = vrot.slane %v3835, %v3851
  %v3853 = vlaneseq
  %v3854 = vshrl.u32 %v3853, 7
  %v3855 = vsub.s32 4, %v3854
  %v3856 = vrot.slane %v3835, %v3855
  %v3857 = vlaneseq
  %v3858 = vshrl.u32 %v3857, 7
  %v3859 = vsub.s32 5, %v3858
  %v3860 = vrot.slane %v3835, %v3859
  %v3861 = vlaneseq
  %v3862 = vshrl.u32 %v3861, 7
  %v3863 = vsub.s32 6, %v3862
  %v3864 = vrot.slane %v3835, %v3863
  %v3865 = vlaneseq
  %v3866 = vshrl.u32 %v3865, 7
  %v3867 = vsub.s32 7, %v3866
  %v3868 = vrot.slane %v3835, %v3867
  %v3877 = vmul.f32 %v3745, %v3840
  %v3878 = vmul.f32 %v3747, %v3844
  %v3879 = vmul.f32 %v3749, %v3848
  %v3880 = vmul.f32 %v3751, %v3852
  %v3881 = vmul.f32 %v3753, %v3856
  %v3882 = vmul.f32 %v3755, %v3860
  %v3883 = vmul.f32 %v3757, %v3864
  %v3884 = vmul.f32 %v3759, %v3868
  %3886 = vset.pattern.permute.xlu0 0
  %3887 = vperm.xlu0 %3886, %v3877
  %v3888 = vpop.permute.xlu0 %3887
  %3891 = vset.pattern.permute.xlu0 0
  %3892 = vperm.xlu0 %3891, %v3878
  %v3893 = vpop.permute.xlu0 %3892
  %3896 = vset.pattern.permute.xlu0 0
  %3897 = vperm.xlu0 %3896, %v3879
  %v3898 = vpop.permute.xlu0 %3897
  %3901 = vset.pattern.permute.xlu0 0
  %3902 = vperm.xlu0 %3901, %v3880
  %v3903 = vpop.permute.xlu0 %3902
  %3906 = vset.pattern.permute.xlu0 0
  %3907 = vperm.xlu0 %3906, %v3881
  %v3908 = vpop.permute.xlu0 %3907
  %3911 = vset.pattern.permute.xlu0 0
  %3912 = vperm.xlu0 %3911, %v3882
  %v3913 = vpop.permute.xlu0 %3912
  %3916 = vset.pattern.permute.xlu0 0
  %3917 = vperm.xlu0 %3916, %v3883
  %v3918 = vpop.permute.xlu0 %3917
  %3921 = vset.pattern.permute.xlu0 0
  %3922 = vperm.xlu0 %3921, %v3884
  %v3923 = vpop.permute.xlu0 %3922
  %v3925 = vmul.f32 %v3888, %v60
  %v3926 = vmul.f32 %v3893, %v61
  %v3927 = vmul.f32 %v3898, %v62
  %v3928 = vmul.f32 %v3903, %v63
  %v3929 = vmul.f32 %v3908, %v64
  %v3930 = vmul.f32 %v3913, %v65
  %v3931 = vmul.f32 %v3918, %v66
  %v3932 = vmul.f32 %v3923, %v67
  %v3933 = vrot.slane %v3925, 4
  %v3934 = vadd.f32 %v3925, %v3933
  %v3935 = vrot.slane %v3934, 2
  %v3936 = vadd.f32 %v3934, %v3935
  %v3937 = vrot.slane %v3936, 1
  %v3938 = vadd.f32 %v3936, %v3937
  %v3939 = vrot.slane %v3926, 4
  %v3940 = vadd.f32 %v3926, %v3939
  %v3941 = vrot.slane %v3940, 2
  %v3942 = vadd.f32 %v3940, %v3941
  %v3943 = vrot.slane %v3942, 1
  %v3944 = vadd.f32 %v3942, %v3943
  %v3945 = vrot.slane %v3927, 4
  %v3946 = vadd.f32 %v3927, %v3945
  %v3947 = vrot.slane %v3946, 2
  %v3948 = vadd.f32 %v3946, %v3947
  %v3949 = vrot.slane %v3948, 1
  %v3950 = vadd.f32 %v3948, %v3949
  %v3951 = vrot.slane %v3928, 4
  %v3952 = vadd.f32 %v3928, %v3951
  %v3953 = vrot.slane %v3952, 2
  %v3954 = vadd.f32 %v3952, %v3953
  %v3955 = vrot.slane %v3954, 1
  %v3956 = vadd.f32 %v3954, %v3955
  %v3957 = vrot.slane %v3929, 4
  %v3958 = vadd.f32 %v3929, %v3957
  %v3959 = vrot.slane %v3958, 2
  %v3960 = vadd.f32 %v3958, %v3959
  %v3961 = vrot.slane %v3960, 1
  %v3962 = vadd.f32 %v3960, %v3961
  %v3963 = vrot.slane %v3930, 4
  %v3964 = vadd.f32 %v3930, %v3963
  %v3965 = vrot.slane %v3964, 2
  %v3966 = vadd.f32 %v3964, %v3965
  %v3967 = vrot.slane %v3966, 1
  %v3968 = vadd.f32 %v3966, %v3967
  %v3969 = vrot.slane %v3931, 4
  %v3970 = vadd.f32 %v3931, %v3969
  %v3971 = vrot.slane %v3970, 2
  %v3972 = vadd.f32 %v3970, %v3971
  %v3973 = vrot.slane %v3972, 1
  %v3974 = vadd.f32 %v3972, %v3973
  %v3975 = vrot.slane %v3932, 4
  %v3976 = vadd.f32 %v3932, %v3975
  %v3977 = vrot.slane %v3976, 2
  %v3978 = vadd.f32 %v3976, %v3977
  %v3979 = vrot.slane %v3978, 1
  %v3980 = vadd.f32 %v3978, %v3979
  %v3989 = vsel %vm546, %v3944, %v3938
  %v3990 = vsel %vm548, %v3950, %v3989
  %v3991 = vsel %vm550, %v3956, %v3990
  %v3992 = vsel %vm552, %v3962, %v3991
  %v3993 = vsel %vm554, %v3968, %v3992
  %v3994 = vsel %vm556, %v3974, %v3993
  %v3995 = vsel %vm558, %v3980, %v3994
  %3997 = vst [vmem:[#allocation3] sm:$0xff] %v3995
  %v3998 = vld [vmem:[#allocation3] sm:$0xff]
  %v3999 = vld [vmem:[#allocation3 + $0x8] sm:$0xff]
  %4000 = vmatprep.subr.mxu0 %v157
  %4001 = vmatpush1.msra.mxu0 %v156
  %4002 = vmatprep.subr.mxu0 %v154
  %4003 = vmatpush1.msra.mxu0 %v153
  %4004 = vmatprep.subr.mxu0 %v151
  %4005 = vmatpush1.msra.mxu0 %v150
  %4006 = vmatprep.subr.mxu0 %v148
  %4007 = vmatpush1.msra.mxu0 %v147
  %4008 = vmatprep.subr.mxu0 %v145
  %4009 = vmatpush1.msra.mxu0 %v144
  %4010 = vmatprep.subr.mxu0 %v142
  %4011 = vmatpush1.msra.mxu0 %v141
  %4012 = vmatprep.subr.mxu0 %v139
  %4013 = vmatpush1.msra.mxu0 %v138
  %4014 = vmatprep.subr.mxu0 %v136
  %4015 = vmatpush1.msra.mxu0 %v135
  %4016 = vmatprep.subr.mxu0 %v133
  %4017 = vmatpush1.msra.mxu0 %v132
  %4018 = vmatprep.subr.mxu0 %v130
  %4019 = vmatpush1.msra.mxu0 %v129
  %4020 = vmatprep.subr.mxu0 %v127
  %4021 = vmatpush1.msra.mxu0 %v126
  %4022 = vmatprep.subr.mxu0 %v124
  %4023 = vmatpush1.msra.mxu0 %v123
  %4024 = vmatprep.subr.mxu0 %v121
  %4025 = vmatpush1.msra.mxu0 %v120
  %4026 = vmatprep.subr.mxu0 %v118
  %4027 = vmatpush1.msra.mxu0 %v117
  %4028 = vmatprep.subr.mxu0 %v115
  %4029 = vmatpush1.msra.mxu0 %v114
  %4030 = vmatprep.subr.mxu0 %v112
  %4031 = vmatpush1.msra.mxu0 %v111
  %4032 = vmatprep.subr.mxu0 %v205
  %4033 = vmatpush2.msra.mxu0 %v204
  %4034 = vmatprep.subr.mxu0 %v202
  %4035 = vmatpush2.msra.mxu0 %v201
  %4036 = vmatprep.subr.mxu0 %v199
  %4037 = vmatpush2.msra.mxu0 %v198
  %4038 = vmatprep.subr.mxu0 %v196
  %4039 = vmatpush2.msra.mxu0 %v195
  %4040 = vmatprep.subr.mxu0 %v193
  %4041 = vmatpush2.msra.mxu0 %v192
  %4042 = vmatprep.subr.mxu0 %v190
  %4043 = vmatpush2.msra.mxu0 %v189
  %4044 = vmatprep.subr.mxu0 %v187
  %4045 = vmatpush2.msra.mxu0 %v186
  %4046 = vmatprep.subr.mxu0 %v184
  %4047 = vmatpush2.msra.mxu0 %v183
  %4048 = vmatprep.subr.mxu0 %v181
  %4049 = vmatpush2.msra.mxu0 %v180
  %4050 = vmatprep.subr.mxu0 %v178
  %4051 = vmatpush2.msra.mxu0 %v177
  %4052 = vmatprep.subr.mxu0 %v175
  %4053 = vmatpush2.msra.mxu0 %v174
  %4054 = vmatprep.subr.mxu0 %v172
  %4055 = vmatpush2.msra.mxu0 %v171
  %4056 = vmatprep.subr.mxu0 %v169
  %4057 = vmatpush2.msra.mxu0 %v168
  %4058 = vmatprep.subr.mxu0 %v166
  %4059 = vmatpush2.msra.mxu0 %v165
  %4060 = vmatprep.subr.mxu0 %v163
  %4061 = vmatpush2.msra.mxu0 %v162
  %4062 = vmatprep.subr.mxu0 %v160
  %4063 = vmatpush2.msra.mxu0 %v159
  %4064 = vmatprep.mubr.f32.mxu0 %v3999
  %4065 = vmatmul.mubr.f32.gmra.mxu0 %v3998
  %v4066 = vpop.f32.mrf.mxu0
  %v4067 = vadd.f32 %v874, %v4066
  %v4068 = vpop.f32.mrf.mxu0
  %v4069 = vadd.f32 %v878, %v4068
  %4070 = vdwg.mxu0
  %4071 = vmatprep.subr.mxu0 0.0
  %4072 = vmatpush1.msra.mxu0 %v158
  %4073 = vmatprep.subr.mxu0 0.0
  %4074 = vmatpush1.msra.mxu0 %v155
  %4075 = vmatprep.subr.mxu0 0.0
  %4076 = vmatpush1.msra.mxu0 %v152
  %4077 = vmatprep.subr.mxu0 0.0
  %4078 = vmatpush1.msra.mxu0 %v149
  %4079 = vmatprep.subr.mxu0 0.0
  %4080 = vmatpush1.msra.mxu0 %v146
  %4081 = vmatprep.subr.mxu0 0.0
  %4082 = vmatpush1.msra.mxu0 %v143
  %4083 = vmatprep.subr.mxu0 0.0
  %4084 = vmatpush1.msra.mxu0 %v140
  %4085 = vmatprep.subr.mxu0 0.0
  %4086 = vmatpush1.msra.mxu0 %v137
  %4087 = vmatprep.subr.mxu0 0.0
  %4088 = vmatpush1.msra.mxu0 %v134
  %4089 = vmatprep.subr.mxu0 0.0
  %4090 = vmatpush1.msra.mxu0 %v131
  %4091 = vmatprep.subr.mxu0 0.0
  %4092 = vmatpush1.msra.mxu0 %v128
  %4093 = vmatprep.subr.mxu0 0.0
  %4094 = vmatpush1.msra.mxu0 %v125
  %4095 = vmatprep.subr.mxu0 0.0
  %4096 = vmatpush1.msra.mxu0 %v122
  %4097 = vmatprep.subr.mxu0 0.0
  %4098 = vmatpush1.msra.mxu0 %v119
  %4099 = vmatprep.subr.mxu0 0.0
  %4100 = vmatpush1.msra.mxu0 %v116
  %4101 = vmatprep.subr.mxu0 0.0
  %4102 = vmatpush1.msra.mxu0 %v113
  %4103 = vmatprep.subr.mxu0 0.0
  %4104 = vmatpush2.msra.mxu0 %v206
  %4105 = vmatprep.subr.mxu0 0.0
  %4106 = vmatpush2.msra.mxu0 %v203
  %4107 = vmatprep.subr.mxu0 0.0
  %4108 = vmatpush2.msra.mxu0 %v200
  %4109 = vmatprep.subr.mxu0 0.0
  %4110 = vmatpush2.msra.mxu0 %v197
  %4111 = vmatprep.subr.mxu0 0.0
  %4112 = vmatpush2.msra.mxu0 %v194
  %4113 = vmatprep.subr.mxu0 0.0
  %4114 = vmatpush2.msra.mxu0 %v191
  %4115 = vmatprep.subr.mxu0 0.0
  %4116 = vmatpush2.msra.mxu0 %v188
  %4117 = vmatprep.subr.mxu0 0.0
  %4118 = vmatpush2.msra.mxu0 %v185
  %4119 = vmatprep.subr.mxu0 0.0
  %4120 = vmatpush2.msra.mxu0 %v182
  %4121 = vmatprep.subr.mxu0 0.0
  %4122 = vmatpush2.msra.mxu0 %v179
  %4123 = vmatprep.subr.mxu0 0.0
  %4124 = vmatpush2.msra.mxu0 %v176
  %4125 = vmatprep.subr.mxu0 0.0
  %4126 = vmatpush2.msra.mxu0 %v173
  %4127 = vmatprep.subr.mxu0 0.0
  %4128 = vmatpush2.msra.mxu0 %v170
  %4129 = vmatprep.subr.mxu0 0.0
  %4130 = vmatpush2.msra.mxu0 %v167
  %4131 = vmatprep.subr.mxu0 0.0
  %4132 = vmatpush2.msra.mxu0 %v164
  %4133 = vmatprep.subr.mxu0 0.0
  %4134 = vmatpush2.msra.mxu0 %v161
  %4135 = vmatprep.mubr.f32.mxu0 %v3999
  %4136 = vmatmul.mubr.f32.gmra.mxu0 %v3998
  %v4137 = vpop.f32.mrf.mxu0
  %v4138 = vadd.f32 %v882, %v4137
  %v4139 = vpop.f32.mrf.mxu0
  %4140 = vdwg.mxu0
  %4141 = vmatprep.subr.mxu0 %v253
  %4142 = vmatpush1.msra.mxu0 %v252
  %4143 = vmatprep.subr.mxu0 %v250
  %4144 = vmatpush1.msra.mxu0 %v249
  %4145 = vmatprep.subr.mxu0 %v247
  %4146 = vmatpush1.msra.mxu0 %v246
  %4147 = vmatprep.subr.mxu0 %v244
  %4148 = vmatpush1.msra.mxu0 %v243
  %4149 = vmatprep.subr.mxu0 %v241
  %4150 = vmatpush1.msra.mxu0 %v240
  %4151 = vmatprep.subr.mxu0 %v238
  %4152 = vmatpush1.msra.mxu0 %v237
  %4153 = vmatprep.subr.mxu0 %v235
  %4154 = vmatpush1.msra.mxu0 %v234
  %4155 = vmatprep.subr.mxu0 %v232
  %4156 = vmatpush1.msra.mxu0 %v231
  %4157 = vmatprep.subr.mxu0 %v229
  %4158 = vmatpush1.msra.mxu0 %v228
  %4159 = vmatprep.subr.mxu0 %v226
  %4160 = vmatpush1.msra.mxu0 %v225
  %4161 = vmatprep.subr.mxu0 %v223
  %4162 = vmatpush1.msra.mxu0 %v222
  %4163 = vmatprep.subr.mxu0 %v220
  %4164 = vmatpush1.msra.mxu0 %v219
  %4165 = vmatprep.subr.mxu0 %v217
  %4166 = vmatpush1.msra.mxu0 %v216
  %4167 = vmatprep.subr.mxu0 %v214
  %4168 = vmatpush1.msra.mxu0 %v213
  %4169 = vmatprep.subr.mxu0 %v211
  %4170 = vmatpush1.msra.mxu0 %v210
  %4171 = vmatprep.subr.mxu0 %v208
  %4172 = vmatpush1.msra.mxu0 %v207
  %4173 = vmatprep.subr.mxu0 0.0
  %4174 = vmatpush2.msra.mxu0 0.0
  %4175 = vmatprep.subr.mxu0 0.0
  %4176 = vmatpush2.msra.mxu0 0.0
  %4177 = vmatprep.subr.mxu0 0.0
  %4178 = vmatpush2.msra.mxu0 0.0
  %4179 = vmatprep.subr.mxu0 0.0
  %4180 = vmatpush2.msra.mxu0 0.0
  %4181 = vmatprep.subr.mxu0 0.0
  %4182 = vmatpush2.msra.mxu0 0.0
  %4183 = vmatprep.subr.mxu0 0.0
  %4184 = vmatpush2.msra.mxu0 0.0
  %4185 = vmatprep.subr.mxu0 0.0
  %4186 = vmatpush2.msra.mxu0 0.0
  %4187 = vmatprep.subr.mxu0 0.0
  %4188 = vmatpush2.msra.mxu0 0.0
  %4189 = vmatprep.subr.mxu0 0.0
  %4190 = vmatpush2.msra.mxu0 0.0
  %4191 = vmatprep.subr.mxu0 0.0
  %4192 = vmatpush2.msra.mxu0 0.0
  %4193 = vmatprep.subr.mxu0 0.0
  %4194 = vmatpush2.msra.mxu0 0.0
  %4195 = vmatprep.subr.mxu0 0.0
  %4196 = vmatpush2.msra.mxu0 0.0
  %4197 = vmatprep.subr.mxu0 0.0
  %4198 = vmatpush2.msra.mxu0 0.0
  %4199 = vmatprep.subr.mxu0 0.0
  %4200 = vmatpush2.msra.mxu0 0.0
  %4201 = vmatprep.subr.mxu0 0.0
  %4202 = vmatpush2.msra.mxu0 0.0
  %4203 = vmatprep.subr.mxu0 0.0
  %4204 = vmatpush2.msra.mxu0 0.0
  %4205 = vmatprep.mubr.f32.mxu0 0.0
  %4206 = vmatmul.mubr.f32.gmra.mxu0 %v3271
  %v4207 = vpop.f32.mrf.mxu0
  %v4208 = vadd.f32 %v1031, %v4207
  %v4209 = vpop.f32.mrf.mxu0
  %v4210 = vadd.f32 %v1035, %v4209
  %4211 = vdwg.mxu0
  %4212 = vmatprep.subr.mxu0 0.0
  %4213 = vmatpush1.msra.mxu0 %v254
  %4214 = vmatprep.subr.mxu0 0.0
  %4215 = vmatpush1.msra.mxu0 %v251
  %4216 = vmatprep.subr.mxu0 0.0
  %4217 = vmatpush1.msra.mxu0 %v248
  %4218 = vmatprep.subr.mxu0 0.0
  %4219 = vmatpush1.msra.mxu0 %v245
  %4220 = vmatprep.subr.mxu0 0.0
  %4221 = vmatpush1.msra.mxu0 %v242
  %4222 = vmatprep.subr.mxu0 0.0
  %4223 = vmatpush1.msra.mxu0 %v239
  %4224 = vmatprep.subr.mxu0 0.0
  %4225 = vmatpush1.msra.mxu0 %v236
  %4226 = vmatprep.subr.mxu0 0.0
  %4227 = vmatpush1.msra.mxu0 %v233
  %4228 = vmatprep.subr.mxu0 0.0
  %4229 = vmatpush1.msra.mxu0 %v230
  %4230 = vmatprep.subr.mxu0 0.0
  %4231 = vmatpush1.msra.mxu0 %v227
  %4232 = vmatprep.subr.mxu0 0.0
  %4233 = vmatpush1.msra.mxu0 %v224
  %4234 = vmatprep.subr.mxu0 0.0
  %4235 = vmatpush1.msra.mxu0 %v221
  %4236 = vmatprep.subr.mxu0 0.0
  %4237 = vmatpush1.msra.mxu0 %v218
  %4238 = vmatprep.subr.mxu0 0.0
  %4239 = vmatpush1.msra.mxu0 %v215
  %4240 = vmatprep.subr.mxu0 0.0
  %4241 = vmatpush1.msra.mxu0 %v212
  %4242 = vmatprep.subr.mxu0 0.0
  %4243 = vmatpush1.msra.mxu0 %v209
  %4244 = vmatprep.subr.mxu0 0.0
  %4245 = vmatpush2.msra.mxu0 0.0
  %4246 = vmatprep.subr.mxu0 0.0
  %4247 = vmatpush2.msra.mxu0 0.0
  %4248 = vmatprep.subr.mxu0 0.0
  %4249 = vmatpush2.msra.mxu0 0.0
  %4250 = vmatprep.subr.mxu0 0.0
  %4251 = vmatpush2.msra.mxu0 0.0
  %4252 = vmatprep.subr.mxu0 0.0
  %4253 = vmatpush2.msra.mxu0 0.0
  %4254 = vmatprep.subr.mxu0 0.0
  %4255 = vmatpush2.msra.mxu0 0.0
  %4256 = vmatprep.subr.mxu0 0.0
  %4257 = vmatpush2.msra.mxu0 0.0
  %4258 = vmatprep.subr.mxu0 0.0
  %4259 = vmatpush2.msra.mxu0 0.0
  %4260 = vmatprep.subr.mxu0 0.0
  %4261 = vmatpush2.msra.mxu0 0.0
  %4262 = vmatprep.subr.mxu0 0.0
  %4263 = vmatpush2.msra.mxu0 0.0
  %4264 = vmatprep.subr.mxu0 0.0
  %4265 = vmatpush2.msra.mxu0 0.0
  %4266 = vmatprep.subr.mxu0 0.0
  %4267 = vmatpush2.msra.mxu0 0.0
  %4268 = vmatprep.subr.mxu0 0.0
  %4269 = vmatpush2.msra.mxu0 0.0
  %4270 = vmatprep.subr.mxu0 0.0
  %4271 = vmatpush2.msra.mxu0 0.0
  %4272 = vmatprep.subr.mxu0 0.0
  %4273 = vmatpush2.msra.mxu0 0.0
  %4274 = vmatprep.subr.mxu0 0.0
  %4275 = vmatpush2.msra.mxu0 0.0
  %4276 = vmatprep.mubr.f32.mxu0 0.0
  %4277 = vmatmul.mubr.f32.gmra.mxu0 %v3271
  %v4278 = vpop.f32.mrf.mxu0
  %v4279 = vadd.f32 %v1039, %v4278
  %v4280 = vpop.f32.mrf.mxu0
  %4281 = vdwg.mxu0
  %v4282 = vadd.f32 %v4067, %v4208
  %v4283 = vxor.u32 %v4282, 2147483648
  %v4284 = vmul.f32 %v4283, 1.442695
  %v4285 = vpow.pop %v4284
  %v4286 = vadd.f32 %v4285, 1.0
  %v4287 = vrcp.pop %v4286
  %v4288 = vmul.f32 1.0, %v4287
  %v4289 = vadd.f32 %v4069, %v4210
  %v4290 = vxor.u32 %v4289, 2147483648
  %v4291 = vmul.f32 %v4290, 1.442695
  %v4292 = vpow.pop %v4291
  %v4293 = vadd.f32 %v4292, 1.0
  %v4294 = vrcp.pop %v4293
  %v4295 = vmul.f32 1.0, %v4294
  %v4296 = vmul.f32 %v4288, %v4279
  %v4297 = vadd.f32 %v4138, %v4296
  %v4298 = vtanh.pop %v4297
  %v4299 = vsub.f32 1.0, %v4295
  %v4300 = vmul.f32 %v4299, %v4298
  %v4301 = vmul.f32 %v4295, %v3271
  %v4302 = vadd.f32 %v4300, %v4301
  %4303 = vmatprep.subr.mxu0 0.0
  %4304 = vmatpush1.msra.mxu0 %v272
  %4305 = vmatprep.subr.mxu0 0.0
  %4306 = vmatpush1.msra.mxu0 %v271
  %4307 = vmatprep.subr.mxu0 0.0
  %4308 = vmatpush1.msra.mxu0 %v270
  %4309 = vmatprep.subr.mxu0 0.0
  %4310 = vmatpush1.msra.mxu0 %v269
  %4311 = vmatprep.subr.mxu0 0.0
  %4312 = vmatpush1.msra.mxu0 %v268
  %4313 = vmatprep.subr.mxu0 0.0
  %4314 = vmatpush1.msra.mxu0 %v267
  %4315 = vmatprep.subr.mxu0 0.0
  %4316 = vmatpush1.msra.mxu0 %v266
  %4317 = vmatprep.subr.mxu0 0.0
  %4318 = vmatpush1.msra.mxu0 %v265
  %4319 = vmatprep.subr.mxu0 0.0
  %4320 = vmatpush1.msra.mxu0 %v264
  %4321 = vmatprep.subr.mxu0 0.0
  %4322 = vmatpush1.msra.mxu0 %v263
  %4323 = vmatprep.subr.mxu0 0.0
  %4324 = vmatpush1.msra.mxu0 %v262
  %4325 = vmatprep.subr.mxu0 0.0
  %4326 = vmatpush1.msra.mxu0 %v261
  %4327 = vmatprep.subr.mxu0 0.0
  %4328 = vmatpush1.msra.mxu0 %v260
  %4329 = vmatprep.subr.mxu0 0.0
  %4330 = vmatpush1.msra.mxu0 %v259
  %4331 = vmatprep.subr.mxu0 0.0
  %4332 = vmatpush1.msra.mxu0 %v258
  %4333 = vmatprep.subr.mxu0 0.0
  %4334 = vmatpush1.msra.mxu0 %v257
  %4335 = vmatprep.subr.mxu0 0.0
  %4336 = vmatpush2.msra.mxu0 0.0
  %4337 = vmatprep.subr.mxu0 0.0
  %4338 = vmatpush2.msra.mxu0 0.0
  %4339 = vmatprep.subr.mxu0 0.0
  %4340 = vmatpush2.msra.mxu0 0.0
  %4341 = vmatprep.subr.mxu0 0.0
  %4342 = vmatpush2.msra.mxu0 0.0
  %4343 = vmatprep.subr.mxu0 0.0
  %4344 = vmatpush2.msra.mxu0 0.0
  %4345 = vmatprep.subr.mxu0 0.0
  %4346 = vmatpush2.msra.mxu0 0.0
  %4347 = vmatprep.subr.mxu0 0.0
  %4348 = vmatpush2.msra.mxu0 0.0
  %4349 = vmatprep.subr.mxu0 0.0
  %4350 = vmatpush2.msra.mxu0 0.0
  %4351 = vmatprep.subr.mxu0 0.0
  %4352 = vmatpush2.msra.mxu0 0.0
  %4353 = vmatprep.subr.mxu0 0.0
  %4354 = vmatpush2.msra.mxu0 0.0
  %4355 = vmatprep.subr.mxu0 0.0
  %4356 = vmatpush2.msra.mxu0 0.0
  %4357 = vmatprep.subr.mxu0 0.0
  %4358 = vmatpush2.msra.mxu0 0.0
  %4359 = vmatprep.subr.mxu0 0.0
  %4360 = vmatpush2.msra.mxu0 0.0
  %4361 = vmatprep.subr.mxu0 0.0
  %4362 = vmatpush2.msra.mxu0 0.0
  %4363 = vmatprep.subr.mxu0 0.0
  %4364 = vmatpush2.msra.mxu0 0.0
  %4365 = vmatprep.subr.mxu0 0.0
  %4366 = vmatpush2.msra.mxu0 0.0
  %4367 = vmatprep.mubr.f32.mxu0 0.0
  %4368 = vmatmul.mubr.f32.gmra.mxu0 %v4302
  %v4369 = vpop.f32.mrf.mxu0
  %v4370 = vadd.f32 %v1209, %v4369
  %v4371 = vpop.f32.mrf.mxu0
  %4372 = vdwg.mxu0
  %s4373 = scalar_lea.vmem %s15, 24
  %4374 = vst [vmem:[%s4373] sm:$0xff] %v4370
  %4375 = vmax.xlane.f32.xlu0 %v4370
  %v4376 = vpop.xlane.xlu0 %4375
  %vm4377 = vcmp.eq.f32.partialorder %v4370, %v4376
  %v4378 = vsel %vm4377, %v513, 128
  %v4379 = vand.u32 %v4378, 65535
  %v4380 = vshra.s32 %v4378, 16
  %v4381 = vcvt.s32.f32 %v4379
  %v4382 = vcvt.s32.f32 %v4380
  %4383 = vmin.xlane.f32.xlu0 %v4382
  %v4384 = vpop.xlane.xlu0 %4383
  %vm4385 = vcmp.eq.f32.partialorder %v4382, %v4384
  %v4386 = vsel %vm4385, %v4381, inf
  %4387 = vmin.xlane.f32.xlu0 %v4386
  %v4388 = vpop.xlane.xlu0 %4387
  %v4389 = vcvt.f32.s32 %v4388
  %v4390 = vcvt.f32.s32 %v4384
  %v4391 = vshll.u32 %v4390, 16
  %v4392 = vadd.s32 %v4391, %v4389
  %vm4393 = vcmp.eq.s32.totalorder %v513, %v4392
  %v4394 = vsel %vm4393, 1, 0
  %v4395 = vcvt.s32.f32 %v4394
  %4396 = vmatprep.subr.mxu0 0.0
  %4397 = vmatpush1.msra.mxu0 %v110
  %4398 = vmatprep.subr.mxu0 0.0
  %4399 = vmatpush1.msra.mxu0 %v109
  %4400 = vmatprep.subr.mxu0 0.0
  %4401 = vmatpush1.msra.mxu0 %v108
  %4402 = vmatprep.subr.mxu0 0.0
  %4403 = vmatpush1.msra.mxu0 %v107
  %4404 = vmatprep.subr.mxu0 0.0
  %4405 = vmatpush1.msra.mxu0 %v106
  %4406 = vmatprep.subr.mxu0 0.0
  %4407 = vmatpush1.msra.mxu0 %v105
  %4408 = vmatprep.subr.mxu0 0.0
  %4409 = vmatpush1.msra.mxu0 %v104
  %4410 = vmatprep.subr.mxu0 0.0
  %4411 = vmatpush1.msra.mxu0 %v103
  %4412 = vmatprep.subr.mxu0 0.0
  %4413 = vmatpush1.msra.mxu0 %v102
  %4414 = vmatprep.subr.mxu0 0.0
  %4415 = vmatpush1.msra.mxu0 %v101
  %4416 = vmatprep.subr.mxu0 0.0
  %4417 = vmatpush1.msra.mxu0 %v100
  %4418 = vmatprep.subr.mxu0 0.0
  %4419 = vmatpush1.msra.mxu0 %v99
  %4420 = vmatprep.subr.mxu0 0.0
  %4421 = vmatpush1.msra.mxu0 %v98
  %4422 = vmatprep.subr.mxu0 0.0
  %4423 = vmatpush1.msra.mxu0 %v97
  %4424 = vmatprep.subr.mxu0 0.0
  %4425 = vmatpush1.msra.mxu0 %v96
  %4426 = vmatprep.subr.mxu0 0.0
  %4427 = vmatpush1.msra.mxu0 %v95
  %4428 = vmatprep.subr.mxu0 0.0
  %4429 = vmatpush2.msra.mxu0 0.0
  %4430 = vmatprep.subr.mxu0 0.0
  %4431 = vmatpush2.msra.mxu0 0.0
  %4432 = vmatprep.subr.mxu0 0.0
  %4433 = vmatpush2.msra.mxu0 0.0
  %4434 = vmatprep.subr.mxu0 0.0
  %4435 = vmatpush2.msra.mxu0 0.0
  %4436 = vmatprep.subr.mxu0 0.0
  %4437 = vmatpush2.msra.mxu0 0.0
  %4438 = vmatprep.subr.mxu0 0.0
  %4439 = vmatpush2.msra.mxu0 0.0
  %4440 = vmatprep.subr.mxu0 0.0
  %4441 = vmatpush2.msra.mxu0 0.0
  %4442 = vmatprep.subr.mxu0 0.0
  %4443 = vmatpush2.msra.mxu0 0.0
  %4444 = vmatprep.subr.mxu0 0.0
  %4445 = vmatpush2.msra.mxu0 0.0
  %4446 = vmatprep.subr.mxu0 0.0
  %4447 = vmatpush2.msra.mxu0 0.0
  %4448 = vmatprep.subr.mxu0 0.0
  %4449 = vmatpush2.msra.mxu0 0.0
  %4450 = vmatprep.subr.mxu0 0.0
  %4451 = vmatpush2.msra.mxu0 0.0
  %4452 = vmatprep.subr.mxu0 0.0
  %4453 = vmatpush2.msra.mxu0 0.0
  %4454 = vmatprep.subr.mxu0 0.0
  %4455 = vmatpush2.msra.mxu0 0.0
  %4456 = vmatprep.subr.mxu0 0.0
  %4457 = vmatpush2.msra.mxu0 0.0
  %4458 = vmatprep.subr.mxu0 0.0
  %4459 = vmatpush2.msra.mxu0 0.0
  %4460 = vmatprep.mubr.f32.mxu0 0.0
  %4461 = vmatmul.mubr.f32.gmra.mxu0 %v4395
  %v4462 = vpop.f32.mrf.mxu0
  %v4463 = vadd.f32 0.0, %v4462
  %v4464 = vpop.f32.mrf.mxu0
  %4465 = vdwg.mxu0
  %4466 = vst [vmem:[#allocation3 + $0x8] sm:$0xff] %v4463
  %4467 = vmatprep.subr.mxu0 0.0
  %4468 = vmatpush1.msra.mxu0 %v91
  %4469 = vmatprep.subr.mxu0 0.0
  %4470 = vmatpush1.msra.mxu0 %v90
  %4471 = vmatprep.subr.mxu0 0.0
  %4472 = vmatpush1.msra.mxu0 %v89
  %4473 = vmatprep.subr.mxu0 0.0
  %4474 = vmatpush1.msra.mxu0 %v88
  %4475 = vmatprep.subr.mxu0 0.0
  %4476 = vmatpush1.msra.mxu0 %v87
  %4477 = vmatprep.subr.mxu0 0.0
  %4478 = vmatpush1.msra.mxu0 %v86
  %4479 = vmatprep.subr.mxu0 0.0
  %4480 = vmatpush1.msra.mxu0 %v85
  %4481 = vmatprep.subr.mxu0 0.0
  %4482 = vmatpush1.msra.mxu0 %v84
  %4483 = vmatprep.subr.mxu0 0.0
  %4484 = vmatpush1.msra.mxu0 %v83
  %4485 = vmatprep.subr.mxu0 0.0
  %4486 = vmatpush1.msra.mxu0 %v82
  %4487 = vmatprep.subr.mxu0 0.0
  %4488 = vmatpush1.msra.mxu0 %v81
  %4489 = vmatprep.subr.mxu0 0.0
  %4490 = vmatpush1.msra.mxu0 %v80
  %4491 = vmatprep.subr.mxu0 0.0
  %4492 = vmatpush1.msra.mxu0 %v79
  %4493 = vmatprep.subr.mxu0 0.0
  %4494 = vmatpush1.msra.mxu0 %v78
  %4495 = vmatprep.subr.mxu0 0.0
  %4496 = vmatpush1.msra.mxu0 %v77
  %4497 = vmatprep.subr.mxu0 0.0
  %4498 = vmatpush1.msra.mxu0 %v76
  %4499 = vmatprep.subr.mxu0 0.0
  %4500 = vmatpush2.msra.mxu0 0.0
  %4501 = vmatprep.subr.mxu0 0.0
  %4502 = vmatpush2.msra.mxu0 0.0
  %4503 = vmatprep.subr.mxu0 0.0
  %4504 = vmatpush2.msra.mxu0 0.0
  %4505 = vmatprep.subr.mxu0 0.0
  %4506 = vmatpush2.msra.mxu0 0.0
  %4507 = vmatprep.subr.mxu0 0.0
  %4508 = vmatpush2.msra.mxu0 0.0
  %4509 = vmatprep.subr.mxu0 0.0
  %4510 = vmatpush2.msra.mxu0 0.0
  %4511 = vmatprep.subr.mxu0 0.0
  %4512 = vmatpush2.msra.mxu0 0.0
  %4513 = vmatprep.subr.mxu0 0.0
  %4514 = vmatpush2.msra.mxu0 0.0
  %4515 = vmatprep.subr.mxu0 0.0
  %4516 = vmatpush2.msra.mxu0 0.0
  %4517 = vmatprep.subr.mxu0 0.0
  %4518 = vmatpush2.msra.mxu0 0.0
  %4519 = vmatprep.subr.mxu0 0.0
  %4520 = vmatpush2.msra.mxu0 0.0
  %4521 = vmatprep.subr.mxu0 0.0
  %4522 = vmatpush2.msra.mxu0 0.0
  %4523 = vmatprep.subr.mxu0 0.0
  %4524 = vmatpush2.msra.mxu0 0.0
  %4525 = vmatprep.subr.mxu0 0.0
  %4526 = vmatpush2.msra.mxu0 0.0
  %4527 = vmatprep.subr.mxu0 0.0
  %4528 = vmatpush2.msra.mxu0 0.0
  %4529 = vmatprep.subr.mxu0 0.0
  %4530 = vmatpush2.msra.mxu0 0.0
  %4531 = vmatprep.mubr.f32.mxu0 0.0
  %4532 = vmatmul.mubr.f32.gmra.mxu0 %v4302
  %v4533 = vpop.f32.mrf.mxu0
  %v4534 = vadd.f32 %v279, %v4533
  %v4535 = vpop.f32.mrf.mxu0
  %4536 = vdwg.mxu0
  %v4538 = vcombine.high %v4534, %v4534
  %v4540 = vunpack.c.l.s4 1966171168
  %v4541 = vunpack.c.0.s8 %v4540
  %v4542 = vlaneseq
  %v4543 = vshrl.u32 %v4542, 7
  %v4544 = vsub.s32 %v4541, %v4543
  %v4545 = vrot.slane %v4534, %v4544
  %v4547 = vunpack.c.l.s4 1966171168
  %v4548 = vunpack.c.0.s8 %v4547
  %v4549 = vlaneseq
  %v4550 = vshrl.u32 %v4549, 7
  %v4551 = vsub.s32 %v4548, %v4550
  %v4552 = vrot.slane %v4538, %v4551
  %v4553 = vcombine.high %v4545, %v4545
  %v4554 = vcombine.high %v4552, %v4552
  %v4556 = vunpack.c.l.s4 1966171168
  %v4557 = vunpack.c.0.s8 %v4556
  %v4558 = vlaneseq
  %v4559 = vshrl.u32 %v4558, 7
  %v4560 = vsub.s32 %v4557, %v4559
  %v4561 = vrot.slane %v4545, %v4560
  %v4563 = vunpack.c.l.s4 1966171168
  %v4564 = vunpack.c.0.s8 %v4563
  %v4565 = vlaneseq
  %v4566 = vshrl.u32 %v4565, 7
  %v4567 = vsub.s32 %v4564, %v4566
  %v4568 = vrot.slane %v4552, %v4567
  %v4570 = vunpack.c.l.s4 1966171168
  %v4571 = vunpack.c.0.s8 %v4570
  %v4572 = vlaneseq
  %v4573 = vshrl.u32 %v4572, 7
  %v4574 = vsub.s32 %v4571, %v4573
  %v4575 = vrot.slane %v4553, %v4574
  %v4577 = vunpack.c.l.s4 1966171168
  %v4578 = vunpack.c.0.s8 %v4577
  %v4579 = vlaneseq
  %v4580 = vshrl.u32 %v4579, 7
  %v4581 = vsub.s32 %v4578, %v4580
  %v4582 = vrot.slane %v4554, %v4581
  %v4583 = vcombine.high %v4561, %v4561
  %v4584 = vcombine.high %v4568, %v4568
  %v4585 = vcombine.high %v4575, %v4575
  %v4586 = vcombine.high %v4582, %v4582
  %v4587 = vlaneseq
  %v4588 = vshrl.u32 %v4587, 7
  %v4589 = vsub.s32 0, %v4588
  %v4590 = vrot.slane %v4561, %v4589
  %v4591 = vlaneseq
  %v4592 = vshrl.u32 %v4591, 7
  %v4593 = vsub.s32 0, %v4592
  %v4594 = vrot.slane %v4575, %v4593
  %v4595 = vlaneseq
  %v4596 = vshrl.u32 %v4595, 7
  %v4597 = vsub.s32 0, %v4596
  %v4598 = vrot.slane %v4583, %v4597
  %v4599 = vlaneseq
  %v4600 = vshrl.u32 %v4599, 7
  %v4601 = vsub.s32 0, %v4600
  %v4602 = vrot.slane %v4585, %v4601
  %v4603 = vlaneseq
  %v4604 = vshrl.u32 %v4603, 7
  %v4605 = vsub.s32 0, %v4604
  %v4606 = vrot.slane %v4568, %v4605
  %v4607 = vlaneseq
  %v4608 = vshrl.u32 %v4607, 7
  %v4609 = vsub.s32 0, %v4608
  %v4610 = vrot.slane %v4582, %v4609
  %v4611 = vlaneseq
  %v4612 = vshrl.u32 %v4611, 7
  %v4613 = vsub.s32 0, %v4612
  %v4614 = vrot.slane %v4584, %v4613
  %v4615 = vlaneseq
  %v4616 = vshrl.u32 %v4615, 7
  %v4617 = vsub.s32 0, %v4616
  %v4618 = vrot.slane %v4586, %v4617
  %v4627 = vadd.f32 %v68, %v4590
  %v4628 = vadd.f32 %v69, %v4594
  %v4629 = vadd.f32 %v70, %v4598
  %v4630 = vadd.f32 %v71, %v4602
  %v4631 = vadd.f32 %v72, %v4606
  %v4632 = vadd.f32 %v73, %v4610
  %v4633 = vadd.f32 %v74, %v4614
  %v4634 = vadd.f32 %v75, %v4618
  %v4635 = vtanh.pop %v4627
  %v4636 = vtanh.pop %v4628
  %v4637 = vtanh.pop %v4629
  %v4638 = vtanh.pop %v4630
  %v4639 = vtanh.pop %v4631
  %v4640 = vtanh.pop %v4632
  %v4641 = vtanh.pop %v4633
  %v4642 = vtanh.pop %v4634
  %v4643 = vmul.f32 %v4635, %v461
  %v4644 = vmul.f32 %v4636, %v461
  %v4645 = vmul.f32 %v4637, %v461
  %v4646 = vmul.f32 %v4638, %v461
  %v4647 = vmul.f32 %v4639, %v461
  %v4648 = vmul.f32 %v4640, %v461
  %v4649 = vmul.f32 %v4641, %v461
  %v4650 = vmul.f32 %v4642, %v461
  %4651 = vadd.xlane.f32.xlu0 %v4643
  %v4652 = vpop.xlane.xlu0 %4651
  %4653 = vadd.xlane.f32.xlu0 %v4644
  %v4654 = vpop.xlane.xlu0 %4653
  %4655 = vadd.xlane.f32.xlu0 %v4645
  %v4656 = vpop.xlane.xlu0 %4655
  %4657 = vadd.xlane.f32.xlu0 %v4646
  %v4658 = vpop.xlane.xlu0 %4657
  %4659 = vadd.xlane.f32.xlu0 %v4647
  %v4660 = vpop.xlane.xlu0 %4659
  %4661 = vadd.xlane.f32.xlu0 %v4648
  %v4662 = vpop.xlane.xlu0 %4661
  %4663 = vadd.xlane.f32.xlu0 %v4649
  %v4664 = vpop.xlane.xlu0 %4663
  %4665 = vadd.xlane.f32.xlu0 %v4650
  %v4666 = vpop.xlane.xlu0 %4665
  %v4667 = vadd.f32 %v4652, %v494
  %v4668 = vadd.f32 %v4654, %v494
  %v4669 = vadd.f32 %v4656, %v494
  %v4670 = vadd.f32 %v4658, %v494
  %v4671 = vadd.f32 %v4660, %v494
  %v4672 = vadd.f32 %v4662, %v494
  %v4673 = vadd.f32 %v4664, %v494
  %v4674 = vadd.f32 %v4666, %v494
  %v4683 = vlaneseq
  %v4684 = vshrl.u32 %v4683, 7
  %v4685 = vsub.s32 %v513, %v4684
  %v4686 = vrot.slane %v4667, %v4685
  %v4687 = vlaneseq
  %v4688 = vshrl.u32 %v4687, 7
  %v4689 = vsub.s32 %v513, %v4688
  %v4690 = vrot.slane %v4668, %v4689
  %v4691 = vlaneseq
  %v4692 = vshrl.u32 %v4691, 7
  %v4693 = vsub.s32 %v513, %v4692
  %v4694 = vrot.slane %v4669, %v4693
  %v4695 = vlaneseq
  %v4696 = vshrl.u32 %v4695, 7
  %v4697 = vsub.s32 %v513, %v4696
  %v4698 = vrot.slane %v4670, %v4697
  %v4699 = vlaneseq
  %v4700 = vshrl.u32 %v4699, 7
  %v4701 = vsub.s32 %v513, %v4700
  %v4702 = vrot.slane %v4671, %v4701
  %v4703 = vlaneseq
  %v4704 = vshrl.u32 %v4703, 7
  %v4705 = vsub.s32 %v513, %v4704
  %v4706 = vrot.slane %v4672, %v4705
  %v4707 = vlaneseq
  %v4708 = vshrl.u32 %v4707, 7
  %v4709 = vsub.s32 %v513, %v4708
  %v4710 = vrot.slane %v4673, %v4709
  %v4711 = vlaneseq
  %v4712 = vshrl.u32 %v4711, 7
  %v4713 = vsub.s32 %v513, %v4712
  %v4714 = vrot.slane %v4674, %v4713
  %v4715 = vsel %vm546, %v4690, %v4686
  %v4716 = vsel %vm548, %v4694, %v4715
  %v4717 = vsel %vm550, %v4698, %v4716
  %v4718 = vsel %vm552, %v4702, %v4717
  %v4719 = vsel %vm554, %v4706, %v4718
  %v4720 = vsel %vm556, %v4710, %v4719
  %v4721 = vsel %vm558, %v4714, %v4720
  %v4723 = vsel %vm561, %v4721, -inf
  %4724 = vmax.xlane.f32.xlu0 %v4723
  %v4725 = vpop.xlane.xlu0 %4724
  %v4727 = vlaneseq
  %v4728 = vshrl.u32 %v4727, 7
  %v4729 = vsub.s32 0, %v4728
  %v4730 = vrot.slane %v4725, %v4729
  %v4731 = vlaneseq
  %v4732 = vshrl.u32 %v4731, 7
  %v4733 = vsub.s32 1, %v4732
  %v4734 = vrot.slane %v4725, %v4733
  %v4735 = vlaneseq
  %v4736 = vshrl.u32 %v4735, 7
  %v4737 = vsub.s32 2, %v4736
  %v4738 = vrot.slane %v4725, %v4737
  %v4739 = vlaneseq
  %v4740 = vshrl.u32 %v4739, 7
  %v4741 = vsub.s32 3, %v4740
  %v4742 = vrot.slane %v4725, %v4741
  %v4743 = vlaneseq
  %v4744 = vshrl.u32 %v4743, 7
  %v4745 = vsub.s32 4, %v4744
  %v4746 = vrot.slane %v4725, %v4745
  %v4747 = vlaneseq
  %v4748 = vshrl.u32 %v4747, 7
  %v4749 = vsub.s32 5, %v4748
  %v4750 = vrot.slane %v4725, %v4749
  %v4751 = vlaneseq
  %v4752 = vshrl.u32 %v4751, 7
  %v4753 = vsub.s32 6, %v4752
  %v4754 = vrot.slane %v4725, %v4753
  %v4755 = vlaneseq
  %v4756 = vshrl.u32 %v4755, 7
  %v4757 = vsub.s32 7, %v4756
  %v4758 = vrot.slane %v4725, %v4757
  %v4767 = vsub.f32 %v4667, %v4730
  %v4768 = vsub.f32 %v4668, %v4734
  %v4769 = vsub.f32 %v4669, %v4738
  %v4770 = vsub.f32 %v4670, %v4742
  %v4771 = vsub.f32 %v4671, %v4746
  %v4772 = vsub.f32 %v4672, %v4750
  %v4773 = vsub.f32 %v4673, %v4754
  %v4774 = vsub.f32 %v4674, %v4758
  %v4775 = vmul.f32 %v4767, 1.442695
  %v4776 = vpow.pop %v4775
  %v4777 = vmul.f32 %v4768, 1.442695
  %v4778 = vpow.pop %v4777
  %v4779 = vmul.f32 %v4769, 1.442695
  %v4780 = vpow.pop %v4779
  %v4781 = vmul.f32 %v4770, 1.442695
  %v4782 = vpow.pop %v4781
  %v4783 = vmul.f32 %v4771, 1.442695
  %v4784 = vpow.pop %v4783
  %v4785 = vmul.f32 %v4772, 1.442695
  %v4786 = vpow.pop %v4785
  %v4787 = vmul.f32 %v4773, 1.442695
  %v4788 = vpow.pop %v4787
  %v4789 = vmul.f32 %v4774, 1.442695
  %v4790 = vpow.pop %v4789
  %4799 = vset.pattern.permute.xlu0 0
  %4800 = vperm.xlu0 %4799, %v4776
  %v4801 = vpop.permute.xlu0 %4800
  %4802 = vset.pattern.permute.xlu0 0
  %4803 = vperm.xlu0 %4802, %v4778
  %v4804 = vpop.permute.xlu0 %4803
  %4805 = vset.pattern.permute.xlu0 0
  %4806 = vperm.xlu0 %4805, %v4780
  %v4807 = vpop.permute.xlu0 %4806
  %4808 = vset.pattern.permute.xlu0 0
  %4809 = vperm.xlu0 %4808, %v4782
  %v4810 = vpop.permute.xlu0 %4809
  %4811 = vset.pattern.permute.xlu0 0
  %4812 = vperm.xlu0 %4811, %v4784
  %v4813 = vpop.permute.xlu0 %4812
  %4814 = vset.pattern.permute.xlu0 0
  %4815 = vperm.xlu0 %4814, %v4786
  %v4816 = vpop.permute.xlu0 %4815
  %4817 = vset.pattern.permute.xlu0 0
  %4818 = vperm.xlu0 %4817, %v4788
  %v4819 = vpop.permute.xlu0 %4818
  %4820 = vset.pattern.permute.xlu0 0
  %4821 = vperm.xlu0 %4820, %v4790
  %v4822 = vpop.permute.xlu0 %4821
  %v4823 = vlaneseq
  %v4824 = vshrl.u32 %v4823, 7
  %v4825 = vsub.s32 %v513, %v4824
  %v4826 = vrot.slane %v4801, %v4825
  %v4827 = vlaneseq
  %v4828 = vshrl.u32 %v4827, 7
  %v4829 = vsub.s32 %v513, %v4828
  %v4830 = vrot.slane %v4804, %v4829
  %v4831 = vlaneseq
  %v4832 = vshrl.u32 %v4831, 7
  %v4833 = vsub.s32 %v513, %v4832
  %v4834 = vrot.slane %v4807, %v4833
  %v4835 = vlaneseq
  %v4836 = vshrl.u32 %v4835, 7
  %v4837 = vsub.s32 %v513, %v4836
  %v4838 = vrot.slane %v4810, %v4837
  %v4839 = vlaneseq
  %v4840 = vshrl.u32 %v4839, 7
  %v4841 = vsub.s32 %v513, %v4840
  %v4842 = vrot.slane %v4813, %v4841
  %v4843 = vlaneseq
  %v4844 = vshrl.u32 %v4843, 7
  %v4845 = vsub.s32 %v513, %v4844
  %v4846 = vrot.slane %v4816, %v4845
  %v4847 = vlaneseq
  %v4848 = vshrl.u32 %v4847, 7
  %v4849 = vsub.s32 %v513, %v4848
  %v4850 = vrot.slane %v4819, %v4849
  %v4851 = vlaneseq
  %v4852 = vshrl.u32 %v4851, 7
  %v4853 = vsub.s32 %v513, %v4852
  %v4854 = vrot.slane %v4822, %v4853
  %v4855 = vsel %vm546, %v4830, %v4826
  %v4856 = vsel %vm548, %v4834, %v4855
  %v4857 = vsel %vm550, %v4838, %v4856
  %v4858 = vsel %vm552, %v4842, %v4857
  %v4859 = vsel %vm554, %v4846, %v4858
  %v4860 = vsel %vm556, %v4850, %v4859
  %v4861 = vsel %vm558, %v4854, %v4860
  %v4863 = vsel %vm561, %v4861, 0.0
  %4864 = vadd.xlane.f32.xlu0 %v4863
  %v4865 = vpop.xlane.xlu0 %4864
  %v4866 = vrcp.pop %v4865
  %v4868 = vlaneseq
  %v4869 = vshrl.u32 %v4868, 7
  %v4870 = vsub.s32 0, %v4869
  %v4871 = vrot.slane %v4866, %v4870
  %v4872 = vlaneseq
  %v4873 = vshrl.u32 %v4872, 7
  %v4874 = vsub.s32 1, %v4873
  %v4875 = vrot.slane %v4866, %v4874
  %v4876 = vlaneseq
  %v4877 = vshrl.u32 %v4876, 7
  %v4878 = vsub.s32 2, %v4877
  %v4879 = vrot.slane %v4866, %v4878
  %v4880 = vlaneseq
  %v4881 = vshrl.u32 %v4880, 7
  %v4882 = vsub.s32 3, %v4881
  %v4883 = vrot.slane %v4866, %v4882
  %v4884 = vlaneseq
  %v4885 = vshrl.u32 %v4884, 7
  %v4886 = vsub.s32 4, %v4885
  %v4887 = vrot.slane %v4866, %v4886
  %v4888 = vlaneseq
  %v4889 = vshrl.u32 %v4888, 7
  %v4890 = vsub.s32 5, %v4889
  %v4891 = vrot.slane %v4866, %v4890
  %v4892 = vlaneseq
  %v4893 = vshrl.u32 %v4892, 7
  %v4894 = vsub.s32 6, %v4893
  %v4895 = vrot.slane %v4866, %v4894
  %v4896 = vlaneseq
  %v4897 = vshrl.u32 %v4896, 7
  %v4898 = vsub.s32 7, %v4897
  %v4899 = vrot.slane %v4866, %v4898
  %v4908 = vmul.f32 %v4776, %v4871
  %v4909 = vmul.f32 %v4778, %v4875
  %v4910 = vmul.f32 %v4780, %v4879
  %v4911 = vmul.f32 %v4782, %v4883
  %v4912 = vmul.f32 %v4784, %v4887
  %v4913 = vmul.f32 %v4786, %v4891
  %v4914 = vmul.f32 %v4788, %v4895
  %v4915 = vmul.f32 %v4790, %v4899
  %4917 = vset.pattern.permute.xlu0 0
  %4918 = vperm.xlu0 %4917, %v4908
  %v4919 = vpop.permute.xlu0 %4918
  %4922 = vset.pattern.permute.xlu0 0
  %4923 = vperm.xlu0 %4922, %v4909
  %v4924 = vpop.permute.xlu0 %4923
  %4927 = vset.pattern.permute.xlu0 0
  %4928 = vperm.xlu0 %4927, %v4910
  %v4929 = vpop.permute.xlu0 %4928
  %4932 = vset.pattern.permute.xlu0 0
  %4933 = vperm.xlu0 %4932, %v4911
  %v4934 = vpop.permute.xlu0 %4933
  %4937 = vset.pattern.permute.xlu0 0
  %4938 = vperm.xlu0 %4937, %v4912
  %v4939 = vpop.permute.xlu0 %4938
  %4942 = vset.pattern.permute.xlu0 0
  %4943 = vperm.xlu0 %4942, %v4913
  %v4944 = vpop.permute.xlu0 %4943
  %4947 = vset.pattern.permute.xlu0 0
  %4948 = vperm.xlu0 %4947, %v4914
  %v4949 = vpop.permute.xlu0 %4948
  %4952 = vset.pattern.permute.xlu0 0
  %4953 = vperm.xlu0 %4952, %v4915
  %v4954 = vpop.permute.xlu0 %4953
  %v4956 = vmul.f32 %v4919, %v60
  %v4957 = vmul.f32 %v4924, %v61
  %v4958 = vmul.f32 %v4929, %v62
  %v4959 = vmul.f32 %v4934, %v63
  %v4960 = vmul.f32 %v4939, %v64
  %v4961 = vmul.f32 %v4944, %v65
  %v4962 = vmul.f32 %v4949, %v66
  %v4963 = vmul.f32 %v4954, %v67
  %v4964 = vrot.slane %v4956, 4
  %v4965 = vadd.f32 %v4956, %v4964
  %v4966 = vrot.slane %v4965, 2
  %v4967 = vadd.f32 %v4965, %v4966
  %v4968 = vrot.slane %v4967, 1
  %v4969 = vadd.f32 %v4967, %v4968
  %v4970 = vrot.slane %v4957, 4
  %v4971 = vadd.f32 %v4957, %v4970
  %v4972 = vrot.slane %v4971, 2
  %v4973 = vadd.f32 %v4971, %v4972
  %v4974 = vrot.slane %v4973, 1
  %v4975 = vadd.f32 %v4973, %v4974
  %v4976 = vrot.slane %v4958, 4
  %v4977 = vadd.f32 %v4958, %v4976
  %v4978 = vrot.slane %v4977, 2
  %v4979 = vadd.f32 %v4977, %v4978
  %v4980 = vrot.slane %v4979, 1
  %v4981 = vadd.f32 %v4979, %v4980
  %v4982 = vrot.slane %v4959, 4
  %v4983 = vadd.f32 %v4959, %v4982
  %v4984 = vrot.slane %v4983, 2
  %v4985 = vadd.f32 %v4983, %v4984
  %v4986 = vrot.slane %v4985, 1
  %v4987 = vadd.f32 %v4985, %v4986
  %v4988 = vrot.slane %v4960, 4
  %v4989 = vadd.f32 %v4960, %v4988
  %v4990 = vrot.slane %v4989, 2
  %v4991 = vadd.f32 %v4989, %v4990
  %v4992 = vrot.slane %v4991, 1
  %v4993 = vadd.f32 %v4991, %v4992
  %v4994 = vrot.slane %v4961, 4
  %v4995 = vadd.f32 %v4961, %v4994
  %v4996 = vrot.slane %v4995, 2
  %v4997 = vadd.f32 %v4995, %v4996
  %v4998 = vrot.slane %v4997, 1
  %v4999 = vadd.f32 %v4997, %v4998
  %v5000 = vrot.slane %v4962, 4
  %v5001 = vadd.f32 %v4962, %v5000
  %v5002 = vrot.slane %v5001, 2
  %v5003 = vadd.f32 %v5001, %v5002
  %v5004 = vrot.slane %v5003, 1
  %v5005 = vadd.f32 %v5003, %v5004
  %v5006 = vrot.slane %v4963, 4
  %v5007 = vadd.f32 %v4963, %v5006
  %v5008 = vrot.slane %v5007, 2
  %v5009 = vadd.f32 %v5007, %v5008
  %v5010 = vrot.slane %v5009, 1
  %v5011 = vadd.f32 %v5009, %v5010
  %v5020 = vsel %vm546, %v4975, %v4969
  %v5021 = vsel %vm548, %v4981, %v5020
  %v5022 = vsel %vm550, %v4987, %v5021
  %v5023 = vsel %vm552, %v4993, %v5022
  %v5024 = vsel %vm554, %v4999, %v5023
  %v5025 = vsel %vm556, %v5005, %v5024
  %v5026 = vsel %vm558, %v5011, %v5025
  %5028 = vst [vmem:[#allocation3] sm:$0xff] %v5026
  %v5029 = vld [vmem:[#allocation3] sm:$0xff]
  %v5030 = vld [vmem:[#allocation3 + $0x8] sm:$0xff]
  %5031 = vmatprep.subr.mxu0 %v157
  %5032 = vmatpush1.msra.mxu0 %v156
  %5033 = vmatprep.subr.mxu0 %v154
  %5034 = vmatpush1.msra.mxu0 %v153
  %5035 = vmatprep.subr.mxu0 %v151
  %5036 = vmatpush1.msra.mxu0 %v150
  %5037 = vmatprep.subr.mxu0 %v148
  %5038 = vmatpush1.msra.mxu0 %v147
  %5039 = vmatprep.subr.mxu0 %v145
  %5040 = vmatpush1.msra.mxu0 %v144
  %5041 = vmatprep.subr.mxu0 %v142
  %5042 = vmatpush1.msra.mxu0 %v141
  %5043 = vmatprep.subr.mxu0 %v139
  %5044 = vmatpush1.msra.mxu0 %v138
  %5045 = vmatprep.subr.mxu0 %v136
  %5046 = vmatpush1.msra.mxu0 %v135
  %5047 = vmatprep.subr.mxu0 %v133
  %5048 = vmatpush1.msra.mxu0 %v132
  %5049 = vmatprep.subr.mxu0 %v130
  %5050 = vmatpush1.msra.mxu0 %v129
  %5051 = vmatprep.subr.mxu0 %v127
  %5052 = vmatpush1.msra.mxu0 %v126
  %5053 = vmatprep.subr.mxu0 %v124
  %5054 = vmatpush1.msra.mxu0 %v123
  %5055 = vmatprep.subr.mxu0 %v121
  %5056 = vmatpush1.msra.mxu0 %v120
  %5057 = vmatprep.subr.mxu0 %v118
  %5058 = vmatpush1.msra.mxu0 %v117
  %5059 = vmatprep.subr.mxu0 %v115
  %5060 = vmatpush1.msra.mxu0 %v114
  %5061 = vmatprep.subr.mxu0 %v112
  %5062 = vmatpush1.msra.mxu0 %v111
  %5063 = vmatprep.subr.mxu0 %v205
  %5064 = vmatpush2.msra.mxu0 %v204
  %5065 = vmatprep.subr.mxu0 %v202
  %5066 = vmatpush2.msra.mxu0 %v201
  %5067 = vmatprep.subr.mxu0 %v199
  %5068 = vmatpush2.msra.mxu0 %v198
  %5069 = vmatprep.subr.mxu0 %v196
  %5070 = vmatpush2.msra.mxu0 %v195
  %5071 = vmatprep.subr.mxu0 %v193
  %5072 = vmatpush2.msra.mxu0 %v192
  %5073 = vmatprep.subr.mxu0 %v190
  %5074 = vmatpush2.msra.mxu0 %v189
  %5075 = vmatprep.subr.mxu0 %v187
  %5076 = vmatpush2.msra.mxu0 %v186
  %5077 = vmatprep.subr.mxu0 %v184
  %5078 = vmatpush2.msra.mxu0 %v183
  %5079 = vmatprep.subr.mxu0 %v181
  %5080 = vmatpush2.msra.mxu0 %v180
  %5081 = vmatprep.subr.mxu0 %v178
  %5082 = vmatpush2.msra.mxu0 %v177
  %5083 = vmatprep.subr.mxu0 %v175
  %5084 = vmatpush2.msra.mxu0 %v174
  %5085 = vmatprep.subr.mxu0 %v172
  %5086 = vmatpush2.msra.mxu0 %v171
  %5087 = vmatprep.subr.mxu0 %v169
  %5088 = vmatpush2.msra.mxu0 %v168
  %5089 = vmatprep.subr.mxu0 %v166
  %5090 = vmatpush2.msra.mxu0 %v165
  %5091 = vmatprep.subr.mxu0 %v163
  %5092 = vmatpush2.msra.mxu0 %v162
  %5093 = vmatprep.subr.mxu0 %v160
  %5094 = vmatpush2.msra.mxu0 %v159
  %5095 = vmatprep.mubr.f32.mxu0 %v5030
  %5096 = vmatmul.mubr.f32.gmra.mxu0 %v5029
  %v5097 = vpop.f32.mrf.mxu0
  %v5098 = vadd.f32 %v874, %v5097
  %v5099 = vpop.f32.mrf.mxu0
  %v5100 = vadd.f32 %v878, %v5099
  %5101 = vdwg.mxu0
  %5102 = vmatprep.subr.mxu0 0.0
  %5103 = vmatpush1.msra.mxu0 %v158
  %5104 = vmatprep.subr.mxu0 0.0
  %5105 = vmatpush1.msra.mxu0 %v155
  %5106 = vmatprep.subr.mxu0 0.0
  %5107 = vmatpush1.msra.mxu0 %v152
  %5108 = vmatprep.subr.mxu0 0.0
  %5109 = vmatpush1.msra.mxu0 %v149
  %5110 = vmatprep.subr.mxu0 0.0
  %5111 = vmatpush1.msra.mxu0 %v146
  %5112 = vmatprep.subr.mxu0 0.0
  %5113 = vmatpush1.msra.mxu0 %v143
  %5114 = vmatprep.subr.mxu0 0.0
  %5115 = vmatpush1.msra.mxu0 %v140
  %5116 = vmatprep.subr.mxu0 0.0
  %5117 = vmatpush1.msra.mxu0 %v137
  %5118 = vmatprep.subr.mxu0 0.0
  %5119 = vmatpush1.msra.mxu0 %v134
  %5120 = vmatprep.subr.mxu0 0.0
  %5121 = vmatpush1.msra.mxu0 %v131
  %5122 = vmatprep.subr.mxu0 0.0
  %5123 = vmatpush1.msra.mxu0 %v128
  %5124 = vmatprep.subr.mxu0 0.0
  %5125 = vmatpush1.msra.mxu0 %v125
  %5126 = vmatprep.subr.mxu0 0.0
  %5127 = vmatpush1.msra.mxu0 %v122
  %5128 = vmatprep.subr.mxu0 0.0
  %5129 = vmatpush1.msra.mxu0 %v119
  %5130 = vmatprep.subr.mxu0 0.0
  %5131 = vmatpush1.msra.mxu0 %v116
  %5132 = vmatprep.subr.mxu0 0.0
  %5133 = vmatpush1.msra.mxu0 %v113
  %5134 = vmatprep.subr.mxu0 0.0
  %5135 = vmatpush2.msra.mxu0 %v206
  %5136 = vmatprep.subr.mxu0 0.0
  %5137 = vmatpush2.msra.mxu0 %v203
  %5138 = vmatprep.subr.mxu0 0.0
  %5139 = vmatpush2.msra.mxu0 %v200
  %5140 = vmatprep.subr.mxu0 0.0
  %5141 = vmatpush2.msra.mxu0 %v197
  %5142 = vmatprep.subr.mxu0 0.0
  %5143 = vmatpush2.msra.mxu0 %v194
  %5144 = vmatprep.subr.mxu0 0.0
  %5145 = vmatpush2.msra.mxu0 %v191
  %5146 = vmatprep.subr.mxu0 0.0
  %5147 = vmatpush2.msra.mxu0 %v188
  %5148 = vmatprep.subr.mxu0 0.0
  %5149 = vmatpush2.msra.mxu0 %v185
  %5150 = vmatprep.subr.mxu0 0.0
  %5151 = vmatpush2.msra.mxu0 %v182
  %5152 = vmatprep.subr.mxu0 0.0
  %5153 = vmatpush2.msra.mxu0 %v179
  %5154 = vmatprep.subr.mxu0 0.0
  %5155 = vmatpush2.msra.mxu0 %v176
  %5156 = vmatprep.subr.mxu0 0.0
  %5157 = vmatpush2.msra.mxu0 %v173
  %5158 = vmatprep.subr.mxu0 0.0
  %5159 = vmatpush2.msra.mxu0 %v170
  %5160 = vmatprep.subr.mxu0 0.0
  %5161 = vmatpush2.msra.mxu0 %v167
  %5162 = vmatprep.subr.mxu0 0.0
  %5163 = vmatpush2.msra.mxu0 %v164
  %5164 = vmatprep.subr.mxu0 0.0
  %5165 = vmatpush2.msra.mxu0 %v161
  %5166 = vmatprep.mubr.f32.mxu0 %v5030
  %5167 = vmatmul.mubr.f32.gmra.mxu0 %v5029
  %v5168 = vpop.f32.mrf.mxu0
  %v5169 = vadd.f32 %v882, %v5168
  %v5170 = vpop.f32.mrf.mxu0
  %5171 = vdwg.mxu0
  %5172 = vmatprep.subr.mxu0 %v253
  %5173 = vmatpush1.msra.mxu0 %v252
  %5174 = vmatprep.subr.mxu0 %v250
  %5175 = vmatpush1.msra.mxu0 %v249
  %5176 = vmatprep.subr.mxu0 %v247
  %5177 = vmatpush1.msra.mxu0 %v246
  %5178 = vmatprep.subr.mxu0 %v244
  %5179 = vmatpush1.msra.mxu0 %v243
  %5180 = vmatprep.subr.mxu0 %v241
  %5181 = vmatpush1.msra.mxu0 %v240
  %5182 = vmatprep.subr.mxu0 %v238
  %5183 = vmatpush1.msra.mxu0 %v237
  %5184 = vmatprep.subr.mxu0 %v235
  %5185 = vmatpush1.msra.mxu0 %v234
  %5186 = vmatprep.subr.mxu0 %v232
  %5187 = vmatpush1.msra.mxu0 %v231
  %5188 = vmatprep.subr.mxu0 %v229
  %5189 = vmatpush1.msra.mxu0 %v228
  %5190 = vmatprep.subr.mxu0 %v226
  %5191 = vmatpush1.msra.mxu0 %v225
  %5192 = vmatprep.subr.mxu0 %v223
  %5193 = vmatpush1.msra.mxu0 %v222
  %5194 = vmatprep.subr.mxu0 %v220
  %5195 = vmatpush1.msra.mxu0 %v219
  %5196 = vmatprep.subr.mxu0 %v217
  %5197 = vmatpush1.msra.mxu0 %v216
  %5198 = vmatprep.subr.mxu0 %v214
  %5199 = vmatpush1.msra.mxu0 %v213
  %5200 = vmatprep.subr.mxu0 %v211
  %5201 = vmatpush1.msra.mxu0 %v210
  %5202 = vmatprep.subr.mxu0 %v208
  %5203 = vmatpush1.msra.mxu0 %v207
  %5204 = vmatprep.subr.mxu0 0.0
  %5205 = vmatpush2.msra.mxu0 0.0
  %5206 = vmatprep.subr.mxu0 0.0
  %5207 = vmatpush2.msra.mxu0 0.0
  %5208 = vmatprep.subr.mxu0 0.0
  %5209 = vmatpush2.msra.mxu0 0.0
  %5210 = vmatprep.subr.mxu0 0.0
  %5211 = vmatpush2.msra.mxu0 0.0
  %5212 = vmatprep.subr.mxu0 0.0
  %5213 = vmatpush2.msra.mxu0 0.0
  %5214 = vmatprep.subr.mxu0 0.0
  %5215 = vmatpush2.msra.mxu0 0.0
  %5216 = vmatprep.subr.mxu0 0.0
  %5217 = vmatpush2.msra.mxu0 0.0
  %5218 = vmatprep.subr.mxu0 0.0
  %5219 = vmatpush2.msra.mxu0 0.0
  %5220 = vmatprep.subr.mxu0 0.0
  %5221 = vmatpush2.msra.mxu0 0.0
  %5222 = vmatprep.subr.mxu0 0.0
  %5223 = vmatpush2.msra.mxu0 0.0
  %5224 = vmatprep.subr.mxu0 0.0
  %5225 = vmatpush2.msra.mxu0 0.0
  %5226 = vmatprep.subr.mxu0 0.0
  %5227 = vmatpush2.msra.mxu0 0.0
  %5228 = vmatprep.subr.mxu0 0.0
  %5229 = vmatpush2.msra.mxu0 0.0
  %5230 = vmatprep.subr.mxu0 0.0
  %5231 = vmatpush2.msra.mxu0 0.0
  %5232 = vmatprep.subr.mxu0 0.0
  %5233 = vmatpush2.msra.mxu0 0.0
  %5234 = vmatprep.subr.mxu0 0.0
  %5235 = vmatpush2.msra.mxu0 0.0
  %5236 = vmatprep.mubr.f32.mxu0 0.0
  %5237 = vmatmul.mubr.f32.gmra.mxu0 %v4302
  %v5238 = vpop.f32.mrf.mxu0
  %v5239 = vadd.f32 %v1031, %v5238
  %v5240 = vpop.f32.mrf.mxu0
  %v5241 = vadd.f32 %v1035, %v5240
  %5242 = vdwg.mxu0
  %5243 = vmatprep.subr.mxu0 0.0
  %5244 = vmatpush1.msra.mxu0 %v254
  %5245 = vmatprep.subr.mxu0 0.0
  %5246 = vmatpush1.msra.mxu0 %v251
  %5247 = vmatprep.subr.mxu0 0.0
  %5248 = vmatpush1.msra.mxu0 %v248
  %5249 = vmatprep.subr.mxu0 0.0
  %5250 = vmatpush1.msra.mxu0 %v245
  %5251 = vmatprep.subr.mxu0 0.0
  %5252 = vmatpush1.msra.mxu0 %v242
  %5253 = vmatprep.subr.mxu0 0.0
  %5254 = vmatpush1.msra.mxu0 %v239
  %5255 = vmatprep.subr.mxu0 0.0
  %5256 = vmatpush1.msra.mxu0 %v236
  %5257 = vmatprep.subr.mxu0 0.0
  %5258 = vmatpush1.msra.mxu0 %v233
  %5259 = vmatprep.subr.mxu0 0.0
  %5260 = vmatpush1.msra.mxu0 %v230
  %5261 = vmatprep.subr.mxu0 0.0
  %5262 = vmatpush1.msra.mxu0 %v227
  %5263 = vmatprep.subr.mxu0 0.0
  %5264 = vmatpush1.msra.mxu0 %v224
  %5265 = vmatprep.subr.mxu0 0.0
  %5266 = vmatpush1.msra.mxu0 %v221
  %5267 = vmatprep.subr.mxu0 0.0
  %5268 = vmatpush1.msra.mxu0 %v218
  %5269 = vmatprep.subr.mxu0 0.0
  %5270 = vmatpush1.msra.mxu0 %v215
  %5271 = vmatprep.subr.mxu0 0.0
  %5272 = vmatpush1.msra.mxu0 %v212
  %5273 = vmatprep.subr.mxu0 0.0
  %5274 = vmatpush1.msra.mxu0 %v209
  %5275 = vmatprep.subr.mxu0 0.0
  %5276 = vmatpush2.msra.mxu0 0.0
  %5277 = vmatprep.subr.mxu0 0.0
  %5278 = vmatpush2.msra.mxu0 0.0
  %5279 = vmatprep.subr.mxu0 0.0
  %5280 = vmatpush2.msra.mxu0 0.0
  %5281 = vmatprep.subr.mxu0 0.0
  %5282 = vmatpush2.msra.mxu0 0.0
  %5283 = vmatprep.subr.mxu0 0.0
  %5284 = vmatpush2.msra.mxu0 0.0
  %5285 = vmatprep.subr.mxu0 0.0
  %5286 = vmatpush2.msra.mxu0 0.0
  %5287 = vmatprep.subr.mxu0 0.0
  %5288 = vmatpush2.msra.mxu0 0.0
  %5289 = vmatprep.subr.mxu0 0.0
  %5290 = vmatpush2.msra.mxu0 0.0
  %5291 = vmatprep.subr.mxu0 0.0
  %5292 = vmatpush2.msra.mxu0 0.0
  %5293 = vmatprep.subr.mxu0 0.0
  %5294 = vmatpush2.msra.mxu0 0.0
  %5295 = vmatprep.subr.mxu0 0.0
  %5296 = vmatpush2.msra.mxu0 0.0
  %5297 = vmatprep.subr.mxu0 0.0
  %5298 = vmatpush2.msra.mxu0 0.0
  %5299 = vmatprep.subr.mxu0 0.0
  %5300 = vmatpush2.msra.mxu0 0.0
  %5301 = vmatprep.subr.mxu0 0.0
  %5302 = vmatpush2.msra.mxu0 0.0
  %5303 = vmatprep.subr.mxu0 0.0
  %5304 = vmatpush2.msra.mxu0 0.0
  %5305 = vmatprep.subr.mxu0 0.0
  %5306 = vmatpush2.msra.mxu0 0.0
  %5307 = vmatprep.mubr.f32.mxu0 0.0
  %5308 = vmatmul.mubr.f32.gmra.mxu0 %v4302
  %v5309 = vpop.f32.mrf.mxu0
  %v5310 = vadd.f32 %v1039, %v5309
  %v5311 = vpop.f32.mrf.mxu0
  %5312 = vdwg.mxu0
  %v5313 = vadd.f32 %v5098, %v5239
  %v5314 = vxor.u32 %v5313, 2147483648
  %v5315 = vmul.f32 %v5314, 1.442695
  %v5316 = vpow.pop %v5315
  %v5317 = vadd.f32 %v5316, 1.0
  %v5318 = vrcp.pop %v5317
  %v5319 = vmul.f32 1.0, %v5318
  %v5320 = vadd.f32 %v5100, %v5241
  %v5321 = vxor.u32 %v5320, 2147483648
  %v5322 = vmul.f32 %v5321, 1.442695
  %v5323 = vpow.pop %v5322
  %v5324 = vadd.f32 %v5323, 1.0
  %v5325 = vrcp.pop %v5324
  %v5326 = vmul.f32 1.0, %v5325
  %v5327 = vmul.f32 %v5319, %v5310
  %v5328 = vadd.f32 %v5169, %v5327
  %v5329 = vtanh.pop %v5328
  %v5330 = vsub.f32 1.0, %v5326
  %v5331 = vmul.f32 %v5330, %v5329
  %v5332 = vmul.f32 %v5326, %v4302
  %v5333 = vadd.f32 %v5331, %v5332
  %5334 = vmatprep.subr.mxu0 0.0
  %5335 = vmatpush1.msra.mxu0 %v272
  %5336 = vmatprep.subr.mxu0 0.0
  %5337 = vmatpush1.msra.mxu0 %v271
  %5338 = vmatprep.subr.mxu0 0.0
  %5339 = vmatpush1.msra.mxu0 %v270
  %5340 = vmatprep.subr.mxu0 0.0
  %5341 = vmatpush1.msra.mxu0 %v269
  %5342 = vmatprep.subr.mxu0 0.0
  %5343 = vmatpush1.msra.mxu0 %v268
  %5344 = vmatprep.subr.mxu0 0.0
  %5345 = vmatpush1.msra.mxu0 %v267
  %5346 = vmatprep.subr.mxu0 0.0
  %5347 = vmatpush1.msra.mxu0 %v266
  %5348 = vmatprep.subr.mxu0 0.0
  %5349 = vmatpush1.msra.mxu0 %v265
  %5350 = vmatprep.subr.mxu0 0.0
  %5351 = vmatpush1.msra.mxu0 %v264
  %5352 = vmatprep.subr.mxu0 0.0
  %5353 = vmatpush1.msra.mxu0 %v263
  %5354 = vmatprep.subr.mxu0 0.0
  %5355 = vmatpush1.msra.mxu0 %v262
  %5356 = vmatprep.subr.mxu0 0.0
  %5357 = vmatpush1.msra.mxu0 %v261
  %5358 = vmatprep.subr.mxu0 0.0
  %5359 = vmatpush1.msra.mxu0 %v260
  %5360 = vmatprep.subr.mxu0 0.0
  %5361 = vmatpush1.msra.mxu0 %v259
  %5362 = vmatprep.subr.mxu0 0.0
  %5363 = vmatpush1.msra.mxu0 %v258
  %5364 = vmatprep.subr.mxu0 0.0
  %5365 = vmatpush1.msra.mxu0 %v257
  %5366 = vmatprep.subr.mxu0 0.0
  %5367 = vmatpush2.msra.mxu0 0.0
  %5368 = vmatprep.subr.mxu0 0.0
  %5369 = vmatpush2.msra.mxu0 0.0
  %5370 = vmatprep.subr.mxu0 0.0
  %5371 = vmatpush2.msra.mxu0 0.0
  %5372 = vmatprep.subr.mxu0 0.0
  %5373 = vmatpush2.msra.mxu0 0.0
  %5374 = vmatprep.subr.mxu0 0.0
  %5375 = vmatpush2.msra.mxu0 0.0
  %5376 = vmatprep.subr.mxu0 0.0
  %5377 = vmatpush2.msra.mxu0 0.0
  %5378 = vmatprep.subr.mxu0 0.0
  %5379 = vmatpush2.msra.mxu0 0.0
  %5380 = vmatprep.subr.mxu0 0.0
  %5381 = vmatpush2.msra.mxu0 0.0
  %5382 = vmatprep.subr.mxu0 0.0
  %5383 = vmatpush2.msra.mxu0 0.0
  %5384 = vmatprep.subr.mxu0 0.0
  %5385 = vmatpush2.msra.mxu0 0.0
  %5386 = vmatprep.subr.mxu0 0.0
  %5387 = vmatpush2.msra.mxu0 0.0
  %5388 = vmatprep.subr.mxu0 0.0
  %5389 = vmatpush2.msra.mxu0 0.0
  %5390 = vmatprep.subr.mxu0 0.0
  %5391 = vmatpush2.msra.mxu0 0.0
  %5392 = vmatprep.subr.mxu0 0.0
  %5393 = vmatpush2.msra.mxu0 0.0
  %5394 = vmatprep.subr.mxu0 0.0
  %5395 = vmatpush2.msra.mxu0 0.0
  %5396 = vmatprep.subr.mxu0 0.0
  %5397 = vmatpush2.msra.mxu0 0.0
  %5398 = vmatprep.mubr.f32.mxu0 0.0
  %5399 = vmatmul.mubr.f32.gmra.mxu0 %v5333
  %v5400 = vpop.f32.mrf.mxu0
  %v5401 = vadd.f32 %v1209, %v5400
  %v5402 = vpop.f32.mrf.mxu0
  %5403 = vdwg.mxu0
  %s5404 = scalar_lea.vmem %s15, 32
  %5405 = vst [vmem:[%s5404] sm:$0xff] %v5401
  %5406 = vmax.xlane.f32.xlu0 %v5401
  %v5407 = vpop.xlane.xlu0 %5406
  %vm5408 = vcmp.eq.f32.partialorder %v5401, %v5407
  %v5409 = vsel %vm5408, %v513, 128
  %v5410 = vand.u32 %v5409, 65535
  %v5411 = vshra.s32 %v5409, 16
  %v5412 = vcvt.s32.f32 %v5410
  %v5413 = vcvt.s32.f32 %v5411
  %5414 = vmin.xlane.f32.xlu0 %v5413
  %v5415 = vpop.xlane.xlu0 %5414
  %vm5416 = vcmp.eq.f32.partialorder %v5413, %v5415
  %v5417 = vsel %vm5416, %v5412, inf
  %5418 = vmin.xlane.f32.xlu0 %v5417
  %v5419 = vpop.xlane.xlu0 %5418
  %v5420 = vcvt.f32.s32 %v5419
  %v5421 = vcvt.f32.s32 %v5415
  %v5422 = vshll.u32 %v5421, 16
  %v5423 = vadd.s32 %v5422, %v5420
  %vm5424 = vcmp.eq.s32.totalorder %v513, %v5423
  %v5425 = vsel %vm5424, 1, 0
  %v5426 = vcvt.s32.f32 %v5425
  %5427 = vmatprep.subr.mxu0 0.0
  %5428 = vmatpush1.msra.mxu0 %v110
  %5429 = vmatprep.subr.mxu0 0.0
  %5430 = vmatpush1.msra.mxu0 %v109
  %5431 = vmatprep.subr.mxu0 0.0
  %5432 = vmatpush1.msra.mxu0 %v108
  %5433 = vmatprep.subr.mxu0 0.0
  %5434 = vmatpush1.msra.mxu0 %v107
  %5435 = vmatprep.subr.mxu0 0.0
  %5436 = vmatpush1.msra.mxu0 %v106
  %5437 = vmatprep.subr.mxu0 0.0
  %5438 = vmatpush1.msra.mxu0 %v105
  %5439 = vmatprep.subr.mxu0 0.0
  %5440 = vmatpush1.msra.mxu0 %v104
  %5441 = vmatprep.subr.mxu0 0.0
  %5442 = vmatpush1.msra.mxu0 %v103
  %5443 = vmatprep.subr.mxu0 0.0
  %5444 = vmatpush1.msra.mxu0 %v102
  %5445 = vmatprep.subr.mxu0 0.0
  %5446 = vmatpush1.msra.mxu0 %v101
  %5447 = vmatprep.subr.mxu0 0.0
  %5448 = vmatpush1.msra.mxu0 %v100
  %5449 = vmatprep.subr.mxu0 0.0
  %5450 = vmatpush1.msra.mxu0 %v99
  %5451 = vmatprep.subr.mxu0 0.0
  %5452 = vmatpush1.msra.mxu0 %v98
  %5453 = vmatprep.subr.mxu0 0.0
  %5454 = vmatpush1.msra.mxu0 %v97
  %5455 = vmatprep.subr.mxu0 0.0
  %5456 = vmatpush1.msra.mxu0 %v96
  %5457 = vmatprep.subr.mxu0 0.0
  %5458 = vmatpush1.msra.mxu0 %v95
  %5459 = vmatprep.subr.mxu0 0.0
  %5460 = vmatpush2.msra.mxu0 0.0
  %5461 = vmatprep.subr.mxu0 0.0
  %5462 = vmatpush2.msra.mxu0 0.0
  %5463 = vmatprep.subr.mxu0 0.0
  %5464 = vmatpush2.msra.mxu0 0.0
  %5465 = vmatprep.subr.mxu0 0.0
  %5466 = vmatpush2.msra.mxu0 0.0
  %5467 = vmatprep.subr.mxu0 0.0
  %5468 = vmatpush2.msra.mxu0 0.0
  %5469 = vmatprep.subr.mxu0 0.0
  %5470 = vmatpush2.msra.mxu0 0.0
  %5471 = vmatprep.subr.mxu0 0.0
  %5472 = vmatpush2.msra.mxu0 0.0
  %5473 = vmatprep.subr.mxu0 0.0
  %5474 = vmatpush2.msra.mxu0 0.0
  %5475 = vmatprep.subr.mxu0 0.0
  %5476 = vmatpush2.msra.mxu0 0.0
  %5477 = vmatprep.subr.mxu0 0.0
  %5478 = vmatpush2.msra.mxu0 0.0
  %5479 = vmatprep.subr.mxu0 0.0
  %5480 = vmatpush2.msra.mxu0 0.0
  %5481 = vmatprep.subr.mxu0 0.0
  %5482 = vmatpush2.msra.mxu0 0.0
  %5483 = vmatprep.subr.mxu0 0.0
  %5484 = vmatpush2.msra.mxu0 0.0
  %5485 = vmatprep.subr.mxu0 0.0
  %5486 = vmatpush2.msra.mxu0 0.0
  %5487 = vmatprep.subr.mxu0 0.0
  %5488 = vmatpush2.msra.mxu0 0.0
  %5489 = vmatprep.subr.mxu0 0.0
  %5490 = vmatpush2.msra.mxu0 0.0
  %5491 = vmatprep.mubr.f32.mxu0 0.0
  %5492 = vmatmul.mubr.f32.gmra.mxu0 %v5426
  %v5493 = vpop.f32.mrf.mxu0
  %v5494 = vadd.f32 0.0, %v5493
  %v5495 = vpop.f32.mrf.mxu0
  %5496 = vdwg.mxu0
  %5497 = vst [vmem:[#allocation3 + $0x8] sm:$0xff] %v5494
  %5498 = vmatprep.subr.mxu0 0.0
  %5499 = vmatpush1.msra.mxu0 %v91
  %5500 = vmatprep.subr.mxu0 0.0
  %5501 = vmatpush1.msra.mxu0 %v90
  %5502 = vmatprep.subr.mxu0 0.0
  %5503 = vmatpush1.msra.mxu0 %v89
  %5504 = vmatprep.subr.mxu0 0.0
  %5505 = vmatpush1.msra.mxu0 %v88
  %5506 = vmatprep.subr.mxu0 0.0
  %5507 = vmatpush1.msra.mxu0 %v87
  %5508 = vmatprep.subr.mxu0 0.0
  %5509 = vmatpush1.msra.mxu0 %v86
  %5510 = vmatprep.subr.mxu0 0.0
  %5511 = vmatpush1.msra.mxu0 %v85
  %5512 = vmatprep.subr.mxu0 0.0
  %5513 = vmatpush1.msra.mxu0 %v84
  %5514 = vmatprep.subr.mxu0 0.0
  %5515 = vmatpush1.msra.mxu0 %v83
  %5516 = vmatprep.subr.mxu0 0.0
  %5517 = vmatpush1.msra.mxu0 %v82
  %5518 = vmatprep.subr.mxu0 0.0
  %5519 = vmatpush1.msra.mxu0 %v81
  %5520 = vmatprep.subr.mxu0 0.0
  %5521 = vmatpush1.msra.mxu0 %v80
  %5522 = vmatprep.subr.mxu0 0.0
  %5523 = vmatpush1.msra.mxu0 %v79
  %5524 = vmatprep.subr.mxu0 0.0
  %5525 = vmatpush1.msra.mxu0 %v78
  %5526 = vmatprep.subr.mxu0 0.0
  %5527 = vmatpush1.msra.mxu0 %v77
  %5528 = vmatprep.subr.mxu0 0.0
  %5529 = vmatpush1.msra.mxu0 %v76
  %5530 = vmatprep.subr.mxu0 0.0
  %5531 = vmatpush2.msra.mxu0 0.0
  %5532 = vmatprep.subr.mxu0 0.0
  %5533 = vmatpush2.msra.mxu0 0.0
  %5534 = vmatprep.subr.mxu0 0.0
  %5535 = vmatpush2.msra.mxu0 0.0
  %5536 = vmatprep.subr.mxu0 0.0
  %5537 = vmatpush2.msra.mxu0 0.0
  %5538 = vmatprep.subr.mxu0 0.0
  %5539 = vmatpush2.msra.mxu0 0.0
  %5540 = vmatprep.subr.mxu0 0.0
  %5541 = vmatpush2.msra.mxu0 0.0
  %5542 = vmatprep.subr.mxu0 0.0
  %5543 = vmatpush2.msra.mxu0 0.0
  %5544 = vmatprep.subr.mxu0 0.0
  %5545 = vmatpush2.msra.mxu0 0.0
  %5546 = vmatprep.subr.mxu0 0.0
  %5547 = vmatpush2.msra.mxu0 0.0
  %5548 = vmatprep.subr.mxu0 0.0
  %5549 = vmatpush2.msra.mxu0 0.0
  %5550 = vmatprep.subr.mxu0 0.0
  %5551 = vmatpush2.msra.mxu0 0.0
  %5552 = vmatprep.subr.mxu0 0.0
  %5553 = vmatpush2.msra.mxu0 0.0
  %5554 = vmatprep.subr.mxu0 0.0
  %5555 = vmatpush2.msra.mxu0 0.0
  %5556 = vmatprep.subr.mxu0 0.0
  %5557 = vmatpush2.msra.mxu0 0.0
  %5558 = vmatprep.subr.mxu0 0.0
  %5559 = vmatpush2.msra.mxu0 0.0
  %5560 = vmatprep.subr.mxu0 0.0
  %5561 = vmatpush2.msra.mxu0 0.0
  %5562 = vmatprep.mubr.f32.mxu0 0.0
  %5563 = vmatmul.mubr.f32.gmra.mxu0 %v5333
  %v5564 = vpop.f32.mrf.mxu0
  %v5565 = vadd.f32 %v279, %v5564
  %v5566 = vpop.f32.mrf.mxu0
  %5567 = vdwg.mxu0
  %v5569 = vcombine.high %v5565, %v5565
  %v5571 = vunpack.c.l.s4 1966171168
  %v5572 = vunpack.c.0.s8 %v5571
  %v5573 = vlaneseq
  %v5574 = vshrl.u32 %v5573, 7
  %v5575 = vsub.s32 %v5572, %v5574
  %v5576 = vrot.slane %v5565, %v5575
  %v5578 = vunpack.c.l.s4 1966171168
  %v5579 = vunpack.c.0.s8 %v5578
  %v5580 = vlaneseq
  %v5581 = vshrl.u32 %v5580, 7
  %v5582 = vsub.s32 %v5579, %v5581
  %v5583 = vrot.slane %v5569, %v5582
  %v5584 = vcombine.high %v5576, %v5576
  %v5585 = vcombine.high %v5583, %v5583
  %v5587 = vunpack.c.l.s4 1966171168
  %v5588 = vunpack.c.0.s8 %v5587
  %v5589 = vlaneseq
  %v5590 = vshrl.u32 %v5589, 7
  %v5591 = vsub.s32 %v5588, %v5590
  %v5592 = vrot.slane %v5576, %v5591
  %v5594 = vunpack.c.l.s4 1966171168
  %v5595 = vunpack.c.0.s8 %v5594
  %v5596 = vlaneseq
  %v5597 = vshrl.u32 %v5596, 7
  %v5598 = vsub.s32 %v5595, %v5597
  %v5599 = vrot.slane %v5583, %v5598
  %v5601 = vunpack.c.l.s4 1966171168
  %v5602 = vunpack.c.0.s8 %v5601
  %v5603 = vlaneseq
  %v5604 = vshrl.u32 %v5603, 7
  %v5605 = vsub.s32 %v5602, %v5604
  %v5606 = vrot.slane %v5584, %v5605
  %v5608 = vunpack.c.l.s4 1966171168
  %v5609 = vunpack.c.0.s8 %v5608
  %v5610 = vlaneseq
  %v5611 = vshrl.u32 %v5610, 7
  %v5612 = vsub.s32 %v5609, %v5611
  %v5613 = vrot.slane %v5585, %v5612
  %v5614 = vcombine.high %v5592, %v5592
  %v5615 = vcombine.high %v5599, %v5599
  %v5616 = vcombine.high %v5606, %v5606
  %v5617 = vcombine.high %v5613, %v5613
  %v5618 = vlaneseq
  %v5619 = vshrl.u32 %v5618, 7
  %v5620 = vsub.s32 0, %v5619
  %v5621 = vrot.slane %v5592, %v5620
  %v5622 = vlaneseq
  %v5623 = vshrl.u32 %v5622, 7
  %v5624 = vsub.s32 0, %v5623
  %v5625 = vrot.slane %v5606, %v5624
  %v5626 = vlaneseq
  %v5627 = vshrl.u32 %v5626, 7
  %v5628 = vsub.s32 0, %v5627
  %v5629 = vrot.slane %v5614, %v5628
  %v5630 = vlaneseq
  %v5631 = vshrl.u32 %v5630, 7
  %v5632 = vsub.s32 0, %v5631
  %v5633 = vrot.slane %v5616, %v5632
  %v5634 = vlaneseq
  %v5635 = vshrl.u32 %v5634, 7
  %v5636 = vsub.s32 0, %v5635
  %v5637 = vrot.slane %v5599, %v5636
  %v5638 = vlaneseq
  %v5639 = vshrl.u32 %v5638, 7
  %v5640 = vsub.s32 0, %v5639
  %v5641 = vrot.slane %v5613, %v5640
  %v5642 = vlaneseq
  %v5643 = vshrl.u32 %v5642, 7
  %v5644 = vsub.s32 0, %v5643
  %v5645 = vrot.slane %v5615, %v5644
  %v5646 = vlaneseq
  %v5647 = vshrl.u32 %v5646, 7
  %v5648 = vsub.s32 0, %v5647
  %v5649 = vrot.slane %v5617, %v5648
  %v5658 = vadd.f32 %v68, %v5621
  %v5659 = vadd.f32 %v69, %v5625
  %v5660 = vadd.f32 %v70, %v5629
  %v5661 = vadd.f32 %v71, %v5633
  %v5662 = vadd.f32 %v72, %v5637
  %v5663 = vadd.f32 %v73, %v5641
  %v5664 = vadd.f32 %v74, %v5645
  %v5665 = vadd.f32 %v75, %v5649
  %v5666 = vtanh.pop %v5658
  %v5667 = vtanh.pop %v5659
  %v5668 = vtanh.pop %v5660
  %v5669 = vtanh.pop %v5661
  %v5670 = vtanh.pop %v5662
  %v5671 = vtanh.pop %v5663
  %v5672 = vtanh.pop %v5664
  %v5673 = vtanh.pop %v5665
  %v5674 = vmul.f32 %v5666, %v461
  %v5675 = vmul.f32 %v5667, %v461
  %v5676 = vmul.f32 %v5668, %v461
  %v5677 = vmul.f32 %v5669, %v461
  %v5678 = vmul.f32 %v5670, %v461
  %v5679 = vmul.f32 %v5671, %v461
  %v5680 = vmul.f32 %v5672, %v461
  %v5681 = vmul.f32 %v5673, %v461
  %5682 = vadd.xlane.f32.xlu0 %v5674
  %v5683 = vpop.xlane.xlu0 %5682
  %5684 = vadd.xlane.f32.xlu0 %v5675
  %v5685 = vpop.xlane.xlu0 %5684
  %5686 = vadd.xlane.f32.xlu0 %v5676
  %v5687 = vpop.xlane.xlu0 %5686
  %5688 = vadd.xlane.f32.xlu0 %v5677
  %v5689 = vpop.xlane.xlu0 %5688
  %5690 = vadd.xlane.f32.xlu0 %v5678
  %v5691 = vpop.xlane.xlu0 %5690
  %5692 = vadd.xlane.f32.xlu0 %v5679
  %v5693 = vpop.xlane.xlu0 %5692
  %5694 = vadd.xlane.f32.xlu0 %v5680
  %v5695 = vpop.xlane.xlu0 %5694
  %5696 = vadd.xlane.f32.xlu0 %v5681
  %v5697 = vpop.xlane.xlu0 %5696
  %v5698 = vadd.f32 %v5683, %v494
  %v5699 = vadd.f32 %v5685, %v494
  %v5700 = vadd.f32 %v5687, %v494
  %v5701 = vadd.f32 %v5689, %v494
  %v5702 = vadd.f32 %v5691, %v494
  %v5703 = vadd.f32 %v5693, %v494
  %v5704 = vadd.f32 %v5695, %v494
  %v5705 = vadd.f32 %v5697, %v494
  %v5714 = vlaneseq
  %v5715 = vshrl.u32 %v5714, 7
  %v5716 = vsub.s32 %v513, %v5715
  %v5717 = vrot.slane %v5698, %v5716
  %v5718 = vlaneseq
  %v5719 = vshrl.u32 %v5718, 7
  %v5720 = vsub.s32 %v513, %v5719
  %v5721 = vrot.slane %v5699, %v5720
  %v5722 = vlaneseq
  %v5723 = vshrl.u32 %v5722, 7
  %v5724 = vsub.s32 %v513, %v5723
  %v5725 = vrot.slane %v5700, %v5724
  %v5726 = vlaneseq
  %v5727 = vshrl.u32 %v5726, 7
  %v5728 = vsub.s32 %v513, %v5727
  %v5729 = vrot.slane %v5701, %v5728
  %v5730 = vlaneseq
  %v5731 = vshrl.u32 %v5730, 7
  %v5732 = vsub.s32 %v513, %v5731
  %v5733 = vrot.slane %v5702, %v5732
  %v5734 = vlaneseq
  %v5735 = vshrl.u32 %v5734, 7
  %v5736 = vsub.s32 %v513, %v5735
  %v5737 = vrot.slane %v5703, %v5736
  %v5738 = vlaneseq
  %v5739 = vshrl.u32 %v5738, 7
  %v5740 = vsub.s32 %v513, %v5739
  %v5741 = vrot.slane %v5704, %v5740
  %v5742 = vlaneseq
  %v5743 = vshrl.u32 %v5742, 7
  %v5744 = vsub.s32 %v513, %v5743
  %v5745 = vrot.slane %v5705, %v5744
  %v5746 = vsel %vm546, %v5721, %v5717
  %v5747 = vsel %vm548, %v5725, %v5746
  %v5748 = vsel %vm550, %v5729, %v5747
  %v5749 = vsel %vm552, %v5733, %v5748
  %v5750 = vsel %vm554, %v5737, %v5749
  %v5751 = vsel %vm556, %v5741, %v5750
  %v5752 = vsel %vm558, %v5745, %v5751
  %v5754 = vsel %vm561, %v5752, -inf
  %5755 = vmax.xlane.f32.xlu0 %v5754
  %v5756 = vpop.xlane.xlu0 %5755
  %v5758 = vlaneseq
  %v5759 = vshrl.u32 %v5758, 7
  %v5760 = vsub.s32 0, %v5759
  %v5761 = vrot.slane %v5756, %v5760
  %v5762 = vlaneseq
  %v5763 = vshrl.u32 %v5762, 7
  %v5764 = vsub.s32 1, %v5763
  %v5765 = vrot.slane %v5756, %v5764
  %v5766 = vlaneseq
  %v5767 = vshrl.u32 %v5766, 7
  %v5768 = vsub.s32 2, %v5767
  %v5769 = vrot.slane %v5756, %v5768
  %v5770 = vlaneseq
  %v5771 = vshrl.u32 %v5770, 7
  %v5772 = vsub.s32 3, %v5771
  %v5773 = vrot.slane %v5756, %v5772
  %v5774 = vlaneseq
  %v5775 = vshrl.u32 %v5774, 7
  %v5776 = vsub.s32 4, %v5775
  %v5777 = vrot.slane %v5756, %v5776
  %v5778 = vlaneseq
  %v5779 = vshrl.u32 %v5778, 7
  %v5780 = vsub.s32 5, %v5779
  %v5781 = vrot.slane %v5756, %v5780
  %v5782 = vlaneseq
  %v5783 = vshrl.u32 %v5782, 7
  %v5784 = vsub.s32 6, %v5783
  %v5785 = vrot.slane %v5756, %v5784
  %v5786 = vlaneseq
  %v5787 = vshrl.u32 %v5786, 7
  %v5788 = vsub.s32 7, %v5787
  %v5789 = vrot.slane %v5756, %v5788
  %v5798 = vsub.f32 %v5698, %v5761
  %v5799 = vsub.f32 %v5699, %v5765
  %v5800 = vsub.f32 %v5700, %v5769
  %v5801 = vsub.f32 %v5701, %v5773
  %v5802 = vsub.f32 %v5702, %v5777
  %v5803 = vsub.f32 %v5703, %v5781
  %v5804 = vsub.f32 %v5704, %v5785
  %v5805 = vsub.f32 %v5705, %v5789
  %v5806 = vmul.f32 %v5798, 1.442695
  %v5807 = vpow.pop %v5806
  %v5808 = vmul.f32 %v5799, 1.442695
  %v5809 = vpow.pop %v5808
  %v5810 = vmul.f32 %v5800, 1.442695
  %v5811 = vpow.pop %v5810
  %v5812 = vmul.f32 %v5801, 1.442695
  %v5813 = vpow.pop %v5812
  %v5814 = vmul.f32 %v5802, 1.442695
  %v5815 = vpow.pop %v5814
  %v5816 = vmul.f32 %v5803, 1.442695
  %v5817 = vpow.pop %v5816
  %v5818 = vmul.f32 %v5804, 1.442695
  %v5819 = vpow.pop %v5818
  %v5820 = vmul.f32 %v5805, 1.442695
  %v5821 = vpow.pop %v5820
  %5830 = vset.pattern.permute.xlu0 0
  %5831 = vperm.xlu0 %5830, %v5807
  %v5832 = vpop.permute.xlu0 %5831
  %5833 = vset.pattern.permute.xlu0 0
  %5834 = vperm.xlu0 %5833, %v5809
  %v5835 = vpop.permute.xlu0 %5834
  %5836 = vset.pattern.permute.xlu0 0
  %5837 = vperm.xlu0 %5836, %v5811
  %v5838 = vpop.permute.xlu0 %5837
  %5839 = vset.pattern.permute.xlu0 0
  %5840 = vperm.xlu0 %5839, %v5813
  %v5841 = vpop.permute.xlu0 %5840
  %5842 = vset.pattern.permute.xlu0 0
  %5843 = vperm.xlu0 %5842, %v5815
  %v5844 = vpop.permute.xlu0 %5843
  %5845 = vset.pattern.permute.xlu0 0
  %5846 = vperm.xlu0 %5845, %v5817
  %v5847 = vpop.permute.xlu0 %5846
  %5848 = vset.pattern.permute.xlu0 0
  %5849 = vperm.xlu0 %5848, %v5819
  %v5850 = vpop.permute.xlu0 %5849
  %5851 = vset.pattern.permute.xlu0 0
  %5852 = vperm.xlu0 %5851, %v5821
  %v5853 = vpop.permute.xlu0 %5852
  %v5854 = vlaneseq
  %v5855 = vshrl.u32 %v5854, 7
  %v5856 = vsub.s32 %v513, %v5855
  %v5857 = vrot.slane %v5832, %v5856
  %v5858 = vlaneseq
  %v5859 = vshrl.u32 %v5858, 7
  %v5860 = vsub.s32 %v513, %v5859
  %v5861 = vrot.slane %v5835, %v5860
  %v5862 = vlaneseq
  %v5863 = vshrl.u32 %v5862, 7
  %v5864 = vsub.s32 %v513, %v5863
  %v5865 = vrot.slane %v5838, %v5864
  %v5866 = vlaneseq
  %v5867 = vshrl.u32 %v5866, 7
  %v5868 = vsub.s32 %v513, %v5867
  %v5869 = vrot.slane %v5841, %v5868
  %v5870 = vlaneseq
  %v5871 = vshrl.u32 %v5870, 7
  %v5872 = vsub.s32 %v513, %v5871
  %v5873 = vrot.slane %v5844, %v5872
  %v5874 = vlaneseq
  %v5875 = vshrl.u32 %v5874, 7
  %v5876 = vsub.s32 %v513, %v5875
  %v5877 = vrot.slane %v5847, %v5876
  %v5878 = vlaneseq
  %v5879 = vshrl.u32 %v5878, 7
  %v5880 = vsub.s32 %v513, %v5879
  %v5881 = vrot.slane %v5850, %v5880
  %v5882 = vlaneseq
  %v5883 = vshrl.u32 %v5882, 7
  %v5884 = vsub.s32 %v513, %v5883
  %v5885 = vrot.slane %v5853, %v5884
  %v5886 = vsel %vm546, %v5861, %v5857
  %v5887 = vsel %vm548, %v5865, %v5886
  %v5888 = vsel %vm550, %v5869, %v5887
  %v5889 = vsel %vm552, %v5873, %v5888
  %v5890 = vsel %vm554, %v5877, %v5889
  %v5891 = vsel %vm556, %v5881, %v5890
  %v5892 = vsel %vm558, %v5885, %v5891
  %v5894 = vsel %vm561, %v5892, 0.0
  %5895 = vadd.xlane.f32.xlu0 %v5894
  %v5896 = vpop.xlane.xlu0 %5895
  %v5897 = vrcp.pop %v5896
  %v5899 = vlaneseq
  %v5900 = vshrl.u32 %v5899, 7
  %v5901 = vsub.s32 0, %v5900
  %v5902 = vrot.slane %v5897, %v5901
  %v5903 = vlaneseq
  %v5904 = vshrl.u32 %v5903, 7
  %v5905 = vsub.s32 1, %v5904
  %v5906 = vrot.slane %v5897, %v5905
  %v5907 = vlaneseq
  %v5908 = vshrl.u32 %v5907, 7
  %v5909 = vsub.s32 2, %v5908
  %v5910 = vrot.slane %v5897, %v5909
  %v5911 = vlaneseq
  %v5912 = vshrl.u32 %v5911, 7
  %v5913 = vsub.s32 3, %v5912
  %v5914 = vrot.slane %v5897, %v5913
  %v5915 = vlaneseq
  %v5916 = vshrl.u32 %v5915, 7
  %v5917 = vsub.s32 4, %v5916
  %v5918 = vrot.slane %v5897, %v5917
  %v5919 = vlaneseq
  %v5920 = vshrl.u32 %v5919, 7
  %v5921 = vsub.s32 5, %v5920
  %v5922 = vrot.slane %v5897, %v5921
  %v5923 = vlaneseq
  %v5924 = vshrl.u32 %v5923, 7
  %v5925 = vsub.s32 6, %v5924
  %v5926 = vrot.slane %v5897, %v5925
  %v5927 = vlaneseq
  %v5928 = vshrl.u32 %v5927, 7
  %v5929 = vsub.s32 7, %v5928
  %v5930 = vrot.slane %v5897, %v5929
  %v5939 = vmul.f32 %v5807, %v5902
  %v5940 = vmul.f32 %v5809, %v5906
  %v5941 = vmul.f32 %v5811, %v5910
  %v5942 = vmul.f32 %v5813, %v5914
  %v5943 = vmul.f32 %v5815, %v5918
  %v5944 = vmul.f32 %v5817, %v5922
  %v5945 = vmul.f32 %v5819, %v5926
  %v5946 = vmul.f32 %v5821, %v5930
  %5948 = vset.pattern.permute.xlu0 0
  %5949 = vperm.xlu0 %5948, %v5939
  %v5950 = vpop.permute.xlu0 %5949
  %5953 = vset.pattern.permute.xlu0 0
  %5954 = vperm.xlu0 %5953, %v5940
  %v5955 = vpop.permute.xlu0 %5954
  %5958 = vset.pattern.permute.xlu0 0
  %5959 = vperm.xlu0 %5958, %v5941
  %v5960 = vpop.permute.xlu0 %5959
  %5963 = vset.pattern.permute.xlu0 0
  %5964 = vperm.xlu0 %5963, %v5942
  %v5965 = vpop.permute.xlu0 %5964
  %5968 = vset.pattern.permute.xlu0 0
  %5969 = vperm.xlu0 %5968, %v5943
  %v5970 = vpop.permute.xlu0 %5969
  %5973 = vset.pattern.permute.xlu0 0
  %5974 = vperm.xlu0 %5973, %v5944
  %v5975 = vpop.permute.xlu0 %5974
  %5978 = vset.pattern.permute.xlu0 0
  %5979 = vperm.xlu0 %5978, %v5945
  %v5980 = vpop.permute.xlu0 %5979
  %5983 = vset.pattern.permute.xlu0 0
  %5984 = vperm.xlu0 %5983, %v5946
  %v5985 = vpop.permute.xlu0 %5984
  %v5987 = vmul.f32 %v5950, %v60
  %v5988 = vmul.f32 %v5955, %v61
  %v5989 = vmul.f32 %v5960, %v62
  %v5990 = vmul.f32 %v5965, %v63
  %v5991 = vmul.f32 %v5970, %v64
  %v5992 = vmul.f32 %v5975, %v65
  %v5993 = vmul.f32 %v5980, %v66
  %v5994 = vmul.f32 %v5985, %v67
  %v5995 = vrot.slane %v5987, 4
  %v5996 = vadd.f32 %v5987, %v5995
  %v5997 = vrot.slane %v5996, 2
  %v5998 = vadd.f32 %v5996, %v5997
  %v5999 = vrot.slane %v5998, 1
  %v6000 = vadd.f32 %v5998, %v5999
  %v6001 = vrot.slane %v5988, 4
  %v6002 = vadd.f32 %v5988, %v6001
  %v6003 = vrot.slane %v6002, 2
  %v6004 = vadd.f32 %v6002, %v6003
  %v6005 = vrot.slane %v6004, 1
  %v6006 = vadd.f32 %v6004, %v6005
  %v6007 = vrot.slane %v5989, 4
  %v6008 = vadd.f32 %v5989, %v6007
  %v6009 = vrot.slane %v6008, 2
  %v6010 = vadd.f32 %v6008, %v6009
  %v6011 = vrot.slane %v6010, 1
  %v6012 = vadd.f32 %v6010, %v6011
  %v6013 = vrot.slane %v5990, 4
  %v6014 = vadd.f32 %v5990, %v6013
  %v6015 = vrot.slane %v6014, 2
  %v6016 = vadd.f32 %v6014, %v6015
  %v6017 = vrot.slane %v6016, 1
  %v6018 = vadd.f32 %v6016, %v6017
  %v6019 = vrot.slane %v5991, 4
  %v6020 = vadd.f32 %v5991, %v6019
  %v6021 = vrot.slane %v6020, 2
  %v6022 = vadd.f32 %v6020, %v6021
  %v6023 = vrot.slane %v6022, 1
  %v6024 = vadd.f32 %v6022, %v6023
  %v6025 = vrot.slane %v5992, 4
  %v6026 = vadd.f32 %v5992, %v6025
  %v6027 = vrot.slane %v6026, 2
  %v6028 = vadd.f32 %v6026, %v6027
  %v6029 = vrot.slane %v6028, 1
  %v6030 = vadd.f32 %v6028, %v6029
  %v6031 = vrot.slane %v5993, 4
  %v6032 = vadd.f32 %v5993, %v6031
  %v6033 = vrot.slane %v6032, 2
  %v6034 = vadd.f32 %v6032, %v6033
  %v6035 = vrot.slane %v6034, 1
  %v6036 = vadd.f32 %v6034, %v6035
  %v6037 = vrot.slane %v5994, 4
  %v6038 = vadd.f32 %v5994, %v6037
  %v6039 = vrot.slane %v6038, 2
  %v6040 = vadd.f32 %v6038, %v6039
  %v6041 = vrot.slane %v6040, 1
  %v6042 = vadd.f32 %v6040, %v6041
  %v6051 = vsel %vm546, %v6006, %v6000
  %v6052 = vsel %vm548, %v6012, %v6051
  %v6053 = vsel %vm550, %v6018, %v6052
  %v6054 = vsel %vm552, %v6024, %v6053
  %v6055 = vsel %vm554, %v6030, %v6054
  %v6056 = vsel %vm556, %v6036, %v6055
  %v6057 = vsel %vm558, %v6042, %v6056
  %6059 = vst [vmem:[#allocation3] sm:$0xff] %v6057
  %v6060 = vld [vmem:[#allocation3] sm:$0xff]
  %v6061 = vld [vmem:[#allocation3 + $0x8] sm:$0xff]
  %6062 = vmatprep.subr.mxu0 %v157
  %6063 = vmatpush1.msra.mxu0 %v156
  %6064 = vmatprep.subr.mxu0 %v154
  %6065 = vmatpush1.msra.mxu0 %v153
  %6066 = vmatprep.subr.mxu0 %v151
  %6067 = vmatpush1.msra.mxu0 %v150
  %6068 = vmatprep.subr.mxu0 %v148
  %6069 = vmatpush1.msra.mxu0 %v147
  %6070 = vmatprep.subr.mxu0 %v145
  %6071 = vmatpush1.msra.mxu0 %v144
  %6072 = vmatprep.subr.mxu0 %v142
  %6073 = vmatpush1.msra.mxu0 %v141
  %6074 = vmatprep.subr.mxu0 %v139
  %6075 = vmatpush1.msra.mxu0 %v138
  %6076 = vmatprep.subr.mxu0 %v136
  %6077 = vmatpush1.msra.mxu0 %v135
  %6078 = vmatprep.subr.mxu0 %v133
  %6079 = vmatpush1.msra.mxu0 %v132
  %6080 = vmatprep.subr.mxu0 %v130
  %6081 = vmatpush1.msra.mxu0 %v129
  %6082 = vmatprep.subr.mxu0 %v127
  %6083 = vmatpush1.msra.mxu0 %v126
  %6084 = vmatprep.subr.mxu0 %v124
  %6085 = vmatpush1.msra.mxu0 %v123
  %6086 = vmatprep.subr.mxu0 %v121
  %6087 = vmatpush1.msra.mxu0 %v120
  %6088 = vmatprep.subr.mxu0 %v118
  %6089 = vmatpush1.msra.mxu0 %v117
  %6090 = vmatprep.subr.mxu0 %v115
  %6091 = vmatpush1.msra.mxu0 %v114
  %6092 = vmatprep.subr.mxu0 %v112
  %6093 = vmatpush1.msra.mxu0 %v111
  %6094 = vmatprep.subr.mxu0 %v205
  %6095 = vmatpush2.msra.mxu0 %v204
  %6096 = vmatprep.subr.mxu0 %v202
  %6097 = vmatpush2.msra.mxu0 %v201
  %6098 = vmatprep.subr.mxu0 %v199
  %6099 = vmatpush2.msra.mxu0 %v198
  %6100 = vmatprep.subr.mxu0 %v196
  %6101 = vmatpush2.msra.mxu0 %v195
  %6102 = vmatprep.subr.mxu0 %v193
  %6103 = vmatpush2.msra.mxu0 %v192
  %6104 = vmatprep.subr.mxu0 %v190
  %6105 = vmatpush2.msra.mxu0 %v189
  %6106 = vmatprep.subr.mxu0 %v187
  %6107 = vmatpush2.msra.mxu0 %v186
  %6108 = vmatprep.subr.mxu0 %v184
  %6109 = vmatpush2.msra.mxu0 %v183
  %6110 = vmatprep.subr.mxu0 %v181
  %6111 = vmatpush2.msra.mxu0 %v180
  %6112 = vmatprep.subr.mxu0 %v178
  %6113 = vmatpush2.msra.mxu0 %v177
  %6114 = vmatprep.subr.mxu0 %v175
  %6115 = vmatpush2.msra.mxu0 %v174
  %6116 = vmatprep.subr.mxu0 %v172
  %6117 = vmatpush2.msra.mxu0 %v171
  %6118 = vmatprep.subr.mxu0 %v169
  %6119 = vmatpush2.msra.mxu0 %v168
  %6120 = vmatprep.subr.mxu0 %v166
  %6121 = vmatpush2.msra.mxu0 %v165
  %6122 = vmatprep.subr.mxu0 %v163
  %6123 = vmatpush2.msra.mxu0 %v162
  %6124 = vmatprep.subr.mxu0 %v160
  %6125 = vmatpush2.msra.mxu0 %v159
  %6126 = vmatprep.mubr.f32.mxu0 %v6061
  %6127 = vmatmul.mubr.f32.gmra.mxu0 %v6060
  %v6128 = vpop.f32.mrf.mxu0
  %v6129 = vadd.f32 %v874, %v6128
  %v6130 = vpop.f32.mrf.mxu0
  %v6131 = vadd.f32 %v878, %v6130
  %6132 = vdwg.mxu0
  %6133 = vmatprep.subr.mxu0 0.0
  %6134 = vmatpush1.msra.mxu0 %v158
  %6135 = vmatprep.subr.mxu0 0.0
  %6136 = vmatpush1.msra.mxu0 %v155
  %6137 = vmatprep.subr.mxu0 0.0
  %6138 = vmatpush1.msra.mxu0 %v152
  %6139 = vmatprep.subr.mxu0 0.0
  %6140 = vmatpush1.msra.mxu0 %v149
  %6141 = vmatprep.subr.mxu0 0.0
  %6142 = vmatpush1.msra.mxu0 %v146
  %6143 = vmatprep.subr.mxu0 0.0
  %6144 = vmatpush1.msra.mxu0 %v143
  %6145 = vmatprep.subr.mxu0 0.0
  %6146 = vmatpush1.msra.mxu0 %v140
  %6147 = vmatprep.subr.mxu0 0.0
  %6148 = vmatpush1.msra.mxu0 %v137
  %6149 = vmatprep.subr.mxu0 0.0
  %6150 = vmatpush1.msra.mxu0 %v134
  %6151 = vmatprep.subr.mxu0 0.0
  %6152 = vmatpush1.msra.mxu0 %v131
  %6153 = vmatprep.subr.mxu0 0.0
  %6154 = vmatpush1.msra.mxu0 %v128
  %6155 = vmatprep.subr.mxu0 0.0
  %6156 = vmatpush1.msra.mxu0 %v125
  %6157 = vmatprep.subr.mxu0 0.0
  %6158 = vmatpush1.msra.mxu0 %v122
  %6159 = vmatprep.subr.mxu0 0.0
  %6160 = vmatpush1.msra.mxu0 %v119
  %6161 = vmatprep.subr.mxu0 0.0
  %6162 = vmatpush1.msra.mxu0 %v116
  %6163 = vmatprep.subr.mxu0 0.0
  %6164 = vmatpush1.msra.mxu0 %v113
  %6165 = vmatprep.subr.mxu0 0.0
  %6166 = vmatpush2.msra.mxu0 %v206
  %6167 = vmatprep.subr.mxu0 0.0
  %6168 = vmatpush2.msra.mxu0 %v203
  %6169 = vmatprep.subr.mxu0 0.0
  %6170 = vmatpush2.msra.mxu0 %v200
  %6171 = vmatprep.subr.mxu0 0.0
  %6172 = vmatpush2.msra.mxu0 %v197
  %6173 = vmatprep.subr.mxu0 0.0
  %6174 = vmatpush2.msra.mxu0 %v194
  %6175 = vmatprep.subr.mxu0 0.0
  %6176 = vmatpush2.msra.mxu0 %v191
  %6177 = vmatprep.subr.mxu0 0.0
  %6178 = vmatpush2.msra.mxu0 %v188
  %6179 = vmatprep.subr.mxu0 0.0
  %6180 = vmatpush2.msra.mxu0 %v185
  %6181 = vmatprep.subr.mxu0 0.0
  %6182 = vmatpush2.msra.mxu0 %v182
  %6183 = vmatprep.subr.mxu0 0.0
  %6184 = vmatpush2.msra.mxu0 %v179
  %6185 = vmatprep.subr.mxu0 0.0
  %6186 = vmatpush2.msra.mxu0 %v176
  %6187 = vmatprep.subr.mxu0 0.0
  %6188 = vmatpush2.msra.mxu0 %v173
  %6189 = vmatprep.subr.mxu0 0.0
  %6190 = vmatpush2.msra.mxu0 %v170
  %6191 = vmatprep.subr.mxu0 0.0
  %6192 = vmatpush2.msra.mxu0 %v167
  %6193 = vmatprep.subr.mxu0 0.0
  %6194 = vmatpush2.msra.mxu0 %v164
  %6195 = vmatprep.subr.mxu0 0.0
  %6196 = vmatpush2.msra.mxu0 %v161
  %6197 = vmatprep.mubr.f32.mxu0 %v6061
  %6198 = vmatmul.mubr.f32.gmra.mxu0 %v6060
  %v6199 = vpop.f32.mrf.mxu0
  %v6200 = vadd.f32 %v882, %v6199
  %v6201 = vpop.f32.mrf.mxu0
  %6202 = vdwg.mxu0
  %6203 = vmatprep.subr.mxu0 %v253
  %6204 = vmatpush1.msra.mxu0 %v252
  %6205 = vmatprep.subr.mxu0 %v250
  %6206 = vmatpush1.msra.mxu0 %v249
  %6207 = vmatprep.subr.mxu0 %v247
  %6208 = vmatpush1.msra.mxu0 %v246
  %6209 = vmatprep.subr.mxu0 %v244
  %6210 = vmatpush1.msra.mxu0 %v243
  %6211 = vmatprep.subr.mxu0 %v241
  %6212 = vmatpush1.msra.mxu0 %v240
  %6213 = vmatprep.subr.mxu0 %v238
  %6214 = vmatpush1.msra.mxu0 %v237
  %6215 = vmatprep.subr.mxu0 %v235
  %6216 = vmatpush1.msra.mxu0 %v234
  %6217 = vmatprep.subr.mxu0 %v232
  %6218 = vmatpush1.msra.mxu0 %v231
  %6219 = vmatprep.subr.mxu0 %v229
  %6220 = vmatpush1.msra.mxu0 %v228
  %6221 = vmatprep.subr.mxu0 %v226
  %6222 = vmatpush1.msra.mxu0 %v225
  %6223 = vmatprep.subr.mxu0 %v223
  %6224 = vmatpush1.msra.mxu0 %v222
  %6225 = vmatprep.subr.mxu0 %v220
  %6226 = vmatpush1.msra.mxu0 %v219
  %6227 = vmatprep.subr.mxu0 %v217
  %6228 = vmatpush1.msra.mxu0 %v216
  %6229 = vmatprep.subr.mxu0 %v214
  %6230 = vmatpush1.msra.mxu0 %v213
  %6231 = vmatprep.subr.mxu0 %v211
  %6232 = vmatpush1.msra.mxu0 %v210
  %6233 = vmatprep.subr.mxu0 %v208
  %6234 = vmatpush1.msra.mxu0 %v207
  %6235 = vmatprep.subr.mxu0 0.0
  %6236 = vmatpush2.msra.mxu0 0.0
  %6237 = vmatprep.subr.mxu0 0.0
  %6238 = vmatpush2.msra.mxu0 0.0
  %6239 = vmatprep.subr.mxu0 0.0
  %6240 = vmatpush2.msra.mxu0 0.0
  %6241 = vmatprep.subr.mxu0 0.0
  %6242 = vmatpush2.msra.mxu0 0.0
  %6243 = vmatprep.subr.mxu0 0.0
  %6244 = vmatpush2.msra.mxu0 0.0
  %6245 = vmatprep.subr.mxu0 0.0
  %6246 = vmatpush2.msra.mxu0 0.0
  %6247 = vmatprep.subr.mxu0 0.0
  %6248 = vmatpush2.msra.mxu0 0.0
  %6249 = vmatprep.subr.mxu0 0.0
  %6250 = vmatpush2.msra.mxu0 0.0
  %6251 = vmatprep.subr.mxu0 0.0
  %6252 = vmatpush2.msra.mxu0 0.0
  %6253 = vmatprep.subr.mxu0 0.0
  %6254 = vmatpush2.msra.mxu0 0.0
  %6255 = vmatprep.subr.mxu0 0.0
  %6256 = vmatpush2.msra.mxu0 0.0
  %6257 = vmatprep.subr.mxu0 0.0
  %6258 = vmatpush2.msra.mxu0 0.0
  %6259 = vmatprep.subr.mxu0 0.0
  %6260 = vmatpush2.msra.mxu0 0.0
  %6261 = vmatprep.subr.mxu0 0.0
  %6262 = vmatpush2.msra.mxu0 0.0
  %6263 = vmatprep.subr.mxu0 0.0
  %6264 = vmatpush2.msra.mxu0 0.0
  %6265 = vmatprep.subr.mxu0 0.0
  %6266 = vmatpush2.msra.mxu0 0.0
  %6267 = vmatprep.mubr.f32.mxu0 0.0
  %6268 = vmatmul.mubr.f32.gmra.mxu0 %v5333
  %v6269 = vpop.f32.mrf.mxu0
  %v6270 = vadd.f32 %v1031, %v6269
  %v6271 = vpop.f32.mrf.mxu0
  %v6272 = vadd.f32 %v1035, %v6271
  %6273 = vdwg.mxu0
  %6274 = vmatprep.subr.mxu0 0.0
  %6275 = vmatpush1.msra.mxu0 %v254
  %6276 = vmatprep.subr.mxu0 0.0
  %6277 = vmatpush1.msra.mxu0 %v251
  %6278 = vmatprep.subr.mxu0 0.0
  %6279 = vmatpush1.msra.mxu0 %v248
  %6280 = vmatprep.subr.mxu0 0.0
  %6281 = vmatpush1.msra.mxu0 %v245
  %6282 = vmatprep.subr.mxu0 0.0
  %6283 = vmatpush1.msra.mxu0 %v242
  %6284 = vmatprep.subr.mxu0 0.0
  %6285 = vmatpush1.msra.mxu0 %v239
  %6286 = vmatprep.subr.mxu0 0.0
  %6287 = vmatpush1.msra.mxu0 %v236
  %6288 = vmatprep.subr.mxu0 0.0
  %6289 = vmatpush1.msra.mxu0 %v233
  %6290 = vmatprep.subr.mxu0 0.0
  %6291 = vmatpush1.msra.mxu0 %v230
  %6292 = vmatprep.subr.mxu0 0.0
  %6293 = vmatpush1.msra.mxu0 %v227
  %6294 = vmatprep.subr.mxu0 0.0
  %6295 = vmatpush1.msra.mxu0 %v224
  %6296 = vmatprep.subr.mxu0 0.0
  %6297 = vmatpush1.msra.mxu0 %v221
  %6298 = vmatprep.subr.mxu0 0.0
  %6299 = vmatpush1.msra.mxu0 %v218
  %6300 = vmatprep.subr.mxu0 0.0
  %6301 = vmatpush1.msra.mxu0 %v215
  %6302 = vmatprep.subr.mxu0 0.0
  %6303 = vmatpush1.msra.mxu0 %v212
  %6304 = vmatprep.subr.mxu0 0.0
  %6305 = vmatpush1.msra.mxu0 %v209
  %6306 = vmatprep.subr.mxu0 0.0
  %6307 = vmatpush2.msra.mxu0 0.0
  %6308 = vmatprep.subr.mxu0 0.0
  %6309 = vmatpush2.msra.mxu0 0.0
  %6310 = vmatprep.subr.mxu0 0.0
  %6311 = vmatpush2.msra.mxu0 0.0
  %6312 = vmatprep.subr.mxu0 0.0
  %6313 = vmatpush2.msra.mxu0 0.0
  %6314 = vmatprep.subr.mxu0 0.0
  %6315 = vmatpush2.msra.mxu0 0.0
  %6316 = vmatprep.subr.mxu0 0.0
  %6317 = vmatpush2.msra.mxu0 0.0
  %6318 = vmatprep.subr.mxu0 0.0
  %6319 = vmatpush2.msra.mxu0 0.0
  %6320 = vmatprep.subr.mxu0 0.0
  %6321 = vmatpush2.msra.mxu0 0.0
  %6322 = vmatprep.subr.mxu0 0.0
  %6323 = vmatpush2.msra.mxu0 0.0
  %6324 = vmatprep.subr.mxu0 0.0
  %6325 = vmatpush2.msra.mxu0 0.0
  %6326 = vmatprep.subr.mxu0 0.0
  %6327 = vmatpush2.msra.mxu0 0.0
  %6328 = vmatprep.subr.mxu0 0.0
  %6329 = vmatpush2.msra.mxu0 0.0
  %6330 = vmatprep.subr.mxu0 0.0
  %6331 = vmatpush2.msra.mxu0 0.0
  %6332 = vmatprep.subr.mxu0 0.0
  %6333 = vmatpush2.msra.mxu0 0.0
  %6334 = vmatprep.subr.mxu0 0.0
  %6335 = vmatpush2.msra.mxu0 0.0
  %6336 = vmatprep.subr.mxu0 0.0
  %6337 = vmatpush2.msra.mxu0 0.0
  %6338 = vmatprep.mubr.f32.mxu0 0.0
  %6339 = vmatmul.mubr.f32.gmra.mxu0 %v5333
  %v6340 = vpop.f32.mrf.mxu0
  %v6341 = vadd.f32 %v1039, %v6340
  %v6342 = vpop.f32.mrf.mxu0
  %6343 = vdwg.mxu0
  %v6344 = vadd.f32 %v6129, %v6270
  %v6345 = vxor.u32 %v6344, 2147483648
  %v6346 = vmul.f32 %v6345, 1.442695
  %v6347 = vpow.pop %v6346
  %v6348 = vadd.f32 %v6347, 1.0
  %v6349 = vrcp.pop %v6348
  %v6350 = vmul.f32 1.0, %v6349
  %v6351 = vadd.f32 %v6131, %v6272
  %v6352 = vxor.u32 %v6351, 2147483648
  %v6353 = vmul.f32 %v6352, 1.442695
  %v6354 = vpow.pop %v6353
  %v6355 = vadd.f32 %v6354, 1.0
  %v6356 = vrcp.pop %v6355
  %v6357 = vmul.f32 1.0, %v6356
  %v6358 = vmul.f32 %v6350, %v6341
  %v6359 = vadd.f32 %v6200, %v6358
  %v6360 = vtanh.pop %v6359
  %v6361 = vsub.f32 1.0, %v6357
  %v6362 = vmul.f32 %v6361, %v6360
  %v6363 = vmul.f32 %v6357, %v5333
  %v6364 = vadd.f32 %v6362, %v6363
  %6365 = vmatprep.subr.mxu0 0.0
  %6366 = vmatpush1.msra.mxu0 %v272
  %6367 = vmatprep.subr.mxu0 0.0
  %6368 = vmatpush1.msra.mxu0 %v271
  %6369 = vmatprep.subr.mxu0 0.0
  %6370 = vmatpush1.msra.mxu0 %v270
  %6371 = vmatprep.subr.mxu0 0.0
  %6372 = vmatpush1.msra.mxu0 %v269
  %6373 = vmatprep.subr.mxu0 0.0
  %6374 = vmatpush1.msra.mxu0 %v268
  %6375 = vmatprep.subr.mxu0 0.0
  %6376 = vmatpush1.msra.mxu0 %v267
  %6377 = vmatprep.subr.mxu0 0.0
  %6378 = vmatpush1.msra.mxu0 %v266
  %6379 = vmatprep.subr.mxu0 0.0
  %6380 = vmatpush1.msra.mxu0 %v265
  %6381 = vmatprep.subr.mxu0 0.0
  %6382 = vmatpush1.msra.mxu0 %v264
  %6383 = vmatprep.subr.mxu0 0.0
  %6384 = vmatpush1.msra.mxu0 %v263
  %6385 = vmatprep.subr.mxu0 0.0
  %6386 = vmatpush1.msra.mxu0 %v262
  %6387 = vmatprep.subr.mxu0 0.0
  %6388 = vmatpush1.msra.mxu0 %v261
  %6389 = vmatprep.subr.mxu0 0.0
  %6390 = vmatpush1.msra.mxu0 %v260
  %6391 = vmatprep.subr.mxu0 0.0
  %6392 = vmatpush1.msra.mxu0 %v259
  %6393 = vmatprep.subr.mxu0 0.0
  %6394 = vmatpush1.msra.mxu0 %v258
  %6395 = vmatprep.subr.mxu0 0.0
  %6396 = vmatpush1.msra.mxu0 %v257
  %6397 = vmatprep.subr.mxu0 0.0
  %6398 = vmatpush2.msra.mxu0 0.0
  %6399 = vmatprep.subr.mxu0 0.0
  %6400 = vmatpush2.msra.mxu0 0.0
  %6401 = vmatprep.subr.mxu0 0.0
  %6402 = vmatpush2.msra.mxu0 0.0
  %6403 = vmatprep.subr.mxu0 0.0
  %6404 = vmatpush2.msra.mxu0 0.0
  %6405 = vmatprep.subr.mxu0 0.0
  %6406 = vmatpush2.msra.mxu0 0.0
  %6407 = vmatprep.subr.mxu0 0.0
  %6408 = vmatpush2.msra.mxu0 0.0
  %6409 = vmatprep.subr.mxu0 0.0
  %6410 = vmatpush2.msra.mxu0 0.0
  %6411 = vmatprep.subr.mxu0 0.0
  %6412 = vmatpush2.msra.mxu0 0.0
  %6413 = vmatprep.subr.mxu0 0.0
  %6414 = vmatpush2.msra.mxu0 0.0
  %6415 = vmatprep.subr.mxu0 0.0
  %6416 = vmatpush2.msra.mxu0 0.0
  %6417 = vmatprep.subr.mxu0 0.0
  %6418 = vmatpush2.msra.mxu0 0.0
  %6419 = vmatprep.subr.mxu0 0.0
  %6420 = vmatpush2.msra.mxu0 0.0
  %6421 = vmatprep.subr.mxu0 0.0
  %6422 = vmatpush2.msra.mxu0 0.0
  %6423 = vmatprep.subr.mxu0 0.0
  %6424 = vmatpush2.msra.mxu0 0.0
  %6425 = vmatprep.subr.mxu0 0.0
  %6426 = vmatpush2.msra.mxu0 0.0
  %6427 = vmatprep.subr.mxu0 0.0
  %6428 = vmatpush2.msra.mxu0 0.0
  %6429 = vmatprep.mubr.f32.mxu0 0.0
  %6430 = vmatmul.mubr.f32.gmra.mxu0 %v6364
  %v6431 = vpop.f32.mrf.mxu0
  %v6432 = vadd.f32 %v1209, %v6431
  %v6433 = vpop.f32.mrf.mxu0
  %6434 = vdwg.mxu0
  %s6435 = scalar_lea.vmem %s15, 40
  %6436 = vst [vmem:[%s6435] sm:$0xff] %v6432
  %6437 = vmax.xlane.f32.xlu0 %v6432
  %v6438 = vpop.xlane.xlu0 %6437
  %vm6439 = vcmp.eq.f32.partialorder %v6432, %v6438
  %v6440 = vsel %vm6439, %v513, 128
  %v6441 = vand.u32 %v6440, 65535
  %v6442 = vshra.s32 %v6440, 16
  %v6443 = vcvt.s32.f32 %v6441
  %v6444 = vcvt.s32.f32 %v6442
  %6445 = vmin.xlane.f32.xlu0 %v6444
  %v6446 = vpop.xlane.xlu0 %6445
  %vm6447 = vcmp.eq.f32.partialorder %v6444, %v6446
  %v6448 = vsel %vm6447, %v6443, inf
  %6449 = vmin.xlane.f32.xlu0 %v6448
  %v6450 = vpop.xlane.xlu0 %6449
  %v6451 = vcvt.f32.s32 %v6450
  %v6452 = vcvt.f32.s32 %v6446
  %v6453 = vshll.u32 %v6452, 16
  %v6454 = vadd.s32 %v6453, %v6451
  %vm6455 = vcmp.eq.s32.totalorder %v513, %v6454
  %v6456 = vsel %vm6455, 1, 0
  %v6457 = vcvt.s32.f32 %v6456
  %6458 = vmatprep.subr.mxu0 0.0
  %6459 = vmatpush1.msra.mxu0 %v110
  %6460 = vmatprep.subr.mxu0 0.0
  %6461 = vmatpush1.msra.mxu0 %v109
  %6462 = vmatprep.subr.mxu0 0.0
  %6463 = vmatpush1.msra.mxu0 %v108
  %6464 = vmatprep.subr.mxu0 0.0
  %6465 = vmatpush1.msra.mxu0 %v107
  %6466 = vmatprep.subr.mxu0 0.0
  %6467 = vmatpush1.msra.mxu0 %v106
  %6468 = vmatprep.subr.mxu0 0.0
  %6469 = vmatpush1.msra.mxu0 %v105
  %6470 = vmatprep.subr.mxu0 0.0
  %6471 = vmatpush1.msra.mxu0 %v104
  %6472 = vmatprep.subr.mxu0 0.0
  %6473 = vmatpush1.msra.mxu0 %v103
  %6474 = vmatprep.subr.mxu0 0.0
  %6475 = vmatpush1.msra.mxu0 %v102
  %6476 = vmatprep.subr.mxu0 0.0
  %6477 = vmatpush1.msra.mxu0 %v101
  %6478 = vmatprep.subr.mxu0 0.0
  %6479 = vmatpush1.msra.mxu0 %v100
  %6480 = vmatprep.subr.mxu0 0.0
  %6481 = vmatpush1.msra.mxu0 %v99
  %6482 = vmatprep.subr.mxu0 0.0
  %6483 = vmatpush1.msra.mxu0 %v98
  %6484 = vmatprep.subr.mxu0 0.0
  %6485 = vmatpush1.msra.mxu0 %v97
  %6486 = vmatprep.subr.mxu0 0.0
  %6487 = vmatpush1.msra.mxu0 %v96
  %6488 = vmatprep.subr.mxu0 0.0
  %6489 = vmatpush1.msra.mxu0 %v95
  %6490 = vmatprep.subr.mxu0 0.0
  %6491 = vmatpush2.msra.mxu0 0.0
  %6492 = vmatprep.subr.mxu0 0.0
  %6493 = vmatpush2.msra.mxu0 0.0
  %6494 = vmatprep.subr.mxu0 0.0
  %6495 = vmatpush2.msra.mxu0 0.0
  %6496 = vmatprep.subr.mxu0 0.0
  %6497 = vmatpush2.msra.mxu0 0.0
  %6498 = vmatprep.subr.mxu0 0.0
  %6499 = vmatpush2.msra.mxu0 0.0
  %6500 = vmatprep.subr.mxu0 0.0
  %6501 = vmatpush2.msra.mxu0 0.0
  %6502 = vmatprep.subr.mxu0 0.0
  %6503 = vmatpush2.msra.mxu0 0.0
  %6504 = vmatprep.subr.mxu0 0.0
  %6505 = vmatpush2.msra.mxu0 0.0
  %6506 = vmatprep.subr.mxu0 0.0
  %6507 = vmatpush2.msra.mxu0 0.0
  %6508 = vmatprep.subr.mxu0 0.0
  %6509 = vmatpush2.msra.mxu0 0.0
  %6510 = vmatprep.subr.mxu0 0.0
  %6511 = vmatpush2.msra.mxu0 0.0
  %6512 = vmatprep.subr.mxu0 0.0
  %6513 = vmatpush2.msra.mxu0 0.0
  %6514 = vmatprep.subr.mxu0 0.0
  %6515 = vmatpush2.msra.mxu0 0.0
  %6516 = vmatprep.subr.mxu0 0.0
  %6517 = vmatpush2.msra.mxu0 0.0
  %6518 = vmatprep.subr.mxu0 0.0
  %6519 = vmatpush2.msra.mxu0 0.0
  %6520 = vmatprep.subr.mxu0 0.0
  %6521 = vmatpush2.msra.mxu0 0.0
  %6522 = vmatprep.mubr.f32.mxu0 0.0
  %6523 = vmatmul.mubr.f32.gmra.mxu0 %v6457
  %v6524 = vpop.f32.mrf.mxu0
  %v6525 = vadd.f32 0.0, %v6524
  %v6526 = vpop.f32.mrf.mxu0
  %6527 = vdwg.mxu0
  %6528 = vst [vmem:[#allocation3 + $0x8] sm:$0xff] %v6525
  %6529 = vmatprep.subr.mxu0 0.0
  %6530 = vmatpush1.msra.mxu0 %v91
  %6531 = vmatprep.subr.mxu0 0.0
  %6532 = vmatpush1.msra.mxu0 %v90
  %6533 = vmatprep.subr.mxu0 0.0
  %6534 = vmatpush1.msra.mxu0 %v89
  %6535 = vmatprep.subr.mxu0 0.0
  %6536 = vmatpush1.msra.mxu0 %v88
  %6537 = vmatprep.subr.mxu0 0.0
  %6538 = vmatpush1.msra.mxu0 %v87
  %6539 = vmatprep.subr.mxu0 0.0
  %6540 = vmatpush1.msra.mxu0 %v86
  %6541 = vmatprep.subr.mxu0 0.0
  %6542 = vmatpush1.msra.mxu0 %v85
  %6543 = vmatprep.subr.mxu0 0.0
  %6544 = vmatpush1.msra.mxu0 %v84
  %6545 = vmatprep.subr.mxu0 0.0
  %6546 = vmatpush1.msra.mxu0 %v83
  %6547 = vmatprep.subr.mxu0 0.0
  %6548 = vmatpush1.msra.mxu0 %v82
  %6549 = vmatprep.subr.mxu0 0.0
  %6550 = vmatpush1.msra.mxu0 %v81
  %6551 = vmatprep.subr.mxu0 0.0
  %6552 = vmatpush1.msra.mxu0 %v80
  %6553 = vmatprep.subr.mxu0 0.0
  %6554 = vmatpush1.msra.mxu0 %v79
  %6555 = vmatprep.subr.mxu0 0.0
  %6556 = vmatpush1.msra.mxu0 %v78
  %6557 = vmatprep.subr.mxu0 0.0
  %6558 = vmatpush1.msra.mxu0 %v77
  %6559 = vmatprep.subr.mxu0 0.0
  %6560 = vmatpush1.msra.mxu0 %v76
  %6561 = vmatprep.subr.mxu0 0.0
  %6562 = vmatpush2.msra.mxu0 0.0
  %6563 = vmatprep.subr.mxu0 0.0
  %6564 = vmatpush2.msra.mxu0 0.0
  %6565 = vmatprep.subr.mxu0 0.0
  %6566 = vmatpush2.msra.mxu0 0.0
  %6567 = vmatprep.subr.mxu0 0.0
  %6568 = vmatpush2.msra.mxu0 0.0
  %6569 = vmatprep.subr.mxu0 0.0
  %6570 = vmatpush2.msra.mxu0 0.0
  %6571 = vmatprep.subr.mxu0 0.0
  %6572 = vmatpush2.msra.mxu0 0.0
  %6573 = vmatprep.subr.mxu0 0.0
  %6574 = vmatpush2.msra.mxu0 0.0
  %6575 = vmatprep.subr.mxu0 0.0
  %6576 = vmatpush2.msra.mxu0 0.0
  %6577 = vmatprep.subr.mxu0 0.0
  %6578 = vmatpush2.msra.mxu0 0.0
  %6579 = vmatprep.subr.mxu0 0.0
  %6580 = vmatpush2.msra.mxu0 0.0
  %6581 = vmatprep.subr.mxu0 0.0
  %6582 = vmatpush2.msra.mxu0 0.0
  %6583 = vmatprep.subr.mxu0 0.0
  %6584 = vmatpush2.msra.mxu0 0.0
  %6585 = vmatprep.subr.mxu0 0.0
  %6586 = vmatpush2.msra.mxu0 0.0
  %6587 = vmatprep.subr.mxu0 0.0
  %6588 = vmatpush2.msra.mxu0 0.0
  %6589 = vmatprep.subr.mxu0 0.0
  %6590 = vmatpush2.msra.mxu0 0.0
  %6591 = vmatprep.subr.mxu0 0.0
  %6592 = vmatpush2.msra.mxu0 0.0
  %6593 = vmatprep.mubr.f32.mxu0 0.0
  %6594 = vmatmul.mubr.f32.gmra.mxu0 %v6364
  %v6595 = vpop.f32.mrf.mxu0
  %v6596 = vadd.f32 %v279, %v6595
  %v6597 = vpop.f32.mrf.mxu0
  %6598 = vdwg.mxu0
  %v6600 = vcombine.high %v6596, %v6596
  %v6602 = vunpack.c.l.s4 1966171168
  %v6603 = vunpack.c.0.s8 %v6602
  %v6604 = vlaneseq
  %v6605 = vshrl.u32 %v6604, 7
  %v6606 = vsub.s32 %v6603, %v6605
  %v6607 = vrot.slane %v6596, %v6606
  %v6609 = vunpack.c.l.s4 1966171168
  %v6610 = vunpack.c.0.s8 %v6609
  %v6611 = vlaneseq
  %v6612 = vshrl.u32 %v6611, 7
  %v6613 = vsub.s32 %v6610, %v6612
  %v6614 = vrot.slane %v6600, %v6613
  %v6615 = vcombine.high %v6607, %v6607
  %v6616 = vcombine.high %v6614, %v6614
  %v6618 = vunpack.c.l.s4 1966171168
  %v6619 = vunpack.c.0.s8 %v6618
  %v6620 = vlaneseq
  %v6621 = vshrl.u32 %v6620, 7
  %v6622 = vsub.s32 %v6619, %v6621
  %v6623 = vrot.slane %v6607, %v6622
  %v6625 = vunpack.c.l.s4 1966171168
  %v6626 = vunpack.c.0.s8 %v6625
  %v6627 = vlaneseq
  %v6628 = vshrl.u32 %v6627, 7
  %v6629 = vsub.s32 %v6626, %v6628
  %v6630 = vrot.slane %v6614, %v6629
  %v6632 = vunpack.c.l.s4 1966171168
  %v6633 = vunpack.c.0.s8 %v6632
  %v6634 = vlaneseq
  %v6635 = vshrl.u32 %v6634, 7
  %v6636 = vsub.s32 %v6633, %v6635
  %v6637 = vrot.slane %v6615, %v6636
  %v6639 = vunpack.c.l.s4 1966171168
  %v6640 = vunpack.c.0.s8 %v6639
  %v6641 = vlaneseq
  %v6642 = vshrl.u32 %v6641, 7
  %v6643 = vsub.s32 %v6640, %v6642
  %v6644 = vrot.slane %v6616, %v6643
  %v6645 = vcombine.high %v6623, %v6623
  %v6646 = vcombine.high %v6630, %v6630
  %v6647 = vcombine.high %v6637, %v6637
  %v6648 = vcombine.high %v6644, %v6644
  %v6649 = vlaneseq
  %v6650 = vshrl.u32 %v6649, 7
  %v6651 = vsub.s32 0, %v6650
  %v6652 = vrot.slane %v6623, %v6651
  %v6653 = vlaneseq
  %v6654 = vshrl.u32 %v6653, 7
  %v6655 = vsub.s32 0, %v6654
  %v6656 = vrot.slane %v6637, %v6655
  %v6657 = vlaneseq
  %v6658 = vshrl.u32 %v6657, 7
  %v6659 = vsub.s32 0, %v6658
  %v6660 = vrot.slane %v6645, %v6659
  %v6661 = vlaneseq
  %v6662 = vshrl.u32 %v6661, 7
  %v6663 = vsub.s32 0, %v6662
  %v6664 = vrot.slane %v6647, %v6663
  %v6665 = vlaneseq
  %v6666 = vshrl.u32 %v6665, 7
  %v6667 = vsub.s32 0, %v6666
  %v6668 = vrot.slane %v6630, %v6667
  %v6669 = vlaneseq
  %v6670 = vshrl.u32 %v6669, 7
  %v6671 = vsub.s32 0, %v6670
  %v6672 = vrot.slane %v6644, %v6671
  %v6673 = vlaneseq
  %v6674 = vshrl.u32 %v6673, 7
  %v6675 = vsub.s32 0, %v6674
  %v6676 = vrot.slane %v6646, %v6675
  %v6677 = vlaneseq
  %v6678 = vshrl.u32 %v6677, 7
  %v6679 = vsub.s32 0, %v6678
  %v6680 = vrot.slane %v6648, %v6679
  %v6689 = vadd.f32 %v68, %v6652
  %v6690 = vadd.f32 %v69, %v6656
  %v6691 = vadd.f32 %v70, %v6660
  %v6692 = vadd.f32 %v71, %v6664
  %v6693 = vadd.f32 %v72, %v6668
  %v6694 = vadd.f32 %v73, %v6672
  %v6695 = vadd.f32 %v74, %v6676
  %v6696 = vadd.f32 %v75, %v6680
  %v6697 = vtanh.pop %v6689
  %v6698 = vtanh.pop %v6690
  %v6699 = vtanh.pop %v6691
  %v6700 = vtanh.pop %v6692
  %v6701 = vtanh.pop %v6693
  %v6702 = vtanh.pop %v6694
  %v6703 = vtanh.pop %v6695
  %v6704 = vtanh.pop %v6696
  %v6705 = vmul.f32 %v6697, %v461
  %v6706 = vmul.f32 %v6698, %v461
  %v6707 = vmul.f32 %v6699, %v461
  %v6708 = vmul.f32 %v6700, %v461
  %v6709 = vmul.f32 %v6701, %v461
  %v6710 = vmul.f32 %v6702, %v461
  %v6711 = vmul.f32 %v6703, %v461
  %v6712 = vmul.f32 %v6704, %v461
  %6713 = vadd.xlane.f32.xlu0 %v6705
  %v6714 = vpop.xlane.xlu0 %6713
  %6715 = vadd.xlane.f32.xlu0 %v6706
  %v6716 = vpop.xlane.xlu0 %6715
  %6717 = vadd.xlane.f32.xlu0 %v6707
  %v6718 = vpop.xlane.xlu0 %6717
  %6719 = vadd.xlane.f32.xlu0 %v6708
  %v6720 = vpop.xlane.xlu0 %6719
  %6721 = vadd.xlane.f32.xlu0 %v6709
  %v6722 = vpop.xlane.xlu0 %6721
  %6723 = vadd.xlane.f32.xlu0 %v6710
  %v6724 = vpop.xlane.xlu0 %6723
  %6725 = vadd.xlane.f32.xlu0 %v6711
  %v6726 = vpop.xlane.xlu0 %6725
  %6727 = vadd.xlane.f32.xlu0 %v6712
  %v6728 = vpop.xlane.xlu0 %6727
  %v6729 = vadd.f32 %v6714, %v494
  %v6730 = vadd.f32 %v6716, %v494
  %v6731 = vadd.f32 %v6718, %v494
  %v6732 = vadd.f32 %v6720, %v494
  %v6733 = vadd.f32 %v6722, %v494
  %v6734 = vadd.f32 %v6724, %v494
  %v6735 = vadd.f32 %v6726, %v494
  %v6736 = vadd.f32 %v6728, %v494
  %v6745 = vlaneseq
  %v6746 = vshrl.u32 %v6745, 7
  %v6747 = vsub.s32 %v513, %v6746
  %v6748 = vrot.slane %v6729, %v6747
  %v6749 = vlaneseq
  %v6750 = vshrl.u32 %v6749, 7
  %v6751 = vsub.s32 %v513, %v6750
  %v6752 = vrot.slane %v6730, %v6751
  %v6753 = vlaneseq
  %v6754 = vshrl.u32 %v6753, 7
  %v6755 = vsub.s32 %v513, %v6754
  %v6756 = vrot.slane %v6731, %v6755
  %v6757 = vlaneseq
  %v6758 = vshrl.u32 %v6757, 7
  %v6759 = vsub.s32 %v513, %v6758
  %v6760 = vrot.slane %v6732, %v6759
  %v6761 = vlaneseq
  %v6762 = vshrl.u32 %v6761, 7
  %v6763 = vsub.s32 %v513, %v6762
  %v6764 = vrot.slane %v6733, %v6763
  %v6765 = vlaneseq
  %v6766 = vshrl.u32 %v6765, 7
  %v6767 = vsub.s32 %v513, %v6766
  %v6768 = vrot.slane %v6734, %v6767
  %v6769 = vlaneseq
  %v6770 = vshrl.u32 %v6769, 7
  %v6771 = vsub.s32 %v513, %v6770
  %v6772 = vrot.slane %v6735, %v6771
  %v6773 = vlaneseq
  %v6774 = vshrl.u32 %v6773, 7
  %v6775 = vsub.s32 %v513, %v6774
  %v6776 = vrot.slane %v6736, %v6775
  %v6777 = vsel %vm546, %v6752, %v6748
  %v6778 = vsel %vm548, %v6756, %v6777
  %v6779 = vsel %vm550, %v6760, %v6778
  %v6780 = vsel %vm552, %v6764, %v6779
  %v6781 = vsel %vm554, %v6768, %v6780
  %v6782 = vsel %vm556, %v6772, %v6781
  %v6783 = vsel %vm558, %v6776, %v6782
  %v6785 = vsel %vm561, %v6783, -inf
  %6786 = vmax.xlane.f32.xlu0 %v6785
  %v6787 = vpop.xlane.xlu0 %6786
  %v6789 = vlaneseq
  %v6790 = vshrl.u32 %v6789, 7
  %v6791 = vsub.s32 0, %v6790
  %v6792 = vrot.slane %v6787, %v6791
  %v6793 = vlaneseq
  %v6794 = vshrl.u32 %v6793, 7
  %v6795 = vsub.s32 1, %v6794
  %v6796 = vrot.slane %v6787, %v6795
  %v6797 = vlaneseq
  %v6798 = vshrl.u32 %v6797, 7
  %v6799 = vsub.s32 2, %v6798
  %v6800 = vrot.slane %v6787, %v6799
  %v6801 = vlaneseq
  %v6802 = vshrl.u32 %v6801, 7
  %v6803 = vsub.s32 3, %v6802
  %v6804 = vrot.slane %v6787, %v6803
  %v6805 = vlaneseq
  %v6806 = vshrl.u32 %v6805, 7
  %v6807 = vsub.s32 4, %v6806
  %v6808 = vrot.slane %v6787, %v6807
  %v6809 = vlaneseq
  %v6810 = vshrl.u32 %v6809, 7
  %v6811 = vsub.s32 5, %v6810
  %v6812 = vrot.slane %v6787, %v6811
  %v6813 = vlaneseq
  %v6814 = vshrl.u32 %v6813, 7
  %v6815 = vsub.s32 6, %v6814
  %v6816 = vrot.slane %v6787, %v6815
  %v6817 = vlaneseq
  %v6818 = vshrl.u32 %v6817, 7
  %v6819 = vsub.s32 7, %v6818
  %v6820 = vrot.slane %v6787, %v6819
  %v6829 = vsub.f32 %v6729, %v6792
  %v6830 = vsub.f32 %v6730, %v6796
  %v6831 = vsub.f32 %v6731, %v6800
  %v6832 = vsub.f32 %v6732, %v6804
  %v6833 = vsub.f32 %v6733, %v6808
  %v6834 = vsub.f32 %v6734, %v6812
  %v6835 = vsub.f32 %v6735, %v6816
  %v6836 = vsub.f32 %v6736, %v6820
  %v6837 = vmul.f32 %v6829, 1.442695
  %v6838 = vpow.pop %v6837
  %v6839 = vmul.f32 %v6830, 1.442695
  %v6840 = vpow.pop %v6839
  %v6841 = vmul.f32 %v6831, 1.442695
  %v6842 = vpow.pop %v6841
  %v6843 = vmul.f32 %v6832, 1.442695
  %v6844 = vpow.pop %v6843
  %v6845 = vmul.f32 %v6833, 1.442695
  %v6846 = vpow.pop %v6845
  %v6847 = vmul.f32 %v6834, 1.442695
  %v6848 = vpow.pop %v6847
  %v6849 = vmul.f32 %v6835, 1.442695
  %v6850 = vpow.pop %v6849
  %v6851 = vmul.f32 %v6836, 1.442695
  %v6852 = vpow.pop %v6851
  %6861 = vset.pattern.permute.xlu0 0
  %6862 = vperm.xlu0 %6861, %v6838
  %v6863 = vpop.permute.xlu0 %6862
  %6864 = vset.pattern.permute.xlu0 0
  %6865 = vperm.xlu0 %6864, %v6840
  %v6866 = vpop.permute.xlu0 %6865
  %6867 = vset.pattern.permute.xlu0 0
  %6868 = vperm.xlu0 %6867, %v6842
  %v6869 = vpop.permute.xlu0 %6868
  %6870 = vset.pattern.permute.xlu0 0
  %6871 = vperm.xlu0 %6870, %v6844
  %v6872 = vpop.permute.xlu0 %6871
  %6873 = vset.pattern.permute.xlu0 0
  %6874 = vperm.xlu0 %6873, %v6846
  %v6875 = vpop.permute.xlu0 %6874
  %6876 = vset.pattern.permute.xlu0 0
  %6877 = vperm.xlu0 %6876, %v6848
  %v6878 = vpop.permute.xlu0 %6877
  %6879 = vset.pattern.permute.xlu0 0
  %6880 = vperm.xlu0 %6879, %v6850
  %v6881 = vpop.permute.xlu0 %6880
  %6882 = vset.pattern.permute.xlu0 0
  %6883 = vperm.xlu0 %6882, %v6852
  %v6884 = vpop.permute.xlu0 %6883
  %v6885 = vlaneseq
  %v6886 = vshrl.u32 %v6885, 7
  %v6887 = vsub.s32 %v513, %v6886
  %v6888 = vrot.slane %v6863, %v6887
  %v6889 = vlaneseq
  %v6890 = vshrl.u32 %v6889, 7
  %v6891 = vsub.s32 %v513, %v6890
  %v6892 = vrot.slane %v6866, %v6891
  %v6893 = vlaneseq
  %v6894 = vshrl.u32 %v6893, 7
  %v6895 = vsub.s32 %v513, %v6894
  %v6896 = vrot.slane %v6869, %v6895
  %v6897 = vlaneseq
  %v6898 = vshrl.u32 %v6897, 7
  %v6899 = vsub.s32 %v513, %v6898
  %v6900 = vrot.slane %v6872, %v6899
  %v6901 = vlaneseq
  %v6902 = vshrl.u32 %v6901, 7
  %v6903 = vsub.s32 %v513, %v6902
  %v6904 = vrot.slane %v6875, %v6903
  %v6905 = vlaneseq
  %v6906 = vshrl.u32 %v6905, 7
  %v6907 = vsub.s32 %v513, %v6906
  %v6908 = vrot.slane %v6878, %v6907
  %v6909 = vlaneseq
  %v6910 = vshrl.u32 %v6909, 7
  %v6911 = vsub.s32 %v513, %v6910
  %v6912 = vrot.slane %v6881, %v6911
  %v6913 = vlaneseq
  %v6914 = vshrl.u32 %v6913, 7
  %v6915 = vsub.s32 %v513, %v6914
  %v6916 = vrot.slane %v6884, %v6915
  %v6917 = vsel %vm546, %v6892, %v6888
  %v6918 = vsel %vm548, %v6896, %v6917
  %v6919 = vsel %vm550, %v6900, %v6918
  %v6920 = vsel %vm552, %v6904, %v6919
  %v6921 = vsel %vm554, %v6908, %v6920
  %v6922 = vsel %vm556, %v6912, %v6921
  %v6923 = vsel %vm558, %v6916, %v6922
  %v6925 = vsel %vm561, %v6923, 0.0
  %6926 = vadd.xlane.f32.xlu0 %v6925
  %v6927 = vpop.xlane.xlu0 %6926
  %v6928 = vrcp.pop %v6927
  %v6930 = vlaneseq
  %v6931 = vshrl.u32 %v6930, 7
  %v6932 = vsub.s32 0, %v6931
  %v6933 = vrot.slane %v6928, %v6932
  %v6934 = vlaneseq
  %v6935 = vshrl.u32 %v6934, 7
  %v6936 = vsub.s32 1, %v6935
  %v6937 = vrot.slane %v6928, %v6936
  %v6938 = vlaneseq
  %v6939 = vshrl.u32 %v6938, 7
  %v6940 = vsub.s32 2, %v6939
  %v6941 = vrot.slane %v6928, %v6940
  %v6942 = vlaneseq
  %v6943 = vshrl.u32 %v6942, 7
  %v6944 = vsub.s32 3, %v6943
  %v6945 = vrot.slane %v6928, %v6944
  %v6946 = vlaneseq
  %v6947 = vshrl.u32 %v6946, 7
  %v6948 = vsub.s32 4, %v6947
  %v6949 = vrot.slane %v6928, %v6948
  %v6950 = vlaneseq
  %v6951 = vshrl.u32 %v6950, 7
  %v6952 = vsub.s32 5, %v6951
  %v6953 = vrot.slane %v6928, %v6952
  %v6954 = vlaneseq
  %v6955 = vshrl.u32 %v6954, 7
  %v6956 = vsub.s32 6, %v6955
  %v6957 = vrot.slane %v6928, %v6956
  %v6958 = vlaneseq
  %v6959 = vshrl.u32 %v6958, 7
  %v6960 = vsub.s32 7, %v6959
  %v6961 = vrot.slane %v6928, %v6960
  %v6970 = vmul.f32 %v6838, %v6933
  %v6971 = vmul.f32 %v6840, %v6937
  %v6972 = vmul.f32 %v6842, %v6941
  %v6973 = vmul.f32 %v6844, %v6945
  %v6974 = vmul.f32 %v6846, %v6949
  %v6975 = vmul.f32 %v6848, %v6953
  %v6976 = vmul.f32 %v6850, %v6957
  %v6977 = vmul.f32 %v6852, %v6961
  %6979 = vset.pattern.permute.xlu0 0
  %6980 = vperm.xlu0 %6979, %v6970
  %v6981 = vpop.permute.xlu0 %6980
  %6984 = vset.pattern.permute.xlu0 0
  %6985 = vperm.xlu0 %6984, %v6971
  %v6986 = vpop.permute.xlu0 %6985
  %6989 = vset.pattern.permute.xlu0 0
  %6990 = vperm.xlu0 %6989, %v6972
  %v6991 = vpop.permute.xlu0 %6990
  %6994 = vset.pattern.permute.xlu0 0
  %6995 = vperm.xlu0 %6994, %v6973
  %v6996 = vpop.permute.xlu0 %6995
  %6999 = vset.pattern.permute.xlu0 0
  %7000 = vperm.xlu0 %6999, %v6974
  %v7001 = vpop.permute.xlu0 %7000
  %7004 = vset.pattern.permute.xlu0 0
  %7005 = vperm.xlu0 %7004, %v6975
  %v7006 = vpop.permute.xlu0 %7005
  %7009 = vset.pattern.permute.xlu0 0
  %7010 = vperm.xlu0 %7009, %v6976
  %v7011 = vpop.permute.xlu0 %7010
  %7014 = vset.pattern.permute.xlu0 0
  %7015 = vperm.xlu0 %7014, %v6977
  %v7016 = vpop.permute.xlu0 %7015
  %v7018 = vmul.f32 %v6981, %v60
  %v7019 = vmul.f32 %v6986, %v61
  %v7020 = vmul.f32 %v6991, %v62
  %v7021 = vmul.f32 %v6996, %v63
  %v7022 = vmul.f32 %v7001, %v64
  %v7023 = vmul.f32 %v7006, %v65
  %v7024 = vmul.f32 %v7011, %v66
  %v7025 = vmul.f32 %v7016, %v67
  %v7026 = vrot.slane %v7018, 4
  %v7027 = vadd.f32 %v7018, %v7026
  %v7028 = vrot.slane %v7027, 2
  %v7029 = vadd.f32 %v7027, %v7028
  %v7030 = vrot.slane %v7029, 1
  %v7031 = vadd.f32 %v7029, %v7030
  %v7032 = vrot.slane %v7019, 4
  %v7033 = vadd.f32 %v7019, %v7032
  %v7034 = vrot.slane %v7033, 2
  %v7035 = vadd.f32 %v7033, %v7034
  %v7036 = vrot.slane %v7035, 1
  %v7037 = vadd.f32 %v7035, %v7036
  %v7038 = vrot.slane %v7020, 4
  %v7039 = vadd.f32 %v7020, %v7038
  %v7040 = vrot.slane %v7039, 2
  %v7041 = vadd.f32 %v7039, %v7040
  %v7042 = vrot.slane %v7041, 1
  %v7043 = vadd.f32 %v7041, %v7042
  %v7044 = vrot.slane %v7021, 4
  %v7045 = vadd.f32 %v7021, %v7044
  %v7046 = vrot.slane %v7045, 2
  %v7047 = vadd.f32 %v7045, %v7046
  %v7048 = vrot.slane %v7047, 1
  %v7049 = vadd.f32 %v7047, %v7048
  %v7050 = vrot.slane %v7022, 4
  %v7051 = vadd.f32 %v7022, %v7050
  %v7052 = vrot.slane %v7051, 2
  %v7053 = vadd.f32 %v7051, %v7052
  %v7054 = vrot.slane %v7053, 1
  %v7055 = vadd.f32 %v7053, %v7054
  %v7056 = vrot.slane %v7023, 4
  %v7057 = vadd.f32 %v7023, %v7056
  %v7058 = vrot.slane %v7057, 2
  %v7059 = vadd.f32 %v7057, %v7058
  %v7060 = vrot.slane %v7059, 1
  %v7061 = vadd.f32 %v7059, %v7060
  %v7062 = vrot.slane %v7024, 4
  %v7063 = vadd.f32 %v7024, %v7062
  %v7064 = vrot.slane %v7063, 2
  %v7065 = vadd.f32 %v7063, %v7064
  %v7066 = vrot.slane %v7065, 1
  %v7067 = vadd.f32 %v7065, %v7066
  %v7068 = vrot.slane %v7025, 4
  %v7069 = vadd.f32 %v7025, %v7068
  %v7070 = vrot.slane %v7069, 2
  %v7071 = vadd.f32 %v7069, %v7070
  %v7072 = vrot.slane %v7071, 1
  %v7073 = vadd.f32 %v7071, %v7072
  %v7082 = vsel %vm546, %v7037, %v7031
  %v7083 = vsel %vm548, %v7043, %v7082
  %v7084 = vsel %vm550, %v7049, %v7083
  %v7085 = vsel %vm552, %v7055, %v7084
  %v7086 = vsel %vm554, %v7061, %v7085
  %v7087 = vsel %vm556, %v7067, %v7086
  %v7088 = vsel %vm558, %v7073, %v7087
  %7090 = vst [vmem:[#allocation3] sm:$0xff] %v7088
  %v7091 = vld [vmem:[#allocation3] sm:$0xff]
  %v7092 = vld [vmem:[#allocation3 + $0x8] sm:$0xff]
  %7093 = vmatprep.subr.mxu0 %v157
  %7094 = vmatpush1.msra.mxu0 %v156
  %7095 = vmatprep.subr.mxu0 %v154
  %7096 = vmatpush1.msra.mxu0 %v153
  %7097 = vmatprep.subr.mxu0 %v151
  %7098 = vmatpush1.msra.mxu0 %v150
  %7099 = vmatprep.subr.mxu0 %v148
  %7100 = vmatpush1.msra.mxu0 %v147
  %7101 = vmatprep.subr.mxu0 %v145
  %7102 = vmatpush1.msra.mxu0 %v144
  %7103 = vmatprep.subr.mxu0 %v142
  %7104 = vmatpush1.msra.mxu0 %v141
  %7105 = vmatprep.subr.mxu0 %v139
  %7106 = vmatpush1.msra.mxu0 %v138
  %7107 = vmatprep.subr.mxu0 %v136
  %7108 = vmatpush1.msra.mxu0 %v135
  %7109 = vmatprep.subr.mxu0 %v133
  %7110 = vmatpush1.msra.mxu0 %v132
  %7111 = vmatprep.subr.mxu0 %v130
  %7112 = vmatpush1.msra.mxu0 %v129
  %7113 = vmatprep.subr.mxu0 %v127
  %7114 = vmatpush1.msra.mxu0 %v126
  %7115 = vmatprep.subr.mxu0 %v124
  %7116 = vmatpush1.msra.mxu0 %v123
  %7117 = vmatprep.subr.mxu0 %v121
  %7118 = vmatpush1.msra.mxu0 %v120
  %7119 = vmatprep.subr.mxu0 %v118
  %7120 = vmatpush1.msra.mxu0 %v117
  %7121 = vmatprep.subr.mxu0 %v115
  %7122 = vmatpush1.msra.mxu0 %v114
  %7123 = vmatprep.subr.mxu0 %v112
  %7124 = vmatpush1.msra.mxu0 %v111
  %7125 = vmatprep.subr.mxu0 %v205
  %7126 = vmatpush2.msra.mxu0 %v204
  %7127 = vmatprep.subr.mxu0 %v202
  %7128 = vmatpush2.msra.mxu0 %v201
  %7129 = vmatprep.subr.mxu0 %v199
  %7130 = vmatpush2.msra.mxu0 %v198
  %7131 = vmatprep.subr.mxu0 %v196
  %7132 = vmatpush2.msra.mxu0 %v195
  %7133 = vmatprep.subr.mxu0 %v193
  %7134 = vmatpush2.msra.mxu0 %v192
  %7135 = vmatprep.subr.mxu0 %v190
  %7136 = vmatpush2.msra.mxu0 %v189
  %7137 = vmatprep.subr.mxu0 %v187
  %7138 = vmatpush2.msra.mxu0 %v186
  %7139 = vmatprep.subr.mxu0 %v184
  %7140 = vmatpush2.msra.mxu0 %v183
  %7141 = vmatprep.subr.mxu0 %v181
  %7142 = vmatpush2.msra.mxu0 %v180
  %7143 = vmatprep.subr.mxu0 %v178
  %7144 = vmatpush2.msra.mxu0 %v177
  %7145 = vmatprep.subr.mxu0 %v175
  %7146 = vmatpush2.msra.mxu0 %v174
  %7147 = vmatprep.subr.mxu0 %v172
  %7148 = vmatpush2.msra.mxu0 %v171
  %7149 = vmatprep.subr.mxu0 %v169
  %7150 = vmatpush2.msra.mxu0 %v168
  %7151 = vmatprep.subr.mxu0 %v166
  %7152 = vmatpush2.msra.mxu0 %v165
  %7153 = vmatprep.subr.mxu0 %v163
  %7154 = vmatpush2.msra.mxu0 %v162
  %7155 = vmatprep.subr.mxu0 %v160
  %7156 = vmatpush2.msra.mxu0 %v159
  %7157 = vmatprep.mubr.f32.mxu0 %v7092
  %7158 = vmatmul.mubr.f32.gmra.mxu0 %v7091
  %v7159 = vpop.f32.mrf.mxu0
  %v7160 = vadd.f32 %v874, %v7159
  %v7161 = vpop.f32.mrf.mxu0
  %v7162 = vadd.f32 %v878, %v7161
  %7163 = vdwg.mxu0
  %7164 = vmatprep.subr.mxu0 0.0
  %7165 = vmatpush1.msra.mxu0 %v158
  %7166 = vmatprep.subr.mxu0 0.0
  %7167 = vmatpush1.msra.mxu0 %v155
  %7168 = vmatprep.subr.mxu0 0.0
  %7169 = vmatpush1.msra.mxu0 %v152
  %7170 = vmatprep.subr.mxu0 0.0
  %7171 = vmatpush1.msra.mxu0 %v149
  %7172 = vmatprep.subr.mxu0 0.0
  %7173 = vmatpush1.msra.mxu0 %v146
  %7174 = vmatprep.subr.mxu0 0.0
  %7175 = vmatpush1.msra.mxu0 %v143
  %7176 = vmatprep.subr.mxu0 0.0
  %7177 = vmatpush1.msra.mxu0 %v140
  %7178 = vmatprep.subr.mxu0 0.0
  %7179 = vmatpush1.msra.mxu0 %v137
  %7180 = vmatprep.subr.mxu0 0.0
  %7181 = vmatpush1.msra.mxu0 %v134
  %7182 = vmatprep.subr.mxu0 0.0
  %7183 = vmatpush1.msra.mxu0 %v131
  %7184 = vmatprep.subr.mxu0 0.0
  %7185 = vmatpush1.msra.mxu0 %v128
  %7186 = vmatprep.subr.mxu0 0.0
  %7187 = vmatpush1.msra.mxu0 %v125
  %7188 = vmatprep.subr.mxu0 0.0
  %7189 = vmatpush1.msra.mxu0 %v122
  %7190 = vmatprep.subr.mxu0 0.0
  %7191 = vmatpush1.msra.mxu0 %v119
  %7192 = vmatprep.subr.mxu0 0.0
  %7193 = vmatpush1.msra.mxu0 %v116
  %7194 = vmatprep.subr.mxu0 0.0
  %7195 = vmatpush1.msra.mxu0 %v113
  %7196 = vmatprep.subr.mxu0 0.0
  %7197 = vmatpush2.msra.mxu0 %v206
  %7198 = vmatprep.subr.mxu0 0.0
  %7199 = vmatpush2.msra.mxu0 %v203
  %7200 = vmatprep.subr.mxu0 0.0
  %7201 = vmatpush2.msra.mxu0 %v200
  %7202 = vmatprep.subr.mxu0 0.0
  %7203 = vmatpush2.msra.mxu0 %v197
  %7204 = vmatprep.subr.mxu0 0.0
  %7205 = vmatpush2.msra.mxu0 %v194
  %7206 = vmatprep.subr.mxu0 0.0
  %7207 = vmatpush2.msra.mxu0 %v191
  %7208 = vmatprep.subr.mxu0 0.0
  %7209 = vmatpush2.msra.mxu0 %v188
  %7210 = vmatprep.subr.mxu0 0.0
  %7211 = vmatpush2.msra.mxu0 %v185
  %7212 = vmatprep.subr.mxu0 0.0
  %7213 = vmatpush2.msra.mxu0 %v182
  %7214 = vmatprep.subr.mxu0 0.0
  %7215 = vmatpush2.msra.mxu0 %v179
  %7216 = vmatprep.subr.mxu0 0.0
  %7217 = vmatpush2.msra.mxu0 %v176
  %7218 = vmatprep.subr.mxu0 0.0
  %7219 = vmatpush2.msra.mxu0 %v173
  %7220 = vmatprep.subr.mxu0 0.0
  %7221 = vmatpush2.msra.mxu0 %v170
  %7222 = vmatprep.subr.mxu0 0.0
  %7223 = vmatpush2.msra.mxu0 %v167
  %7224 = vmatprep.subr.mxu0 0.0
  %7225 = vmatpush2.msra.mxu0 %v164
  %7226 = vmatprep.subr.mxu0 0.0
  %7227 = vmatpush2.msra.mxu0 %v161
  %7228 = vmatprep.mubr.f32.mxu0 %v7092
  %7229 = vmatmul.mubr.f32.gmra.mxu0 %v7091
  %v7230 = vpop.f32.mrf.mxu0
  %v7231 = vadd.f32 %v882, %v7230
  %v7232 = vpop.f32.mrf.mxu0
  %7233 = vdwg.mxu0
  %7234 = vmatprep.subr.mxu0 %v253
  %7235 = vmatpush1.msra.mxu0 %v252
  %7236 = vmatprep.subr.mxu0 %v250
  %7237 = vmatpush1.msra.mxu0 %v249
  %7238 = vmatprep.subr.mxu0 %v247
  %7239 = vmatpush1.msra.mxu0 %v246
  %7240 = vmatprep.subr.mxu0 %v244
  %7241 = vmatpush1.msra.mxu0 %v243
  %7242 = vmatprep.subr.mxu0 %v241
  %7243 = vmatpush1.msra.mxu0 %v240
  %7244 = vmatprep.subr.mxu0 %v238
  %7245 = vmatpush1.msra.mxu0 %v237
  %7246 = vmatprep.subr.mxu0 %v235
  %7247 = vmatpush1.msra.mxu0 %v234
  %7248 = vmatprep.subr.mxu0 %v232
  %7249 = vmatpush1.msra.mxu0 %v231
  %7250 = vmatprep.subr.mxu0 %v229
  %7251 = vmatpush1.msra.mxu0 %v228
  %7252 = vmatprep.subr.mxu0 %v226
  %7253 = vmatpush1.msra.mxu0 %v225
  %7254 = vmatprep.subr.mxu0 %v223
  %7255 = vmatpush1.msra.mxu0 %v222
  %7256 = vmatprep.subr.mxu0 %v220
  %7257 = vmatpush1.msra.mxu0 %v219
  %7258 = vmatprep.subr.mxu0 %v217
  %7259 = vmatpush1.msra.mxu0 %v216
  %7260 = vmatprep.subr.mxu0 %v214
  %7261 = vmatpush1.msra.mxu0 %v213
  %7262 = vmatprep.subr.mxu0 %v211
  %7263 = vmatpush1.msra.mxu0 %v210
  %7264 = vmatprep.subr.mxu0 %v208
  %7265 = vmatpush1.msra.mxu0 %v207
  %7266 = vmatprep.subr.mxu0 0.0
  %7267 = vmatpush2.msra.mxu0 0.0
  %7268 = vmatprep.subr.mxu0 0.0
  %7269 = vmatpush2.msra.mxu0 0.0
  %7270 = vmatprep.subr.mxu0 0.0
  %7271 = vmatpush2.msra.mxu0 0.0
  %7272 = vmatprep.subr.mxu0 0.0
  %7273 = vmatpush2.msra.mxu0 0.0
  %7274 = vmatprep.subr.mxu0 0.0
  %7275 = vmatpush2.msra.mxu0 0.0
  %7276 = vmatprep.subr.mxu0 0.0
  %7277 = vmatpush2.msra.mxu0 0.0
  %7278 = vmatprep.subr.mxu0 0.0
  %7279 = vmatpush2.msra.mxu0 0.0
  %7280 = vmatprep.subr.mxu0 0.0
  %7281 = vmatpush2.msra.mxu0 0.0
  %7282 = vmatprep.subr.mxu0 0.0
  %7283 = vmatpush2.msra.mxu0 0.0
  %7284 = vmatprep.subr.mxu0 0.0
  %7285 = vmatpush2.msra.mxu0 0.0
  %7286 = vmatprep.subr.mxu0 0.0
  %7287 = vmatpush2.msra.mxu0 0.0
  %7288 = vmatprep.subr.mxu0 0.0
  %7289 = vmatpush2.msra.mxu0 0.0
  %7290 = vmatprep.subr.mxu0 0.0
  %7291 = vmatpush2.msra.mxu0 0.0
  %7292 = vmatprep.subr.mxu0 0.0
  %7293 = vmatpush2.msra.mxu0 0.0
  %7294 = vmatprep.subr.mxu0 0.0
  %7295 = vmatpush2.msra.mxu0 0.0
  %7296 = vmatprep.subr.mxu0 0.0
  %7297 = vmatpush2.msra.mxu0 0.0
  %7298 = vmatprep.mubr.f32.mxu0 0.0
  %7299 = vmatmul.mubr.f32.gmra.mxu0 %v6364
  %v7300 = vpop.f32.mrf.mxu0
  %v7301 = vadd.f32 %v1031, %v7300
  %v7302 = vpop.f32.mrf.mxu0
  %v7303 = vadd.f32 %v1035, %v7302
  %7304 = vdwg.mxu0
  %7305 = vmatprep.subr.mxu0 0.0
  %7306 = vmatpush1.msra.mxu0 %v254
  %7307 = vmatprep.subr.mxu0 0.0
  %7308 = vmatpush1.msra.mxu0 %v251
  %7309 = vmatprep.subr.mxu0 0.0
  %7310 = vmatpush1.msra.mxu0 %v248
  %7311 = vmatprep.subr.mxu0 0.0
  %7312 = vmatpush1.msra.mxu0 %v245
  %7313 = vmatprep.subr.mxu0 0.0
  %7314 = vmatpush1.msra.mxu0 %v242
  %7315 = vmatprep.subr.mxu0 0.0
  %7316 = vmatpush1.msra.mxu0 %v239
  %7317 = vmatprep.subr.mxu0 0.0
  %7318 = vmatpush1.msra.mxu0 %v236
  %7319 = vmatprep.subr.mxu0 0.0
  %7320 = vmatpush1.msra.mxu0 %v233
  %7321 = vmatprep.subr.mxu0 0.0
  %7322 = vmatpush1.msra.mxu0 %v230
  %7323 = vmatprep.subr.mxu0 0.0
  %7324 = vmatpush1.msra.mxu0 %v227
  %7325 = vmatprep.subr.mxu0 0.0
  %7326 = vmatpush1.msra.mxu0 %v224
  %7327 = vmatprep.subr.mxu0 0.0
  %7328 = vmatpush1.msra.mxu0 %v221
  %7329 = vmatprep.subr.mxu0 0.0
  %7330 = vmatpush1.msra.mxu0 %v218
  %7331 = vmatprep.subr.mxu0 0.0
  %7332 = vmatpush1.msra.mxu0 %v215
  %7333 = vmatprep.subr.mxu0 0.0
  %7334 = vmatpush1.msra.mxu0 %v212
  %7335 = vmatprep.subr.mxu0 0.0
  %7336 = vmatpush1.msra.mxu0 %v209
  %7337 = vmatprep.subr.mxu0 0.0
  %7338 = vmatpush2.msra.mxu0 0.0
  %7339 = vmatprep.subr.mxu0 0.0
  %7340 = vmatpush2.msra.mxu0 0.0
  %7341 = vmatprep.subr.mxu0 0.0
  %7342 = vmatpush2.msra.mxu0 0.0
  %7343 = vmatprep.subr.mxu0 0.0
  %7344 = vmatpush2.msra.mxu0 0.0
  %7345 = vmatprep.subr.mxu0 0.0
  %7346 = vmatpush2.msra.mxu0 0.0
  %7347 = vmatprep.subr.mxu0 0.0
  %7348 = vmatpush2.msra.mxu0 0.0
  %7349 = vmatprep.subr.mxu0 0.0
  %7350 = vmatpush2.msra.mxu0 0.0
  %7351 = vmatprep.subr.mxu0 0.0
  %7352 = vmatpush2.msra.mxu0 0.0
  %7353 = vmatprep.subr.mxu0 0.0
  %7354 = vmatpush2.msra.mxu0 0.0
  %7355 = vmatprep.subr.mxu0 0.0
  %7356 = vmatpush2.msra.mxu0 0.0
  %7357 = vmatprep.subr.mxu0 0.0
  %7358 = vmatpush2.msra.mxu0 0.0
  %7359 = vmatprep.subr.mxu0 0.0
  %7360 = vmatpush2.msra.mxu0 0.0
  %7361 = vmatprep.subr.mxu0 0.0
  %7362 = vmatpush2.msra.mxu0 0.0
  %7363 = vmatprep.subr.mxu0 0.0
  %7364 = vmatpush2.msra.mxu0 0.0
  %7365 = vmatprep.subr.mxu0 0.0
  %7366 = vmatpush2.msra.mxu0 0.0
  %7367 = vmatprep.subr.mxu0 0.0
  %7368 = vmatpush2.msra.mxu0 0.0
  %7369 = vmatprep.mubr.f32.mxu0 0.0
  %7370 = vmatmul.mubr.f32.gmra.mxu0 %v6364
  %v7371 = vpop.f32.mrf.mxu0
  %v7372 = vadd.f32 %v1039, %v7371
  %v7373 = vpop.f32.mrf.mxu0
  %7374 = vdwg.mxu0
  %v7375 = vadd.f32 %v7160, %v7301
  %v7376 = vxor.u32 %v7375, 2147483648
  %v7377 = vmul.f32 %v7376, 1.442695
  %v7378 = vpow.pop %v7377
  %v7379 = vadd.f32 %v7378, 1.0
  %v7380 = vrcp.pop %v7379
  %v7381 = vmul.f32 1.0, %v7380
  %v7382 = vadd.f32 %v7162, %v7303
  %v7383 = vxor.u32 %v7382, 2147483648
  %v7384 = vmul.f32 %v7383, 1.442695
  %v7385 = vpow.pop %v7384
  %v7386 = vadd.f32 %v7385, 1.0
  %v7387 = vrcp.pop %v7386
  %v7388 = vmul.f32 1.0, %v7387
  %v7389 = vmul.f32 %v7381, %v7372
  %v7390 = vadd.f32 %v7231, %v7389
  %v7391 = vtanh.pop %v7390
  %v7392 = vsub.f32 1.0, %v7388
  %v7393 = vmul.f32 %v7392, %v7391
  %v7394 = vmul.f32 %v7388, %v6364
  %v7395 = vadd.f32 %v7393, %v7394
  %7396 = vmatprep.subr.mxu0 0.0
  %7397 = vmatpush1.msra.mxu0 %v272
  %7398 = vmatprep.subr.mxu0 0.0
  %7399 = vmatpush1.msra.mxu0 %v271
  %7400 = vmatprep.subr.mxu0 0.0
  %7401 = vmatpush1.msra.mxu0 %v270
  %7402 = vmatprep.subr.mxu0 0.0
  %7403 = vmatpush1.msra.mxu0 %v269
  %7404 = vmatprep.subr.mxu0 0.0
  %7405 = vmatpush1.msra.mxu0 %v268
  %7406 = vmatprep.subr.mxu0 0.0
  %7407 = vmatpush1.msra.mxu0 %v267
  %7408 = vmatprep.subr.mxu0 0.0
  %7409 = vmatpush1.msra.mxu0 %v266
  %7410 = vmatprep.subr.mxu0 0.0
  %7411 = vmatpush1.msra.mxu0 %v265
  %7412 = vmatprep.subr.mxu0 0.0
  %7413 = vmatpush1.msra.mxu0 %v264
  %7414 = vmatprep.subr.mxu0 0.0
  %7415 = vmatpush1.msra.mxu0 %v263
  %7416 = vmatprep.subr.mxu0 0.0
  %7417 = vmatpush1.msra.mxu0 %v262
  %7418 = vmatprep.subr.mxu0 0.0
  %7419 = vmatpush1.msra.mxu0 %v261
  %7420 = vmatprep.subr.mxu0 0.0
  %7421 = vmatpush1.msra.mxu0 %v260
  %7422 = vmatprep.subr.mxu0 0.0
  %7423 = vmatpush1.msra.mxu0 %v259
  %7424 = vmatprep.subr.mxu0 0.0
  %7425 = vmatpush1.msra.mxu0 %v258
  %7426 = vmatprep.subr.mxu0 0.0
  %7427 = vmatpush1.msra.mxu0 %v257
  %7428 = vmatprep.subr.mxu0 0.0
  %7429 = vmatpush2.msra.mxu0 0.0
  %7430 = vmatprep.subr.mxu0 0.0
  %7431 = vmatpush2.msra.mxu0 0.0
  %7432 = vmatprep.subr.mxu0 0.0
  %7433 = vmatpush2.msra.mxu0 0.0
  %7434 = vmatprep.subr.mxu0 0.0
  %7435 = vmatpush2.msra.mxu0 0.0
  %7436 = vmatprep.subr.mxu0 0.0
  %7437 = vmatpush2.msra.mxu0 0.0
  %7438 = vmatprep.subr.mxu0 0.0
  %7439 = vmatpush2.msra.mxu0 0.0
  %7440 = vmatprep.subr.mxu0 0.0
  %7441 = vmatpush2.msra.mxu0 0.0
  %7442 = vmatprep.subr.mxu0 0.0
  %7443 = vmatpush2.msra.mxu0 0.0
  %7444 = vmatprep.subr.mxu0 0.0
  %7445 = vmatpush2.msra.mxu0 0.0
  %7446 = vmatprep.subr.mxu0 0.0
  %7447 = vmatpush2.msra.mxu0 0.0
  %7448 = vmatprep.subr.mxu0 0.0
  %7449 = vmatpush2.msra.mxu0 0.0
  %7450 = vmatprep.subr.mxu0 0.0
  %7451 = vmatpush2.msra.mxu0 0.0
  %7452 = vmatprep.subr.mxu0 0.0
  %7453 = vmatpush2.msra.mxu0 0.0
  %7454 = vmatprep.subr.mxu0 0.0
  %7455 = vmatpush2.msra.mxu0 0.0
  %7456 = vmatprep.subr.mxu0 0.0
  %7457 = vmatpush2.msra.mxu0 0.0
  %7458 = vmatprep.subr.mxu0 0.0
  %7459 = vmatpush2.msra.mxu0 0.0
  %7460 = vmatprep.mubr.f32.mxu0 0.0
  %7461 = vmatmul.mubr.f32.gmra.mxu0 %v7395
  %v7462 = vpop.f32.mrf.mxu0
  %v7463 = vadd.f32 %v1209, %v7462
  %v7464 = vpop.f32.mrf.mxu0
  %7465 = vdwg.mxu0
  %s7466 = scalar_lea.vmem %s15, 48
  %7467 = vst [vmem:[%s7466] sm:$0xff] %v7463
  %7468 = vmax.xlane.f32.xlu0 %v7463
  %v7469 = vpop.xlane.xlu0 %7468
  %vm7470 = vcmp.eq.f32.partialorder %v7463, %v7469
  %v7471 = vsel %vm7470, %v513, 128
  %v7472 = vand.u32 %v7471, 65535
  %v7473 = vshra.s32 %v7471, 16
  %v7474 = vcvt.s32.f32 %v7472
  %v7475 = vcvt.s32.f32 %v7473
  %7476 = vmin.xlane.f32.xlu0 %v7475
  %v7477 = vpop.xlane.xlu0 %7476
  %vm7478 = vcmp.eq.f32.partialorder %v7475, %v7477
  %v7479 = vsel %vm7478, %v7474, inf
  %7480 = vmin.xlane.f32.xlu0 %v7479
  %v7481 = vpop.xlane.xlu0 %7480
  %v7482 = vcvt.f32.s32 %v7481
  %v7483 = vcvt.f32.s32 %v7477
  %v7484 = vshll.u32 %v7483, 16
  %v7485 = vadd.s32 %v7484, %v7482
  %vm7486 = vcmp.eq.s32.totalorder %v513, %v7485
  %v7487 = vsel %vm7486, 1, 0
  %v7488 = vcvt.s32.f32 %v7487
  %7489 = vmatprep.subr.mxu0 0.0
  %7490 = vmatpush1.msra.mxu0 %v110
  %7491 = vmatprep.subr.mxu0 0.0
  %7492 = vmatpush1.msra.mxu0 %v109
  %7493 = vmatprep.subr.mxu0 0.0
  %7494 = vmatpush1.msra.mxu0 %v108
  %7495 = vmatprep.subr.mxu0 0.0
  %7496 = vmatpush1.msra.mxu0 %v107
  %7497 = vmatprep.subr.mxu0 0.0
  %7498 = vmatpush1.msra.mxu0 %v106
  %7499 = vmatprep.subr.mxu0 0.0
  %7500 = vmatpush1.msra.mxu0 %v105
  %7501 = vmatprep.subr.mxu0 0.0
  %7502 = vmatpush1.msra.mxu0 %v104
  %7503 = vmatprep.subr.mxu0 0.0
  %7504 = vmatpush1.msra.mxu0 %v103
  %7505 = vmatprep.subr.mxu0 0.0
  %7506 = vmatpush1.msra.mxu0 %v102
  %7507 = vmatprep.subr.mxu0 0.0
  %7508 = vmatpush1.msra.mxu0 %v101
  %7509 = vmatprep.subr.mxu0 0.0
  %7510 = vmatpush1.msra.mxu0 %v100
  %7511 = vmatprep.subr.mxu0 0.0
  %7512 = vmatpush1.msra.mxu0 %v99
  %7513 = vmatprep.subr.mxu0 0.0
  %7514 = vmatpush1.msra.mxu0 %v98
  %7515 = vmatprep.subr.mxu0 0.0
  %7516 = vmatpush1.msra.mxu0 %v97
  %7517 = vmatprep.subr.mxu0 0.0
  %7518 = vmatpush1.msra.mxu0 %v96
  %7519 = vmatprep.subr.mxu0 0.0
  %7520 = vmatpush1.msra.mxu0 %v95
  %7521 = vmatprep.subr.mxu0 0.0
  %7522 = vmatpush2.msra.mxu0 0.0
  %7523 = vmatprep.subr.mxu0 0.0
  %7524 = vmatpush2.msra.mxu0 0.0
  %7525 = vmatprep.subr.mxu0 0.0
  %7526 = vmatpush2.msra.mxu0 0.0
  %7527 = vmatprep.subr.mxu0 0.0
  %7528 = vmatpush2.msra.mxu0 0.0
  %7529 = vmatprep.subr.mxu0 0.0
  %7530 = vmatpush2.msra.mxu0 0.0
  %7531 = vmatprep.subr.mxu0 0.0
  %7532 = vmatpush2.msra.mxu0 0.0
  %7533 = vmatprep.subr.mxu0 0.0
  %7534 = vmatpush2.msra.mxu0 0.0
  %7535 = vmatprep.subr.mxu0 0.0
  %7536 = vmatpush2.msra.mxu0 0.0
  %7537 = vmatprep.subr.mxu0 0.0
  %7538 = vmatpush2.msra.mxu0 0.0
  %7539 = vmatprep.subr.mxu0 0.0
  %7540 = vmatpush2.msra.mxu0 0.0
  %7541 = vmatprep.subr.mxu0 0.0
  %7542 = vmatpush2.msra.mxu0 0.0
  %7543 = vmatprep.subr.mxu0 0.0
  %7544 = vmatpush2.msra.mxu0 0.0
  %7545 = vmatprep.subr.mxu0 0.0
  %7546 = vmatpush2.msra.mxu0 0.0
  %7547 = vmatprep.subr.mxu0 0.0
  %7548 = vmatpush2.msra.mxu0 0.0
  %7549 = vmatprep.subr.mxu0 0.0
  %7550 = vmatpush2.msra.mxu0 0.0
  %7551 = vmatprep.subr.mxu0 0.0
  %7552 = vmatpush2.msra.mxu0 0.0
  %7553 = vmatprep.mubr.f32.mxu0 0.0
  %7554 = vmatmul.mubr.f32.gmra.mxu0 %v7488
  %v7555 = vpop.f32.mrf.mxu0
  %v7556 = vadd.f32 0.0, %v7555
  %v7557 = vpop.f32.mrf.mxu0
  %7558 = vdwg.mxu0
  %7559 = vst [vmem:[#allocation3 + $0x8] sm:$0xff] %v7556
  %7560 = vst [vmem:[#allocation2] sm:$0xff] %v7395
  // Predicated region
  $region66: #{seq2seq_forward.7} parent=0 // pred_check
    _
  $region67: #{seq2seq_forward.7} parent=0 // pred_check_branch
    %7562 = sbr.rel (0) target = $region69
  $region68: #{seq2seq_forward.7} parent=0 // pred_region
    _
  $region69: #{seq2seq_forward.7} parent=0 // pred_fallthru
    _
  // Predicated region
  $region70: #{seq2seq_forward.7} parent=0 // pred_check
    _
  $region71: #{seq2seq_forward.7} parent=0 // pred_check_branch
    %7564 = sbr.rel (0) target = $region73
  $region72: #{seq2seq_forward.7} parent=0 // pred_region
    _
  $region73: #{seq2seq_forward.7} parent=0 // pred_fallthru
    _

</llo_original>
